<compile_context>
chip_gen: v6e
topology: v6e:2x2x1
jax: 0.10.0
libtpu: 0.0.40
codegen_flags: <defaults>
</compile_context>

<pallas_src>
import functools
import math

import jax
import jax.numpy as jnp
from jax.experimental import pallas as pl
from jax.experimental.pallas import tpu as pltpu


# ----------------------------- fused Pallas kernel -----------------------------

def _basic_block_kernel(xph_ref, w1_ref, b1_ref, w2_ref, b2_ref, *rest,
                        stride, has_down):
    """Whole BasicBlock forward on VMEM-resident data.

    xph_ref : (s*s, N, Hp, Wp, Cin)  stride-phase views of the zero-padded input
    w1_ref  : (3, 3, Cin, P)         conv1 weight        b1_ref: (1, P)
    w2_ref  : (3, 3, P, P)           conv2 weight        b2_ref: (1, P)
    [wd_ref : (Cin, P), bd_ref: (1, P)]  optional 1x1 strided downsample conv
    o_ref   : (N, Ho, Wo, P)         output
    h1p_ref : (N, Ho+2, Wo+2, P)     VMEM scratch: relu(conv1), zero-padded
    """
    if has_down:
        wd_ref, bd_ref, o_ref, h1p_ref = rest
    else:
        o_ref, h1p_ref = rest

    s = stride
    n, ho, wo, planes = o_ref.shape
    cin = xph_ref.shape[-1]
    m = n * ho * wo

    # ---- conv1 (3x3, stride s, pad 1) + bias + ReLU: fused-im2col tap loop ----
    acc = jnp.zeros((m, planes), jnp.float32)
    for i in range(3):
        for j in range(3):
            ph = (i % s) * s + (j % s)            # which stride phase
            di, dj = i // s, j // s               # unit-stride offset in phase
            xt = xph_ref[ph, :, di:di + ho, dj:dj + wo, :]
            acc = acc + jnp.dot(xt.reshape(m, cin), w1_ref[i, j],
                                preferred_element_type=jnp.float32)
    h1 = jnp.maximum(acc + b1_ref[...], 0.0)

    # Stage relu(conv1) into a zero-padded VMEM scratch so conv2's 9 taps are
    # plain unit-stride windows; the intermediate never leaves VMEM.
    h1p_ref[...] = jnp.zeros_like(h1p_ref)
    h1p_ref[:, 1:1 + ho, 1:1 + wo, :] = h1.reshape(n, ho, wo, planes)

    # ---- conv2 (3x3, stride 1, pad 1) + bias ---------------------------------
    acc2 = jnp.zeros((m, planes), jnp.float32)
    for i in range(3):
        for j in range(3):
            ht = h1p_ref[:, i:i + ho, j:j + wo, :]
            acc2 = acc2 + jnp.dot(ht.reshape(m, planes), w2_ref[i, j],
                                  preferred_element_type=jnp.float32)
    out = acc2 + b2_ref[...]

    # ---- residual (identity, or fused 1x1 strided downsample conv) ----------
    if has_down:
        pr = 1 % s                                 # phase holding x[:, ::s, ::s]
        dr = (1 - pr) // s
        xr = xph_ref[pr * s + pr, :, dr:dr + ho, dr:dr + wo, :]
        res = jnp.dot(xr.reshape(m, cin), wd_ref[...],
                      preferred_element_type=jnp.float32) + bd_ref[...]
    else:
        res = xph_ref[0, :, 1:1 + ho, 1:1 + wo, :].reshape(m, planes)

    o_ref[...] = jnp.maximum(out + res, 0.0).reshape(n, ho, wo, planes)


# --------------------------------- wrapper -------------------------------------

def basic_block_forward(x_nchw, params, *, stride=1):
    """BasicBlock forward. Accepts / returns PyTorch NCHW; NHWC inside."""
    x = jnp.transpose(x_nchw, (0, 2, 3, 1)).astype(jnp.float32)   # NCHW -> NHWC
    n, h, w, cin = x.shape
    planes = params["w1"].shape[-1]
    has_down = "wd" in params
    s = int(stride)
    if not has_down:
        assert s == 1 and cin == planes, "identity residual needs matching shapes"

    ho = (h - 1) // s + 1            # 3x3 conv, pad=1, stride=s
    wo = (w - 1) // s + 1

    # Glue: pad=1 once, then stride-phase (sub-pixel) views of the padded input
    # so every conv tap inside the kernel is a unit-stride static window.
    xp = jnp.pad(x, ((0, 0), (1, 1), (1, 1), (0, 0)))
    th, tw = ho + 2 // s, wo + 2 // s
    phases = []
    for a in range(s):
        for b in range(s):
            phv = xp[:, a::s, b::s, :]
            phv = jnp.pad(phv, ((0, 0),
                                (0, max(0, th - phv.shape[1])),
                                (0, max(0, tw - phv.shape[2])),
                                (0, 0)))[:, :th, :tw, :]
            phases.append(phv)
    xph = jnp.stack(phases, axis=0)               # (s*s, N, th, tw, Cin)

    args = [xph,
            params["w1"], params["b1"].reshape(1, planes),
            params["w2"], params["b2"].reshape(1, planes)]
    if has_down:
        args += [params["wd"].reshape(cin, planes),
                 params["bd"].reshape(1, planes)]

    # Single fused invocation: everything stays VMEM-resident.
    vmem_bytes = (sum(int(a.size) * a.dtype.itemsize for a in args)
                  + n * ho * wo * planes * 4
                  + n * (ho + 2) * (wo + 2) * planes * 4)
    assert vmem_bytes < 48 * 1024 * 1024, "add a row-tile grid for inputs this large"

    out = pl.pallas_call(
        functools.partial(_basic_block_kernel, stride=s, has_down=has_down),
        out_shape=jax.ShapeDtypeStruct((n, ho, wo, planes), jnp.float32),
        scratch_shapes=[pltpu.VMEM((n, ho + 2, wo + 2, planes), jnp.float32)],
    )(*args)

    return jnp.transpose(out, (0, 3, 1, 2))       # NHWC -> NCHW


# ----------------------------- parameter building -------------------------------

def init_basic_block(key, in_planes, planes, stride=1):
    """Random HWIO parameters (real PyTorch weights would be permuted OIHW->HWIO)."""
    ks = jax.random.split(key, 6)

    def conv_w(k, kh, kw, ci, co):
        return (jax.random.normal(k, (kh, kw, ci, co), jnp.float32)
                / math.sqrt(kh * kw * ci))

    p = {
        "w1": conv_w(ks[0], 3, 3, in_planes, planes),
        "b1": 0.05 * jax.random.normal(ks[1], (planes,), jnp.float32),
        "w2": conv_w(ks[2], 3, 3, planes, planes),
        "b2": 0.05 * jax.random.normal(ks[3], (planes,), jnp.float32),
    }
    if stride != 1 or in_planes != planes:
        p["wd"] = conv_w(ks[4], 1, 1, in_planes, planes)
        p["bd"] = 0.05 * jax.random.normal(ks[5], (planes,), jnp.float32)
    return p


# ------------------------------ pure-JAX reference ------------------------------

def _ref_basic_block(x_nhwc, p, stride):
    """Reference BasicBlock.forward via XLA convs (HIGHEST precision)."""
    prec = jax.lax.Precision.HIGHEST

    def conv(x, wgt, b, s, pad):
        y = jax.lax.conv_general_dilated(
            x, wgt, window_strides=(s, s), padding=((pad, pad), (pad, pad)),
            dimension_numbers=("NHWC", "HWIO", "NHWC"), precision=prec)
        return y + b

    out = jnp.maximum(conv(x_nhwc, p["w1"], p["b1"], stride, 1), 0.0)
    out = conv(out, p["w2"], p["b2"], 1, 1)
    res = conv(x_nhwc, p["wd"], p["bd"], stride, 0) if "wd" in p else x_nhwc
    return jnp.maximum(out + res, 0.0)


def _assert_close(y, ref):
    err = float(jnp.max(jnp.abs(y - ref)))
    tol = 1e-2 + 1e-2 * float(jnp.max(jnp.abs(ref)))
    assert err <= tol, f"max|err|={err} tol={tol}"


# ------------------------------------ main ---------------------------------------

if __name__ == "__main__":
    key = jax.random.PRNGKey(0)
    k1, k2, k3, k4 = jax.random.split(key, 4)

    n, h, w = 2, 16, 16

    # Config A: default BasicBlock (stride=1, identity residual).
    pA = init_basic_block(k1, in_planes=32, planes=32, stride=1)
    xA = jax.random.normal(k2, (n, 32, h, w), jnp.float32)
    yA = jax.block_until_ready(basic_block_forward(xA, pA, stride=1))
    refA = jnp.transpose(
        _ref_basic_block(jnp.transpose(xA, (0, 2, 3, 1)), pA, 1), (0, 3, 1, 2))
    assert yA.shape == (n, 32, h, w), yA.shape
    assert bool(jnp.all(jnp.isfinite(yA)))
    _assert_close(yA, refA)

    # Config B: strided BasicBlock with a 1x1 stride-2 downsample residual.
    pB = init_basic_block(k3, in_planes=32, planes=64, stride=2)
    xB = jax.random.normal(k4, (n, 32, h, w), jnp.float32)
    yB = jax.block_until_ready(basic_block_forward(xB, pB, stride=2))
    refB = jnp.transpose(
        _ref_basic_block(jnp.transpose(xB, (0, 2, 3, 1)), pB, 2), (0, 3, 1, 2))
    assert yB.shape == (n, 64, h // 2, w // 2), yB.shape
    assert bool(jnp.all(jnp.isfinite(yB)))
    _assert_close(yB, refB)

    print("KERNEL_OK")
</pallas_src>

<mosaic_0001>
module attributes {stable_mosaic.version = 11 : i64} {
  func.func @_basic_block_kernel(%arg0: memref<1x2x18x18x32xf32, #tpu.memory_space<vmem>>, %arg1: memref<3x3x32x32xf32, #tpu.memory_space<vmem>>, %arg2: memref<1x32xf32, #tpu.memory_space<vmem>>, %arg3: memref<3x3x32x32xf32, #tpu.memory_space<vmem>>, %arg4: memref<1x32xf32, #tpu.memory_space<vmem>>, %arg5: memref<2x16x16x32xf32, #tpu.memory_space<vmem>>, %arg6: memref<2x18x18x32xf32, #tpu.memory_space<vmem>>) attributes {dimension_semantics = [], scalar_prefetch = 0 : i64, scratch_operands = 1 : i64, tpu.core_type = #tpu.core_type<tc>} {
    %cst = arith.constant 0.000000e+00 : f32
    %0 = vector.broadcast %cst : f32 to vector<512x32xf32>
    %c0 = arith.constant 0 : index
    %c0_0 = arith.constant 0 : index
    %c0_1 = arith.constant 0 : index
    %c0_2 = arith.constant 0 : index
    %c0_3 = arith.constant 0 : index
    %1 = vector.load %arg0[%c0, %c0_0, %c0_1, %c0_2, %c0_3] : memref<1x2x18x18x32xf32, #tpu.memory_space<vmem>>, vector<1x2x16x16x32xf32>
    %2 = vector.shape_cast %1 : vector<1x2x16x16x32xf32> to vector<2x16x16x32xf32>
    %3 = vector.shape_cast %2 : vector<2x16x16x32xf32> to vector<512x32xf32>
    %c0_4 = arith.constant 0 : index
    %c0_5 = arith.constant 0 : index
    %c0_6 = arith.constant 0 : index
    %c0_7 = arith.constant 0 : index
    %4 = vector.load %arg1[%c0_4, %c0_5, %c0_6, %c0_7] : memref<3x3x32x32xf32, #tpu.memory_space<vmem>>, vector<1x1x32x32xf32>
    %5 = vector.shape_cast %4 : vector<1x1x32x32xf32> to vector<32x32xf32>
    %cst_8 = arith.constant dense<0.000000e+00> : vector<512x32xf32>
    %6 = tpu.matmul %3, %5, %cst_8 {dimension_numbers = #tpu.dot_dimension_numbers<[1], [0], [0], [1], [0, 0, 1, 1], [], []>} : vector<512x32xf32>, vector<32x32xf32>, vector<512x32xf32> -> vector<512x32xf32>
    %7 = arith.addf %0, %6 : vector<512x32xf32>
    %c0_9 = arith.constant 0 : index
    %c0_10 = arith.constant 0 : index
    %c0_11 = arith.constant 0 : index
    %c1 = arith.constant 1 : index
    %c0_12 = arith.constant 0 : index
    %8 = vector.load %arg0[%c0_9, %c0_10, %c0_11, %c1, %c0_12] : memref<1x2x18x18x32xf32, #tpu.memory_space<vmem>>, vector<1x2x16x16x32xf32>
    %9 = vector.shape_cast %8 : vector<1x2x16x16x32xf32> to vector<2x16x16x32xf32>
    %10 = vector.shape_cast %9 : vector<2x16x16x32xf32> to vector<512x32xf32>
    %c0_13 = arith.constant 0 : index
    %c1_14 = arith.constant 1 : index
    %c0_15 = arith.constant 0 : index
    %c0_16 = arith.constant 0 : index
    %11 = vector.load %arg1[%c0_13, %c1_14, %c0_15, %c0_16] : memref<3x3x32x32xf32, #tpu.memory_space<vmem>>, vector<1x1x32x32xf32>
    %12 = vector.shape_cast %11 : vector<1x1x32x32xf32> to vector<32x32xf32>
    %cst_17 = arith.constant dense<0.000000e+00> : vector<512x32xf32>
    %13 = tpu.matmul %10, %12, %cst_17 {dimension_numbers = #tpu.dot_dimension_numbers<[1], [0], [0], [1], [0, 0, 1, 1], [], []>} : vector<512x32xf32>, vector<32x32xf32>, vector<512x32xf32> -> vector<512x32xf32>
    %14 = arith.addf %7, %13 : vector<512x32xf32>
    %c0_18 = arith.constant 0 : index
    %c0_19 = arith.constant 0 : index
    %c0_20 = arith.constant 0 : index
    %c2 = arith.constant 2 : index
    %c0_21 = arith.constant 0 : index
    %15 = vector.load %arg0[%c0_18, %c0_19, %c0_20, %c2, %c0_21] : memref<1x2x18x18x32xf32, #tpu.memory_space<vmem>>, vector<1x2x16x16x32xf32>
    %16 = vector.shape_cast %15 : vector<1x2x16x16x32xf32> to vector<2x16x16x32xf32>
    %17 = vector.shape_cast %16 : vector<2x16x16x32xf32> to vector<512x32xf32>
    %c0_22 = arith.constant 0 : index
    %c2_23 = arith.constant 2 : index
    %c0_24 = arith.constant 0 : index
    %c0_25 = arith.constant 0 : index
    %18 = vector.load %arg1[%c0_22, %c2_23, %c0_24, %c0_25] : memref<3x3x32x32xf32, #tpu.memory_space<vmem>>, vector<1x1x32x32xf32>
    %19 = vector.shape_cast %18 : vector<1x1x32x32xf32> to vector<32x32xf32>
    %cst_26 = arith.constant dense<0.000000e+00> : vector<512x32xf32>
    %20 = tpu.matmul %17, %19, %cst_26 {dimension_numbers = #tpu.dot_dimension_numbers<[1], [0], [0], [1], [0, 0, 1, 1], [], []>} : vector<512x32xf32>, vector<32x32xf32>, vector<512x32xf32> -> vector<512x32xf32>
    %21 = arith.addf %14, %20 : vector<512x32xf32>
    %c0_27 = arith.constant 0 : index
    %c0_28 = arith.constant 0 : index
    %c1_29 = arith.constant 1 : index
    %c0_30 = arith.constant 0 : index
    %c0_31 = arith.constant 0 : index
    %22 = vector.load %arg0[%c0_27, %c0_28, %c1_29, %c0_30, %c0_31] : memref<1x2x18x18x32xf32, #tpu.memory_space<vmem>>, vector<1x2x16x16x32xf32>
    %23 = vector.shape_cast %22 : vector<1x2x16x16x32xf32> to vector<2x16x16x32xf32>
    %24 = vector.shape_cast %23 : vector<2x16x16x32xf32> to vector<512x32xf32>
    %c1_32 = arith.constant 1 : index
    %c0_33 = arith.constant 0 : index
    %c0_34 = arith.constant 0 : index
    %c0_35 = arith.constant 0 : index
    %25 = vector.load %arg1[%c1_32, %c0_33, %c0_34, %c0_35] : memref<3x3x32x32xf32, #tpu.memory_space<vmem>>, vector<1x1x32x32xf32>
    %26 = vector.shape_cast %25 : vector<1x1x32x32xf32> to vector<32x32xf32>
    %cst_36 = arith.constant dense<0.000000e+00> : vector<512x32xf32>
    %27 = tpu.matmul %24, %26, %cst_36 {dimension_numbers = #tpu.dot_dimension_numbers<[1], [0], [0], [1], [0, 0, 1, 1], [], []>} : vector<512x32xf32>, vector<32x32xf32>, vector<512x32xf32> -> vector<512x32xf32>
    %28 = arith.addf %21, %27 : vector<512x32xf32>
    %c0_37 = arith.constant 0 : index
    %c0_38 = arith.constant 0 : index
    %c1_39 = arith.constant 1 : index
    %c1_40 = arith.constant 1 : index
    %c0_41 = arith.constant 0 : index
    %29 = vector.load %arg0[%c0_37, %c0_38, %c1_39, %c1_40, %c0_41] : memref<1x2x18x18x32xf32, #tpu.memory_space<vmem>>, vector<1x2x16x16x32xf32>
    %30 = vector.shape_cast %29 : vector<1x2x16x16x32xf32> to vector<2x16x16x32xf32>
    %31 = vector.shape_cast %30 : vector<2x16x16x32xf32> to vector<512x32xf32>
    %c1_42 = arith.constant 1 : index
    %c1_43 = arith.constant 1 : index
    %c0_44 = arith.constant 0 : index
    %c0_45 = arith.constant 0 : index
    %32 = vector.load %arg1[%c1_42, %c1_43, %c0_44, %c0_45] : memref<3x3x32x32xf32, #tpu.memory_space<vmem>>, vector<1x1x32x32xf32>
    %33 = vector.shape_cast %32 : vector<1x1x32x32xf32> to vector<32x32xf32>
    %cst_46 = arith.constant dense<0.000000e+00> : vector<512x32xf32>
    %34 = tpu.matmul %31, %33, %cst_46 {dimension_numbers = #tpu.dot_dimension_numbers<[1], [0], [0], [1], [0, 0, 1, 1], [], []>} : vector<512x32xf32>, vector<32x32xf32>, vector<512x32xf32> -> vector<512x32xf32>
    %35 = arith.addf %28, %34 : vector<512x32xf32>
    %c0_47 = arith.constant 0 : index
    %c0_48 = arith.constant 0 : index
    %c1_49 = arith.constant 1 : index
    %c2_50 = arith.constant 2 : index
    %c0_51 = arith.constant 0 : index
    %36 = vector.load %arg0[%c0_47, %c0_48, %c1_49, %c2_50, %c0_51] : memref<1x2x18x18x32xf32, #tpu.memory_space<vmem>>, vector<1x2x16x16x32xf32>
    %37 = vector.shape_cast %36 : vector<1x2x16x16x32xf32> to vector<2x16x16x32xf32>
    %38 = vector.shape_cast %37 : vector<2x16x16x32xf32> to vector<512x32xf32>
    %c1_52 = arith.constant 1 : index
    %c2_53 = arith.constant 2 : index
    %c0_54 = arith.constant 0 : index
    %c0_55 = arith.constant 0 : index
    %39 = vector.load %arg1[%c1_52, %c2_53, %c0_54, %c0_55] : memref<3x3x32x32xf32, #tpu.memory_space<vmem>>, vector<1x1x32x32xf32>
    %40 = vector.shape_cast %39 : vector<1x1x32x32xf32> to vector<32x32xf32>
    %cst_56 = arith.constant dense<0.000000e+00> : vector<512x32xf32>
    %41 = tpu.matmul %38, %40, %cst_56 {dimension_numbers = #tpu.dot_dimension_numbers<[1], [0], [0], [1], [0, 0, 1, 1], [], []>} : vector<512x32xf32>, vector<32x32xf32>, vector<512x32xf32> -> vector<512x32xf32>
    %42 = arith.addf %35, %41 : vector<512x32xf32>
    %c0_57 = arith.constant 0 : index
    %c0_58 = arith.constant 0 : index
    %c2_59 = arith.constant 2 : index
    %c0_60 = arith.constant 0 : index
    %c0_61 = arith.constant 0 : index
    %43 = vector.load %arg0[%c0_57, %c0_58, %c2_59, %c0_60, %c0_61] : memref<1x2x18x18x32xf32, #tpu.memory_space<vmem>>, vector<1x2x16x16x32xf32>
    %44 = vector.shape_cast %43 : vector<1x2x16x16x32xf32> to vector<2x16x16x32xf32>
    %45 = vector.shape_cast %44 : vector<2x16x16x32xf32> to vector<512x32xf32>
    %c2_62 = arith.constant 2 : index
    %c0_63 = arith.constant 0 : index
    %c0_64 = arith.constant 0 : index
    %c0_65 = arith.constant 0 : index
    %46 = vector.load %arg1[%c2_62, %c0_63, %c0_64, %c0_65] : memref<3x3x32x32xf32, #tpu.memory_space<vmem>>, vector<1x1x32x32xf32>
    %47 = vector.shape_cast %46 : vector<1x1x32x32xf32> to vector<32x32xf32>
    %cst_66 = arith.constant dense<0.000000e+00> : vector<512x32xf32>
    %48 = tpu.matmul %45, %47, %cst_66 {dimension_numbers = #tpu.dot_dimension_numbers<[1], [0], [0], [1], [0, 0, 1, 1], [], []>} : vector<512x32xf32>, vector<32x32xf32>, vector<512x32xf32> -> vector<512x32xf32>
    %49 = arith.addf %42, %48 : vector<512x32xf32>
    %c0_67 = arith.constant 0 : index
    %c0_68 = arith.constant 0 : index
    %c2_69 = arith.constant 2 : index
    %c1_70 = arith.constant 1 : index
    %c0_71 = arith.constant 0 : index
    %50 = vector.load %arg0[%c0_67, %c0_68, %c2_69, %c1_70, %c0_71] : memref<1x2x18x18x32xf32, #tpu.memory_space<vmem>>, vector<1x2x16x16x32xf32>
    %51 = vector.shape_cast %50 : vector<1x2x16x16x32xf32> to vector<2x16x16x32xf32>
    %52 = vector.shape_cast %51 : vector<2x16x16x32xf32> to vector<512x32xf32>
    %c2_72 = arith.constant 2 : index
    %c1_73 = arith.constant 1 : index
    %c0_74 = arith.constant 0 : index
    %c0_75 = arith.constant 0 : index
    %53 = vector.load %arg1[%c2_72, %c1_73, %c0_74, %c0_75] : memref<3x3x32x32xf32, #tpu.memory_space<vmem>>, vector<1x1x32x32xf32>
    %54 = vector.shape_cast %53 : vector<1x1x32x32xf32> to vector<32x32xf32>
    %cst_76 = arith.constant dense<0.000000e+00> : vector<512x32xf32>
    %55 = tpu.matmul %52, %54, %cst_76 {dimension_numbers = #tpu.dot_dimension_numbers<[1], [0], [0], [1], [0, 0, 1, 1], [], []>} : vector<512x32xf32>, vector<32x32xf32>, vector<512x32xf32> -> vector<512x32xf32>
    %56 = arith.addf %49, %55 : vector<512x32xf32>
    %c0_77 = arith.constant 0 : index
    %c0_78 = arith.constant 0 : index
    %c2_79 = arith.constant 2 : index
    %c2_80 = arith.constant 2 : index
    %c0_81 = arith.constant 0 : index
    %57 = vector.load %arg0[%c0_77, %c0_78, %c2_79, %c2_80, %c0_81] : memref<1x2x18x18x32xf32, #tpu.memory_space<vmem>>, vector<1x2x16x16x32xf32>
    %58 = vector.shape_cast %57 : vector<1x2x16x16x32xf32> to vector<2x16x16x32xf32>
    %59 = vector.shape_cast %58 : vector<2x16x16x32xf32> to vector<512x32xf32>
    %c2_82 = arith.constant 2 : index
    %c2_83 = arith.constant 2 : index
    %c0_84 = arith.constant 0 : index
    %c0_85 = arith.constant 0 : index
    %60 = vector.load %arg1[%c2_82, %c2_83, %c0_84, %c0_85] : memref<3x3x32x32xf32, #tpu.memory_space<vmem>>, vector<1x1x32x32xf32>
    %61 = vector.shape_cast %60 : vector<1x1x32x32xf32> to vector<32x32xf32>
    %cst_86 = arith.constant dense<0.000000e+00> : vector<512x32xf32>
    %62 = tpu.matmul %59, %61, %cst_86 {dimension_numbers = #tpu.dot_dimension_numbers<[1], [0], [0], [1], [0, 0, 1, 1], [], []>} : vector<512x32xf32>, vector<32x32xf32>, vector<512x32xf32> -> vector<512x32xf32>
    %63 = arith.addf %56, %62 : vector<512x32xf32>
    %c0_87 = arith.constant 0 : index
    %c0_88 = arith.constant 0 : index
    %64 = vector.load %arg2[%c0_87, %c0_88] : memref<1x32xf32, #tpu.memory_space<vmem>>, vector<1x32xf32>
    %65 = vector.broadcast %64 : vector<1x32xf32> to vector<512x32xf32>
    %66 = arith.addf %63, %65 : vector<512x32xf32>
    %cst_89 = arith.constant 0.000000e+00 : f32
    %67 = vector.broadcast %cst_89 : f32 to vector<512x32xf32>
    %68 = arith.maximumf %66, %67 : vector<512x32xf32>
    %cst_90 = arith.constant 0.000000e+00 : f32
    %69 = vector.broadcast %cst_90 : f32 to vector<2x18x18x32xf32>
    %c0_91 = arith.constant 0 : index
    %c0_92 = arith.constant 0 : index
    %c0_93 = arith.constant 0 : index
    %c0_94 = arith.constant 0 : index
    %70 = vector.load %arg6[%c0_91, %c0_92, %c0_93, %c0_94] : memref<2x18x18x32xf32, #tpu.memory_space<vmem>>, vector<2x18x18x32xf32>
    tpu.vector_store %arg6[%c0_91, %c0_92, %c0_93, %c0_94], %69 {strides = array<i32>} : memref<2x18x18x32xf32, #tpu.memory_space<vmem>>, vector<2x18x18x32xf32>,
    %71 = vector.shape_cast %68 : vector<512x32xf32> to vector<2x16x16x32xf32>
    %c0_95 = arith.constant 0 : index
    %c1_96 = arith.constant 1 : index
    %c1_97 = arith.constant 1 : index
    %c0_98 = arith.constant 0 : index
    %72 = vector.load %arg6[%c0_95, %c1_96, %c1_97, %c0_98] : memref<2x18x18x32xf32, #tpu.memory_space<vmem>>, vector<2x16x16x32xf32>
    tpu.vector_store %arg6[%c0_95, %c1_96, %c1_97, %c0_98], %71 {strides = array<i32>} : memref<2x18x18x32xf32, #tpu.memory_space<vmem>>, vector<2x16x16x32xf32>,
    %cst_99 = arith.constant 0.000000e+00 : f32
    %73 = vector.broadcast %cst_99 : f32 to vector<512x32xf32>
    %c0_100 = arith.constant 0 : index
    %c0_101 = arith.constant 0 : index
    %c0_102 = arith.constant 0 : index
    %c0_103 = arith.constant 0 : index
    %74 = vector.load %arg6[%c0_100, %c0_101, %c0_102, %c0_103] : memref<2x18x18x32xf32, #tpu.memory_space<vmem>>, vector<2x16x16x32xf32>
    %75 = vector.shape_cast %74 : vector<2x16x16x32xf32> to vector<512x32xf32>
    %c0_104 = arith.constant 0 : index
    %c0_105 = arith.constant 0 : index
    %c0_106 = arith.constant 0 : index
    %c0_107 = arith.constant 0 : index
    %76 = vector.load %arg3[%c0_104, %c0_105, %c0_106, %c0_107] : memref<3x3x32x32xf32, #tpu.memory_space<vmem>>, vector<1x1x32x32xf32>
    %77 = vector.shape_cast %76 : vector<1x1x32x32xf32> to vector<32x32xf32>
    %cst_108 = arith.constant dense<0.000000e+00> : vector<512x32xf32>
    %78 = tpu.matmul %75, %77, %cst_108 {dimension_numbers = #tpu.dot_dimension_numbers<[1], [0], [0], [1], [0, 0, 1, 1], [], []>} : vector<512x32xf32>, vector<32x32xf32>, vector<512x32xf32> -> vector<512x32xf32>
    %79 = arith.addf %73, %78 : vector<512x32xf32>
    %c0_109 = arith.constant 0 : index
    %c0_110 = arith.constant 0 : index
    %c1_111 = arith.constant 1 : index
    %c0_112 = arith.constant 0 : index
    %80 = vector.load %arg6[%c0_109, %c0_110, %c1_111, %c0_112] : memref<2x18x18x32xf32, #tpu.memory_space<vmem>>, vector<2x16x16x32xf32>
    %81 = vector.shape_cast %80 : vector<2x16x16x32xf32> to vector<512x32xf32>
    %c0_113 = arith.constant 0 : index
    %c1_114 = arith.constant 1 : index
    %c0_115 = arith.constant 0 : index
    %c0_116 = arith.constant 0 : index
    %82 = vector.load %arg3[%c0_113, %c1_114, %c0_115, %c0_116] : memref<3x3x32x32xf32, #tpu.memory_space<vmem>>, vector<1x1x32x32xf32>
    %83 = vector.shape_cast %82 : vector<1x1x32x32xf32> to vector<32x32xf32>
    %cst_117 = arith.constant dense<0.000000e+00> : vector<512x32xf32>
    %84 = tpu.matmul %81, %83, %cst_117 {dimension_numbers = #tpu.dot_dimension_numbers<[1], [0], [0], [1], [0, 0, 1, 1], [], []>} : vector<512x32xf32>, vector<32x32xf32>, vector<512x32xf32> -> vector<512x32xf32>
    %85 = arith.addf %79, %84 : vector<512x32xf32>
    %c0_118 = arith.constant 0 : index
    %c0_119 = arith.constant 0 : index
    %c2_120 = arith.constant 2 : index
    %c0_121 = arith.constant 0 : index
    %86 = vector.load %arg6[%c0_118, %c0_119, %c2_120, %c0_121] : memref<2x18x18x32xf32, #tpu.memory_space<vmem>>, vector<2x16x16x32xf32>
    %87 = vector.shape_cast %86 : vector<2x16x16x32xf32> to vector<512x32xf32>
    %c0_122 = arith.constant 0 : index
    %c2_123 = arith.constant 2 : index
    %c0_124 = arith.constant 0 : index
    %c0_125 = arith.constant 0 : index
    %88 = vector.load %arg3[%c0_122, %c2_123, %c0_124, %c0_125] : memref<3x3x32x32xf32, #tpu.memory_space<vmem>>, vector<1x1x32x32xf32>
    %89 = vector.shape_cast %88 : vector<1x1x32x32xf32> to vector<32x32xf32>
    %cst_126 = arith.constant dense<0.000000e+00> : vector<512x32xf32>
    %90 = tpu.matmul %87, %89, %cst_126 {dimension_numbers = #tpu.dot_dimension_numbers<[1], [0], [0], [1], [0, 0, 1, 1], [], []>} : vector<512x32xf32>, vector<32x32xf32>, vector<512x32xf32> -> vector<512x32xf32>
    %91 = arith.addf %85, %90 : vector<512x32xf32>
    %c0_127 = arith.constant 0 : index
    %c1_128 = arith.constant 1 : index
    %c0_129 = arith.constant 0 : index
    %c0_130 = arith.constant 0 : index
    %92 = vector.load %arg6[%c0_127, %c1_128, %c0_129, %c0_130] : memref<2x18x18x32xf32, #tpu.memory_space<vmem>>, vector<2x16x16x32xf32>
    %93 = vector.shape_cast %92 : vector<2x16x16x32xf32> to vector<512x32xf32>
    %c1_131 = arith.constant 1 : index
    %c0_132 = arith.constant 0 : index
    %c0_133 = arith.constant 0 : index
    %c0_134 = arith.constant 0 : index
    %94 = vector.load %arg3[%c1_131, %c0_132, %c0_133, %c0_134] : memref<3x3x32x32xf32, #tpu.memory_space<vmem>>, vector<1x1x32x32xf32>
    %95 = vector.shape_cast %94 : vector<1x1x32x32xf32> to vector<32x32xf32>
    %cst_135 = arith.constant dense<0.000000e+00> : vector<512x32xf32>
    %96 = tpu.matmul %93, %95, %cst_135 {dimension_numbers = #tpu.dot_dimension_numbers<[1], [0], [0], [1], [0, 0, 1, 1], [], []>} : vector<512x32xf32>, vector<32x32xf32>, vector<512x32xf32> -> vector<512x32xf32>
    %97 = arith.addf %91, %96 : vector<512x32xf32>
    %c0_136 = arith.constant 0 : index
    %c1_137 = arith.constant 1 : index
    %c1_138 = arith.constant 1 : index
    %c0_139 = arith.constant 0 : index
    %98 = vector.load %arg6[%c0_136, %c1_137, %c1_138, %c0_139] : memref<2x18x18x32xf32, #tpu.memory_space<vmem>>, vector<2x16x16x32xf32>
    %99 = vector.shape_cast %98 : vector<2x16x16x32xf32> to vector<512x32xf32>
    %c1_140 = arith.constant 1 : index
    %c1_141 = arith.constant 1 : index
    %c0_142 = arith.constant 0 : index
    %c0_143 = arith.constant 0 : index
    %100 = vector.load %arg3[%c1_140, %c1_141, %c0_142, %c0_143] : memref<3x3x32x32xf32, #tpu.memory_space<vmem>>, vector<1x1x32x32xf32>
    %101 = vector.shape_cast %100 : vector<1x1x32x32xf32> to vector<32x32xf32>
    %cst_144 = arith.constant dense<0.000000e+00> : vector<512x32xf32>
    %102 = tpu.matmul %99, %101, %cst_144 {dimension_numbers = #tpu.dot_dimension_numbers<[1], [0], [0], [1], [0, 0, 1, 1], [], []>} : vector<512x32xf32>, vector<32x32xf32>, vector<512x32xf32> -> vector<512x32xf32>
    %103 = arith.addf %97, %102 : vector<512x32xf32>
    %c0_145 = arith.constant 0 : index
    %c1_146 = arith.constant 1 : index
    %c2_147 = arith.constant 2 : index
    %c0_148 = arith.constant 0 : index
    %104 = vector.load %arg6[%c0_145, %c1_146, %c2_147, %c0_148] : memref<2x18x18x32xf32, #tpu.memory_space<vmem>>, vector<2x16x16x32xf32>
    %105 = vector.shape_cast %104 : vector<2x16x16x32xf32> to vector<512x32xf32>
    %c1_149 = arith.constant 1 : index
    %c2_150 = arith.constant 2 : index
    %c0_151 = arith.constant 0 : index
    %c0_152 = arith.constant 0 : index
    %106 = vector.load %arg3[%c1_149, %c2_150, %c0_151, %c0_152] : memref<3x3x32x32xf32, #tpu.memory_space<vmem>>, vector<1x1x32x32xf32>
    %107 = vector.shape_cast %106 : vector<1x1x32x32xf32> to vector<32x32xf32>
    %cst_153 = arith.constant dense<0.000000e+00> : vector<512x32xf32>
    %108 = tpu.matmul %105, %107, %cst_153 {dimension_numbers = #tpu.dot_dimension_numbers<[1], [0], [0], [1], [0, 0, 1, 1], [], []>} : vector<512x32xf32>, vector<32x32xf32>, vector<512x32xf32> -> vector<512x32xf32>
    %109 = arith.addf %103, %108 : vector<512x32xf32>
    %c0_154 = arith.constant 0 : index
    %c2_155 = arith.constant 2 : index
    %c0_156 = arith.constant 0 : index
    %c0_157 = arith.constant 0 : index
    %110 = vector.load %arg6[%c0_154, %c2_155, %c0_156, %c0_157] : memref<2x18x18x32xf32, #tpu.memory_space<vmem>>, vector<2x16x16x32xf32>
    %111 = vector.shape_cast %110 : vector<2x16x16x32xf32> to vector<512x32xf32>
    %c2_158 = arith.constant 2 : index
    %c0_159 = arith.constant 0 : index
    %c0_160 = arith.constant 0 : index
    %c0_161 = arith.constant 0 : index
    %112 = vector.load %arg3[%c2_158, %c0_159, %c0_160, %c0_161] : memref<3x3x32x32xf32, #tpu.memory_space<vmem>>, vector<1x1x32x32xf32>
    %113 = vector.shape_cast %112 : vector<1x1x32x32xf32> to vector<32x32xf32>
    %cst_162 = arith.constant dense<0.000000e+00> : vector<512x32xf32>
    %114 = tpu.matmul %111, %113, %cst_162 {dimension_numbers = #tpu.dot_dimension_numbers<[1], [0], [0], [1], [0, 0, 1, 1], [], []>} : vector<512x32xf32>, vector<32x32xf32>, vector<512x32xf32> -> vector<512x32xf32>
    %115 = arith.addf %109, %114 : vector<512x32xf32>
    %c0_163 = arith.constant 0 : index
    %c2_164 = arith.constant 2 : index
    %c1_165 = arith.constant 1 : index
    %c0_166 = arith.constant 0 : index
    %116 = vector.load %arg6[%c0_163, %c2_164, %c1_165, %c0_166] : memref<2x18x18x32xf32, #tpu.memory_space<vmem>>, vector<2x16x16x32xf32>
    %117 = vector.shape_cast %116 : vector<2x16x16x32xf32> to vector<512x32xf32>
    %c2_167 = arith.constant 2 : index
    %c1_168 = arith.constant 1 : index
    %c0_169 = arith.constant 0 : index
    %c0_170 = arith.constant 0 : index
    %118 = vector.load %arg3[%c2_167, %c1_168, %c0_169, %c0_170] : memref<3x3x32x32xf32, #tpu.memory_space<vmem>>, vector<1x1x32x32xf32>
    %119 = vector.shape_cast %118 : vector<1x1x32x32xf32> to vector<32x32xf32>
    %cst_171 = arith.constant dense<0.000000e+00> : vector<512x32xf32>
    %120 = tpu.matmul %117, %119, %cst_171 {dimension_numbers = #tpu.dot_dimension_numbers<[1], [0], [0], [1], [0, 0, 1, 1], [], []>} : vector<512x32xf32>, vector<32x32xf32>, vector<512x32xf32> -> vector<512x32xf32>
    %121 = arith.addf %115, %120 : vector<512x32xf32>
    %c0_172 = arith.constant 0 : index
    %c2_173 = arith.constant 2 : index
    %c2_174 = arith.constant 2 : index
    %c0_175 = arith.constant 0 : index
    %122 = vector.load %arg6[%c0_172, %c2_173, %c2_174, %c0_175] : memref<2x18x18x32xf32, #tpu.memory_space<vmem>>, vector<2x16x16x32xf32>
    %123 = vector.shape_cast %122 : vector<2x16x16x32xf32> to vector<512x32xf32>
    %c2_176 = arith.constant 2 : index
    %c2_177 = arith.constant 2 : index
    %c0_178 = arith.constant 0 : index
    %c0_179 = arith.constant 0 : index
    %124 = vector.load %arg3[%c2_176, %c2_177, %c0_178, %c0_179] : memref<3x3x32x32xf32, #tpu.memory_space<vmem>>, vector<1x1x32x32xf32>
    %125 = vector.shape_cast %124 : vector<1x1x32x32xf32> to vector<32x32xf32>
    %cst_180 = arith.constant dense<0.000000e+00> : vector<512x32xf32>
    %126 = tpu.matmul %123, %125, %cst_180 {dimension_numbers = #tpu.dot_dimension_numbers<[1], [0], [0], [1], [0, 0, 1, 1], [], []>} : vector<512x32xf32>, vector<32x32xf32>, vector<512x32xf32> -> vector<512x32xf32>
    %127 = arith.addf %121, %126 : vector<512x32xf32>
    %c0_181 = arith.constant 0 : index
    %c0_182 = arith.constant 0 : index
    %128 = vector.load %arg4[%c0_181, %c0_182] : memref<1x32xf32, #tpu.memory_space<vmem>>, vector<1x32xf32>
    %129 = vector.broadcast %128 : vector<1x32xf32> to vector<512x32xf32>
    %130 = arith.addf %127, %129 : vector<512x32xf32>
    %c0_183 = arith.constant 0 : index
    %c0_184 = arith.constant 0 : index
    %c1_185 = arith.constant 1 : index
    %c1_186 = arith.constant 1 : index
    %c0_187 = arith.constant 0 : index
    %131 = vector.load %arg0[%c0_183, %c0_184, %c1_185, %c1_186, %c0_187] : memref<1x2x18x18x32xf32, #tpu.memory_space<vmem>>, vector<1x2x16x16x32xf32>
    %132 = vector.shape_cast %131 : vector<1x2x16x16x32xf32> to vector<2x16x16x32xf32>
    %133 = vector.shape_cast %132 : vector<2x16x16x32xf32> to vector<512x32xf32>
    %134 = arith.addf %130, %133 : vector<512x32xf32>
    %cst_188 = arith.constant 0.000000e+00 : f32
    %135 = vector.broadcast %cst_188 : f32 to vector<512x32xf32>
    %136 = arith.maximumf %134, %135 : vector<512x32xf32>
    %137 = vector.shape_cast %136 : vector<512x32xf32> to vector<2x16x16x32xf32>
    %c0_189 = arith.constant 0 : index
    %c0_190 = arith.constant 0 : index
    %c0_191 = arith.constant 0 : index
    %c0_192 = arith.constant 0 : index
    %138 = vector.load %arg5[%c0_189, %c0_190, %c0_191, %c0_192] : memref<2x16x16x32xf32, #tpu.memory_space<vmem>>, vector<2x16x16x32xf32>
    tpu.vector_store %arg5[%c0_189, %c0_190, %c0_191, %c0_192], %137 {strides = array<i32>} : memref<2x16x16x32xf32, #tpu.memory_space<vmem>>, vector<2x16x16x32xf32>,
    return
  }
}

</mosaic_0001>

<llo_original>
// kernel: tpu_custom_call.1
$region0: #{tpu_custom_call.1}
  #allocation0 [shape = 'u32[]', space=smem, size = 0x4, offset = 0x4, fixed_abs, tag = 'smem constant byte address 0x4 - core index']
  #allocation1 [shape = 'u32[144,128]{1,0:T(1,128)}', space=vmem, size = 0x12000, scoped, tag = 'internal scratch']
  #allocation2 [shape = 'f32[2,18,18,32]{3,2,1,0:T(8,128)}', space=vmem, size = 0x6c000, scoped, tag = 'scratch operand']
  %s0 = inlined_call_operand.vmem [shape: f32[1,2,18,18,32], index: 0, kind: input, shape index: {}]
  %s1 = inlined_call_operand.vmem [shape: f32[3,3,32,32], index: 1, kind: input, shape index: {}]
  %s2 = inlined_call_operand.vmem [shape: f32[1,32], index: 2, kind: input, shape index: {}]
  %s3 = inlined_call_operand.vmem [shape: f32[3,3,32,32], index: 3, kind: input, shape index: {}]
  %s4 = inlined_call_operand.vmem [shape: f32[1,32], index: 4, kind: input, shape index: {}]
  %s5 = inlined_call_operand.hbm [shape: f32[2,16,16,32], index: 5, kind: output, shape index: {}]
  %s6 = sld [smem:[#allocation0]]
  $region30: #{tpu_custom_call.1} parent=0
    _
  %s8 = ssub.s32 1, %s6
  %s9 = scalar_select 0, %s8, %s6
  $region1: #{tpu_custom_call.1} parent=0
    #allocation3 [shape = 'u8[262144]{0}', space=vmem, size = 0x40000, scoped, tag = 'output window, operand 0, single buffered']
    #allocation4 [shape = 's32[1]{0}', space=sflag, size = 0x4, scoped, tag = 'scoped memory for tpu_custom_call.1']
    %10 = vsyncpa [#allocation4], 0
    // Predicated region
    $region2: #{tpu_custom_call.1} parent=1 // pred_check
      _
    $region3: #{tpu_custom_call.1} parent=1 // pred_check_branch
      %12 = sbr.rel (0) target = $region5
    $region4: #{tpu_custom_call.1} parent=1 // pred_region
      _
    $region5: #{tpu_custom_call.1} parent=1 // pred_fallthru
      _
    // Predicated region
    $region6: #{tpu_custom_call.1} parent=1 // pred_check
      _
    $region7: #{tpu_custom_call.1} parent=1 // pred_check_branch
      %14 = sbr.rel (0) target = $region9
    $region8: #{tpu_custom_call.1} parent=1 // pred_region
      _
    $region9: #{tpu_custom_call.1} parent=1 // pred_fallthru
      _
    // Predicated region
    $region10: #{tpu_custom_call.1} parent=1 // pred_check
      _
    $region11: #{tpu_custom_call.1} parent=1 // pred_check_branch
      %16 = sbr.rel (0) target = $region13
    $region12: #{tpu_custom_call.1} parent=1 // pred_region
      _
    $region13: #{tpu_custom_call.1} parent=1 // pred_fallthru
      _
    // Predicated region
    $region14: #{tpu_custom_call.1} parent=1 // pred_check
      _
    $region15: #{tpu_custom_call.1} parent=1 // pred_check_branch
      %18 = sbr.rel (0) target = $region17
    $region16: #{tpu_custom_call.1} parent=1 // pred_region
      _
    $region17: #{tpu_custom_call.1} parent=1 // pred_fallthru
      _
    // Predicated region
    $region18: #{tpu_custom_call.1} parent=1 // pred_check
      _
    $region19: #{tpu_custom_call.1} parent=1 // pred_check_branch
      %20 = sbr.rel (0) target = $region21
    $region20: #{tpu_custom_call.1} parent=1 // pred_region
      _
    $region21: #{tpu_custom_call.1} parent=1 // pred_fallthru
      _
    %v21 = vld [vmem:[%s0] sm:$0xff]
    %v22 = vld [vmem:[%s0 + $0x8] sm:$0xff]
    %v23 = vld [vmem:[%s0 + $0x18] sm:$0xff]
    %v24 = vld [vmem:[%s0 + $0x20] sm:$0xff]
    %v25 = vld [vmem:[%s0 + $0x30] sm:$0xff]
    %v26 = vld [vmem:[%s0 + $0x38] sm:$0xff]
    %v27 = vld [vmem:[%s0 + $0x48] sm:$0xff]
    %v28 = vld [vmem:[%s0 + $0x50] sm:$0xff]
    %v29 = vld [vmem:[%s0 + $0x60] sm:$0xff]
    %v30 = vld [vmem:[%s0 + $0x68] sm:$0xff]
    %v31 = vld [vmem:[%s0 + $0x78] sm:$0xff]
    %v32 = vld [vmem:[%s0 + $0x80] sm:$0xff]
    %v33 = vld [vmem:[%s0 + $0x90] sm:$0xff]
    %v34 = vld [vmem:[%s0 + $0x98] sm:$0xff]
    %v35 = vld [vmem:[%s0 + $0xa8] sm:$0xff]
    %v36 = vld [vmem:[%s0 + $0xb0] sm:$0xff]
    %v37 = vld [vmem:[%s0 + $0xc0] sm:$0xff]
    %v38 = vld [vmem:[%s0 + $0xc8] sm:$0xff]
    %v39 = vld [vmem:[%s0 + $0xd8] sm:$0xff]
    %v40 = vld [vmem:[%s0 + $0xe0] sm:$0xff]
    %v41 = vld [vmem:[%s0 + $0xf0] sm:$0xff]
    %v42 = vld [vmem:[%s0 + $0xf8] sm:$0xff]
    %v43 = vld [vmem:[%s0 + $0x108] sm:$0xff]
    %v44 = vld [vmem:[%s0 + $0x110] sm:$0xff]
    %v45 = vld [vmem:[%s0 + $0x120] sm:$0xff]
    %v46 = vld [vmem:[%s0 + $0x128] sm:$0xff]
    %v47 = vld [vmem:[%s0 + $0x138] sm:$0xff]
    %v48 = vld [vmem:[%s0 + $0x140] sm:$0xff]
    %v49 = vld [vmem:[%s0 + $0x150] sm:$0xff]
    %v50 = vld [vmem:[%s0 + $0x158] sm:$0xff]
    %v51 = vld [vmem:[%s0 + $0x168] sm:$0xff]
    %v52 = vld [vmem:[%s0 + $0x170] sm:$0xff]
    %v53 = vld [vmem:[%s0 + $0x1b0] sm:$0xff]
    %v54 = vld [vmem:[%s0 + $0x1b8] sm:$0xff]
    %v55 = vld [vmem:[%s0 + $0x1c8] sm:$0xff]
    %v56 = vld [vmem:[%s0 + $0x1d0] sm:$0xff]
    %v57 = vld [vmem:[%s0 + $0x1e0] sm:$0xff]
    %v58 = vld [vmem:[%s0 + $0x1e8] sm:$0xff]
    %v59 = vld [vmem:[%s0 + $0x1f8] sm:$0xff]
    %v60 = vld [vmem:[%s0 + $0x200] sm:$0xff]
    %v61 = vld [vmem:[%s0 + $0x210] sm:$0xff]
    %v62 = vld [vmem:[%s0 + $0x218] sm:$0xff]
    %v63 = vld [vmem:[%s0 + $0x228] sm:$0xff]
    %v64 = vld [vmem:[%s0 + $0x230] sm:$0xff]
    %v65 = vld [vmem:[%s0 + $0x240] sm:$0xff]
    %v66 = vld [vmem:[%s0 + $0x248] sm:$0xff]
    %v67 = vld [vmem:[%s0 + $0x258] sm:$0xff]
    %v68 = vld [vmem:[%s0 + $0x260] sm:$0xff]
    %v69 = vld [vmem:[%s0 + $0x270] sm:$0xff]
    %v70 = vld [vmem:[%s0 + $0x278] sm:$0xff]
    %v71 = vld [vmem:[%s0 + $0x288] sm:$0xff]
    %v72 = vld [vmem:[%s0 + $0x290] sm:$0xff]
    %v73 = vld [vmem:[%s0 + $0x2a0] sm:$0xff]
    %v74 = vld [vmem:[%s0 + $0x2a8] sm:$0xff]
    %v75 = vld [vmem:[%s0 + $0x2b8] sm:$0xff]
    %v76 = vld [vmem:[%s0 + $0x2c0] sm:$0xff]
    %v77 = vld [vmem:[%s0 + $0x2d0] sm:$0xff]
    %v78 = vld [vmem:[%s0 + $0x2d8] sm:$0xff]
    %v79 = vld [vmem:[%s0 + $0x2e8] sm:$0xff]
    %v80 = vld [vmem:[%s0 + $0x2f0] sm:$0xff]
    %v81 = vld [vmem:[%s0 + $0x300] sm:$0xff]
    %v82 = vld [vmem:[%s0 + $0x308] sm:$0xff]
    %v83 = vld [vmem:[%s0 + $0x318] sm:$0xff]
    %v84 = vld [vmem:[%s0 + $0x320] sm:$0xff]
    %v85 = vld [vmem:[%s1] sm:$0xff]
    %v86 = vld [vmem:[%s1 + $0x8] sm:$0xff]
    %v87 = vld [vmem:[%s1 + $0x10] sm:$0xff]
    %v88 = vld [vmem:[%s1 + $0x18] sm:$0xff]
    %v89 = vld [vmem:[%s0 + $0x1] sm:$0xff]
    %v90 = vld [vmem:[%s0 + $0x9] sm:$0xff]
    %v91 = vld [vmem:[%s0 + $0x19] sm:$0xff]
    %v92 = vld [vmem:[%s0 + $0x21] sm:$0xff]
    %v93 = vld [vmem:[%s0 + $0x31] sm:$0xff]
    %v94 = vld [vmem:[%s0 + $0x39] sm:$0xff]
    %v95 = vld [vmem:[%s0 + $0x49] sm:$0xff]
    %v96 = vld [vmem:[%s0 + $0x51] sm:$0xff]
    %v97 = vld [vmem:[%s0 + $0x61] sm:$0xff]
    %v98 = vld [vmem:[%s0 + $0x69] sm:$0xff]
    %v99 = vld [vmem:[%s0 + $0x79] sm:$0xff]
    %v100 = vld [vmem:[%s0 + $0x81] sm:$0xff]
    %v101 = vld [vmem:[%s0 + $0x91] sm:$0xff]
    %v102 = vld [vmem:[%s0 + $0x99] sm:$0xff]
    %v103 = vld [vmem:[%s0 + $0xa9] sm:$0xff]
    %v104 = vld [vmem:[%s0 + $0xb1] sm:$0xff]
    %v105 = vld [vmem:[%s0 + $0xc1] sm:$0xff]
    %v106 = vld [vmem:[%s0 + $0xc9] sm:$0xff]
    %v107 = vld [vmem:[%s0 + $0xd9] sm:$0xff]
    %v108 = vld [vmem:[%s0 + $0xe1] sm:$0xff]
    %v109 = vld [vmem:[%s0 + $0xf1] sm:$0xff]
    %v110 = vld [vmem:[%s0 + $0xf9] sm:$0xff]
    %v111 = vld [vmem:[%s0 + $0x109] sm:$0xff]
    %v112 = vld [vmem:[%s0 + $0x111] sm:$0xff]
    %v113 = vld [vmem:[%s0 + $0x121] sm:$0xff]
    %v114 = vld [vmem:[%s0 + $0x129] sm:$0xff]
    %v115 = vld [vmem:[%s0 + $0x139] sm:$0xff]
    %v116 = vld [vmem:[%s0 + $0x141] sm:$0xff]
    %v117 = vld [vmem:[%s0 + $0x151] sm:$0xff]
    %v118 = vld [vmem:[%s0 + $0x159] sm:$0xff]
    %v119 = vld [vmem:[%s0 + $0x169] sm:$0xff]
    %v120 = vld [vmem:[%s0 + $0x171] sm:$0xff]
    %v121 = vld [vmem:[%s0 + $0x1b1] sm:$0xff]
    %v122 = vld [vmem:[%s0 + $0x1b9] sm:$0xff]
    %v123 = vld [vmem:[%s0 + $0x1c9] sm:$0xff]
    %v124 = vld [vmem:[%s0 + $0x1d1] sm:$0xff]
    %v125 = vld [vmem:[%s0 + $0x1e1] sm:$0xff]
    %v126 = vld [vmem:[%s0 + $0x1e9] sm:$0xff]
    %v127 = vld [vmem:[%s0 + $0x1f9] sm:$0xff]
    %v128 = vld [vmem:[%s0 + $0x201] sm:$0xff]
    %v129 = vld [vmem:[%s0 + $0x211] sm:$0xff]
    %v130 = vld [vmem:[%s0 + $0x219] sm:$0xff]
    %v131 = vld [vmem:[%s0 + $0x229] sm:$0xff]
    %v132 = vld [vmem:[%s0 + $0x231] sm:$0xff]
    %v133 = vld [vmem:[%s0 + $0x241] sm:$0xff]
    %v134 = vld [vmem:[%s0 + $0x249] sm:$0xff]
    %v135 = vld [vmem:[%s0 + $0x259] sm:$0xff]
    %v136 = vld [vmem:[%s0 + $0x261] sm:$0xff]
    %v137 = vld [vmem:[%s0 + $0x271] sm:$0xff]
    %v138 = vld [vmem:[%s0 + $0x279] sm:$0xff]
    %v139 = vld [vmem:[%s0 + $0x289] sm:$0xff]
    %v140 = vld [vmem:[%s0 + $0x291] sm:$0xff]
    %v141 = vld [vmem:[%s0 + $0x2a1] sm:$0xff]
    %v142 = vld [vmem:[%s0 + $0x2a9] sm:$0xff]
    %v143 = vld [vmem:[%s0 + $0x2b9] sm:$0xff]
    %v144 = vld [vmem:[%s0 + $0x2c1] sm:$0xff]
    %v145 = vld [vmem:[%s0 + $0x2d1] sm:$0xff]
    %v146 = vld [vmem:[%s0 + $0x2d9] sm:$0xff]
    %v147 = vld [vmem:[%s0 + $0x2e9] sm:$0xff]
    %v148 = vld [vmem:[%s0 + $0x2f1] sm:$0xff]
    %v149 = vld [vmem:[%s0 + $0x301] sm:$0xff]
    %v150 = vld [vmem:[%s0 + $0x309] sm:$0xff]
    %v151 = vld [vmem:[%s0 + $0x319] sm:$0xff]
    %v152 = vld [vmem:[%s0 + $0x321] sm:$0xff]
    %s153 = scalar_lea.vmem %s1, 32
    %v154 = vld [vmem:[%s153] sm:$0xff]
    %v155 = vld [vmem:[%s153 + $0x8] sm:$0xff]
    %v156 = vld [vmem:[%s153 + $0x10] sm:$0xff]
    %v157 = vld [vmem:[%s153 + $0x18] sm:$0xff]
    %vm158 = vcmask 261120
    %v160 = vsel %vm158, %v89, 0
    %v163 = vsel %vm158, %v90, 0
    %v166 = vsel %vm158, %v91, 0
    %v169 = vsel %vm158, %v92, 0
    %v172 = vsel %vm158, %v93, 0
    %v175 = vsel %vm158, %v94, 0
    %v178 = vsel %vm158, %v95, 0
    %v181 = vsel %vm158, %v96, 0
    %v184 = vsel %vm158, %v97, 0
    %v187 = vsel %vm158, %v98, 0
    %v190 = vsel %vm158, %v99, 0
    %v193 = vsel %vm158, %v100, 0
    %v196 = vsel %vm158, %v101, 0
    %v199 = vsel %vm158, %v102, 0
    %v202 = vsel %vm158, %v103, 0
    %v205 = vsel %vm158, %v104, 0
    %v208 = vsel %vm158, %v105, 0
    %v211 = vsel %vm158, %v106, 0
    %v214 = vsel %vm158, %v107, 0
    %v217 = vsel %vm158, %v108, 0
    %v220 = vsel %vm158, %v109, 0
    %v223 = vsel %vm158, %v110, 0
    %v226 = vsel %vm158, %v111, 0
    %v229 = vsel %vm158, %v112, 0
    %v232 = vsel %vm158, %v113, 0
    %v235 = vsel %vm158, %v114, 0
    %v238 = vsel %vm158, %v115, 0
    %v241 = vsel %vm158, %v116, 0
    %v244 = vsel %vm158, %v117, 0
    %v247 = vsel %vm158, %v118, 0
    %v250 = vsel %vm158, %v119, 0
    %v253 = vsel %vm158, %v120, 0
    %v256 = vsel %vm158, %v121, 0
    %v259 = vsel %vm158, %v122, 0
    %v262 = vsel %vm158, %v123, 0
    %v265 = vsel %vm158, %v124, 0
    %v268 = vsel %vm158, %v125, 0
    %v271 = vsel %vm158, %v126, 0
    %v274 = vsel %vm158, %v127, 0
    %v277 = vsel %vm158, %v128, 0
    %v280 = vsel %vm158, %v129, 0
    %v283 = vsel %vm158, %v130, 0
    %v286 = vsel %vm158, %v131, 0
    %v289 = vsel %vm158, %v132, 0
    %v292 = vsel %vm158, %v133, 0
    %v295 = vsel %vm158, %v134, 0
    %v298 = vsel %vm158, %v135, 0
    %v301 = vsel %vm158, %v136, 0
    %v304 = vsel %vm158, %v137, 0
    %v307 = vsel %vm158, %v138, 0
    %v310 = vsel %vm158, %v139, 0
    %v313 = vsel %vm158, %v140, 0
    %v316 = vsel %vm158, %v141, 0
    %v319 = vsel %vm158, %v142, 0
    %v322 = vsel %vm158, %v143, 0
    %v325 = vsel %vm158, %v144, 0
    %v328 = vsel %vm158, %v145, 0
    %v331 = vsel %vm158, %v146, 0
    %v334 = vsel %vm158, %v147, 0
    %v337 = vsel %vm158, %v148, 0
    %v340 = vsel %vm158, %v149, 0
    %v343 = vsel %vm158, %v150, 0
    %v346 = vsel %vm158, %v151, 0
    %v349 = vsel %vm158, %v152, 0
    %351 = vmatprep.subr.mxu0 0.0
    %352 = vmatpush1.msra.mxu0 0.0
    %353 = vmatprep.subr.mxu0 0.0
    %354 = vmatpush1.msra.mxu0 0.0
    %355 = vmatprep.subr.mxu0 0.0
    %356 = vmatpush1.msra.mxu0 0.0
    %357 = vmatprep.subr.mxu0 0.0
    %358 = vmatpush1.msra.mxu0 0.0
    %359 = vmatprep.subr.mxu0 0.0
    %360 = vmatpush1.msra.mxu0 0.0
    %361 = vmatprep.subr.mxu0 0.0
    %362 = vmatpush1.msra.mxu0 0.0
    %363 = vmatprep.subr.mxu0 0.0
    %364 = vmatpush1.msra.mxu0 0.0
    %365 = vmatprep.subr.mxu0 0.0
    %366 = vmatpush1.msra.mxu0 0.0
    %367 = vmatprep.subr.mxu0 0.0
    %368 = vmatpush1.msra.mxu0 0.0
    %369 = vmatprep.subr.mxu0 0.0
    %370 = vmatpush1.msra.mxu0 0.0
    %371 = vmatprep.subr.mxu0 0.0
    %372 = vmatpush1.msra.mxu0 0.0
    %373 = vmatprep.subr.mxu0 0.0
    %374 = vmatpush1.msra.mxu0 0.0
    %375 = vmatprep.subr.mxu0 0.0
    %376 = vmatpush1.msra.mxu0 %v157
    %377 = vmatprep.subr.mxu0 0.0
    %378 = vmatpush1.msra.mxu0 %v156
    %379 = vmatprep.subr.mxu0 0.0
    %380 = vmatpush1.msra.mxu0 %v155
    %381 = vmatprep.subr.mxu0 0.0
    %382 = vmatpush1.msra.mxu0 %v154
    %383 = vmatprep.subr.mxu0 0.0
    %384 = vmatpush2.msra.mxu0 0.0
    %385 = vmatprep.subr.mxu0 0.0
    %386 = vmatpush2.msra.mxu0 0.0
    %387 = vmatprep.subr.mxu0 0.0
    %388 = vmatpush2.msra.mxu0 0.0
    %389 = vmatprep.subr.mxu0 0.0
    %390 = vmatpush2.msra.mxu0 0.0
    %391 = vmatprep.subr.mxu0 0.0
    %392 = vmatpush2.msra.mxu0 0.0
    %393 = vmatprep.subr.mxu0 0.0
    %394 = vmatpush2.msra.mxu0 0.0
    %395 = vmatprep.subr.mxu0 0.0
    %396 = vmatpush2.msra.mxu0 0.0
    %397 = vmatprep.subr.mxu0 0.0
    %398 = vmatpush2.msra.mxu0 0.0
    %399 = vmatprep.subr.mxu0 0.0
    %400 = vmatpush2.msra.mxu0 0.0
    %401 = vmatprep.subr.mxu0 0.0
    %402 = vmatpush2.msra.mxu0 0.0
    %403 = vmatprep.subr.mxu0 0.0
    %404 = vmatpush2.msra.mxu0 0.0
    %405 = vmatprep.subr.mxu0 0.0
    %406 = vmatpush2.msra.mxu0 0.0
    %407 = vmatprep.subr.mxu0 0.0
    %408 = vmatpush2.msra.mxu0 0.0
    %409 = vmatprep.subr.mxu0 0.0
    %410 = vmatpush2.msra.mxu0 0.0
    %411 = vmatprep.subr.mxu0 0.0
    %412 = vmatpush2.msra.mxu0 0.0
    %413 = vmatprep.subr.mxu0 0.0
    %414 = vmatpush2.msra.mxu0 0.0
    %415 = vmatprep.mubr.f32.mxu0 0.0
    %416 = vmatmul.mubr.f32.gmra.mxu0 %v160
    %v417 = vpop.f32.mrf.mxu0
    %v418 = vadd.f32 0.0, %v417
    %v419 = vpop.f32.mrf.mxu0
    %420 = vmatprep.mubr.f32.mxu0 0.0
    %421 = vmatmul.mubr.f32.gmra.mxu0 %v163
    %v422 = vpop.f32.mrf.mxu0
    %v423 = vadd.f32 0.0, %v422
    %v424 = vpop.f32.mrf.mxu0
    %425 = vmatprep.mubr.f32.mxu0 0.0
    %426 = vmatmul.mubr.f32.gmra.mxu0 %v166
    %v427 = vpop.f32.mrf.mxu0
    %v428 = vadd.f32 0.0, %v427
    %v429 = vpop.f32.mrf.mxu0
    %430 = vmatprep.mubr.f32.mxu0 0.0
    %431 = vmatmul.mubr.f32.gmra.mxu0 %v169
    %v432 = vpop.f32.mrf.mxu0
    %v433 = vadd.f32 0.0, %v432
    %v434 = vpop.f32.mrf.mxu0
    %435 = vmatprep.mubr.f32.mxu0 0.0
    %436 = vmatmul.mubr.f32.gmra.mxu0 %v172
    %v437 = vpop.f32.mrf.mxu0
    %v438 = vadd.f32 0.0, %v437
    %v439 = vpop.f32.mrf.mxu0
    %440 = vmatprep.mubr.f32.mxu0 0.0
    %441 = vmatmul.mubr.f32.gmra.mxu0 %v175
    %v442 = vpop.f32.mrf.mxu0
    %v443 = vadd.f32 0.0, %v442
    %v444 = vpop.f32.mrf.mxu0
    %445 = vmatprep.mubr.f32.mxu0 0.0
    %446 = vmatmul.mubr.f32.gmra.mxu0 %v178
    %v447 = vpop.f32.mrf.mxu0
    %v448 = vadd.f32 0.0, %v447
    %v449 = vpop.f32.mrf.mxu0
    %450 = vmatprep.mubr.f32.mxu0 0.0
    %451 = vmatmul.mubr.f32.gmra.mxu0 %v181
    %v452 = vpop.f32.mrf.mxu0
    %v453 = vadd.f32 0.0, %v452
    %v454 = vpop.f32.mrf.mxu0
    %455 = vmatprep.mubr.f32.mxu0 0.0
    %456 = vmatmul.mubr.f32.gmra.mxu0 %v184
    %v457 = vpop.f32.mrf.mxu0
    %v458 = vadd.f32 0.0, %v457
    %v459 = vpop.f32.mrf.mxu0
    %460 = vmatprep.mubr.f32.mxu0 0.0
    %461 = vmatmul.mubr.f32.gmra.mxu0 %v187
    %v462 = vpop.f32.mrf.mxu0
    %v463 = vadd.f32 0.0, %v462
    %v464 = vpop.f32.mrf.mxu0
    %465 = vmatprep.mubr.f32.mxu0 0.0
    %466 = vmatmul.mubr.f32.gmra.mxu0 %v190
    %v467 = vpop.f32.mrf.mxu0
    %v468 = vadd.f32 0.0, %v467
    %v469 = vpop.f32.mrf.mxu0
    %470 = vmatprep.mubr.f32.mxu0 0.0
    %471 = vmatmul.mubr.f32.gmra.mxu0 %v193
    %v472 = vpop.f32.mrf.mxu0
    %v473 = vadd.f32 0.0, %v472
    %v474 = vpop.f32.mrf.mxu0
    %475 = vmatprep.mubr.f32.mxu0 0.0
    %476 = vmatmul.mubr.f32.gmra.mxu0 %v196
    %v477 = vpop.f32.mrf.mxu0
    %v478 = vadd.f32 0.0, %v477
    %v479 = vpop.f32.mrf.mxu0
    %480 = vmatprep.mubr.f32.mxu0 0.0
    %481 = vmatmul.mubr.f32.gmra.mxu0 %v199
    %v482 = vpop.f32.mrf.mxu0
    %v483 = vadd.f32 0.0, %v482
    %v484 = vpop.f32.mrf.mxu0
    %485 = vmatprep.mubr.f32.mxu0 0.0
    %486 = vmatmul.mubr.f32.gmra.mxu0 %v202
    %v487 = vpop.f32.mrf.mxu0
    %v488 = vadd.f32 0.0, %v487
    %v489 = vpop.f32.mrf.mxu0
    %490 = vmatprep.mubr.f32.mxu0 0.0
    %491 = vmatmul.mubr.f32.gmra.mxu0 %v205
    %v492 = vpop.f32.mrf.mxu0
    %v493 = vadd.f32 0.0, %v492
    %v494 = vpop.f32.mrf.mxu0
    %495 = vmatprep.mubr.f32.mxu0 0.0
    %496 = vmatmul.mubr.f32.gmra.mxu0 %v208
    %v497 = vpop.f32.mrf.mxu0
    %v498 = vadd.f32 0.0, %v497
    %v499 = vpop.f32.mrf.mxu0
    %500 = vmatprep.mubr.f32.mxu0 0.0
    %501 = vmatmul.mubr.f32.gmra.mxu0 %v211
    %v502 = vpop.f32.mrf.mxu0
    %v503 = vadd.f32 0.0, %v502
    %v504 = vpop.f32.mrf.mxu0
    %505 = vmatprep.mubr.f32.mxu0 0.0
    %506 = vmatmul.mubr.f32.gmra.mxu0 %v214
    %v507 = vpop.f32.mrf.mxu0
    %v508 = vadd.f32 0.0, %v507
    %v509 = vpop.f32.mrf.mxu0
    %510 = vmatprep.mubr.f32.mxu0 0.0
    %511 = vmatmul.mubr.f32.gmra.mxu0 %v217
    %v512 = vpop.f32.mrf.mxu0
    %v513 = vadd.f32 0.0, %v512
    %v514 = vpop.f32.mrf.mxu0
    %515 = vmatprep.mubr.f32.mxu0 0.0
    %516 = vmatmul.mubr.f32.gmra.mxu0 %v220
    %v517 = vpop.f32.mrf.mxu0
    %v518 = vadd.f32 0.0, %v517
    %v519 = vpop.f32.mrf.mxu0
    %520 = vmatprep.mubr.f32.mxu0 0.0
    %521 = vmatmul.mubr.f32.gmra.mxu0 %v223
    %v522 = vpop.f32.mrf.mxu0
    %v523 = vadd.f32 0.0, %v522
    %v524 = vpop.f32.mrf.mxu0
    %525 = vmatprep.mubr.f32.mxu0 0.0
    %526 = vmatmul.mubr.f32.gmra.mxu0 %v226
    %v527 = vpop.f32.mrf.mxu0
    %v528 = vadd.f32 0.0, %v527
    %v529 = vpop.f32.mrf.mxu0
    %530 = vmatprep.mubr.f32.mxu0 0.0
    %531 = vmatmul.mubr.f32.gmra.mxu0 %v229
    %v532 = vpop.f32.mrf.mxu0
    %v533 = vadd.f32 0.0, %v532
    %v534 = vpop.f32.mrf.mxu0
    %535 = vmatprep.mubr.f32.mxu0 0.0
    %536 = vmatmul.mubr.f32.gmra.mxu0 %v232
    %v537 = vpop.f32.mrf.mxu0
    %v538 = vadd.f32 0.0, %v537
    %v539 = vpop.f32.mrf.mxu0
    %540 = vmatprep.mubr.f32.mxu0 0.0
    %541 = vmatmul.mubr.f32.gmra.mxu0 %v235
    %v542 = vpop.f32.mrf.mxu0
    %v543 = vadd.f32 0.0, %v542
    %v544 = vpop.f32.mrf.mxu0
    %545 = vmatprep.mubr.f32.mxu0 0.0
    %546 = vmatmul.mubr.f32.gmra.mxu0 %v238
    %v547 = vpop.f32.mrf.mxu0
    %v548 = vadd.f32 0.0, %v547
    %v549 = vpop.f32.mrf.mxu0
    %550 = vmatprep.mubr.f32.mxu0 0.0
    %551 = vmatmul.mubr.f32.gmra.mxu0 %v241
    %v552 = vpop.f32.mrf.mxu0
    %v553 = vadd.f32 0.0, %v552
    %v554 = vpop.f32.mrf.mxu0
    %555 = vmatprep.mubr.f32.mxu0 0.0
    %556 = vmatmul.mubr.f32.gmra.mxu0 %v244
    %v557 = vpop.f32.mrf.mxu0
    %v558 = vadd.f32 0.0, %v557
    %v559 = vpop.f32.mrf.mxu0
    %560 = vmatprep.mubr.f32.mxu0 0.0
    %561 = vmatmul.mubr.f32.gmra.mxu0 %v247
    %v562 = vpop.f32.mrf.mxu0
    %v563 = vadd.f32 0.0, %v562
    %v564 = vpop.f32.mrf.mxu0
    %565 = vmatprep.mubr.f32.mxu0 0.0
    %566 = vmatmul.mubr.f32.gmra.mxu0 %v250
    %v567 = vpop.f32.mrf.mxu0
    %v568 = vadd.f32 0.0, %v567
    %v569 = vpop.f32.mrf.mxu0
    %570 = vmatprep.mubr.f32.mxu0 0.0
    %571 = vmatmul.mubr.f32.gmra.mxu0 %v253
    %v572 = vpop.f32.mrf.mxu0
    %v573 = vadd.f32 0.0, %v572
    %v574 = vpop.f32.mrf.mxu0
    %575 = vmatprep.mubr.f32.mxu0 0.0
    %576 = vmatmul.mubr.f32.gmra.mxu0 %v256
    %v577 = vpop.f32.mrf.mxu0
    %v578 = vadd.f32 0.0, %v577
    %v579 = vpop.f32.mrf.mxu0
    %580 = vmatprep.mubr.f32.mxu0 0.0
    %581 = vmatmul.mubr.f32.gmra.mxu0 %v259
    %v582 = vpop.f32.mrf.mxu0
    %v583 = vadd.f32 0.0, %v582
    %v584 = vpop.f32.mrf.mxu0
    %585 = vmatprep.mubr.f32.mxu0 0.0
    %586 = vmatmul.mubr.f32.gmra.mxu0 %v262
    %v587 = vpop.f32.mrf.mxu0
    %v588 = vadd.f32 0.0, %v587
    %v589 = vpop.f32.mrf.mxu0
    %590 = vmatprep.mubr.f32.mxu0 0.0
    %591 = vmatmul.mubr.f32.gmra.mxu0 %v265
    %v592 = vpop.f32.mrf.mxu0
    %v593 = vadd.f32 0.0, %v592
    %v594 = vpop.f32.mrf.mxu0
    %595 = vmatprep.mubr.f32.mxu0 0.0
    %596 = vmatmul.mubr.f32.gmra.mxu0 %v268
    %v597 = vpop.f32.mrf.mxu0
    %v598 = vadd.f32 0.0, %v597
    %v599 = vpop.f32.mrf.mxu0
    %600 = vmatprep.mubr.f32.mxu0 0.0
    %601 = vmatmul.mubr.f32.gmra.mxu0 %v271
    %v602 = vpop.f32.mrf.mxu0
    %v603 = vadd.f32 0.0, %v602
    %v604 = vpop.f32.mrf.mxu0
    %605 = vmatprep.mubr.f32.mxu0 0.0
    %606 = vmatmul.mubr.f32.gmra.mxu0 %v274
    %v607 = vpop.f32.mrf.mxu0
    %v608 = vadd.f32 0.0, %v607
    %v609 = vpop.f32.mrf.mxu0
    %610 = vmatprep.mubr.f32.mxu0 0.0
    %611 = vmatmul.mubr.f32.gmra.mxu0 %v277
    %v612 = vpop.f32.mrf.mxu0
    %v613 = vadd.f32 0.0, %v612
    %v614 = vpop.f32.mrf.mxu0
    %615 = vmatprep.mubr.f32.mxu0 0.0
    %616 = vmatmul.mubr.f32.gmra.mxu0 %v280
    %v617 = vpop.f32.mrf.mxu0
    %v618 = vadd.f32 0.0, %v617
    %v619 = vpop.f32.mrf.mxu0
    %620 = vmatprep.mubr.f32.mxu0 0.0
    %621 = vmatmul.mubr.f32.gmra.mxu0 %v283
    %v622 = vpop.f32.mrf.mxu0
    %v623 = vadd.f32 0.0, %v622
    %v624 = vpop.f32.mrf.mxu0
    %625 = vmatprep.mubr.f32.mxu0 0.0
    %626 = vmatmul.mubr.f32.gmra.mxu0 %v286
    %v627 = vpop.f32.mrf.mxu0
    %v628 = vadd.f32 0.0, %v627
    %v629 = vpop.f32.mrf.mxu0
    %630 = vmatprep.mubr.f32.mxu0 0.0
    %631 = vmatmul.mubr.f32.gmra.mxu0 %v289
    %v632 = vpop.f32.mrf.mxu0
    %v633 = vadd.f32 0.0, %v632
    %v634 = vpop.f32.mrf.mxu0
    %635 = vmatprep.mubr.f32.mxu0 0.0
    %636 = vmatmul.mubr.f32.gmra.mxu0 %v292
    %v637 = vpop.f32.mrf.mxu0
    %v638 = vadd.f32 0.0, %v637
    %v639 = vpop.f32.mrf.mxu0
    %640 = vmatprep.mubr.f32.mxu0 0.0
    %641 = vmatmul.mubr.f32.gmra.mxu0 %v295
    %v642 = vpop.f32.mrf.mxu0
    %v643 = vadd.f32 0.0, %v642
    %v644 = vpop.f32.mrf.mxu0
    %645 = vmatprep.mubr.f32.mxu0 0.0
    %646 = vmatmul.mubr.f32.gmra.mxu0 %v298
    %v647 = vpop.f32.mrf.mxu0
    %v648 = vadd.f32 0.0, %v647
    %v649 = vpop.f32.mrf.mxu0
    %650 = vmatprep.mubr.f32.mxu0 0.0
    %651 = vmatmul.mubr.f32.gmra.mxu0 %v301
    %v652 = vpop.f32.mrf.mxu0
    %v653 = vadd.f32 0.0, %v652
    %v654 = vpop.f32.mrf.mxu0
    %655 = vmatprep.mubr.f32.mxu0 0.0
    %656 = vmatmul.mubr.f32.gmra.mxu0 %v304
    %v657 = vpop.f32.mrf.mxu0
    %v658 = vadd.f32 0.0, %v657
    %v659 = vpop.f32.mrf.mxu0
    %660 = vmatprep.mubr.f32.mxu0 0.0
    %661 = vmatmul.mubr.f32.gmra.mxu0 %v307
    %v662 = vpop.f32.mrf.mxu0
    %v663 = vadd.f32 0.0, %v662
    %v664 = vpop.f32.mrf.mxu0
    %665 = vmatprep.mubr.f32.mxu0 0.0
    %666 = vmatmul.mubr.f32.gmra.mxu0 %v310
    %v667 = vpop.f32.mrf.mxu0
    %v668 = vadd.f32 0.0, %v667
    %v669 = vpop.f32.mrf.mxu0
    %670 = vmatprep.mubr.f32.mxu0 0.0
    %671 = vmatmul.mubr.f32.gmra.mxu0 %v313
    %v672 = vpop.f32.mrf.mxu0
    %v673 = vadd.f32 0.0, %v672
    %v674 = vpop.f32.mrf.mxu0
    %675 = vmatprep.mubr.f32.mxu0 0.0
    %676 = vmatmul.mubr.f32.gmra.mxu0 %v316
    %v677 = vpop.f32.mrf.mxu0
    %v678 = vadd.f32 0.0, %v677
    %v679 = vpop.f32.mrf.mxu0
    %680 = vmatprep.mubr.f32.mxu0 0.0
    %681 = vmatmul.mubr.f32.gmra.mxu0 %v319
    %v682 = vpop.f32.mrf.mxu0
    %v683 = vadd.f32 0.0, %v682
    %v684 = vpop.f32.mrf.mxu0
    %685 = vmatprep.mubr.f32.mxu0 0.0
    %686 = vmatmul.mubr.f32.gmra.mxu0 %v322
    %v687 = vpop.f32.mrf.mxu0
    %v688 = vadd.f32 0.0, %v687
    %v689 = vpop.f32.mrf.mxu0
    %690 = vmatprep.mubr.f32.mxu0 0.0
    %691 = vmatmul.mubr.f32.gmra.mxu0 %v325
    %v692 = vpop.f32.mrf.mxu0
    %v693 = vadd.f32 0.0, %v692
    %v694 = vpop.f32.mrf.mxu0
    %695 = vmatprep.mubr.f32.mxu0 0.0
    %696 = vmatmul.mubr.f32.gmra.mxu0 %v328
    %v697 = vpop.f32.mrf.mxu0
    %v698 = vadd.f32 0.0, %v697
    %v699 = vpop.f32.mrf.mxu0
    %700 = vmatprep.mubr.f32.mxu0 0.0
    %701 = vmatmul.mubr.f32.gmra.mxu0 %v331
    %v702 = vpop.f32.mrf.mxu0
    %v703 = vadd.f32 0.0, %v702
    %v704 = vpop.f32.mrf.mxu0
    %705 = vmatprep.mubr.f32.mxu0 0.0
    %706 = vmatmul.mubr.f32.gmra.mxu0 %v334
    %v707 = vpop.f32.mrf.mxu0
    %v708 = vadd.f32 0.0, %v707
    %v709 = vpop.f32.mrf.mxu0
    %710 = vmatprep.mubr.f32.mxu0 0.0
    %711 = vmatmul.mubr.f32.gmra.mxu0 %v337
    %v712 = vpop.f32.mrf.mxu0
    %v713 = vadd.f32 0.0, %v712
    %v714 = vpop.f32.mrf.mxu0
    %715 = vmatprep.mubr.f32.mxu0 0.0
    %716 = vmatmul.mubr.f32.gmra.mxu0 %v340
    %v717 = vpop.f32.mrf.mxu0
    %v718 = vadd.f32 0.0, %v717
    %v719 = vpop.f32.mrf.mxu0
    %720 = vmatprep.mubr.f32.mxu0 0.0
    %721 = vmatmul.mubr.f32.gmra.mxu0 %v343
    %v722 = vpop.f32.mrf.mxu0
    %v723 = vadd.f32 0.0, %v722
    %v724 = vpop.f32.mrf.mxu0
    %725 = vmatprep.mubr.f32.mxu0 0.0
    %726 = vmatmul.mubr.f32.gmra.mxu0 %v346
    %v727 = vpop.f32.mrf.mxu0
    %v728 = vadd.f32 0.0, %v727
    %v729 = vpop.f32.mrf.mxu0
    %730 = vmatprep.mubr.f32.mxu0 0.0
    %731 = vmatmul.mubr.f32.gmra.mxu0 %v349
    %v732 = vpop.f32.mrf.mxu0
    %v733 = vadd.f32 0.0, %v732
    %v734 = vpop.f32.mrf.mxu0
    %735 = vdwg.mxu0
    %v737 = vsel %vm158, %v21, 0
    %v740 = vsel %vm158, %v22, 0
    %v743 = vsel %vm158, %v23, 0
    %v746 = vsel %vm158, %v24, 0
    %v749 = vsel %vm158, %v25, 0
    %v752 = vsel %vm158, %v26, 0
    %v755 = vsel %vm158, %v27, 0
    %v758 = vsel %vm158, %v28, 0
    %v761 = vsel %vm158, %v29, 0
    %v764 = vsel %vm158, %v30, 0
    %v767 = vsel %vm158, %v31, 0
    %v770 = vsel %vm158, %v32, 0
    %v773 = vsel %vm158, %v33, 0
    %v776 = vsel %vm158, %v34, 0
    %v779 = vsel %vm158, %v35, 0
    %v782 = vsel %vm158, %v36, 0
    %v785 = vsel %vm158, %v37, 0
    %v788 = vsel %vm158, %v38, 0
    %v791 = vsel %vm158, %v39, 0
    %v794 = vsel %vm158, %v40, 0
    %v797 = vsel %vm158, %v41, 0
    %v800 = vsel %vm158, %v42, 0
    %v803 = vsel %vm158, %v43, 0
    %v806 = vsel %vm158, %v44, 0
    %v809 = vsel %vm158, %v45, 0
    %v812 = vsel %vm158, %v46, 0
    %v815 = vsel %vm158, %v47, 0
    %v818 = vsel %vm158, %v48, 0
    %v821 = vsel %vm158, %v49, 0
    %v824 = vsel %vm158, %v50, 0
    %v827 = vsel %vm158, %v51, 0
    %v830 = vsel %vm158, %v52, 0
    %v833 = vsel %vm158, %v53, 0
    %v836 = vsel %vm158, %v54, 0
    %v839 = vsel %vm158, %v55, 0
    %v842 = vsel %vm158, %v56, 0
    %v845 = vsel %vm158, %v57, 0
    %v848 = vsel %vm158, %v58, 0
    %v851 = vsel %vm158, %v59, 0
    %v854 = vsel %vm158, %v60, 0
    %v857 = vsel %vm158, %v61, 0
    %v860 = vsel %vm158, %v62, 0
    %v863 = vsel %vm158, %v63, 0
    %v866 = vsel %vm158, %v64, 0
    %v869 = vsel %vm158, %v65, 0
    %v872 = vsel %vm158, %v66, 0
    %v875 = vsel %vm158, %v67, 0
    %v878 = vsel %vm158, %v68, 0
    %v881 = vsel %vm158, %v69, 0
    %v884 = vsel %vm158, %v70, 0
    %v887 = vsel %vm158, %v71, 0
    %v890 = vsel %vm158, %v72, 0
    %v893 = vsel %vm158, %v73, 0
    %v896 = vsel %vm158, %v74, 0
    %v899 = vsel %vm158, %v75, 0
    %v902 = vsel %vm158, %v76, 0
    %v905 = vsel %vm158, %v77, 0
    %v908 = vsel %vm158, %v78, 0
    %v911 = vsel %vm158, %v79, 0
    %v914 = vsel %vm158, %v80, 0
    %v917 = vsel %vm158, %v81, 0
    %v920 = vsel %vm158, %v82, 0
    %v923 = vsel %vm158, %v83, 0
    %v926 = vsel %vm158, %v84, 0
    %928 = vmatprep.subr.mxu0 0.0
    %929 = vmatpush1.msra.mxu0 0.0
    %930 = vmatprep.subr.mxu0 0.0
    %931 = vmatpush1.msra.mxu0 0.0
    %932 = vmatprep.subr.mxu0 0.0
    %933 = vmatpush1.msra.mxu0 0.0
    %934 = vmatprep.subr.mxu0 0.0
    %935 = vmatpush1.msra.mxu0 0.0
    %936 = vmatprep.subr.mxu0 0.0
    %937 = vmatpush1.msra.mxu0 0.0
    %938 = vmatprep.subr.mxu0 0.0
    %939 = vmatpush1.msra.mxu0 0.0
    %940 = vmatprep.subr.mxu0 0.0
    %941 = vmatpush1.msra.mxu0 0.0
    %942 = vmatprep.subr.mxu0 0.0
    %943 = vmatpush1.msra.mxu0 0.0
    %944 = vmatprep.subr.mxu0 0.0
    %945 = vmatpush1.msra.mxu0 0.0
    %946 = vmatprep.subr.mxu0 0.0
    %947 = vmatpush1.msra.mxu0 0.0
    %948 = vmatprep.subr.mxu0 0.0
    %949 = vmatpush1.msra.mxu0 0.0
    %950 = vmatprep.subr.mxu0 0.0
    %951 = vmatpush1.msra.mxu0 0.0
    %952 = vmatprep.subr.mxu0 0.0
    %953 = vmatpush1.msra.mxu0 %v88
    %954 = vmatprep.subr.mxu0 0.0
    %955 = vmatpush1.msra.mxu0 %v87
    %956 = vmatprep.subr.mxu0 0.0
    %957 = vmatpush1.msra.mxu0 %v86
    %958 = vmatprep.subr.mxu0 0.0
    %959 = vmatpush1.msra.mxu0 %v85
    %960 = vmatprep.subr.mxu0 0.0
    %961 = vmatpush2.msra.mxu0 0.0
    %962 = vmatprep.subr.mxu0 0.0
    %963 = vmatpush2.msra.mxu0 0.0
    %964 = vmatprep.subr.mxu0 0.0
    %965 = vmatpush2.msra.mxu0 0.0
    %966 = vmatprep.subr.mxu0 0.0
    %967 = vmatpush2.msra.mxu0 0.0
    %968 = vmatprep.subr.mxu0 0.0
    %969 = vmatpush2.msra.mxu0 0.0
    %970 = vmatprep.subr.mxu0 0.0
    %971 = vmatpush2.msra.mxu0 0.0
    %972 = vmatprep.subr.mxu0 0.0
    %973 = vmatpush2.msra.mxu0 0.0
    %974 = vmatprep.subr.mxu0 0.0
    %975 = vmatpush2.msra.mxu0 0.0
    %976 = vmatprep.subr.mxu0 0.0
    %977 = vmatpush2.msra.mxu0 0.0
    %978 = vmatprep.subr.mxu0 0.0
    %979 = vmatpush2.msra.mxu0 0.0
    %980 = vmatprep.subr.mxu0 0.0
    %981 = vmatpush2.msra.mxu0 0.0
    %982 = vmatprep.subr.mxu0 0.0
    %983 = vmatpush2.msra.mxu0 0.0
    %984 = vmatprep.subr.mxu0 0.0
    %985 = vmatpush2.msra.mxu0 0.0
    %986 = vmatprep.subr.mxu0 0.0
    %987 = vmatpush2.msra.mxu0 0.0
    %988 = vmatprep.subr.mxu0 0.0
    %989 = vmatpush2.msra.mxu0 0.0
    %990 = vmatprep.subr.mxu0 0.0
    %991 = vmatpush2.msra.mxu0 0.0
    %992 = vmatprep.mubr.f32.mxu0 0.0
    %993 = vmatmul.mubr.f32.gmra.mxu0 %v737
    %v994 = vpop.f32.mrf.mxu0
    %v995 = vadd.f32 %v418, %v994
    %v996 = vpop.f32.mrf.mxu0
    %997 = vmatprep.mubr.f32.mxu0 0.0
    %998 = vmatmul.mubr.f32.gmra.mxu0 %v740
    %v999 = vpop.f32.mrf.mxu0
    %v1000 = vadd.f32 %v423, %v999
    %v1001 = vpop.f32.mrf.mxu0
    %1002 = vmatprep.mubr.f32.mxu0 0.0
    %1003 = vmatmul.mubr.f32.gmra.mxu0 %v743
    %v1004 = vpop.f32.mrf.mxu0
    %v1005 = vadd.f32 %v428, %v1004
    %v1006 = vpop.f32.mrf.mxu0
    %1007 = vmatprep.mubr.f32.mxu0 0.0
    %1008 = vmatmul.mubr.f32.gmra.mxu0 %v746
    %v1009 = vpop.f32.mrf.mxu0
    %v1010 = vadd.f32 %v433, %v1009
    %v1011 = vpop.f32.mrf.mxu0
    %1012 = vmatprep.mubr.f32.mxu0 0.0
    %1013 = vmatmul.mubr.f32.gmra.mxu0 %v749
    %v1014 = vpop.f32.mrf.mxu0
    %v1015 = vadd.f32 %v438, %v1014
    %v1016 = vpop.f32.mrf.mxu0
    %1017 = vmatprep.mubr.f32.mxu0 0.0
    %1018 = vmatmul.mubr.f32.gmra.mxu0 %v752
    %v1019 = vpop.f32.mrf.mxu0
    %v1020 = vadd.f32 %v443, %v1019
    %v1021 = vpop.f32.mrf.mxu0
    %1022 = vmatprep.mubr.f32.mxu0 0.0
    %1023 = vmatmul.mubr.f32.gmra.mxu0 %v755
    %v1024 = vpop.f32.mrf.mxu0
    %v1025 = vadd.f32 %v448, %v1024
    %v1026 = vpop.f32.mrf.mxu0
    %1027 = vmatprep.mubr.f32.mxu0 0.0
    %1028 = vmatmul.mubr.f32.gmra.mxu0 %v758
    %v1029 = vpop.f32.mrf.mxu0
    %v1030 = vadd.f32 %v453, %v1029
    %v1031 = vpop.f32.mrf.mxu0
    %1032 = vmatprep.mubr.f32.mxu0 0.0
    %1033 = vmatmul.mubr.f32.gmra.mxu0 %v761
    %v1034 = vpop.f32.mrf.mxu0
    %v1035 = vadd.f32 %v458, %v1034
    %v1036 = vpop.f32.mrf.mxu0
    %1037 = vmatprep.mubr.f32.mxu0 0.0
    %1038 = vmatmul.mubr.f32.gmra.mxu0 %v764
    %v1039 = vpop.f32.mrf.mxu0
    %v1040 = vadd.f32 %v463, %v1039
    %v1041 = vpop.f32.mrf.mxu0
    %1042 = vmatprep.mubr.f32.mxu0 0.0
    %1043 = vmatmul.mubr.f32.gmra.mxu0 %v767
    %v1044 = vpop.f32.mrf.mxu0
    %v1045 = vadd.f32 %v468, %v1044
    %v1046 = vpop.f32.mrf.mxu0
    %1047 = vmatprep.mubr.f32.mxu0 0.0
    %1048 = vmatmul.mubr.f32.gmra.mxu0 %v770
    %v1049 = vpop.f32.mrf.mxu0
    %v1050 = vadd.f32 %v473, %v1049
    %v1051 = vpop.f32.mrf.mxu0
    %1052 = vmatprep.mubr.f32.mxu0 0.0
    %1053 = vmatmul.mubr.f32.gmra.mxu0 %v773
    %v1054 = vpop.f32.mrf.mxu0
    %v1055 = vadd.f32 %v478, %v1054
    %v1056 = vpop.f32.mrf.mxu0
    %1057 = vmatprep.mubr.f32.mxu0 0.0
    %1058 = vmatmul.mubr.f32.gmra.mxu0 %v776
    %v1059 = vpop.f32.mrf.mxu0
    %v1060 = vadd.f32 %v483, %v1059
    %v1061 = vpop.f32.mrf.mxu0
    %1062 = vmatprep.mubr.f32.mxu0 0.0
    %1063 = vmatmul.mubr.f32.gmra.mxu0 %v779
    %v1064 = vpop.f32.mrf.mxu0
    %v1065 = vadd.f32 %v488, %v1064
    %v1066 = vpop.f32.mrf.mxu0
    %1067 = vmatprep.mubr.f32.mxu0 0.0
    %1068 = vmatmul.mubr.f32.gmra.mxu0 %v782
    %v1069 = vpop.f32.mrf.mxu0
    %v1070 = vadd.f32 %v493, %v1069
    %v1071 = vpop.f32.mrf.mxu0
    %1072 = vmatprep.mubr.f32.mxu0 0.0
    %1073 = vmatmul.mubr.f32.gmra.mxu0 %v785
    %v1074 = vpop.f32.mrf.mxu0
    %v1075 = vadd.f32 %v498, %v1074
    %v1076 = vpop.f32.mrf.mxu0
    %1077 = vmatprep.mubr.f32.mxu0 0.0
    %1078 = vmatmul.mubr.f32.gmra.mxu0 %v788
    %v1079 = vpop.f32.mrf.mxu0
    %v1080 = vadd.f32 %v503, %v1079
    %v1081 = vpop.f32.mrf.mxu0
    %1082 = vmatprep.mubr.f32.mxu0 0.0
    %1083 = vmatmul.mubr.f32.gmra.mxu0 %v791
    %v1084 = vpop.f32.mrf.mxu0
    %v1085 = vadd.f32 %v508, %v1084
    %v1086 = vpop.f32.mrf.mxu0
    %1087 = vmatprep.mubr.f32.mxu0 0.0
    %1088 = vmatmul.mubr.f32.gmra.mxu0 %v794
    %v1089 = vpop.f32.mrf.mxu0
    %v1090 = vadd.f32 %v513, %v1089
    %v1091 = vpop.f32.mrf.mxu0
    %1092 = vmatprep.mubr.f32.mxu0 0.0
    %1093 = vmatmul.mubr.f32.gmra.mxu0 %v797
    %v1094 = vpop.f32.mrf.mxu0
    %v1095 = vadd.f32 %v518, %v1094
    %v1096 = vpop.f32.mrf.mxu0
    %1097 = vmatprep.mubr.f32.mxu0 0.0
    %1098 = vmatmul.mubr.f32.gmra.mxu0 %v800
    %v1099 = vpop.f32.mrf.mxu0
    %v1100 = vadd.f32 %v523, %v1099
    %v1101 = vpop.f32.mrf.mxu0
    %1102 = vmatprep.mubr.f32.mxu0 0.0
    %1103 = vmatmul.mubr.f32.gmra.mxu0 %v803
    %v1104 = vpop.f32.mrf.mxu0
    %v1105 = vadd.f32 %v528, %v1104
    %v1106 = vpop.f32.mrf.mxu0
    %1107 = vmatprep.mubr.f32.mxu0 0.0
    %1108 = vmatmul.mubr.f32.gmra.mxu0 %v806
    %v1109 = vpop.f32.mrf.mxu0
    %v1110 = vadd.f32 %v533, %v1109
    %v1111 = vpop.f32.mrf.mxu0
    %1112 = vmatprep.mubr.f32.mxu0 0.0
    %1113 = vmatmul.mubr.f32.gmra.mxu0 %v809
    %v1114 = vpop.f32.mrf.mxu0
    %v1115 = vadd.f32 %v538, %v1114
    %v1116 = vpop.f32.mrf.mxu0
    %1117 = vmatprep.mubr.f32.mxu0 0.0
    %1118 = vmatmul.mubr.f32.gmra.mxu0 %v812
    %v1119 = vpop.f32.mrf.mxu0
    %v1120 = vadd.f32 %v543, %v1119
    %v1121 = vpop.f32.mrf.mxu0
    %1122 = vmatprep.mubr.f32.mxu0 0.0
    %1123 = vmatmul.mubr.f32.gmra.mxu0 %v815
    %v1124 = vpop.f32.mrf.mxu0
    %v1125 = vadd.f32 %v548, %v1124
    %v1126 = vpop.f32.mrf.mxu0
    %1127 = vmatprep.mubr.f32.mxu0 0.0
    %1128 = vmatmul.mubr.f32.gmra.mxu0 %v818
    %v1129 = vpop.f32.mrf.mxu0
    %v1130 = vadd.f32 %v553, %v1129
    %v1131 = vpop.f32.mrf.mxu0
    %1132 = vmatprep.mubr.f32.mxu0 0.0
    %1133 = vmatmul.mubr.f32.gmra.mxu0 %v821
    %v1134 = vpop.f32.mrf.mxu0
    %v1135 = vadd.f32 %v558, %v1134
    %v1136 = vpop.f32.mrf.mxu0
    %1137 = vmatprep.mubr.f32.mxu0 0.0
    %1138 = vmatmul.mubr.f32.gmra.mxu0 %v824
    %v1139 = vpop.f32.mrf.mxu0
    %v1140 = vadd.f32 %v563, %v1139
    %v1141 = vpop.f32.mrf.mxu0
    %1142 = vmatprep.mubr.f32.mxu0 0.0
    %1143 = vmatmul.mubr.f32.gmra.mxu0 %v827
    %v1144 = vpop.f32.mrf.mxu0
    %v1145 = vadd.f32 %v568, %v1144
    %v1146 = vpop.f32.mrf.mxu0
    %1147 = vmatprep.mubr.f32.mxu0 0.0
    %1148 = vmatmul.mubr.f32.gmra.mxu0 %v830
    %v1149 = vpop.f32.mrf.mxu0
    %v1150 = vadd.f32 %v573, %v1149
    %v1151 = vpop.f32.mrf.mxu0
    %1152 = vmatprep.mubr.f32.mxu0 0.0
    %1153 = vmatmul.mubr.f32.gmra.mxu0 %v833
    %v1154 = vpop.f32.mrf.mxu0
    %v1155 = vadd.f32 %v578, %v1154
    %v1156 = vpop.f32.mrf.mxu0
    %1157 = vmatprep.mubr.f32.mxu0 0.0
    %1158 = vmatmul.mubr.f32.gmra.mxu0 %v836
    %v1159 = vpop.f32.mrf.mxu0
    %v1160 = vadd.f32 %v583, %v1159
    %v1161 = vpop.f32.mrf.mxu0
    %1162 = vmatprep.mubr.f32.mxu0 0.0
    %1163 = vmatmul.mubr.f32.gmra.mxu0 %v839
    %v1164 = vpop.f32.mrf.mxu0
    %v1165 = vadd.f32 %v588, %v1164
    %v1166 = vpop.f32.mrf.mxu0
    %1167 = vmatprep.mubr.f32.mxu0 0.0
    %1168 = vmatmul.mubr.f32.gmra.mxu0 %v842
    %v1169 = vpop.f32.mrf.mxu0
    %v1170 = vadd.f32 %v593, %v1169
    %v1171 = vpop.f32.mrf.mxu0
    %1172 = vmatprep.mubr.f32.mxu0 0.0
    %1173 = vmatmul.mubr.f32.gmra.mxu0 %v845
    %v1174 = vpop.f32.mrf.mxu0
    %v1175 = vadd.f32 %v598, %v1174
    %v1176 = vpop.f32.mrf.mxu0
    %1177 = vmatprep.mubr.f32.mxu0 0.0
    %1178 = vmatmul.mubr.f32.gmra.mxu0 %v848
    %v1179 = vpop.f32.mrf.mxu0
    %v1180 = vadd.f32 %v603, %v1179
    %v1181 = vpop.f32.mrf.mxu0
    %1182 = vmatprep.mubr.f32.mxu0 0.0
    %1183 = vmatmul.mubr.f32.gmra.mxu0 %v851
    %v1184 = vpop.f32.mrf.mxu0
    %v1185 = vadd.f32 %v608, %v1184
    %v1186 = vpop.f32.mrf.mxu0
    %1187 = vmatprep.mubr.f32.mxu0 0.0
    %1188 = vmatmul.mubr.f32.gmra.mxu0 %v854
    %v1189 = vpop.f32.mrf.mxu0
    %v1190 = vadd.f32 %v613, %v1189
    %v1191 = vpop.f32.mrf.mxu0
    %1192 = vmatprep.mubr.f32.mxu0 0.0
    %1193 = vmatmul.mubr.f32.gmra.mxu0 %v857
    %v1194 = vpop.f32.mrf.mxu0
    %v1195 = vadd.f32 %v618, %v1194
    %v1196 = vpop.f32.mrf.mxu0
    %1197 = vmatprep.mubr.f32.mxu0 0.0
    %1198 = vmatmul.mubr.f32.gmra.mxu0 %v860
    %v1199 = vpop.f32.mrf.mxu0
    %v1200 = vadd.f32 %v623, %v1199
    %v1201 = vpop.f32.mrf.mxu0
    %1202 = vmatprep.mubr.f32.mxu0 0.0
    %1203 = vmatmul.mubr.f32.gmra.mxu0 %v863
    %v1204 = vpop.f32.mrf.mxu0
    %v1205 = vadd.f32 %v628, %v1204
    %v1206 = vpop.f32.mrf.mxu0
    %1207 = vmatprep.mubr.f32.mxu0 0.0
    %1208 = vmatmul.mubr.f32.gmra.mxu0 %v866
    %v1209 = vpop.f32.mrf.mxu0
    %v1210 = vadd.f32 %v633, %v1209
    %v1211 = vpop.f32.mrf.mxu0
    %1212 = vmatprep.mubr.f32.mxu0 0.0
    %1213 = vmatmul.mubr.f32.gmra.mxu0 %v869
    %v1214 = vpop.f32.mrf.mxu0
    %v1215 = vadd.f32 %v638, %v1214
    %v1216 = vpop.f32.mrf.mxu0
    %1217 = vmatprep.mubr.f32.mxu0 0.0
    %1218 = vmatmul.mubr.f32.gmra.mxu0 %v872
    %v1219 = vpop.f32.mrf.mxu0
    %v1220 = vadd.f32 %v643, %v1219
    %v1221 = vpop.f32.mrf.mxu0
    %1222 = vmatprep.mubr.f32.mxu0 0.0
    %1223 = vmatmul.mubr.f32.gmra.mxu0 %v875
    %v1224 = vpop.f32.mrf.mxu0
    %v1225 = vadd.f32 %v648, %v1224
    %v1226 = vpop.f32.mrf.mxu0
    %1227 = vmatprep.mubr.f32.mxu0 0.0
    %1228 = vmatmul.mubr.f32.gmra.mxu0 %v878
    %v1229 = vpop.f32.mrf.mxu0
    %v1230 = vadd.f32 %v653, %v1229
    %v1231 = vpop.f32.mrf.mxu0
    %1232 = vmatprep.mubr.f32.mxu0 0.0
    %1233 = vmatmul.mubr.f32.gmra.mxu0 %v881
    %v1234 = vpop.f32.mrf.mxu0
    %v1235 = vadd.f32 %v658, %v1234
    %v1236 = vpop.f32.mrf.mxu0
    %1237 = vmatprep.mubr.f32.mxu0 0.0
    %1238 = vmatmul.mubr.f32.gmra.mxu0 %v884
    %v1239 = vpop.f32.mrf.mxu0
    %v1240 = vadd.f32 %v663, %v1239
    %v1241 = vpop.f32.mrf.mxu0
    %1242 = vmatprep.mubr.f32.mxu0 0.0
    %1243 = vmatmul.mubr.f32.gmra.mxu0 %v887
    %v1244 = vpop.f32.mrf.mxu0
    %v1245 = vadd.f32 %v668, %v1244
    %v1246 = vpop.f32.mrf.mxu0
    %1247 = vmatprep.mubr.f32.mxu0 0.0
    %1248 = vmatmul.mubr.f32.gmra.mxu0 %v890
    %v1249 = vpop.f32.mrf.mxu0
    %v1250 = vadd.f32 %v673, %v1249
    %v1251 = vpop.f32.mrf.mxu0
    %1252 = vmatprep.mubr.f32.mxu0 0.0
    %1253 = vmatmul.mubr.f32.gmra.mxu0 %v893
    %v1254 = vpop.f32.mrf.mxu0
    %v1255 = vadd.f32 %v678, %v1254
    %v1256 = vpop.f32.mrf.mxu0
    %1257 = vmatprep.mubr.f32.mxu0 0.0
    %1258 = vmatmul.mubr.f32.gmra.mxu0 %v896
    %v1259 = vpop.f32.mrf.mxu0
    %v1260 = vadd.f32 %v683, %v1259
    %v1261 = vpop.f32.mrf.mxu0
    %1262 = vmatprep.mubr.f32.mxu0 0.0
    %1263 = vmatmul.mubr.f32.gmra.mxu0 %v899
    %v1264 = vpop.f32.mrf.mxu0
    %v1265 = vadd.f32 %v688, %v1264
    %v1266 = vpop.f32.mrf.mxu0
    %1267 = vmatprep.mubr.f32.mxu0 0.0
    %1268 = vmatmul.mubr.f32.gmra.mxu0 %v902
    %v1269 = vpop.f32.mrf.mxu0
    %v1270 = vadd.f32 %v693, %v1269
    %v1271 = vpop.f32.mrf.mxu0
    %1272 = vmatprep.mubr.f32.mxu0 0.0
    %1273 = vmatmul.mubr.f32.gmra.mxu0 %v905
    %v1274 = vpop.f32.mrf.mxu0
    %v1275 = vadd.f32 %v698, %v1274
    %v1276 = vpop.f32.mrf.mxu0
    %1277 = vmatprep.mubr.f32.mxu0 0.0
    %1278 = vmatmul.mubr.f32.gmra.mxu0 %v908
    %v1279 = vpop.f32.mrf.mxu0
    %v1280 = vadd.f32 %v703, %v1279
    %v1281 = vpop.f32.mrf.mxu0
    %1282 = vmatprep.mubr.f32.mxu0 0.0
    %1283 = vmatmul.mubr.f32.gmra.mxu0 %v911
    %v1284 = vpop.f32.mrf.mxu0
    %v1285 = vadd.f32 %v708, %v1284
    %v1286 = vpop.f32.mrf.mxu0
    %1287 = vmatprep.mubr.f32.mxu0 0.0
    %1288 = vmatmul.mubr.f32.gmra.mxu0 %v914
    %v1289 = vpop.f32.mrf.mxu0
    %v1290 = vadd.f32 %v713, %v1289
    %v1291 = vpop.f32.mrf.mxu0
    %1292 = vmatprep.mubr.f32.mxu0 0.0
    %1293 = vmatmul.mubr.f32.gmra.mxu0 %v917
    %v1294 = vpop.f32.mrf.mxu0
    %v1295 = vadd.f32 %v718, %v1294
    %v1296 = vpop.f32.mrf.mxu0
    %1297 = vmatprep.mubr.f32.mxu0 0.0
    %1298 = vmatmul.mubr.f32.gmra.mxu0 %v920
    %v1299 = vpop.f32.mrf.mxu0
    %v1300 = vadd.f32 %v723, %v1299
    %v1301 = vpop.f32.mrf.mxu0
    %1302 = vmatprep.mubr.f32.mxu0 0.0
    %1303 = vmatmul.mubr.f32.gmra.mxu0 %v923
    %v1304 = vpop.f32.mrf.mxu0
    %v1305 = vadd.f32 %v728, %v1304
    %v1306 = vpop.f32.mrf.mxu0
    %1307 = vmatprep.mubr.f32.mxu0 0.0
    %1308 = vmatmul.mubr.f32.gmra.mxu0 %v926
    %v1309 = vpop.f32.mrf.mxu0
    %v1310 = vadd.f32 %v733, %v1309
    %v1311 = vpop.f32.mrf.mxu0
    %1312 = vdwg.mxu0
    %v1313 = vld [vmem:[%s0 + $0x2] sm:$0xff]
    %v1314 = vld [vmem:[%s0 + $0xa] sm:$0xff]
    %v1315 = vld [vmem:[%s0 + $0x1a] sm:$0xff]
    %v1316 = vld [vmem:[%s0 + $0x22] sm:$0xff]
    %v1317 = vld [vmem:[%s0 + $0x32] sm:$0xff]
    %v1318 = vld [vmem:[%s0 + $0x3a] sm:$0xff]
    %v1319 = vld [vmem:[%s0 + $0x4a] sm:$0xff]
    %v1320 = vld [vmem:[%s0 + $0x52] sm:$0xff]
    %v1321 = vld [vmem:[%s0 + $0x62] sm:$0xff]
    %v1322 = vld [vmem:[%s0 + $0x6a] sm:$0xff]
    %v1323 = vld [vmem:[%s0 + $0x7a] sm:$0xff]
    %v1324 = vld [vmem:[%s0 + $0x82] sm:$0xff]
    %v1325 = vld [vmem:[%s0 + $0x92] sm:$0xff]
    %v1326 = vld [vmem:[%s0 + $0x9a] sm:$0xff]
    %v1327 = vld [vmem:[%s0 + $0xaa] sm:$0xff]
    %v1328 = vld [vmem:[%s0 + $0xb2] sm:$0xff]
    %v1329 = vld [vmem:[%s0 + $0xc2] sm:$0xff]
    %v1330 = vld [vmem:[%s0 + $0xca] sm:$0xff]
    %v1331 = vld [vmem:[%s0 + $0xda] sm:$0xff]
    %v1332 = vld [vmem:[%s0 + $0xe2] sm:$0xff]
    %v1333 = vld [vmem:[%s0 + $0xf2] sm:$0xff]
    %v1334 = vld [vmem:[%s0 + $0xfa] sm:$0xff]
    %v1335 = vld [vmem:[%s0 + $0x10a] sm:$0xff]
    %v1336 = vld [vmem:[%s0 + $0x112] sm:$0xff]
    %v1337 = vld [vmem:[%s0 + $0x122] sm:$0xff]
    %v1338 = vld [vmem:[%s0 + $0x12a] sm:$0xff]
    %v1339 = vld [vmem:[%s0 + $0x13a] sm:$0xff]
    %v1340 = vld [vmem:[%s0 + $0x142] sm:$0xff]
    %v1341 = vld [vmem:[%s0 + $0x152] sm:$0xff]
    %v1342 = vld [vmem:[%s0 + $0x15a] sm:$0xff]
    %v1343 = vld [vmem:[%s0 + $0x16a] sm:$0xff]
    %v1344 = vld [vmem:[%s0 + $0x172] sm:$0xff]
    %v1345 = vld [vmem:[%s0 + $0x1b2] sm:$0xff]
    %v1346 = vld [vmem:[%s0 + $0x1ba] sm:$0xff]
    %v1347 = vld [vmem:[%s0 + $0x1ca] sm:$0xff]
    %v1348 = vld [vmem:[%s0 + $0x1d2] sm:$0xff]
    %v1349 = vld [vmem:[%s0 + $0x1e2] sm:$0xff]
    %v1350 = vld [vmem:[%s0 + $0x1ea] sm:$0xff]
    %v1351 = vld [vmem:[%s0 + $0x1fa] sm:$0xff]
    %v1352 = vld [vmem:[%s0 + $0x202] sm:$0xff]
    %v1353 = vld [vmem:[%s0 + $0x212] sm:$0xff]
    %v1354 = vld [vmem:[%s0 + $0x21a] sm:$0xff]
    %v1355 = vld [vmem:[%s0 + $0x22a] sm:$0xff]
    %v1356 = vld [vmem:[%s0 + $0x232] sm:$0xff]
    %v1357 = vld [vmem:[%s0 + $0x242] sm:$0xff]
    %v1358 = vld [vmem:[%s0 + $0x24a] sm:$0xff]
    %v1359 = vld [vmem:[%s0 + $0x25a] sm:$0xff]
    %v1360 = vld [vmem:[%s0 + $0x262] sm:$0xff]
    %v1361 = vld [vmem:[%s0 + $0x272] sm:$0xff]
    %v1362 = vld [vmem:[%s0 + $0x27a] sm:$0xff]
    %v1363 = vld [vmem:[%s0 + $0x28a] sm:$0xff]
    %v1364 = vld [vmem:[%s0 + $0x292] sm:$0xff]
    %v1365 = vld [vmem:[%s0 + $0x2a2] sm:$0xff]
    %v1366 = vld [vmem:[%s0 + $0x2aa] sm:$0xff]
    %v1367 = vld [vmem:[%s0 + $0x2ba] sm:$0xff]
    %v1368 = vld [vmem:[%s0 + $0x2c2] sm:$0xff]
    %v1369 = vld [vmem:[%s0 + $0x2d2] sm:$0xff]
    %v1370 = vld [vmem:[%s0 + $0x2da] sm:$0xff]
    %v1371 = vld [vmem:[%s0 + $0x2ea] sm:$0xff]
    %v1372 = vld [vmem:[%s0 + $0x2f2] sm:$0xff]
    %v1373 = vld [vmem:[%s0 + $0x302] sm:$0xff]
    %v1374 = vld [vmem:[%s0 + $0x30a] sm:$0xff]
    %v1375 = vld [vmem:[%s0 + $0x31a] sm:$0xff]
    %v1376 = vld [vmem:[%s0 + $0x322] sm:$0xff]
    %s1377 = scalar_lea.vmem %s1, 64
    %v1378 = vld [vmem:[%s1377] sm:$0xff]
    %v1379 = vld [vmem:[%s1377 + $0x8] sm:$0xff]
    %v1380 = vld [vmem:[%s1377 + $0x10] sm:$0xff]
    %v1381 = vld [vmem:[%s1377 + $0x18] sm:$0xff]
    %v1383 = vsel %vm158, %v1313, 0
    %v1386 = vsel %vm158, %v1314, 0
    %v1389 = vsel %vm158, %v1315, 0
    %v1392 = vsel %vm158, %v1316, 0
    %v1395 = vsel %vm158, %v1317, 0
    %v1398 = vsel %vm158, %v1318, 0
    %v1401 = vsel %vm158, %v1319, 0
    %v1404 = vsel %vm158, %v1320, 0
    %v1407 = vsel %vm158, %v1321, 0
    %v1410 = vsel %vm158, %v1322, 0
    %v1413 = vsel %vm158, %v1323, 0
    %v1416 = vsel %vm158, %v1324, 0
    %v1419 = vsel %vm158, %v1325, 0
    %v1422 = vsel %vm158, %v1326, 0
    %v1425 = vsel %vm158, %v1327, 0
    %v1428 = vsel %vm158, %v1328, 0
    %v1431 = vsel %vm158, %v1329, 0
    %v1434 = vsel %vm158, %v1330, 0
    %v1437 = vsel %vm158, %v1331, 0
    %v1440 = vsel %vm158, %v1332, 0
    %v1443 = vsel %vm158, %v1333, 0
    %v1446 = vsel %vm158, %v1334, 0
    %v1449 = vsel %vm158, %v1335, 0
    %v1452 = vsel %vm158, %v1336, 0
    %v1455 = vsel %vm158, %v1337, 0
    %v1458 = vsel %vm158, %v1338, 0
    %v1461 = vsel %vm158, %v1339, 0
    %v1464 = vsel %vm158, %v1340, 0
    %v1467 = vsel %vm158, %v1341, 0
    %v1470 = vsel %vm158, %v1342, 0
    %v1473 = vsel %vm158, %v1343, 0
    %v1476 = vsel %vm158, %v1344, 0
    %v1479 = vsel %vm158, %v1345, 0
    %v1482 = vsel %vm158, %v1346, 0
    %v1485 = vsel %vm158, %v1347, 0
    %v1488 = vsel %vm158, %v1348, 0
    %v1491 = vsel %vm158, %v1349, 0
    %v1494 = vsel %vm158, %v1350, 0
    %v1497 = vsel %vm158, %v1351, 0
    %v1500 = vsel %vm158, %v1352, 0
    %v1503 = vsel %vm158, %v1353, 0
    %v1506 = vsel %vm158, %v1354, 0
    %v1509 = vsel %vm158, %v1355, 0
    %v1512 = vsel %vm158, %v1356, 0
    %v1515 = vsel %vm158, %v1357, 0
    %v1518 = vsel %vm158, %v1358, 0
    %v1521 = vsel %vm158, %v1359, 0
    %v1524 = vsel %vm158, %v1360, 0
    %v1527 = vsel %vm158, %v1361, 0
    %v1530 = vsel %vm158, %v1362, 0
    %v1533 = vsel %vm158, %v1363, 0
    %v1536 = vsel %vm158, %v1364, 0
    %v1539 = vsel %vm158, %v1365, 0
    %v1542 = vsel %vm158, %v1366, 0
    %v1545 = vsel %vm158, %v1367, 0
    %v1548 = vsel %vm158, %v1368, 0
    %v1551 = vsel %vm158, %v1369, 0
    %v1554 = vsel %vm158, %v1370, 0
    %v1557 = vsel %vm158, %v1371, 0
    %v1560 = vsel %vm158, %v1372, 0
    %v1563 = vsel %vm158, %v1373, 0
    %v1566 = vsel %vm158, %v1374, 0
    %v1569 = vsel %vm158, %v1375, 0
    %v1572 = vsel %vm158, %v1376, 0
    %1574 = vmatprep.subr.mxu0 0.0
    %1575 = vmatpush1.msra.mxu0 0.0
    %1576 = vmatprep.subr.mxu0 0.0
    %1577 = vmatpush1.msra.mxu0 0.0
    %1578 = vmatprep.subr.mxu0 0.0
    %1579 = vmatpush1.msra.mxu0 0.0
    %1580 = vmatprep.subr.mxu0 0.0
    %1581 = vmatpush1.msra.mxu0 0.0
    %1582 = vmatprep.subr.mxu0 0.0
    %1583 = vmatpush1.msra.mxu0 0.0
    %1584 = vmatprep.subr.mxu0 0.0
    %1585 = vmatpush1.msra.mxu0 0.0
    %1586 = vmatprep.subr.mxu0 0.0
    %1587 = vmatpush1.msra.mxu0 0.0
    %1588 = vmatprep.subr.mxu0 0.0
    %1589 = vmatpush1.msra.mxu0 0.0
    %1590 = vmatprep.subr.mxu0 0.0
    %1591 = vmatpush1.msra.mxu0 0.0
    %1592 = vmatprep.subr.mxu0 0.0
    %1593 = vmatpush1.msra.mxu0 0.0
    %1594 = vmatprep.subr.mxu0 0.0
    %1595 = vmatpush1.msra.mxu0 0.0
    %1596 = vmatprep.subr.mxu0 0.0
    %1597 = vmatpush1.msra.mxu0 0.0
    %1598 = vmatprep.subr.mxu0 0.0
    %1599 = vmatpush1.msra.mxu0 %v1381
    %1600 = vmatprep.subr.mxu0 0.0
    %1601 = vmatpush1.msra.mxu0 %v1380
    %1602 = vmatprep.subr.mxu0 0.0
    %1603 = vmatpush1.msra.mxu0 %v1379
    %1604 = vmatprep.subr.mxu0 0.0
    %1605 = vmatpush1.msra.mxu0 %v1378
    %1606 = vmatprep.subr.mxu0 0.0
    %1607 = vmatpush2.msra.mxu0 0.0
    %1608 = vmatprep.subr.mxu0 0.0
    %1609 = vmatpush2.msra.mxu0 0.0
    %1610 = vmatprep.subr.mxu0 0.0
    %1611 = vmatpush2.msra.mxu0 0.0
    %1612 = vmatprep.subr.mxu0 0.0
    %1613 = vmatpush2.msra.mxu0 0.0
    %1614 = vmatprep.subr.mxu0 0.0
    %1615 = vmatpush2.msra.mxu0 0.0
    %1616 = vmatprep.subr.mxu0 0.0
    %1617 = vmatpush2.msra.mxu0 0.0
    %1618 = vmatprep.subr.mxu0 0.0
    %1619 = vmatpush2.msra.mxu0 0.0
    %1620 = vmatprep.subr.mxu0 0.0
    %1621 = vmatpush2.msra.mxu0 0.0
    %1622 = vmatprep.subr.mxu0 0.0
    %1623 = vmatpush2.msra.mxu0 0.0
    %1624 = vmatprep.subr.mxu0 0.0
    %1625 = vmatpush2.msra.mxu0 0.0
    %1626 = vmatprep.subr.mxu0 0.0
    %1627 = vmatpush2.msra.mxu0 0.0
    %1628 = vmatprep.subr.mxu0 0.0
    %1629 = vmatpush2.msra.mxu0 0.0
    %1630 = vmatprep.subr.mxu0 0.0
    %1631 = vmatpush2.msra.mxu0 0.0
    %1632 = vmatprep.subr.mxu0 0.0
    %1633 = vmatpush2.msra.mxu0 0.0
    %1634 = vmatprep.subr.mxu0 0.0
    %1635 = vmatpush2.msra.mxu0 0.0
    %1636 = vmatprep.subr.mxu0 0.0
    %1637 = vmatpush2.msra.mxu0 0.0
    %1638 = vmatprep.mubr.f32.mxu0 0.0
    %1639 = vmatmul.mubr.f32.gmra.mxu0 %v1383
    %v1640 = vpop.f32.mrf.mxu0
    %v1641 = vadd.f32 0.0, %v1640
    %v1642 = vpop.f32.mrf.mxu0
    %1643 = vmatprep.mubr.f32.mxu0 0.0
    %1644 = vmatmul.mubr.f32.gmra.mxu0 %v1386
    %v1645 = vpop.f32.mrf.mxu0
    %v1646 = vadd.f32 0.0, %v1645
    %v1647 = vpop.f32.mrf.mxu0
    %1648 = vmatprep.mubr.f32.mxu0 0.0
    %1649 = vmatmul.mubr.f32.gmra.mxu0 %v1389
    %v1650 = vpop.f32.mrf.mxu0
    %v1651 = vadd.f32 0.0, %v1650
    %v1652 = vpop.f32.mrf.mxu0
    %1653 = vmatprep.mubr.f32.mxu0 0.0
    %1654 = vmatmul.mubr.f32.gmra.mxu0 %v1392
    %v1655 = vpop.f32.mrf.mxu0
    %v1656 = vadd.f32 0.0, %v1655
    %v1657 = vpop.f32.mrf.mxu0
    %1658 = vmatprep.mubr.f32.mxu0 0.0
    %1659 = vmatmul.mubr.f32.gmra.mxu0 %v1395
    %v1660 = vpop.f32.mrf.mxu0
    %v1661 = vadd.f32 0.0, %v1660
    %v1662 = vpop.f32.mrf.mxu0
    %1663 = vmatprep.mubr.f32.mxu0 0.0
    %1664 = vmatmul.mubr.f32.gmra.mxu0 %v1398
    %v1665 = vpop.f32.mrf.mxu0
    %v1666 = vadd.f32 0.0, %v1665
    %v1667 = vpop.f32.mrf.mxu0
    %1668 = vmatprep.mubr.f32.mxu0 0.0
    %1669 = vmatmul.mubr.f32.gmra.mxu0 %v1401
    %v1670 = vpop.f32.mrf.mxu0
    %v1671 = vadd.f32 0.0, %v1670
    %v1672 = vpop.f32.mrf.mxu0
    %1673 = vmatprep.mubr.f32.mxu0 0.0
    %1674 = vmatmul.mubr.f32.gmra.mxu0 %v1404
    %v1675 = vpop.f32.mrf.mxu0
    %v1676 = vadd.f32 0.0, %v1675
    %v1677 = vpop.f32.mrf.mxu0
    %1678 = vmatprep.mubr.f32.mxu0 0.0
    %1679 = vmatmul.mubr.f32.gmra.mxu0 %v1407
    %v1680 = vpop.f32.mrf.mxu0
    %v1681 = vadd.f32 0.0, %v1680
    %v1682 = vpop.f32.mrf.mxu0
    %1683 = vmatprep.mubr.f32.mxu0 0.0
    %1684 = vmatmul.mubr.f32.gmra.mxu0 %v1410
    %v1685 = vpop.f32.mrf.mxu0
    %v1686 = vadd.f32 0.0, %v1685
    %v1687 = vpop.f32.mrf.mxu0
    %1688 = vmatprep.mubr.f32.mxu0 0.0
    %1689 = vmatmul.mubr.f32.gmra.mxu0 %v1413
    %v1690 = vpop.f32.mrf.mxu0
    %v1691 = vadd.f32 0.0, %v1690
    %v1692 = vpop.f32.mrf.mxu0
    %1693 = vmatprep.mubr.f32.mxu0 0.0
    %1694 = vmatmul.mubr.f32.gmra.mxu0 %v1416
    %v1695 = vpop.f32.mrf.mxu0
    %v1696 = vadd.f32 0.0, %v1695
    %v1697 = vpop.f32.mrf.mxu0
    %1698 = vmatprep.mubr.f32.mxu0 0.0
    %1699 = vmatmul.mubr.f32.gmra.mxu0 %v1419
    %v1700 = vpop.f32.mrf.mxu0
    %v1701 = vadd.f32 0.0, %v1700
    %v1702 = vpop.f32.mrf.mxu0
    %1703 = vmatprep.mubr.f32.mxu0 0.0
    %1704 = vmatmul.mubr.f32.gmra.mxu0 %v1422
    %v1705 = vpop.f32.mrf.mxu0
    %v1706 = vadd.f32 0.0, %v1705
    %v1707 = vpop.f32.mrf.mxu0
    %1708 = vmatprep.mubr.f32.mxu0 0.0
    %1709 = vmatmul.mubr.f32.gmra.mxu0 %v1425
    %v1710 = vpop.f32.mrf.mxu0
    %v1711 = vadd.f32 0.0, %v1710
    %v1712 = vpop.f32.mrf.mxu0
    %1713 = vmatprep.mubr.f32.mxu0 0.0
    %1714 = vmatmul.mubr.f32.gmra.mxu0 %v1428
    %v1715 = vpop.f32.mrf.mxu0
    %v1716 = vadd.f32 0.0, %v1715
    %v1717 = vpop.f32.mrf.mxu0
    %1718 = vmatprep.mubr.f32.mxu0 0.0
    %1719 = vmatmul.mubr.f32.gmra.mxu0 %v1431
    %v1720 = vpop.f32.mrf.mxu0
    %v1721 = vadd.f32 0.0, %v1720
    %v1722 = vpop.f32.mrf.mxu0
    %1723 = vmatprep.mubr.f32.mxu0 0.0
    %1724 = vmatmul.mubr.f32.gmra.mxu0 %v1434
    %v1725 = vpop.f32.mrf.mxu0
    %v1726 = vadd.f32 0.0, %v1725
    %v1727 = vpop.f32.mrf.mxu0
    %1728 = vmatprep.mubr.f32.mxu0 0.0
    %1729 = vmatmul.mubr.f32.gmra.mxu0 %v1437
    %v1730 = vpop.f32.mrf.mxu0
    %v1731 = vadd.f32 0.0, %v1730
    %v1732 = vpop.f32.mrf.mxu0
    %1733 = vmatprep.mubr.f32.mxu0 0.0
    %1734 = vmatmul.mubr.f32.gmra.mxu0 %v1440
    %v1735 = vpop.f32.mrf.mxu0
    %v1736 = vadd.f32 0.0, %v1735
    %v1737 = vpop.f32.mrf.mxu0
    %1738 = vmatprep.mubr.f32.mxu0 0.0
    %1739 = vmatmul.mubr.f32.gmra.mxu0 %v1443
    %v1740 = vpop.f32.mrf.mxu0
    %v1741 = vadd.f32 0.0, %v1740
    %v1742 = vpop.f32.mrf.mxu0
    %1743 = vmatprep.mubr.f32.mxu0 0.0
    %1744 = vmatmul.mubr.f32.gmra.mxu0 %v1446
    %v1745 = vpop.f32.mrf.mxu0
    %v1746 = vadd.f32 0.0, %v1745
    %v1747 = vpop.f32.mrf.mxu0
    %1748 = vmatprep.mubr.f32.mxu0 0.0
    %1749 = vmatmul.mubr.f32.gmra.mxu0 %v1449
    %v1750 = vpop.f32.mrf.mxu0
    %v1751 = vadd.f32 0.0, %v1750
    %v1752 = vpop.f32.mrf.mxu0
    %1753 = vmatprep.mubr.f32.mxu0 0.0
    %1754 = vmatmul.mubr.f32.gmra.mxu0 %v1452
    %v1755 = vpop.f32.mrf.mxu0
    %v1756 = vadd.f32 0.0, %v1755
    %v1757 = vpop.f32.mrf.mxu0
    %1758 = vmatprep.mubr.f32.mxu0 0.0
    %1759 = vmatmul.mubr.f32.gmra.mxu0 %v1455
    %v1760 = vpop.f32.mrf.mxu0
    %v1761 = vadd.f32 0.0, %v1760
    %v1762 = vpop.f32.mrf.mxu0
    %1763 = vmatprep.mubr.f32.mxu0 0.0
    %1764 = vmatmul.mubr.f32.gmra.mxu0 %v1458
    %v1765 = vpop.f32.mrf.mxu0
    %v1766 = vadd.f32 0.0, %v1765
    %v1767 = vpop.f32.mrf.mxu0
    %1768 = vmatprep.mubr.f32.mxu0 0.0
    %1769 = vmatmul.mubr.f32.gmra.mxu0 %v1461
    %v1770 = vpop.f32.mrf.mxu0
    %v1771 = vadd.f32 0.0, %v1770
    %v1772 = vpop.f32.mrf.mxu0
    %1773 = vmatprep.mubr.f32.mxu0 0.0
    %1774 = vmatmul.mubr.f32.gmra.mxu0 %v1464
    %v1775 = vpop.f32.mrf.mxu0
    %v1776 = vadd.f32 0.0, %v1775
    %v1777 = vpop.f32.mrf.mxu0
    %1778 = vmatprep.mubr.f32.mxu0 0.0
    %1779 = vmatmul.mubr.f32.gmra.mxu0 %v1467
    %v1780 = vpop.f32.mrf.mxu0
    %v1781 = vadd.f32 0.0, %v1780
    %v1782 = vpop.f32.mrf.mxu0
    %1783 = vmatprep.mubr.f32.mxu0 0.0
    %1784 = vmatmul.mubr.f32.gmra.mxu0 %v1470
    %v1785 = vpop.f32.mrf.mxu0
    %v1786 = vadd.f32 0.0, %v1785
    %v1787 = vpop.f32.mrf.mxu0
    %1788 = vmatprep.mubr.f32.mxu0 0.0
    %1789 = vmatmul.mubr.f32.gmra.mxu0 %v1473
    %v1790 = vpop.f32.mrf.mxu0
    %v1791 = vadd.f32 0.0, %v1790
    %v1792 = vpop.f32.mrf.mxu0
    %1793 = vmatprep.mubr.f32.mxu0 0.0
    %1794 = vmatmul.mubr.f32.gmra.mxu0 %v1476
    %v1795 = vpop.f32.mrf.mxu0
    %v1796 = vadd.f32 0.0, %v1795
    %v1797 = vpop.f32.mrf.mxu0
    %1798 = vmatprep.mubr.f32.mxu0 0.0
    %1799 = vmatmul.mubr.f32.gmra.mxu0 %v1479
    %v1800 = vpop.f32.mrf.mxu0
    %v1801 = vadd.f32 0.0, %v1800
    %v1802 = vpop.f32.mrf.mxu0
    %1803 = vmatprep.mubr.f32.mxu0 0.0
    %1804 = vmatmul.mubr.f32.gmra.mxu0 %v1482
    %v1805 = vpop.f32.mrf.mxu0
    %v1806 = vadd.f32 0.0, %v1805
    %v1807 = vpop.f32.mrf.mxu0
    %1808 = vmatprep.mubr.f32.mxu0 0.0
    %1809 = vmatmul.mubr.f32.gmra.mxu0 %v1485
    %v1810 = vpop.f32.mrf.mxu0
    %v1811 = vadd.f32 0.0, %v1810
    %v1812 = vpop.f32.mrf.mxu0
    %1813 = vmatprep.mubr.f32.mxu0 0.0
    %1814 = vmatmul.mubr.f32.gmra.mxu0 %v1488
    %v1815 = vpop.f32.mrf.mxu0
    %v1816 = vadd.f32 0.0, %v1815
    %v1817 = vpop.f32.mrf.mxu0
    %1818 = vmatprep.mubr.f32.mxu0 0.0
    %1819 = vmatmul.mubr.f32.gmra.mxu0 %v1491
    %v1820 = vpop.f32.mrf.mxu0
    %v1821 = vadd.f32 0.0, %v1820
    %v1822 = vpop.f32.mrf.mxu0
    %1823 = vmatprep.mubr.f32.mxu0 0.0
    %1824 = vmatmul.mubr.f32.gmra.mxu0 %v1494
    %v1825 = vpop.f32.mrf.mxu0
    %v1826 = vadd.f32 0.0, %v1825
    %v1827 = vpop.f32.mrf.mxu0
    %1828 = vmatprep.mubr.f32.mxu0 0.0
    %1829 = vmatmul.mubr.f32.gmra.mxu0 %v1497
    %v1830 = vpop.f32.mrf.mxu0
    %v1831 = vadd.f32 0.0, %v1830
    %v1832 = vpop.f32.mrf.mxu0
    %1833 = vmatprep.mubr.f32.mxu0 0.0
    %1834 = vmatmul.mubr.f32.gmra.mxu0 %v1500
    %v1835 = vpop.f32.mrf.mxu0
    %v1836 = vadd.f32 0.0, %v1835
    %v1837 = vpop.f32.mrf.mxu0
    %1838 = vmatprep.mubr.f32.mxu0 0.0
    %1839 = vmatmul.mubr.f32.gmra.mxu0 %v1503
    %v1840 = vpop.f32.mrf.mxu0
    %v1841 = vadd.f32 0.0, %v1840
    %v1842 = vpop.f32.mrf.mxu0
    %1843 = vmatprep.mubr.f32.mxu0 0.0
    %1844 = vmatmul.mubr.f32.gmra.mxu0 %v1506
    %v1845 = vpop.f32.mrf.mxu0
    %v1846 = vadd.f32 0.0, %v1845
    %v1847 = vpop.f32.mrf.mxu0
    %1848 = vmatprep.mubr.f32.mxu0 0.0
    %1849 = vmatmul.mubr.f32.gmra.mxu0 %v1509
    %v1850 = vpop.f32.mrf.mxu0
    %v1851 = vadd.f32 0.0, %v1850
    %v1852 = vpop.f32.mrf.mxu0
    %1853 = vmatprep.mubr.f32.mxu0 0.0
    %1854 = vmatmul.mubr.f32.gmra.mxu0 %v1512
    %v1855 = vpop.f32.mrf.mxu0
    %v1856 = vadd.f32 0.0, %v1855
    %v1857 = vpop.f32.mrf.mxu0
    %1858 = vmatprep.mubr.f32.mxu0 0.0
    %1859 = vmatmul.mubr.f32.gmra.mxu0 %v1515
    %v1860 = vpop.f32.mrf.mxu0
    %v1861 = vadd.f32 0.0, %v1860
    %v1862 = vpop.f32.mrf.mxu0
    %1863 = vmatprep.mubr.f32.mxu0 0.0
    %1864 = vmatmul.mubr.f32.gmra.mxu0 %v1518
    %v1865 = vpop.f32.mrf.mxu0
    %v1866 = vadd.f32 0.0, %v1865
    %v1867 = vpop.f32.mrf.mxu0
    %1868 = vmatprep.mubr.f32.mxu0 0.0
    %1869 = vmatmul.mubr.f32.gmra.mxu0 %v1521
    %v1870 = vpop.f32.mrf.mxu0
    %v1871 = vadd.f32 0.0, %v1870
    %v1872 = vpop.f32.mrf.mxu0
    %1873 = vmatprep.mubr.f32.mxu0 0.0
    %1874 = vmatmul.mubr.f32.gmra.mxu0 %v1524
    %v1875 = vpop.f32.mrf.mxu0
    %v1876 = vadd.f32 0.0, %v1875
    %v1877 = vpop.f32.mrf.mxu0
    %1878 = vmatprep.mubr.f32.mxu0 0.0
    %1879 = vmatmul.mubr.f32.gmra.mxu0 %v1527
    %v1880 = vpop.f32.mrf.mxu0
    %v1881 = vadd.f32 0.0, %v1880
    %v1882 = vpop.f32.mrf.mxu0
    %1883 = vmatprep.mubr.f32.mxu0 0.0
    %1884 = vmatmul.mubr.f32.gmra.mxu0 %v1530
    %v1885 = vpop.f32.mrf.mxu0
    %v1886 = vadd.f32 0.0, %v1885
    %v1887 = vpop.f32.mrf.mxu0
    %1888 = vmatprep.mubr.f32.mxu0 0.0
    %1889 = vmatmul.mubr.f32.gmra.mxu0 %v1533
    %v1890 = vpop.f32.mrf.mxu0
    %v1891 = vadd.f32 0.0, %v1890
    %v1892 = vpop.f32.mrf.mxu0
    %1893 = vmatprep.mubr.f32.mxu0 0.0
    %1894 = vmatmul.mubr.f32.gmra.mxu0 %v1536
    %v1895 = vpop.f32.mrf.mxu0
    %v1896 = vadd.f32 0.0, %v1895
    %v1897 = vpop.f32.mrf.mxu0
    %1898 = vmatprep.mubr.f32.mxu0 0.0
    %1899 = vmatmul.mubr.f32.gmra.mxu0 %v1539
    %v1900 = vpop.f32.mrf.mxu0
    %v1901 = vadd.f32 0.0, %v1900
    %v1902 = vpop.f32.mrf.mxu0
    %1903 = vmatprep.mubr.f32.mxu0 0.0
    %1904 = vmatmul.mubr.f32.gmra.mxu0 %v1542
    %v1905 = vpop.f32.mrf.mxu0
    %v1906 = vadd.f32 0.0, %v1905
    %v1907 = vpop.f32.mrf.mxu0
    %1908 = vmatprep.mubr.f32.mxu0 0.0
    %1909 = vmatmul.mubr.f32.gmra.mxu0 %v1545
    %v1910 = vpop.f32.mrf.mxu0
    %v1911 = vadd.f32 0.0, %v1910
    %v1912 = vpop.f32.mrf.mxu0
    %1913 = vmatprep.mubr.f32.mxu0 0.0
    %1914 = vmatmul.mubr.f32.gmra.mxu0 %v1548
    %v1915 = vpop.f32.mrf.mxu0
    %v1916 = vadd.f32 0.0, %v1915
    %v1917 = vpop.f32.mrf.mxu0
    %1918 = vmatprep.mubr.f32.mxu0 0.0
    %1919 = vmatmul.mubr.f32.gmra.mxu0 %v1551
    %v1920 = vpop.f32.mrf.mxu0
    %v1921 = vadd.f32 0.0, %v1920
    %v1922 = vpop.f32.mrf.mxu0
    %1923 = vmatprep.mubr.f32.mxu0 0.0
    %1924 = vmatmul.mubr.f32.gmra.mxu0 %v1554
    %v1925 = vpop.f32.mrf.mxu0
    %v1926 = vadd.f32 0.0, %v1925
    %v1927 = vpop.f32.mrf.mxu0
    %1928 = vmatprep.mubr.f32.mxu0 0.0
    %1929 = vmatmul.mubr.f32.gmra.mxu0 %v1557
    %v1930 = vpop.f32.mrf.mxu0
    %v1931 = vadd.f32 0.0, %v1930
    %v1932 = vpop.f32.mrf.mxu0
    %1933 = vmatprep.mubr.f32.mxu0 0.0
    %1934 = vmatmul.mubr.f32.gmra.mxu0 %v1560
    %v1935 = vpop.f32.mrf.mxu0
    %v1936 = vadd.f32 0.0, %v1935
    %v1937 = vpop.f32.mrf.mxu0
    %1938 = vmatprep.mubr.f32.mxu0 0.0
    %1939 = vmatmul.mubr.f32.gmra.mxu0 %v1563
    %v1940 = vpop.f32.mrf.mxu0
    %v1941 = vadd.f32 0.0, %v1940
    %v1942 = vpop.f32.mrf.mxu0
    %1943 = vmatprep.mubr.f32.mxu0 0.0
    %1944 = vmatmul.mubr.f32.gmra.mxu0 %v1566
    %v1945 = vpop.f32.mrf.mxu0
    %v1946 = vadd.f32 0.0, %v1945
    %v1947 = vpop.f32.mrf.mxu0
    %1948 = vmatprep.mubr.f32.mxu0 0.0
    %1949 = vmatmul.mubr.f32.gmra.mxu0 %v1569
    %v1950 = vpop.f32.mrf.mxu0
    %v1951 = vadd.f32 0.0, %v1950
    %v1952 = vpop.f32.mrf.mxu0
    %1953 = vmatprep.mubr.f32.mxu0 0.0
    %1954 = vmatmul.mubr.f32.gmra.mxu0 %v1572
    %v1955 = vpop.f32.mrf.mxu0
    %v1956 = vadd.f32 0.0, %v1955
    %v1957 = vpop.f32.mrf.mxu0
    %1958 = vdwg.mxu0
    %v1959 = vadd.f32 %v995, %v1641
    %v1960 = vadd.f32 %v1000, %v1646
    %v1961 = vadd.f32 %v1005, %v1651
    %v1962 = vadd.f32 %v1010, %v1656
    %v1963 = vadd.f32 %v1015, %v1661
    %v1964 = vadd.f32 %v1020, %v1666
    %v1965 = vadd.f32 %v1025, %v1671
    %v1966 = vadd.f32 %v1030, %v1676
    %v1967 = vadd.f32 %v1035, %v1681
    %v1968 = vadd.f32 %v1040, %v1686
    %v1969 = vadd.f32 %v1045, %v1691
    %v1970 = vadd.f32 %v1050, %v1696
    %v1971 = vadd.f32 %v1055, %v1701
    %v1972 = vadd.f32 %v1060, %v1706
    %v1973 = vadd.f32 %v1065, %v1711
    %v1974 = vadd.f32 %v1070, %v1716
    %v1975 = vadd.f32 %v1075, %v1721
    %v1976 = vadd.f32 %v1080, %v1726
    %v1977 = vadd.f32 %v1085, %v1731
    %v1978 = vadd.f32 %v1090, %v1736
    %v1979 = vadd.f32 %v1095, %v1741
    %v1980 = vadd.f32 %v1100, %v1746
    %v1981 = vadd.f32 %v1105, %v1751
    %v1982 = vadd.f32 %v1110, %v1756
    %v1983 = vadd.f32 %v1115, %v1761
    %v1984 = vadd.f32 %v1120, %v1766
    %v1985 = vadd.f32 %v1125, %v1771
    %v1986 = vadd.f32 %v1130, %v1776
    %v1987 = vadd.f32 %v1135, %v1781
    %v1988 = vadd.f32 %v1140, %v1786
    %v1989 = vadd.f32 %v1145, %v1791
    %v1990 = vadd.f32 %v1150, %v1796
    %v1991 = vadd.f32 %v1155, %v1801
    %v1992 = vadd.f32 %v1160, %v1806
    %v1993 = vadd.f32 %v1165, %v1811
    %v1994 = vadd.f32 %v1170, %v1816
    %v1995 = vadd.f32 %v1175, %v1821
    %v1996 = vadd.f32 %v1180, %v1826
    %v1997 = vadd.f32 %v1185, %v1831
    %v1998 = vadd.f32 %v1190, %v1836
    %v1999 = vadd.f32 %v1195, %v1841
    %v2000 = vadd.f32 %v1200, %v1846
    %v2001 = vadd.f32 %v1205, %v1851
    %v2002 = vadd.f32 %v1210, %v1856
    %v2003 = vadd.f32 %v1215, %v1861
    %v2004 = vadd.f32 %v1220, %v1866
    %v2005 = vadd.f32 %v1225, %v1871
    %v2006 = vadd.f32 %v1230, %v1876
    %v2007 = vadd.f32 %v1235, %v1881
    %v2008 = vadd.f32 %v1240, %v1886
    %v2009 = vadd.f32 %v1245, %v1891
    %v2010 = vadd.f32 %v1250, %v1896
    %v2011 = vadd.f32 %v1255, %v1901
    %v2012 = vadd.f32 %v1260, %v1906
    %v2013 = vadd.f32 %v1265, %v1911
    %v2014 = vadd.f32 %v1270, %v1916
    %v2015 = vadd.f32 %v1275, %v1921
    %v2016 = vadd.f32 %v1280, %v1926
    %v2017 = vadd.f32 %v1285, %v1931
    %v2018 = vadd.f32 %v1290, %v1936
    %v2019 = vadd.f32 %v1295, %v1941
    %v2020 = vadd.f32 %v1300, %v1946
    %v2021 = vadd.f32 %v1305, %v1951
    %v2022 = vadd.f32 %v1310, %v1956
    %s2023 = scalar_lea.vmem %s0, 24
    %v2024 = vld [vmem:[%s2023] sm:$0xff]
    %v2025 = vld [vmem:[%s2023 + $0x8] sm:$0xff]
    %v2026 = vld [vmem:[%s2023 + $0x18] sm:$0xff]
    %v2027 = vld [vmem:[%s2023 + $0x20] sm:$0xff]
    %v2028 = vld [vmem:[%s2023 + $0x30] sm:$0xff]
    %v2029 = vld [vmem:[%s2023 + $0x38] sm:$0xff]
    %v2030 = vld [vmem:[%s2023 + $0x48] sm:$0xff]
    %v2031 = vld [vmem:[%s2023 + $0x50] sm:$0xff]
    %v2032 = vld [vmem:[%s2023 + $0x60] sm:$0xff]
    %v2033 = vld [vmem:[%s2023 + $0x68] sm:$0xff]
    %v2034 = vld [vmem:[%s2023 + $0x78] sm:$0xff]
    %v2035 = vld [vmem:[%s2023 + $0x80] sm:$0xff]
    %v2036 = vld [vmem:[%s2023 + $0x90] sm:$0xff]
    %v2037 = vld [vmem:[%s2023 + $0x98] sm:$0xff]
    %v2038 = vld [vmem:[%s2023 + $0xa8] sm:$0xff]
    %v2039 = vld [vmem:[%s2023 + $0xb0] sm:$0xff]
    %v2040 = vld [vmem:[%s2023 + $0xc0] sm:$0xff]
    %v2041 = vld [vmem:[%s2023 + $0xc8] sm:$0xff]
    %v2042 = vld [vmem:[%s2023 + $0xd8] sm:$0xff]
    %v2043 = vld [vmem:[%s2023 + $0xe0] sm:$0xff]
    %v2044 = vld [vmem:[%s2023 + $0xf0] sm:$0xff]
    %v2045 = vld [vmem:[%s2023 + $0xf8] sm:$0xff]
    %v2046 = vld [vmem:[%s2023 + $0x108] sm:$0xff]
    %v2047 = vld [vmem:[%s2023 + $0x110] sm:$0xff]
    %v2048 = vld [vmem:[%s2023 + $0x120] sm:$0xff]
    %v2049 = vld [vmem:[%s2023 + $0x128] sm:$0xff]
    %v2050 = vld [vmem:[%s2023 + $0x138] sm:$0xff]
    %v2051 = vld [vmem:[%s2023 + $0x140] sm:$0xff]
    %v2052 = vld [vmem:[%s2023 + $0x150] sm:$0xff]
    %v2053 = vld [vmem:[%s2023 + $0x158] sm:$0xff]
    %v2054 = vld [vmem:[%s2023 + $0x168] sm:$0xff]
    %v2055 = vld [vmem:[%s2023 + $0x170] sm:$0xff]
    %v2056 = vld [vmem:[%s2023 + $0x1b0] sm:$0xff]
    %v2057 = vld [vmem:[%s2023 + $0x1b8] sm:$0xff]
    %v2058 = vld [vmem:[%s2023 + $0x1c8] sm:$0xff]
    %v2059 = vld [vmem:[%s2023 + $0x1d0] sm:$0xff]
    %v2060 = vld [vmem:[%s2023 + $0x1e0] sm:$0xff]
    %v2061 = vld [vmem:[%s2023 + $0x1e8] sm:$0xff]
    %v2062 = vld [vmem:[%s2023 + $0x1f8] sm:$0xff]
    %v2063 = vld [vmem:[%s2023 + $0x200] sm:$0xff]
    %v2064 = vld [vmem:[%s2023 + $0x210] sm:$0xff]
    %v2065 = vld [vmem:[%s2023 + $0x218] sm:$0xff]
    %v2066 = vld [vmem:[%s2023 + $0x228] sm:$0xff]
    %v2067 = vld [vmem:[%s2023 + $0x230] sm:$0xff]
    %v2068 = vld [vmem:[%s2023 + $0x240] sm:$0xff]
    %v2069 = vld [vmem:[%s2023 + $0x248] sm:$0xff]
    %v2070 = vld [vmem:[%s2023 + $0x258] sm:$0xff]
    %v2071 = vld [vmem:[%s2023 + $0x260] sm:$0xff]
    %v2072 = vld [vmem:[%s2023 + $0x270] sm:$0xff]
    %v2073 = vld [vmem:[%s2023 + $0x278] sm:$0xff]
    %v2074 = vld [vmem:[%s2023 + $0x288] sm:$0xff]
    %v2075 = vld [vmem:[%s2023 + $0x290] sm:$0xff]
    %v2076 = vld [vmem:[%s2023 + $0x2a0] sm:$0xff]
    %v2077 = vld [vmem:[%s2023 + $0x2a8] sm:$0xff]
    %v2078 = vld [vmem:[%s2023 + $0x2b8] sm:$0xff]
    %v2079 = vld [vmem:[%s2023 + $0x2c0] sm:$0xff]
    %v2080 = vld [vmem:[%s2023 + $0x2d0] sm:$0xff]
    %v2081 = vld [vmem:[%s2023 + $0x2d8] sm:$0xff]
    %v2082 = vld [vmem:[%s2023 + $0x2e8] sm:$0xff]
    %v2083 = vld [vmem:[%s2023 + $0x2f0] sm:$0xff]
    %v2084 = vld [vmem:[%s2023 + $0x300] sm:$0xff]
    %v2085 = vld [vmem:[%s2023 + $0x308] sm:$0xff]
    %v2086 = vld [vmem:[%s2023 + $0x318] sm:$0xff]
    %v2087 = vld [vmem:[%s2023 + $0x320] sm:$0xff]
    %s2088 = scalar_lea.vmem %s1, 96
    %v2089 = vld [vmem:[%s2088] sm:$0xff]
    %v2090 = vld [vmem:[%s2088 + $0x8] sm:$0xff]
    %v2091 = vld [vmem:[%s2088 + $0x10] sm:$0xff]
    %v2092 = vld [vmem:[%s2088 + $0x18] sm:$0xff]
    %v2094 = vsel %vm158, %v2024, 0
    %v2097 = vsel %vm158, %v2025, 0
    %v2100 = vsel %vm158, %v2026, 0
    %v2103 = vsel %vm158, %v2027, 0
    %v2106 = vsel %vm158, %v2028, 0
    %v2109 = vsel %vm158, %v2029, 0
    %v2112 = vsel %vm158, %v2030, 0
    %v2115 = vsel %vm158, %v2031, 0
    %v2118 = vsel %vm158, %v2032, 0
    %v2121 = vsel %vm158, %v2033, 0
    %v2124 = vsel %vm158, %v2034, 0
    %v2127 = vsel %vm158, %v2035, 0
    %v2130 = vsel %vm158, %v2036, 0
    %v2133 = vsel %vm158, %v2037, 0
    %v2136 = vsel %vm158, %v2038, 0
    %v2139 = vsel %vm158, %v2039, 0
    %v2142 = vsel %vm158, %v2040, 0
    %v2145 = vsel %vm158, %v2041, 0
    %v2148 = vsel %vm158, %v2042, 0
    %v2151 = vsel %vm158, %v2043, 0
    %v2154 = vsel %vm158, %v2044, 0
    %v2157 = vsel %vm158, %v2045, 0
    %v2160 = vsel %vm158, %v2046, 0
    %v2163 = vsel %vm158, %v2047, 0
    %v2166 = vsel %vm158, %v2048, 0
    %v2169 = vsel %vm158, %v2049, 0
    %v2172 = vsel %vm158, %v2050, 0
    %v2175 = vsel %vm158, %v2051, 0
    %v2178 = vsel %vm158, %v2052, 0
    %v2181 = vsel %vm158, %v2053, 0
    %v2184 = vsel %vm158, %v2054, 0
    %v2187 = vsel %vm158, %v2055, 0
    %v2190 = vsel %vm158, %v2056, 0
    %v2193 = vsel %vm158, %v2057, 0
    %v2196 = vsel %vm158, %v2058, 0
    %v2199 = vsel %vm158, %v2059, 0
    %v2202 = vsel %vm158, %v2060, 0
    %v2205 = vsel %vm158, %v2061, 0
    %v2208 = vsel %vm158, %v2062, 0
    %v2211 = vsel %vm158, %v2063, 0
    %v2214 = vsel %vm158, %v2064, 0
    %v2217 = vsel %vm158, %v2065, 0
    %v2220 = vsel %vm158, %v2066, 0
    %v2223 = vsel %vm158, %v2067, 0
    %v2226 = vsel %vm158, %v2068, 0
    %v2229 = vsel %vm158, %v2069, 0
    %v2232 = vsel %vm158, %v2070, 0
    %v2235 = vsel %vm158, %v2071, 0
    %v2238 = vsel %vm158, %v2072, 0
    %v2241 = vsel %vm158, %v2073, 0
    %v2244 = vsel %vm158, %v2074, 0
    %v2247 = vsel %vm158, %v2075, 0
    %v2250 = vsel %vm158, %v2076, 0
    %v2253 = vsel %vm158, %v2077, 0
    %v2256 = vsel %vm158, %v2078, 0
    %v2259 = vsel %vm158, %v2079, 0
    %v2262 = vsel %vm158, %v2080, 0
    %v2265 = vsel %vm158, %v2081, 0
    %v2268 = vsel %vm158, %v2082, 0
    %v2271 = vsel %vm158, %v2083, 0
    %v2274 = vsel %vm158, %v2084, 0
    %v2277 = vsel %vm158, %v2085, 0
    %v2280 = vsel %vm158, %v2086, 0
    %v2283 = vsel %vm158, %v2087, 0
    %2285 = vmatprep.subr.mxu0 0.0
    %2286 = vmatpush1.msra.mxu0 0.0
    %2287 = vmatprep.subr.mxu0 0.0
    %2288 = vmatpush1.msra.mxu0 0.0
    %2289 = vmatprep.subr.mxu0 0.0
    %2290 = vmatpush1.msra.mxu0 0.0
    %2291 = vmatprep.subr.mxu0 0.0
    %2292 = vmatpush1.msra.mxu0 0.0
    %2293 = vmatprep.subr.mxu0 0.0
    %2294 = vmatpush1.msra.mxu0 0.0
    %2295 = vmatprep.subr.mxu0 0.0
    %2296 = vmatpush1.msra.mxu0 0.0
    %2297 = vmatprep.subr.mxu0 0.0
    %2298 = vmatpush1.msra.mxu0 0.0
    %2299 = vmatprep.subr.mxu0 0.0
    %2300 = vmatpush1.msra.mxu0 0.0
    %2301 = vmatprep.subr.mxu0 0.0
    %2302 = vmatpush1.msra.mxu0 0.0
    %2303 = vmatprep.subr.mxu0 0.0
    %2304 = vmatpush1.msra.mxu0 0.0
    %2305 = vmatprep.subr.mxu0 0.0
    %2306 = vmatpush1.msra.mxu0 0.0
    %2307 = vmatprep.subr.mxu0 0.0
    %2308 = vmatpush1.msra.mxu0 0.0
    %2309 = vmatprep.subr.mxu0 0.0
    %2310 = vmatpush1.msra.mxu0 %v2092
    %2311 = vmatprep.subr.mxu0 0.0
    %2312 = vmatpush1.msra.mxu0 %v2091
    %2313 = vmatprep.subr.mxu0 0.0
    %2314 = vmatpush1.msra.mxu0 %v2090
    %2315 = vmatprep.subr.mxu0 0.0
    %2316 = vmatpush1.msra.mxu0 %v2089
    %2317 = vmatprep.subr.mxu0 0.0
    %2318 = vmatpush2.msra.mxu0 0.0
    %2319 = vmatprep.subr.mxu0 0.0
    %2320 = vmatpush2.msra.mxu0 0.0
    %2321 = vmatprep.subr.mxu0 0.0
    %2322 = vmatpush2.msra.mxu0 0.0
    %2323 = vmatprep.subr.mxu0 0.0
    %2324 = vmatpush2.msra.mxu0 0.0
    %2325 = vmatprep.subr.mxu0 0.0
    %2326 = vmatpush2.msra.mxu0 0.0
    %2327 = vmatprep.subr.mxu0 0.0
    %2328 = vmatpush2.msra.mxu0 0.0
    %2329 = vmatprep.subr.mxu0 0.0
    %2330 = vmatpush2.msra.mxu0 0.0
    %2331 = vmatprep.subr.mxu0 0.0
    %2332 = vmatpush2.msra.mxu0 0.0
    %2333 = vmatprep.subr.mxu0 0.0
    %2334 = vmatpush2.msra.mxu0 0.0
    %2335 = vmatprep.subr.mxu0 0.0
    %2336 = vmatpush2.msra.mxu0 0.0
    %2337 = vmatprep.subr.mxu0 0.0
    %2338 = vmatpush2.msra.mxu0 0.0
    %2339 = vmatprep.subr.mxu0 0.0
    %2340 = vmatpush2.msra.mxu0 0.0
    %2341 = vmatprep.subr.mxu0 0.0
    %2342 = vmatpush2.msra.mxu0 0.0
    %2343 = vmatprep.subr.mxu0 0.0
    %2344 = vmatpush2.msra.mxu0 0.0
    %2345 = vmatprep.subr.mxu0 0.0
    %2346 = vmatpush2.msra.mxu0 0.0
    %2347 = vmatprep.subr.mxu0 0.0
    %2348 = vmatpush2.msra.mxu0 0.0
    %2349 = vmatprep.mubr.f32.mxu0 0.0
    %2350 = vmatmul.mubr.f32.gmra.mxu0 %v2094
    %v2351 = vpop.f32.mrf.mxu0
    %v2352 = vadd.f32 0.0, %v2351
    %v2353 = vpop.f32.mrf.mxu0
    %2354 = vmatprep.mubr.f32.mxu0 0.0
    %2355 = vmatmul.mubr.f32.gmra.mxu0 %v2097
    %v2356 = vpop.f32.mrf.mxu0
    %v2357 = vadd.f32 0.0, %v2356
    %v2358 = vpop.f32.mrf.mxu0
    %2359 = vmatprep.mubr.f32.mxu0 0.0
    %2360 = vmatmul.mubr.f32.gmra.mxu0 %v2100
    %v2361 = vpop.f32.mrf.mxu0
    %v2362 = vadd.f32 0.0, %v2361
    %v2363 = vpop.f32.mrf.mxu0
    %2364 = vmatprep.mubr.f32.mxu0 0.0
    %2365 = vmatmul.mubr.f32.gmra.mxu0 %v2103
    %v2366 = vpop.f32.mrf.mxu0
    %v2367 = vadd.f32 0.0, %v2366
    %v2368 = vpop.f32.mrf.mxu0
    %2369 = vmatprep.mubr.f32.mxu0 0.0
    %2370 = vmatmul.mubr.f32.gmra.mxu0 %v2106
    %v2371 = vpop.f32.mrf.mxu0
    %v2372 = vadd.f32 0.0, %v2371
    %v2373 = vpop.f32.mrf.mxu0
    %2374 = vmatprep.mubr.f32.mxu0 0.0
    %2375 = vmatmul.mubr.f32.gmra.mxu0 %v2109
    %v2376 = vpop.f32.mrf.mxu0
    %v2377 = vadd.f32 0.0, %v2376
    %v2378 = vpop.f32.mrf.mxu0
    %2379 = vmatprep.mubr.f32.mxu0 0.0
    %2380 = vmatmul.mubr.f32.gmra.mxu0 %v2112
    %v2381 = vpop.f32.mrf.mxu0
    %v2382 = vadd.f32 0.0, %v2381
    %v2383 = vpop.f32.mrf.mxu0
    %2384 = vmatprep.mubr.f32.mxu0 0.0
    %2385 = vmatmul.mubr.f32.gmra.mxu0 %v2115
    %v2386 = vpop.f32.mrf.mxu0
    %v2387 = vadd.f32 0.0, %v2386
    %v2388 = vpop.f32.mrf.mxu0
    %2389 = vmatprep.mubr.f32.mxu0 0.0
    %2390 = vmatmul.mubr.f32.gmra.mxu0 %v2118
    %v2391 = vpop.f32.mrf.mxu0
    %v2392 = vadd.f32 0.0, %v2391
    %v2393 = vpop.f32.mrf.mxu0
    %2394 = vmatprep.mubr.f32.mxu0 0.0
    %2395 = vmatmul.mubr.f32.gmra.mxu0 %v2121
    %v2396 = vpop.f32.mrf.mxu0
    %v2397 = vadd.f32 0.0, %v2396
    %v2398 = vpop.f32.mrf.mxu0
    %2399 = vmatprep.mubr.f32.mxu0 0.0
    %2400 = vmatmul.mubr.f32.gmra.mxu0 %v2124
    %v2401 = vpop.f32.mrf.mxu0
    %v2402 = vadd.f32 0.0, %v2401
    %v2403 = vpop.f32.mrf.mxu0
    %2404 = vmatprep.mubr.f32.mxu0 0.0
    %2405 = vmatmul.mubr.f32.gmra.mxu0 %v2127
    %v2406 = vpop.f32.mrf.mxu0
    %v2407 = vadd.f32 0.0, %v2406
    %v2408 = vpop.f32.mrf.mxu0
    %2409 = vmatprep.mubr.f32.mxu0 0.0
    %2410 = vmatmul.mubr.f32.gmra.mxu0 %v2130
    %v2411 = vpop.f32.mrf.mxu0
    %v2412 = vadd.f32 0.0, %v2411
    %v2413 = vpop.f32.mrf.mxu0
    %2414 = vmatprep.mubr.f32.mxu0 0.0
    %2415 = vmatmul.mubr.f32.gmra.mxu0 %v2133
    %v2416 = vpop.f32.mrf.mxu0
    %v2417 = vadd.f32 0.0, %v2416
    %v2418 = vpop.f32.mrf.mxu0
    %2419 = vmatprep.mubr.f32.mxu0 0.0
    %2420 = vmatmul.mubr.f32.gmra.mxu0 %v2136
    %v2421 = vpop.f32.mrf.mxu0
    %v2422 = vadd.f32 0.0, %v2421
    %v2423 = vpop.f32.mrf.mxu0
    %2424 = vmatprep.mubr.f32.mxu0 0.0
    %2425 = vmatmul.mubr.f32.gmra.mxu0 %v2139
    %v2426 = vpop.f32.mrf.mxu0
    %v2427 = vadd.f32 0.0, %v2426
    %v2428 = vpop.f32.mrf.mxu0
    %2429 = vmatprep.mubr.f32.mxu0 0.0
    %2430 = vmatmul.mubr.f32.gmra.mxu0 %v2142
    %v2431 = vpop.f32.mrf.mxu0
    %v2432 = vadd.f32 0.0, %v2431
    %v2433 = vpop.f32.mrf.mxu0
    %2434 = vmatprep.mubr.f32.mxu0 0.0
    %2435 = vmatmul.mubr.f32.gmra.mxu0 %v2145
    %v2436 = vpop.f32.mrf.mxu0
    %v2437 = vadd.f32 0.0, %v2436
    %v2438 = vpop.f32.mrf.mxu0
    %2439 = vmatprep.mubr.f32.mxu0 0.0
    %2440 = vmatmul.mubr.f32.gmra.mxu0 %v2148
    %v2441 = vpop.f32.mrf.mxu0
    %v2442 = vadd.f32 0.0, %v2441
    %v2443 = vpop.f32.mrf.mxu0
    %2444 = vmatprep.mubr.f32.mxu0 0.0
    %2445 = vmatmul.mubr.f32.gmra.mxu0 %v2151
    %v2446 = vpop.f32.mrf.mxu0
    %v2447 = vadd.f32 0.0, %v2446
    %v2448 = vpop.f32.mrf.mxu0
    %2449 = vmatprep.mubr.f32.mxu0 0.0
    %2450 = vmatmul.mubr.f32.gmra.mxu0 %v2154
    %v2451 = vpop.f32.mrf.mxu0
    %v2452 = vadd.f32 0.0, %v2451
    %v2453 = vpop.f32.mrf.mxu0
    %2454 = vmatprep.mubr.f32.mxu0 0.0
    %2455 = vmatmul.mubr.f32.gmra.mxu0 %v2157
    %v2456 = vpop.f32.mrf.mxu0
    %v2457 = vadd.f32 0.0, %v2456
    %v2458 = vpop.f32.mrf.mxu0
    %2459 = vmatprep.mubr.f32.mxu0 0.0
    %2460 = vmatmul.mubr.f32.gmra.mxu0 %v2160
    %v2461 = vpop.f32.mrf.mxu0
    %v2462 = vadd.f32 0.0, %v2461
    %v2463 = vpop.f32.mrf.mxu0
    %2464 = vmatprep.mubr.f32.mxu0 0.0
    %2465 = vmatmul.mubr.f32.gmra.mxu0 %v2163
    %v2466 = vpop.f32.mrf.mxu0
    %v2467 = vadd.f32 0.0, %v2466
    %v2468 = vpop.f32.mrf.mxu0
    %2469 = vmatprep.mubr.f32.mxu0 0.0
    %2470 = vmatmul.mubr.f32.gmra.mxu0 %v2166
    %v2471 = vpop.f32.mrf.mxu0
    %v2472 = vadd.f32 0.0, %v2471
    %v2473 = vpop.f32.mrf.mxu0
    %2474 = vmatprep.mubr.f32.mxu0 0.0
    %2475 = vmatmul.mubr.f32.gmra.mxu0 %v2169
    %v2476 = vpop.f32.mrf.mxu0
    %v2477 = vadd.f32 0.0, %v2476
    %v2478 = vpop.f32.mrf.mxu0
    %2479 = vmatprep.mubr.f32.mxu0 0.0
    %2480 = vmatmul.mubr.f32.gmra.mxu0 %v2172
    %v2481 = vpop.f32.mrf.mxu0
    %v2482 = vadd.f32 0.0, %v2481
    %v2483 = vpop.f32.mrf.mxu0
    %2484 = vmatprep.mubr.f32.mxu0 0.0
    %2485 = vmatmul.mubr.f32.gmra.mxu0 %v2175
    %v2486 = vpop.f32.mrf.mxu0
    %v2487 = vadd.f32 0.0, %v2486
    %v2488 = vpop.f32.mrf.mxu0
    %2489 = vmatprep.mubr.f32.mxu0 0.0
    %2490 = vmatmul.mubr.f32.gmra.mxu0 %v2178
    %v2491 = vpop.f32.mrf.mxu0
    %v2492 = vadd.f32 0.0, %v2491
    %v2493 = vpop.f32.mrf.mxu0
    %2494 = vmatprep.mubr.f32.mxu0 0.0
    %2495 = vmatmul.mubr.f32.gmra.mxu0 %v2181
    %v2496 = vpop.f32.mrf.mxu0
    %v2497 = vadd.f32 0.0, %v2496
    %v2498 = vpop.f32.mrf.mxu0
    %2499 = vmatprep.mubr.f32.mxu0 0.0
    %2500 = vmatmul.mubr.f32.gmra.mxu0 %v2184
    %v2501 = vpop.f32.mrf.mxu0
    %v2502 = vadd.f32 0.0, %v2501
    %v2503 = vpop.f32.mrf.mxu0
    %2504 = vmatprep.mubr.f32.mxu0 0.0
    %2505 = vmatmul.mubr.f32.gmra.mxu0 %v2187
    %v2506 = vpop.f32.mrf.mxu0
    %v2507 = vadd.f32 0.0, %v2506
    %v2508 = vpop.f32.mrf.mxu0
    %2509 = vmatprep.mubr.f32.mxu0 0.0
    %2510 = vmatmul.mubr.f32.gmra.mxu0 %v2190
    %v2511 = vpop.f32.mrf.mxu0
    %v2512 = vadd.f32 0.0, %v2511
    %v2513 = vpop.f32.mrf.mxu0
    %2514 = vmatprep.mubr.f32.mxu0 0.0
    %2515 = vmatmul.mubr.f32.gmra.mxu0 %v2193
    %v2516 = vpop.f32.mrf.mxu0
    %v2517 = vadd.f32 0.0, %v2516
    %v2518 = vpop.f32.mrf.mxu0
    %2519 = vmatprep.mubr.f32.mxu0 0.0
    %2520 = vmatmul.mubr.f32.gmra.mxu0 %v2196
    %v2521 = vpop.f32.mrf.mxu0
    %v2522 = vadd.f32 0.0, %v2521
    %v2523 = vpop.f32.mrf.mxu0
    %2524 = vmatprep.mubr.f32.mxu0 0.0
    %2525 = vmatmul.mubr.f32.gmra.mxu0 %v2199
    %v2526 = vpop.f32.mrf.mxu0
    %v2527 = vadd.f32 0.0, %v2526
    %v2528 = vpop.f32.mrf.mxu0
    %2529 = vmatprep.mubr.f32.mxu0 0.0
    %2530 = vmatmul.mubr.f32.gmra.mxu0 %v2202
    %v2531 = vpop.f32.mrf.mxu0
    %v2532 = vadd.f32 0.0, %v2531
    %v2533 = vpop.f32.mrf.mxu0
    %2534 = vmatprep.mubr.f32.mxu0 0.0
    %2535 = vmatmul.mubr.f32.gmra.mxu0 %v2205
    %v2536 = vpop.f32.mrf.mxu0
    %v2537 = vadd.f32 0.0, %v2536
    %v2538 = vpop.f32.mrf.mxu0
    %2539 = vmatprep.mubr.f32.mxu0 0.0
    %2540 = vmatmul.mubr.f32.gmra.mxu0 %v2208
    %v2541 = vpop.f32.mrf.mxu0
    %v2542 = vadd.f32 0.0, %v2541
    %v2543 = vpop.f32.mrf.mxu0
    %2544 = vmatprep.mubr.f32.mxu0 0.0
    %2545 = vmatmul.mubr.f32.gmra.mxu0 %v2211
    %v2546 = vpop.f32.mrf.mxu0
    %v2547 = vadd.f32 0.0, %v2546
    %v2548 = vpop.f32.mrf.mxu0
    %2549 = vmatprep.mubr.f32.mxu0 0.0
    %2550 = vmatmul.mubr.f32.gmra.mxu0 %v2214
    %v2551 = vpop.f32.mrf.mxu0
    %v2552 = vadd.f32 0.0, %v2551
    %v2553 = vpop.f32.mrf.mxu0
    %2554 = vmatprep.mubr.f32.mxu0 0.0
    %2555 = vmatmul.mubr.f32.gmra.mxu0 %v2217
    %v2556 = vpop.f32.mrf.mxu0
    %v2557 = vadd.f32 0.0, %v2556
    %v2558 = vpop.f32.mrf.mxu0
    %2559 = vmatprep.mubr.f32.mxu0 0.0
    %2560 = vmatmul.mubr.f32.gmra.mxu0 %v2220
    %v2561 = vpop.f32.mrf.mxu0
    %v2562 = vadd.f32 0.0, %v2561
    %v2563 = vpop.f32.mrf.mxu0
    %2564 = vmatprep.mubr.f32.mxu0 0.0
    %2565 = vmatmul.mubr.f32.gmra.mxu0 %v2223
    %v2566 = vpop.f32.mrf.mxu0
    %v2567 = vadd.f32 0.0, %v2566
    %v2568 = vpop.f32.mrf.mxu0
    %2569 = vmatprep.mubr.f32.mxu0 0.0
    %2570 = vmatmul.mubr.f32.gmra.mxu0 %v2226
    %v2571 = vpop.f32.mrf.mxu0
    %v2572 = vadd.f32 0.0, %v2571
    %v2573 = vpop.f32.mrf.mxu0
    %2574 = vmatprep.mubr.f32.mxu0 0.0
    %2575 = vmatmul.mubr.f32.gmra.mxu0 %v2229
    %v2576 = vpop.f32.mrf.mxu0
    %v2577 = vadd.f32 0.0, %v2576
    %v2578 = vpop.f32.mrf.mxu0
    %2579 = vmatprep.mubr.f32.mxu0 0.0
    %2580 = vmatmul.mubr.f32.gmra.mxu0 %v2232
    %v2581 = vpop.f32.mrf.mxu0
    %v2582 = vadd.f32 0.0, %v2581
    %v2583 = vpop.f32.mrf.mxu0
    %2584 = vmatprep.mubr.f32.mxu0 0.0
    %2585 = vmatmul.mubr.f32.gmra.mxu0 %v2235
    %v2586 = vpop.f32.mrf.mxu0
    %v2587 = vadd.f32 0.0, %v2586
    %v2588 = vpop.f32.mrf.mxu0
    %2589 = vmatprep.mubr.f32.mxu0 0.0
    %2590 = vmatmul.mubr.f32.gmra.mxu0 %v2238
    %v2591 = vpop.f32.mrf.mxu0
    %v2592 = vadd.f32 0.0, %v2591
    %v2593 = vpop.f32.mrf.mxu0
    %2594 = vmatprep.mubr.f32.mxu0 0.0
    %2595 = vmatmul.mubr.f32.gmra.mxu0 %v2241
    %v2596 = vpop.f32.mrf.mxu0
    %v2597 = vadd.f32 0.0, %v2596
    %v2598 = vpop.f32.mrf.mxu0
    %2599 = vmatprep.mubr.f32.mxu0 0.0
    %2600 = vmatmul.mubr.f32.gmra.mxu0 %v2244
    %v2601 = vpop.f32.mrf.mxu0
    %v2602 = vadd.f32 0.0, %v2601
    %v2603 = vpop.f32.mrf.mxu0
    %2604 = vmatprep.mubr.f32.mxu0 0.0
    %2605 = vmatmul.mubr.f32.gmra.mxu0 %v2247
    %v2606 = vpop.f32.mrf.mxu0
    %v2607 = vadd.f32 0.0, %v2606
    %v2608 = vpop.f32.mrf.mxu0
    %2609 = vmatprep.mubr.f32.mxu0 0.0
    %2610 = vmatmul.mubr.f32.gmra.mxu0 %v2250
    %v2611 = vpop.f32.mrf.mxu0
    %v2612 = vadd.f32 0.0, %v2611
    %v2613 = vpop.f32.mrf.mxu0
    %2614 = vmatprep.mubr.f32.mxu0 0.0
    %2615 = vmatmul.mubr.f32.gmra.mxu0 %v2253
    %v2616 = vpop.f32.mrf.mxu0
    %v2617 = vadd.f32 0.0, %v2616
    %v2618 = vpop.f32.mrf.mxu0
    %2619 = vmatprep.mubr.f32.mxu0 0.0
    %2620 = vmatmul.mubr.f32.gmra.mxu0 %v2256
    %v2621 = vpop.f32.mrf.mxu0
    %v2622 = vadd.f32 0.0, %v2621
    %v2623 = vpop.f32.mrf.mxu0
    %2624 = vmatprep.mubr.f32.mxu0 0.0
    %2625 = vmatmul.mubr.f32.gmra.mxu0 %v2259
    %v2626 = vpop.f32.mrf.mxu0
    %v2627 = vadd.f32 0.0, %v2626
    %v2628 = vpop.f32.mrf.mxu0
    %2629 = vmatprep.mubr.f32.mxu0 0.0
    %2630 = vmatmul.mubr.f32.gmra.mxu0 %v2262
    %v2631 = vpop.f32.mrf.mxu0
    %v2632 = vadd.f32 0.0, %v2631
    %v2633 = vpop.f32.mrf.mxu0
    %2634 = vmatprep.mubr.f32.mxu0 0.0
    %2635 = vmatmul.mubr.f32.gmra.mxu0 %v2265
    %v2636 = vpop.f32.mrf.mxu0
    %v2637 = vadd.f32 0.0, %v2636
    %v2638 = vpop.f32.mrf.mxu0
    %2639 = vmatprep.mubr.f32.mxu0 0.0
    %2640 = vmatmul.mubr.f32.gmra.mxu0 %v2268
    %v2641 = vpop.f32.mrf.mxu0
    %v2642 = vadd.f32 0.0, %v2641
    %v2643 = vpop.f32.mrf.mxu0
    %2644 = vmatprep.mubr.f32.mxu0 0.0
    %2645 = vmatmul.mubr.f32.gmra.mxu0 %v2271
    %v2646 = vpop.f32.mrf.mxu0
    %v2647 = vadd.f32 0.0, %v2646
    %v2648 = vpop.f32.mrf.mxu0
    %2649 = vmatprep.mubr.f32.mxu0 0.0
    %2650 = vmatmul.mubr.f32.gmra.mxu0 %v2274
    %v2651 = vpop.f32.mrf.mxu0
    %v2652 = vadd.f32 0.0, %v2651
    %v2653 = vpop.f32.mrf.mxu0
    %2654 = vmatprep.mubr.f32.mxu0 0.0
    %2655 = vmatmul.mubr.f32.gmra.mxu0 %v2277
    %v2656 = vpop.f32.mrf.mxu0
    %v2657 = vadd.f32 0.0, %v2656
    %v2658 = vpop.f32.mrf.mxu0
    %2659 = vmatprep.mubr.f32.mxu0 0.0
    %2660 = vmatmul.mubr.f32.gmra.mxu0 %v2280
    %v2661 = vpop.f32.mrf.mxu0
    %v2662 = vadd.f32 0.0, %v2661
    %v2663 = vpop.f32.mrf.mxu0
    %2664 = vmatprep.mubr.f32.mxu0 0.0
    %2665 = vmatmul.mubr.f32.gmra.mxu0 %v2283
    %v2666 = vpop.f32.mrf.mxu0
    %v2667 = vadd.f32 0.0, %v2666
    %v2668 = vpop.f32.mrf.mxu0
    %2669 = vdwg.mxu0
    %v2670 = vadd.f32 %v1959, %v2352
    %v2671 = vadd.f32 %v1960, %v2357
    %v2672 = vadd.f32 %v1961, %v2362
    %v2673 = vadd.f32 %v1962, %v2367
    %v2674 = vadd.f32 %v1963, %v2372
    %v2675 = vadd.f32 %v1964, %v2377
    %v2676 = vadd.f32 %v1965, %v2382
    %v2677 = vadd.f32 %v1966, %v2387
    %v2678 = vadd.f32 %v1967, %v2392
    %v2679 = vadd.f32 %v1968, %v2397
    %v2680 = vadd.f32 %v1969, %v2402
    %v2681 = vadd.f32 %v1970, %v2407
    %v2682 = vadd.f32 %v1971, %v2412
    %v2683 = vadd.f32 %v1972, %v2417
    %v2684 = vadd.f32 %v1973, %v2422
    %v2685 = vadd.f32 %v1974, %v2427
    %v2686 = vadd.f32 %v1975, %v2432
    %v2687 = vadd.f32 %v1976, %v2437
    %v2688 = vadd.f32 %v1977, %v2442
    %v2689 = vadd.f32 %v1978, %v2447
    %v2690 = vadd.f32 %v1979, %v2452
    %v2691 = vadd.f32 %v1980, %v2457
    %v2692 = vadd.f32 %v1981, %v2462
    %v2693 = vadd.f32 %v1982, %v2467
    %v2694 = vadd.f32 %v1983, %v2472
    %v2695 = vadd.f32 %v1984, %v2477
    %v2696 = vadd.f32 %v1985, %v2482
    %v2697 = vadd.f32 %v1986, %v2487
    %v2698 = vadd.f32 %v1987, %v2492
    %v2699 = vadd.f32 %v1988, %v2497
    %v2700 = vadd.f32 %v1989, %v2502
    %v2701 = vadd.f32 %v1990, %v2507
    %v2702 = vadd.f32 %v1991, %v2512
    %v2703 = vadd.f32 %v1992, %v2517
    %v2704 = vadd.f32 %v1993, %v2522
    %v2705 = vadd.f32 %v1994, %v2527
    %v2706 = vadd.f32 %v1995, %v2532
    %v2707 = vadd.f32 %v1996, %v2537
    %v2708 = vadd.f32 %v1997, %v2542
    %v2709 = vadd.f32 %v1998, %v2547
    %v2710 = vadd.f32 %v1999, %v2552
    %v2711 = vadd.f32 %v2000, %v2557
    %v2712 = vadd.f32 %v2001, %v2562
    %v2713 = vadd.f32 %v2002, %v2567
    %v2714 = vadd.f32 %v2003, %v2572
    %v2715 = vadd.f32 %v2004, %v2577
    %v2716 = vadd.f32 %v2005, %v2582
    %v2717 = vadd.f32 %v2006, %v2587
    %v2718 = vadd.f32 %v2007, %v2592
    %v2719 = vadd.f32 %v2008, %v2597
    %v2720 = vadd.f32 %v2009, %v2602
    %v2721 = vadd.f32 %v2010, %v2607
    %v2722 = vadd.f32 %v2011, %v2612
    %v2723 = vadd.f32 %v2012, %v2617
    %v2724 = vadd.f32 %v2013, %v2622
    %v2725 = vadd.f32 %v2014, %v2627
    %v2726 = vadd.f32 %v2015, %v2632
    %v2727 = vadd.f32 %v2016, %v2637
    %v2728 = vadd.f32 %v2017, %v2642
    %v2729 = vadd.f32 %v2018, %v2647
    %v2730 = vadd.f32 %v2019, %v2652
    %v2731 = vadd.f32 %v2020, %v2657
    %v2732 = vadd.f32 %v2021, %v2662
    %v2733 = vadd.f32 %v2022, %v2667
    %v2734 = vld [vmem:[%s2023 + $0x1] sm:$0xff]
    %v2735 = vld [vmem:[%s2023 + $0x9] sm:$0xff]
    %v2736 = vld [vmem:[%s2023 + $0x19] sm:$0xff]
    %v2737 = vld [vmem:[%s2023 + $0x21] sm:$0xff]
    %v2738 = vld [vmem:[%s2023 + $0x31] sm:$0xff]
    %v2739 = vld [vmem:[%s2023 + $0x39] sm:$0xff]
    %v2740 = vld [vmem:[%s2023 + $0x49] sm:$0xff]
    %v2741 = vld [vmem:[%s2023 + $0x51] sm:$0xff]
    %v2742 = vld [vmem:[%s2023 + $0x61] sm:$0xff]
    %v2743 = vld [vmem:[%s2023 + $0x69] sm:$0xff]
    %v2744 = vld [vmem:[%s2023 + $0x79] sm:$0xff]
    %v2745 = vld [vmem:[%s2023 + $0x81] sm:$0xff]
    %v2746 = vld [vmem:[%s2023 + $0x91] sm:$0xff]
    %v2747 = vld [vmem:[%s2023 + $0x99] sm:$0xff]
    %v2748 = vld [vmem:[%s2023 + $0xa9] sm:$0xff]
    %v2749 = vld [vmem:[%s2023 + $0xb1] sm:$0xff]
    %v2750 = vld [vmem:[%s2023 + $0xc1] sm:$0xff]
    %v2751 = vld [vmem:[%s2023 + $0xc9] sm:$0xff]
    %v2752 = vld [vmem:[%s2023 + $0xd9] sm:$0xff]
    %v2753 = vld [vmem:[%s2023 + $0xe1] sm:$0xff]
    %v2754 = vld [vmem:[%s2023 + $0xf1] sm:$0xff]
    %v2755 = vld [vmem:[%s2023 + $0xf9] sm:$0xff]
    %v2756 = vld [vmem:[%s2023 + $0x109] sm:$0xff]
    %v2757 = vld [vmem:[%s2023 + $0x111] sm:$0xff]
    %v2758 = vld [vmem:[%s2023 + $0x121] sm:$0xff]
    %v2759 = vld [vmem:[%s2023 + $0x129] sm:$0xff]
    %v2760 = vld [vmem:[%s2023 + $0x139] sm:$0xff]
    %v2761 = vld [vmem:[%s2023 + $0x141] sm:$0xff]
    %v2762 = vld [vmem:[%s2023 + $0x151] sm:$0xff]
    %v2763 = vld [vmem:[%s2023 + $0x159] sm:$0xff]
    %v2764 = vld [vmem:[%s2023 + $0x169] sm:$0xff]
    %v2765 = vld [vmem:[%s2023 + $0x171] sm:$0xff]
    %v2766 = vld [vmem:[%s2023 + $0x1b1] sm:$0xff]
    %v2767 = vld [vmem:[%s2023 + $0x1b9] sm:$0xff]
    %v2768 = vld [vmem:[%s2023 + $0x1c9] sm:$0xff]
    %v2769 = vld [vmem:[%s2023 + $0x1d1] sm:$0xff]
    %v2770 = vld [vmem:[%s2023 + $0x1e1] sm:$0xff]
    %v2771 = vld [vmem:[%s2023 + $0x1e9] sm:$0xff]
    %v2772 = vld [vmem:[%s2023 + $0x1f9] sm:$0xff]
    %v2773 = vld [vmem:[%s2023 + $0x201] sm:$0xff]
    %v2774 = vld [vmem:[%s2023 + $0x211] sm:$0xff]
    %v2775 = vld [vmem:[%s2023 + $0x219] sm:$0xff]
    %v2776 = vld [vmem:[%s2023 + $0x229] sm:$0xff]
    %v2777 = vld [vmem:[%s2023 + $0x231] sm:$0xff]
    %v2778 = vld [vmem:[%s2023 + $0x241] sm:$0xff]
    %v2779 = vld [vmem:[%s2023 + $0x249] sm:$0xff]
    %v2780 = vld [vmem:[%s2023 + $0x259] sm:$0xff]
    %v2781 = vld [vmem:[%s2023 + $0x261] sm:$0xff]
    %v2782 = vld [vmem:[%s2023 + $0x271] sm:$0xff]
    %v2783 = vld [vmem:[%s2023 + $0x279] sm:$0xff]
    %v2784 = vld [vmem:[%s2023 + $0x289] sm:$0xff]
    %v2785 = vld [vmem:[%s2023 + $0x291] sm:$0xff]
    %v2786 = vld [vmem:[%s2023 + $0x2a1] sm:$0xff]
    %v2787 = vld [vmem:[%s2023 + $0x2a9] sm:$0xff]
    %v2788 = vld [vmem:[%s2023 + $0x2b9] sm:$0xff]
    %v2789 = vld [vmem:[%s2023 + $0x2c1] sm:$0xff]
    %v2790 = vld [vmem:[%s2023 + $0x2d1] sm:$0xff]
    %v2791 = vld [vmem:[%s2023 + $0x2d9] sm:$0xff]
    %v2792 = vld [vmem:[%s2023 + $0x2e9] sm:$0xff]
    %v2793 = vld [vmem:[%s2023 + $0x2f1] sm:$0xff]
    %v2794 = vld [vmem:[%s2023 + $0x301] sm:$0xff]
    %v2795 = vld [vmem:[%s2023 + $0x309] sm:$0xff]
    %v2796 = vld [vmem:[%s2023 + $0x319] sm:$0xff]
    %v2797 = vld [vmem:[%s2023 + $0x321] sm:$0xff]
    %s2798 = scalar_lea.vmem %s1, 128
    %v2799 = vld [vmem:[%s2798] sm:$0xff]
    %v2800 = vld [vmem:[%s2798 + $0x8] sm:$0xff]
    %v2801 = vld [vmem:[%s2798 + $0x10] sm:$0xff]
    %v2802 = vld [vmem:[%s2798 + $0x18] sm:$0xff]
    %v2804 = vsel %vm158, %v2734, 0
    %v2807 = vsel %vm158, %v2735, 0
    %v2810 = vsel %vm158, %v2736, 0
    %v2813 = vsel %vm158, %v2737, 0
    %v2816 = vsel %vm158, %v2738, 0
    %v2819 = vsel %vm158, %v2739, 0
    %v2822 = vsel %vm158, %v2740, 0
    %v2825 = vsel %vm158, %v2741, 0
    %v2828 = vsel %vm158, %v2742, 0
    %v2831 = vsel %vm158, %v2743, 0
    %v2834 = vsel %vm158, %v2744, 0
    %v2837 = vsel %vm158, %v2745, 0
    %v2840 = vsel %vm158, %v2746, 0
    %v2843 = vsel %vm158, %v2747, 0
    %v2846 = vsel %vm158, %v2748, 0
    %v2849 = vsel %vm158, %v2749, 0
    %v2852 = vsel %vm158, %v2750, 0
    %v2855 = vsel %vm158, %v2751, 0
    %v2858 = vsel %vm158, %v2752, 0
    %v2861 = vsel %vm158, %v2753, 0
    %v2864 = vsel %vm158, %v2754, 0
    %v2867 = vsel %vm158, %v2755, 0
    %v2870 = vsel %vm158, %v2756, 0
    %v2873 = vsel %vm158, %v2757, 0
    %v2876 = vsel %vm158, %v2758, 0
    %v2879 = vsel %vm158, %v2759, 0
    %v2882 = vsel %vm158, %v2760, 0
    %v2885 = vsel %vm158, %v2761, 0
    %v2888 = vsel %vm158, %v2762, 0
    %v2891 = vsel %vm158, %v2763, 0
    %v2894 = vsel %vm158, %v2764, 0
    %v2897 = vsel %vm158, %v2765, 0
    %v2900 = vsel %vm158, %v2766, 0
    %v2903 = vsel %vm158, %v2767, 0
    %v2906 = vsel %vm158, %v2768, 0
    %v2909 = vsel %vm158, %v2769, 0
    %v2912 = vsel %vm158, %v2770, 0
    %v2915 = vsel %vm158, %v2771, 0
    %v2918 = vsel %vm158, %v2772, 0
    %v2921 = vsel %vm158, %v2773, 0
    %v2924 = vsel %vm158, %v2774, 0
    %v2927 = vsel %vm158, %v2775, 0
    %v2930 = vsel %vm158, %v2776, 0
    %v2933 = vsel %vm158, %v2777, 0
    %v2936 = vsel %vm158, %v2778, 0
    %v2939 = vsel %vm158, %v2779, 0
    %v2942 = vsel %vm158, %v2780, 0
    %v2945 = vsel %vm158, %v2781, 0
    %v2948 = vsel %vm158, %v2782, 0
    %v2951 = vsel %vm158, %v2783, 0
    %v2954 = vsel %vm158, %v2784, 0
    %v2957 = vsel %vm158, %v2785, 0
    %v2960 = vsel %vm158, %v2786, 0
    %v2963 = vsel %vm158, %v2787, 0
    %v2966 = vsel %vm158, %v2788, 0
    %v2969 = vsel %vm158, %v2789, 0
    %v2972 = vsel %vm158, %v2790, 0
    %v2975 = vsel %vm158, %v2791, 0
    %v2978 = vsel %vm158, %v2792, 0
    %v2981 = vsel %vm158, %v2793, 0
    %v2984 = vsel %vm158, %v2794, 0
    %v2987 = vsel %vm158, %v2795, 0
    %v2990 = vsel %vm158, %v2796, 0
    %v2993 = vsel %vm158, %v2797, 0
    %2995 = vmatprep.subr.mxu0 0.0
    %2996 = vmatpush1.msra.mxu0 0.0
    %2997 = vmatprep.subr.mxu0 0.0
    %2998 = vmatpush1.msra.mxu0 0.0
    %2999 = vmatprep.subr.mxu0 0.0
    %3000 = vmatpush1.msra.mxu0 0.0
    %3001 = vmatprep.subr.mxu0 0.0
    %3002 = vmatpush1.msra.mxu0 0.0
    %3003 = vmatprep.subr.mxu0 0.0
    %3004 = vmatpush1.msra.mxu0 0.0
    %3005 = vmatprep.subr.mxu0 0.0
    %3006 = vmatpush1.msra.mxu0 0.0
    %3007 = vmatprep.subr.mxu0 0.0
    %3008 = vmatpush1.msra.mxu0 0.0
    %3009 = vmatprep.subr.mxu0 0.0
    %3010 = vmatpush1.msra.mxu0 0.0
    %3011 = vmatprep.subr.mxu0 0.0
    %3012 = vmatpush1.msra.mxu0 0.0
    %3013 = vmatprep.subr.mxu0 0.0
    %3014 = vmatpush1.msra.mxu0 0.0
    %3015 = vmatprep.subr.mxu0 0.0
    %3016 = vmatpush1.msra.mxu0 0.0
    %3017 = vmatprep.subr.mxu0 0.0
    %3018 = vmatpush1.msra.mxu0 0.0
    %3019 = vmatprep.subr.mxu0 0.0
    %3020 = vmatpush1.msra.mxu0 %v2802
    %3021 = vmatprep.subr.mxu0 0.0
    %3022 = vmatpush1.msra.mxu0 %v2801
    %3023 = vmatprep.subr.mxu0 0.0
    %3024 = vmatpush1.msra.mxu0 %v2800
    %3025 = vmatprep.subr.mxu0 0.0
    %3026 = vmatpush1.msra.mxu0 %v2799
    %3027 = vmatprep.subr.mxu0 0.0
    %3028 = vmatpush2.msra.mxu0 0.0
    %3029 = vmatprep.subr.mxu0 0.0
    %3030 = vmatpush2.msra.mxu0 0.0
    %3031 = vmatprep.subr.mxu0 0.0
    %3032 = vmatpush2.msra.mxu0 0.0
    %3033 = vmatprep.subr.mxu0 0.0
    %3034 = vmatpush2.msra.mxu0 0.0
    %3035 = vmatprep.subr.mxu0 0.0
    %3036 = vmatpush2.msra.mxu0 0.0
    %3037 = vmatprep.subr.mxu0 0.0
    %3038 = vmatpush2.msra.mxu0 0.0
    %3039 = vmatprep.subr.mxu0 0.0
    %3040 = vmatpush2.msra.mxu0 0.0
    %3041 = vmatprep.subr.mxu0 0.0
    %3042 = vmatpush2.msra.mxu0 0.0
    %3043 = vmatprep.subr.mxu0 0.0
    %3044 = vmatpush2.msra.mxu0 0.0
    %3045 = vmatprep.subr.mxu0 0.0
    %3046 = vmatpush2.msra.mxu0 0.0
    %3047 = vmatprep.subr.mxu0 0.0
    %3048 = vmatpush2.msra.mxu0 0.0
    %3049 = vmatprep.subr.mxu0 0.0
    %3050 = vmatpush2.msra.mxu0 0.0
    %3051 = vmatprep.subr.mxu0 0.0
    %3052 = vmatpush2.msra.mxu0 0.0
    %3053 = vmatprep.subr.mxu0 0.0
    %3054 = vmatpush2.msra.mxu0 0.0
    %3055 = vmatprep.subr.mxu0 0.0
    %3056 = vmatpush2.msra.mxu0 0.0
    %3057 = vmatprep.subr.mxu0 0.0
    %3058 = vmatpush2.msra.mxu0 0.0
    %3059 = vmatprep.mubr.f32.mxu0 0.0
    %3060 = vmatmul.mubr.f32.gmra.mxu0 %v2804
    %v3061 = vpop.f32.mrf.mxu0
    %v3062 = vadd.f32 0.0, %v3061
    %v3063 = vpop.f32.mrf.mxu0
    %3064 = vmatprep.mubr.f32.mxu0 0.0
    %3065 = vmatmul.mubr.f32.gmra.mxu0 %v2807
    %v3066 = vpop.f32.mrf.mxu0
    %v3067 = vadd.f32 0.0, %v3066
    %v3068 = vpop.f32.mrf.mxu0
    %3069 = vmatprep.mubr.f32.mxu0 0.0
    %3070 = vmatmul.mubr.f32.gmra.mxu0 %v2810
    %v3071 = vpop.f32.mrf.mxu0
    %v3072 = vadd.f32 0.0, %v3071
    %v3073 = vpop.f32.mrf.mxu0
    %3074 = vmatprep.mubr.f32.mxu0 0.0
    %3075 = vmatmul.mubr.f32.gmra.mxu0 %v2813
    %v3076 = vpop.f32.mrf.mxu0
    %v3077 = vadd.f32 0.0, %v3076
    %v3078 = vpop.f32.mrf.mxu0
    %3079 = vmatprep.mubr.f32.mxu0 0.0
    %3080 = vmatmul.mubr.f32.gmra.mxu0 %v2816
    %v3081 = vpop.f32.mrf.mxu0
    %v3082 = vadd.f32 0.0, %v3081
    %v3083 = vpop.f32.mrf.mxu0
    %3084 = vmatprep.mubr.f32.mxu0 0.0
    %3085 = vmatmul.mubr.f32.gmra.mxu0 %v2819
    %v3086 = vpop.f32.mrf.mxu0
    %v3087 = vadd.f32 0.0, %v3086
    %v3088 = vpop.f32.mrf.mxu0
    %3089 = vmatprep.mubr.f32.mxu0 0.0
    %3090 = vmatmul.mubr.f32.gmra.mxu0 %v2822
    %v3091 = vpop.f32.mrf.mxu0
    %v3092 = vadd.f32 0.0, %v3091
    %v3093 = vpop.f32.mrf.mxu0
    %3094 = vmatprep.mubr.f32.mxu0 0.0
    %3095 = vmatmul.mubr.f32.gmra.mxu0 %v2825
    %v3096 = vpop.f32.mrf.mxu0
    %v3097 = vadd.f32 0.0, %v3096
    %v3098 = vpop.f32.mrf.mxu0
    %3099 = vmatprep.mubr.f32.mxu0 0.0
    %3100 = vmatmul.mubr.f32.gmra.mxu0 %v2828
    %v3101 = vpop.f32.mrf.mxu0
    %v3102 = vadd.f32 0.0, %v3101
    %v3103 = vpop.f32.mrf.mxu0
    %3104 = vmatprep.mubr.f32.mxu0 0.0
    %3105 = vmatmul.mubr.f32.gmra.mxu0 %v2831
    %v3106 = vpop.f32.mrf.mxu0
    %v3107 = vadd.f32 0.0, %v3106
    %v3108 = vpop.f32.mrf.mxu0
    %3109 = vmatprep.mubr.f32.mxu0 0.0
    %3110 = vmatmul.mubr.f32.gmra.mxu0 %v2834
    %v3111 = vpop.f32.mrf.mxu0
    %v3112 = vadd.f32 0.0, %v3111
    %v3113 = vpop.f32.mrf.mxu0
    %3114 = vmatprep.mubr.f32.mxu0 0.0
    %3115 = vmatmul.mubr.f32.gmra.mxu0 %v2837
    %v3116 = vpop.f32.mrf.mxu0
    %v3117 = vadd.f32 0.0, %v3116
    %v3118 = vpop.f32.mrf.mxu0
    %3119 = vmatprep.mubr.f32.mxu0 0.0
    %3120 = vmatmul.mubr.f32.gmra.mxu0 %v2840
    %v3121 = vpop.f32.mrf.mxu0
    %v3122 = vadd.f32 0.0, %v3121
    %v3123 = vpop.f32.mrf.mxu0
    %3124 = vmatprep.mubr.f32.mxu0 0.0
    %3125 = vmatmul.mubr.f32.gmra.mxu0 %v2843
    %v3126 = vpop.f32.mrf.mxu0
    %v3127 = vadd.f32 0.0, %v3126
    %v3128 = vpop.f32.mrf.mxu0
    %3129 = vmatprep.mubr.f32.mxu0 0.0
    %3130 = vmatmul.mubr.f32.gmra.mxu0 %v2846
    %v3131 = vpop.f32.mrf.mxu0
    %v3132 = vadd.f32 0.0, %v3131
    %v3133 = vpop.f32.mrf.mxu0
    %3134 = vmatprep.mubr.f32.mxu0 0.0
    %3135 = vmatmul.mubr.f32.gmra.mxu0 %v2849
    %v3136 = vpop.f32.mrf.mxu0
    %v3137 = vadd.f32 0.0, %v3136
    %v3138 = vpop.f32.mrf.mxu0
    %3139 = vmatprep.mubr.f32.mxu0 0.0
    %3140 = vmatmul.mubr.f32.gmra.mxu0 %v2852
    %v3141 = vpop.f32.mrf.mxu0
    %v3142 = vadd.f32 0.0, %v3141
    %v3143 = vpop.f32.mrf.mxu0
    %3144 = vmatprep.mubr.f32.mxu0 0.0
    %3145 = vmatmul.mubr.f32.gmra.mxu0 %v2855
    %v3146 = vpop.f32.mrf.mxu0
    %v3147 = vadd.f32 0.0, %v3146
    %v3148 = vpop.f32.mrf.mxu0
    %3149 = vmatprep.mubr.f32.mxu0 0.0
    %3150 = vmatmul.mubr.f32.gmra.mxu0 %v2858
    %v3151 = vpop.f32.mrf.mxu0
    %v3152 = vadd.f32 0.0, %v3151
    %v3153 = vpop.f32.mrf.mxu0
    %3154 = vmatprep.mubr.f32.mxu0 0.0
    %3155 = vmatmul.mubr.f32.gmra.mxu0 %v2861
    %v3156 = vpop.f32.mrf.mxu0
    %v3157 = vadd.f32 0.0, %v3156
    %v3158 = vpop.f32.mrf.mxu0
    %3159 = vmatprep.mubr.f32.mxu0 0.0
    %3160 = vmatmul.mubr.f32.gmra.mxu0 %v2864
    %v3161 = vpop.f32.mrf.mxu0
    %v3162 = vadd.f32 0.0, %v3161
    %v3163 = vpop.f32.mrf.mxu0
    %3164 = vmatprep.mubr.f32.mxu0 0.0
    %3165 = vmatmul.mubr.f32.gmra.mxu0 %v2867
    %v3166 = vpop.f32.mrf.mxu0
    %v3167 = vadd.f32 0.0, %v3166
    %v3168 = vpop.f32.mrf.mxu0
    %3169 = vmatprep.mubr.f32.mxu0 0.0
    %3170 = vmatmul.mubr.f32.gmra.mxu0 %v2870
    %v3171 = vpop.f32.mrf.mxu0
    %v3172 = vadd.f32 0.0, %v3171
    %v3173 = vpop.f32.mrf.mxu0
    %3174 = vmatprep.mubr.f32.mxu0 0.0
    %3175 = vmatmul.mubr.f32.gmra.mxu0 %v2873
    %v3176 = vpop.f32.mrf.mxu0
    %v3177 = vadd.f32 0.0, %v3176
    %v3178 = vpop.f32.mrf.mxu0
    %3179 = vmatprep.mubr.f32.mxu0 0.0
    %3180 = vmatmul.mubr.f32.gmra.mxu0 %v2876
    %v3181 = vpop.f32.mrf.mxu0
    %v3182 = vadd.f32 0.0, %v3181
    %v3183 = vpop.f32.mrf.mxu0
    %3184 = vmatprep.mubr.f32.mxu0 0.0
    %3185 = vmatmul.mubr.f32.gmra.mxu0 %v2879
    %v3186 = vpop.f32.mrf.mxu0
    %v3187 = vadd.f32 0.0, %v3186
    %v3188 = vpop.f32.mrf.mxu0
    %3189 = vmatprep.mubr.f32.mxu0 0.0
    %3190 = vmatmul.mubr.f32.gmra.mxu0 %v2882
    %v3191 = vpop.f32.mrf.mxu0
    %v3192 = vadd.f32 0.0, %v3191
    %v3193 = vpop.f32.mrf.mxu0
    %3194 = vmatprep.mubr.f32.mxu0 0.0
    %3195 = vmatmul.mubr.f32.gmra.mxu0 %v2885
    %v3196 = vpop.f32.mrf.mxu0
    %v3197 = vadd.f32 0.0, %v3196
    %v3198 = vpop.f32.mrf.mxu0
    %3199 = vmatprep.mubr.f32.mxu0 0.0
    %3200 = vmatmul.mubr.f32.gmra.mxu0 %v2888
    %v3201 = vpop.f32.mrf.mxu0
    %v3202 = vadd.f32 0.0, %v3201
    %v3203 = vpop.f32.mrf.mxu0
    %3204 = vmatprep.mubr.f32.mxu0 0.0
    %3205 = vmatmul.mubr.f32.gmra.mxu0 %v2891
    %v3206 = vpop.f32.mrf.mxu0
    %v3207 = vadd.f32 0.0, %v3206
    %v3208 = vpop.f32.mrf.mxu0
    %3209 = vmatprep.mubr.f32.mxu0 0.0
    %3210 = vmatmul.mubr.f32.gmra.mxu0 %v2894
    %v3211 = vpop.f32.mrf.mxu0
    %v3212 = vadd.f32 0.0, %v3211
    %v3213 = vpop.f32.mrf.mxu0
    %3214 = vmatprep.mubr.f32.mxu0 0.0
    %3215 = vmatmul.mubr.f32.gmra.mxu0 %v2897
    %v3216 = vpop.f32.mrf.mxu0
    %v3217 = vadd.f32 0.0, %v3216
    %v3218 = vpop.f32.mrf.mxu0
    %3219 = vmatprep.mubr.f32.mxu0 0.0
    %3220 = vmatmul.mubr.f32.gmra.mxu0 %v2900
    %v3221 = vpop.f32.mrf.mxu0
    %v3222 = vadd.f32 0.0, %v3221
    %v3223 = vpop.f32.mrf.mxu0
    %3224 = vmatprep.mubr.f32.mxu0 0.0
    %3225 = vmatmul.mubr.f32.gmra.mxu0 %v2903
    %v3226 = vpop.f32.mrf.mxu0
    %v3227 = vadd.f32 0.0, %v3226
    %v3228 = vpop.f32.mrf.mxu0
    %3229 = vmatprep.mubr.f32.mxu0 0.0
    %3230 = vmatmul.mubr.f32.gmra.mxu0 %v2906
    %v3231 = vpop.f32.mrf.mxu0
    %v3232 = vadd.f32 0.0, %v3231
    %v3233 = vpop.f32.mrf.mxu0
    %3234 = vmatprep.mubr.f32.mxu0 0.0
    %3235 = vmatmul.mubr.f32.gmra.mxu0 %v2909
    %v3236 = vpop.f32.mrf.mxu0
    %v3237 = vadd.f32 0.0, %v3236
    %v3238 = vpop.f32.mrf.mxu0
    %3239 = vmatprep.mubr.f32.mxu0 0.0
    %3240 = vmatmul.mubr.f32.gmra.mxu0 %v2912
    %v3241 = vpop.f32.mrf.mxu0
    %v3242 = vadd.f32 0.0, %v3241
    %v3243 = vpop.f32.mrf.mxu0
    %3244 = vmatprep.mubr.f32.mxu0 0.0
    %3245 = vmatmul.mubr.f32.gmra.mxu0 %v2915
    %v3246 = vpop.f32.mrf.mxu0
    %v3247 = vadd.f32 0.0, %v3246
    %v3248 = vpop.f32.mrf.mxu0
    %3249 = vmatprep.mubr.f32.mxu0 0.0
    %3250 = vmatmul.mubr.f32.gmra.mxu0 %v2918
    %v3251 = vpop.f32.mrf.mxu0
    %v3252 = vadd.f32 0.0, %v3251
    %v3253 = vpop.f32.mrf.mxu0
    %3254 = vmatprep.mubr.f32.mxu0 0.0
    %3255 = vmatmul.mubr.f32.gmra.mxu0 %v2921
    %v3256 = vpop.f32.mrf.mxu0
    %v3257 = vadd.f32 0.0, %v3256
    %v3258 = vpop.f32.mrf.mxu0
    %3259 = vmatprep.mubr.f32.mxu0 0.0
    %3260 = vmatmul.mubr.f32.gmra.mxu0 %v2924
    %v3261 = vpop.f32.mrf.mxu0
    %v3262 = vadd.f32 0.0, %v3261
    %v3263 = vpop.f32.mrf.mxu0
    %3264 = vmatprep.mubr.f32.mxu0 0.0
    %3265 = vmatmul.mubr.f32.gmra.mxu0 %v2927
    %v3266 = vpop.f32.mrf.mxu0
    %v3267 = vadd.f32 0.0, %v3266
    %v3268 = vpop.f32.mrf.mxu0
    %3269 = vmatprep.mubr.f32.mxu0 0.0
    %3270 = vmatmul.mubr.f32.gmra.mxu0 %v2930
    %v3271 = vpop.f32.mrf.mxu0
    %v3272 = vadd.f32 0.0, %v3271
    %v3273 = vpop.f32.mrf.mxu0
    %3274 = vmatprep.mubr.f32.mxu0 0.0
    %3275 = vmatmul.mubr.f32.gmra.mxu0 %v2933
    %v3276 = vpop.f32.mrf.mxu0
    %v3277 = vadd.f32 0.0, %v3276
    %v3278 = vpop.f32.mrf.mxu0
    %3279 = vmatprep.mubr.f32.mxu0 0.0
    %3280 = vmatmul.mubr.f32.gmra.mxu0 %v2936
    %v3281 = vpop.f32.mrf.mxu0
    %v3282 = vadd.f32 0.0, %v3281
    %v3283 = vpop.f32.mrf.mxu0
    %3284 = vmatprep.mubr.f32.mxu0 0.0
    %3285 = vmatmul.mubr.f32.gmra.mxu0 %v2939
    %v3286 = vpop.f32.mrf.mxu0
    %v3287 = vadd.f32 0.0, %v3286
    %v3288 = vpop.f32.mrf.mxu0
    %3289 = vmatprep.mubr.f32.mxu0 0.0
    %3290 = vmatmul.mubr.f32.gmra.mxu0 %v2942
    %v3291 = vpop.f32.mrf.mxu0
    %v3292 = vadd.f32 0.0, %v3291
    %v3293 = vpop.f32.mrf.mxu0
    %3294 = vmatprep.mubr.f32.mxu0 0.0
    %3295 = vmatmul.mubr.f32.gmra.mxu0 %v2945
    %v3296 = vpop.f32.mrf.mxu0
    %v3297 = vadd.f32 0.0, %v3296
    %v3298 = vpop.f32.mrf.mxu0
    %3299 = vmatprep.mubr.f32.mxu0 0.0
    %3300 = vmatmul.mubr.f32.gmra.mxu0 %v2948
    %v3301 = vpop.f32.mrf.mxu0
    %v3302 = vadd.f32 0.0, %v3301
    %v3303 = vpop.f32.mrf.mxu0
    %3304 = vmatprep.mubr.f32.mxu0 0.0
    %3305 = vmatmul.mubr.f32.gmra.mxu0 %v2951
    %v3306 = vpop.f32.mrf.mxu0
    %v3307 = vadd.f32 0.0, %v3306
    %v3308 = vpop.f32.mrf.mxu0
    %3309 = vmatprep.mubr.f32.mxu0 0.0
    %3310 = vmatmul.mubr.f32.gmra.mxu0 %v2954
    %v3311 = vpop.f32.mrf.mxu0
    %v3312 = vadd.f32 0.0, %v3311
    %v3313 = vpop.f32.mrf.mxu0
    %3314 = vmatprep.mubr.f32.mxu0 0.0
    %3315 = vmatmul.mubr.f32.gmra.mxu0 %v2957
    %v3316 = vpop.f32.mrf.mxu0
    %v3317 = vadd.f32 0.0, %v3316
    %v3318 = vpop.f32.mrf.mxu0
    %3319 = vmatprep.mubr.f32.mxu0 0.0
    %3320 = vmatmul.mubr.f32.gmra.mxu0 %v2960
    %v3321 = vpop.f32.mrf.mxu0
    %v3322 = vadd.f32 0.0, %v3321
    %v3323 = vpop.f32.mrf.mxu0
    %3324 = vmatprep.mubr.f32.mxu0 0.0
    %3325 = vmatmul.mubr.f32.gmra.mxu0 %v2963
    %v3326 = vpop.f32.mrf.mxu0
    %v3327 = vadd.f32 0.0, %v3326
    %v3328 = vpop.f32.mrf.mxu0
    %3329 = vmatprep.mubr.f32.mxu0 0.0
    %3330 = vmatmul.mubr.f32.gmra.mxu0 %v2966
    %v3331 = vpop.f32.mrf.mxu0
    %v3332 = vadd.f32 0.0, %v3331
    %v3333 = vpop.f32.mrf.mxu0
    %3334 = vmatprep.mubr.f32.mxu0 0.0
    %3335 = vmatmul.mubr.f32.gmra.mxu0 %v2969
    %v3336 = vpop.f32.mrf.mxu0
    %v3337 = vadd.f32 0.0, %v3336
    %v3338 = vpop.f32.mrf.mxu0
    %3339 = vmatprep.mubr.f32.mxu0 0.0
    %3340 = vmatmul.mubr.f32.gmra.mxu0 %v2972
    %v3341 = vpop.f32.mrf.mxu0
    %v3342 = vadd.f32 0.0, %v3341
    %v3343 = vpop.f32.mrf.mxu0
    %3344 = vmatprep.mubr.f32.mxu0 0.0
    %3345 = vmatmul.mubr.f32.gmra.mxu0 %v2975
    %v3346 = vpop.f32.mrf.mxu0
    %v3347 = vadd.f32 0.0, %v3346
    %v3348 = vpop.f32.mrf.mxu0
    %3349 = vmatprep.mubr.f32.mxu0 0.0
    %3350 = vmatmul.mubr.f32.gmra.mxu0 %v2978
    %v3351 = vpop.f32.mrf.mxu0
    %v3352 = vadd.f32 0.0, %v3351
    %v3353 = vpop.f32.mrf.mxu0
    %3354 = vmatprep.mubr.f32.mxu0 0.0
    %3355 = vmatmul.mubr.f32.gmra.mxu0 %v2981
    %v3356 = vpop.f32.mrf.mxu0
    %v3357 = vadd.f32 0.0, %v3356
    %v3358 = vpop.f32.mrf.mxu0
    %3359 = vmatprep.mubr.f32.mxu0 0.0
    %3360 = vmatmul.mubr.f32.gmra.mxu0 %v2984
    %v3361 = vpop.f32.mrf.mxu0
    %v3362 = vadd.f32 0.0, %v3361
    %v3363 = vpop.f32.mrf.mxu0
    %3364 = vmatprep.mubr.f32.mxu0 0.0
    %3365 = vmatmul.mubr.f32.gmra.mxu0 %v2987
    %v3366 = vpop.f32.mrf.mxu0
    %v3367 = vadd.f32 0.0, %v3366
    %v3368 = vpop.f32.mrf.mxu0
    %3369 = vmatprep.mubr.f32.mxu0 0.0
    %3370 = vmatmul.mubr.f32.gmra.mxu0 %v2990
    %v3371 = vpop.f32.mrf.mxu0
    %v3372 = vadd.f32 0.0, %v3371
    %v3373 = vpop.f32.mrf.mxu0
    %3374 = vmatprep.mubr.f32.mxu0 0.0
    %3375 = vmatmul.mubr.f32.gmra.mxu0 %v2993
    %v3376 = vpop.f32.mrf.mxu0
    %v3377 = vadd.f32 0.0, %v3376
    %v3378 = vpop.f32.mrf.mxu0
    %3379 = vdwg.mxu0
    %v3380 = vadd.f32 %v2670, %v3062
    %v3381 = vadd.f32 %v2671, %v3067
    %v3382 = vadd.f32 %v2672, %v3072
    %v3383 = vadd.f32 %v2673, %v3077
    %v3384 = vadd.f32 %v2674, %v3082
    %v3385 = vadd.f32 %v2675, %v3087
    %v3386 = vadd.f32 %v2676, %v3092
    %v3387 = vadd.f32 %v2677, %v3097
    %v3388 = vadd.f32 %v2678, %v3102
    %v3389 = vadd.f32 %v2679, %v3107
    %v3390 = vadd.f32 %v2680, %v3112
    %v3391 = vadd.f32 %v2681, %v3117
    %v3392 = vadd.f32 %v2682, %v3122
    %v3393 = vadd.f32 %v2683, %v3127
    %v3394 = vadd.f32 %v2684, %v3132
    %v3395 = vadd.f32 %v2685, %v3137
    %v3396 = vadd.f32 %v2686, %v3142
    %v3397 = vadd.f32 %v2687, %v3147
    %v3398 = vadd.f32 %v2688, %v3152
    %v3399 = vadd.f32 %v2689, %v3157
    %v3400 = vadd.f32 %v2690, %v3162
    %v3401 = vadd.f32 %v2691, %v3167
    %v3402 = vadd.f32 %v2692, %v3172
    %v3403 = vadd.f32 %v2693, %v3177
    %v3404 = vadd.f32 %v2694, %v3182
    %v3405 = vadd.f32 %v2695, %v3187
    %v3406 = vadd.f32 %v2696, %v3192
    %v3407 = vadd.f32 %v2697, %v3197
    %v3408 = vadd.f32 %v2698, %v3202
    %v3409 = vadd.f32 %v2699, %v3207
    %v3410 = vadd.f32 %v2700, %v3212
    %v3411 = vadd.f32 %v2701, %v3217
    %v3412 = vadd.f32 %v2702, %v3222
    %v3413 = vadd.f32 %v2703, %v3227
    %v3414 = vadd.f32 %v2704, %v3232
    %v3415 = vadd.f32 %v2705, %v3237
    %v3416 = vadd.f32 %v2706, %v3242
    %v3417 = vadd.f32 %v2707, %v3247
    %v3418 = vadd.f32 %v2708, %v3252
    %v3419 = vadd.f32 %v2709, %v3257
    %v3420 = vadd.f32 %v2710, %v3262
    %v3421 = vadd.f32 %v2711, %v3267
    %v3422 = vadd.f32 %v2712, %v3272
    %v3423 = vadd.f32 %v2713, %v3277
    %v3424 = vadd.f32 %v2714, %v3282
    %v3425 = vadd.f32 %v2715, %v3287
    %v3426 = vadd.f32 %v2716, %v3292
    %v3427 = vadd.f32 %v2717, %v3297
    %v3428 = vadd.f32 %v2718, %v3302
    %v3429 = vadd.f32 %v2719, %v3307
    %v3430 = vadd.f32 %v2720, %v3312
    %v3431 = vadd.f32 %v2721, %v3317
    %v3432 = vadd.f32 %v2722, %v3322
    %v3433 = vadd.f32 %v2723, %v3327
    %v3434 = vadd.f32 %v2724, %v3332
    %v3435 = vadd.f32 %v2725, %v3337
    %v3436 = vadd.f32 %v2726, %v3342
    %v3437 = vadd.f32 %v2727, %v3347
    %v3438 = vadd.f32 %v2728, %v3352
    %v3439 = vadd.f32 %v2729, %v3357
    %v3440 = vadd.f32 %v2730, %v3362
    %v3441 = vadd.f32 %v2731, %v3367
    %v3442 = vadd.f32 %v2732, %v3372
    %v3443 = vadd.f32 %v2733, %v3377
    %v3444 = vld [vmem:[%s2023 + $0x2] sm:$0xff]
    %v3445 = vld [vmem:[%s2023 + $0xa] sm:$0xff]
    %v3446 = vld [vmem:[%s2023 + $0x1a] sm:$0xff]
    %v3447 = vld [vmem:[%s2023 + $0x22] sm:$0xff]
    %v3448 = vld [vmem:[%s2023 + $0x32] sm:$0xff]
    %v3449 = vld [vmem:[%s2023 + $0x3a] sm:$0xff]
    %v3450 = vld [vmem:[%s2023 + $0x4a] sm:$0xff]
    %v3451 = vld [vmem:[%s2023 + $0x52] sm:$0xff]
    %v3452 = vld [vmem:[%s2023 + $0x62] sm:$0xff]
    %v3453 = vld [vmem:[%s2023 + $0x6a] sm:$0xff]
    %v3454 = vld [vmem:[%s2023 + $0x7a] sm:$0xff]
    %v3455 = vld [vmem:[%s2023 + $0x82] sm:$0xff]
    %v3456 = vld [vmem:[%s2023 + $0x92] sm:$0xff]
    %v3457 = vld [vmem:[%s2023 + $0x9a] sm:$0xff]
    %v3458 = vld [vmem:[%s2023 + $0xaa] sm:$0xff]
    %v3459 = vld [vmem:[%s2023 + $0xb2] sm:$0xff]
    %v3460 = vld [vmem:[%s2023 + $0xc2] sm:$0xff]
    %v3461 = vld [vmem:[%s2023 + $0xca] sm:$0xff]
    %v3462 = vld [vmem:[%s2023 + $0xda] sm:$0xff]
    %v3463 = vld [vmem:[%s2023 + $0xe2] sm:$0xff]
    %v3464 = vld [vmem:[%s2023 + $0xf2] sm:$0xff]
    %v3465 = vld [vmem:[%s2023 + $0xfa] sm:$0xff]
    %v3466 = vld [vmem:[%s2023 + $0x10a] sm:$0xff]
    %v3467 = vld [vmem:[%s2023 + $0x112] sm:$0xff]
    %v3468 = vld [vmem:[%s2023 + $0x122] sm:$0xff]
    %v3469 = vld [vmem:[%s2023 + $0x12a] sm:$0xff]
    %v3470 = vld [vmem:[%s2023 + $0x13a] sm:$0xff]
    %v3471 = vld [vmem:[%s2023 + $0x142] sm:$0xff]
    %v3472 = vld [vmem:[%s2023 + $0x152] sm:$0xff]
    %v3473 = vld [vmem:[%s2023 + $0x15a] sm:$0xff]
    %v3474 = vld [vmem:[%s2023 + $0x16a] sm:$0xff]
    %v3475 = vld [vmem:[%s2023 + $0x172] sm:$0xff]
    %v3476 = vld [vmem:[%s2023 + $0x1b2] sm:$0xff]
    %v3477 = vld [vmem:[%s2023 + $0x1ba] sm:$0xff]
    %v3478 = vld [vmem:[%s2023 + $0x1ca] sm:$0xff]
    %v3479 = vld [vmem:[%s2023 + $0x1d2] sm:$0xff]
    %v3480 = vld [vmem:[%s2023 + $0x1e2] sm:$0xff]
    %v3481 = vld [vmem:[%s2023 + $0x1ea] sm:$0xff]
    %v3482 = vld [vmem:[%s2023 + $0x1fa] sm:$0xff]
    %v3483 = vld [vmem:[%s2023 + $0x202] sm:$0xff]
    %v3484 = vld [vmem:[%s2023 + $0x212] sm:$0xff]
    %v3485 = vld [vmem:[%s2023 + $0x21a] sm:$0xff]
    %v3486 = vld [vmem:[%s2023 + $0x22a] sm:$0xff]
    %v3487 = vld [vmem:[%s2023 + $0x232] sm:$0xff]
    %v3488 = vld [vmem:[%s2023 + $0x242] sm:$0xff]
    %v3489 = vld [vmem:[%s2023 + $0x24a] sm:$0xff]
    %v3490 = vld [vmem:[%s2023 + $0x25a] sm:$0xff]
    %v3491 = vld [vmem:[%s2023 + $0x262] sm:$0xff]
    %v3492 = vld [vmem:[%s2023 + $0x272] sm:$0xff]
    %v3493 = vld [vmem:[%s2023 + $0x27a] sm:$0xff]
    %v3494 = vld [vmem:[%s2023 + $0x28a] sm:$0xff]
    %v3495 = vld [vmem:[%s2023 + $0x292] sm:$0xff]
    %v3496 = vld [vmem:[%s2023 + $0x2a2] sm:$0xff]
    %v3497 = vld [vmem:[%s2023 + $0x2aa] sm:$0xff]
    %v3498 = vld [vmem:[%s2023 + $0x2ba] sm:$0xff]
    %v3499 = vld [vmem:[%s2023 + $0x2c2] sm:$0xff]
    %v3500 = vld [vmem:[%s2023 + $0x2d2] sm:$0xff]
    %v3501 = vld [vmem:[%s2023 + $0x2da] sm:$0xff]
    %v3502 = vld [vmem:[%s2023 + $0x2ea] sm:$0xff]
    %v3503 = vld [vmem:[%s2023 + $0x2f2] sm:$0xff]
    %v3504 = vld [vmem:[%s2023 + $0x302] sm:$0xff]
    %v3505 = vld [vmem:[%s2023 + $0x30a] sm:$0xff]
    %v3506 = vld [vmem:[%s2023 + $0x31a] sm:$0xff]
    %v3507 = vld [vmem:[%s2023 + $0x322] sm:$0xff]
    %s3508 = scalar_lea.vmem %s1, 160
    %v3509 = vld [vmem:[%s3508] sm:$0xff]
    %v3510 = vld [vmem:[%s3508 + $0x8] sm:$0xff]
    %v3511 = vld [vmem:[%s3508 + $0x10] sm:$0xff]
    %v3512 = vld [vmem:[%s3508 + $0x18] sm:$0xff]
    %v3514 = vsel %vm158, %v3444, 0
    %v3517 = vsel %vm158, %v3445, 0
    %v3520 = vsel %vm158, %v3446, 0
    %v3523 = vsel %vm158, %v3447, 0
    %v3526 = vsel %vm158, %v3448, 0
    %v3529 = vsel %vm158, %v3449, 0
    %v3532 = vsel %vm158, %v3450, 0
    %v3535 = vsel %vm158, %v3451, 0
    %v3538 = vsel %vm158, %v3452, 0
    %v3541 = vsel %vm158, %v3453, 0
    %v3544 = vsel %vm158, %v3454, 0
    %v3547 = vsel %vm158, %v3455, 0
    %v3550 = vsel %vm158, %v3456, 0
    %v3553 = vsel %vm158, %v3457, 0
    %v3556 = vsel %vm158, %v3458, 0
    %v3559 = vsel %vm158, %v3459, 0
    %v3562 = vsel %vm158, %v3460, 0
    %v3565 = vsel %vm158, %v3461, 0
    %v3568 = vsel %vm158, %v3462, 0
    %v3571 = vsel %vm158, %v3463, 0
    %v3574 = vsel %vm158, %v3464, 0
    %v3577 = vsel %vm158, %v3465, 0
    %v3580 = vsel %vm158, %v3466, 0
    %v3583 = vsel %vm158, %v3467, 0
    %v3586 = vsel %vm158, %v3468, 0
    %v3589 = vsel %vm158, %v3469, 0
    %v3592 = vsel %vm158, %v3470, 0
    %v3595 = vsel %vm158, %v3471, 0
    %v3598 = vsel %vm158, %v3472, 0
    %v3601 = vsel %vm158, %v3473, 0
    %v3604 = vsel %vm158, %v3474, 0
    %v3607 = vsel %vm158, %v3475, 0
    %v3610 = vsel %vm158, %v3476, 0
    %v3613 = vsel %vm158, %v3477, 0
    %v3616 = vsel %vm158, %v3478, 0
    %v3619 = vsel %vm158, %v3479, 0
    %v3622 = vsel %vm158, %v3480, 0
    %v3625 = vsel %vm158, %v3481, 0
    %v3628 = vsel %vm158, %v3482, 0
    %v3631 = vsel %vm158, %v3483, 0
    %v3634 = vsel %vm158, %v3484, 0
    %v3637 = vsel %vm158, %v3485, 0
    %v3640 = vsel %vm158, %v3486, 0
    %v3643 = vsel %vm158, %v3487, 0
    %v3646 = vsel %vm158, %v3488, 0
    %v3649 = vsel %vm158, %v3489, 0
    %v3652 = vsel %vm158, %v3490, 0
    %v3655 = vsel %vm158, %v3491, 0
    %v3658 = vsel %vm158, %v3492, 0
    %v3661 = vsel %vm158, %v3493, 0
    %v3664 = vsel %vm158, %v3494, 0
    %v3667 = vsel %vm158, %v3495, 0
    %v3670 = vsel %vm158, %v3496, 0
    %v3673 = vsel %vm158, %v3497, 0
    %v3676 = vsel %vm158, %v3498, 0
    %v3679 = vsel %vm158, %v3499, 0
    %v3682 = vsel %vm158, %v3500, 0
    %v3685 = vsel %vm158, %v3501, 0
    %v3688 = vsel %vm158, %v3502, 0
    %v3691 = vsel %vm158, %v3503, 0
    %v3694 = vsel %vm158, %v3504, 0
    %v3697 = vsel %vm158, %v3505, 0
    %v3700 = vsel %vm158, %v3506, 0
    %v3703 = vsel %vm158, %v3507, 0
    %3705 = vmatprep.subr.mxu0 0.0
    %3706 = vmatpush1.msra.mxu0 0.0
    %3707 = vmatprep.subr.mxu0 0.0
    %3708 = vmatpush1.msra.mxu0 0.0
    %3709 = vmatprep.subr.mxu0 0.0
    %3710 = vmatpush1.msra.mxu0 0.0
    %3711 = vmatprep.subr.mxu0 0.0
    %3712 = vmatpush1.msra.mxu0 0.0
    %3713 = vmatprep.subr.mxu0 0.0
    %3714 = vmatpush1.msra.mxu0 0.0
    %3715 = vmatprep.subr.mxu0 0.0
    %3716 = vmatpush1.msra.mxu0 0.0
    %3717 = vmatprep.subr.mxu0 0.0
    %3718 = vmatpush1.msra.mxu0 0.0
    %3719 = vmatprep.subr.mxu0 0.0
    %3720 = vmatpush1.msra.mxu0 0.0
    %3721 = vmatprep.subr.mxu0 0.0
    %3722 = vmatpush1.msra.mxu0 0.0
    %3723 = vmatprep.subr.mxu0 0.0
    %3724 = vmatpush1.msra.mxu0 0.0
    %3725 = vmatprep.subr.mxu0 0.0
    %3726 = vmatpush1.msra.mxu0 0.0
    %3727 = vmatprep.subr.mxu0 0.0
    %3728 = vmatpush1.msra.mxu0 0.0
    %3729 = vmatprep.subr.mxu0 0.0
    %3730 = vmatpush1.msra.mxu0 %v3512
    %3731 = vmatprep.subr.mxu0 0.0
    %3732 = vmatpush1.msra.mxu0 %v3511
    %3733 = vmatprep.subr.mxu0 0.0
    %3734 = vmatpush1.msra.mxu0 %v3510
    %3735 = vmatprep.subr.mxu0 0.0
    %3736 = vmatpush1.msra.mxu0 %v3509
    %3737 = vmatprep.subr.mxu0 0.0
    %3738 = vmatpush2.msra.mxu0 0.0
    %3739 = vmatprep.subr.mxu0 0.0
    %3740 = vmatpush2.msra.mxu0 0.0
    %3741 = vmatprep.subr.mxu0 0.0
    %3742 = vmatpush2.msra.mxu0 0.0
    %3743 = vmatprep.subr.mxu0 0.0
    %3744 = vmatpush2.msra.mxu0 0.0
    %3745 = vmatprep.subr.mxu0 0.0
    %3746 = vmatpush2.msra.mxu0 0.0
    %3747 = vmatprep.subr.mxu0 0.0
    %3748 = vmatpush2.msra.mxu0 0.0
    %3749 = vmatprep.subr.mxu0 0.0
    %3750 = vmatpush2.msra.mxu0 0.0
    %3751 = vmatprep.subr.mxu0 0.0
    %3752 = vmatpush2.msra.mxu0 0.0
    %3753 = vmatprep.subr.mxu0 0.0
    %3754 = vmatpush2.msra.mxu0 0.0
    %3755 = vmatprep.subr.mxu0 0.0
    %3756 = vmatpush2.msra.mxu0 0.0
    %3757 = vmatprep.subr.mxu0 0.0
    %3758 = vmatpush2.msra.mxu0 0.0
    %3759 = vmatprep.subr.mxu0 0.0
    %3760 = vmatpush2.msra.mxu0 0.0
    %3761 = vmatprep.subr.mxu0 0.0
    %3762 = vmatpush2.msra.mxu0 0.0
    %3763 = vmatprep.subr.mxu0 0.0
    %3764 = vmatpush2.msra.mxu0 0.0
    %3765 = vmatprep.subr.mxu0 0.0
    %3766 = vmatpush2.msra.mxu0 0.0
    %3767 = vmatprep.subr.mxu0 0.0
    %3768 = vmatpush2.msra.mxu0 0.0
    %3769 = vmatprep.mubr.f32.mxu0 0.0
    %3770 = vmatmul.mubr.f32.gmra.mxu0 %v3514
    %v3771 = vpop.f32.mrf.mxu0
    %v3772 = vadd.f32 0.0, %v3771
    %v3773 = vpop.f32.mrf.mxu0
    %3774 = vmatprep.mubr.f32.mxu0 0.0
    %3775 = vmatmul.mubr.f32.gmra.mxu0 %v3517
    %v3776 = vpop.f32.mrf.mxu0
    %v3777 = vadd.f32 0.0, %v3776
    %v3778 = vpop.f32.mrf.mxu0
    %3779 = vmatprep.mubr.f32.mxu0 0.0
    %3780 = vmatmul.mubr.f32.gmra.mxu0 %v3520
    %v3781 = vpop.f32.mrf.mxu0
    %v3782 = vadd.f32 0.0, %v3781
    %v3783 = vpop.f32.mrf.mxu0
    %3784 = vmatprep.mubr.f32.mxu0 0.0
    %3785 = vmatmul.mubr.f32.gmra.mxu0 %v3523
    %v3786 = vpop.f32.mrf.mxu0
    %v3787 = vadd.f32 0.0, %v3786
    %v3788 = vpop.f32.mrf.mxu0
    %3789 = vmatprep.mubr.f32.mxu0 0.0
    %3790 = vmatmul.mubr.f32.gmra.mxu0 %v3526
    %v3791 = vpop.f32.mrf.mxu0
    %v3792 = vadd.f32 0.0, %v3791
    %v3793 = vpop.f32.mrf.mxu0
    %3794 = vmatprep.mubr.f32.mxu0 0.0
    %3795 = vmatmul.mubr.f32.gmra.mxu0 %v3529
    %v3796 = vpop.f32.mrf.mxu0
    %v3797 = vadd.f32 0.0, %v3796
    %v3798 = vpop.f32.mrf.mxu0
    %3799 = vmatprep.mubr.f32.mxu0 0.0
    %3800 = vmatmul.mubr.f32.gmra.mxu0 %v3532
    %v3801 = vpop.f32.mrf.mxu0
    %v3802 = vadd.f32 0.0, %v3801
    %v3803 = vpop.f32.mrf.mxu0
    %3804 = vmatprep.mubr.f32.mxu0 0.0
    %3805 = vmatmul.mubr.f32.gmra.mxu0 %v3535
    %v3806 = vpop.f32.mrf.mxu0
    %v3807 = vadd.f32 0.0, %v3806
    %v3808 = vpop.f32.mrf.mxu0
    %3809 = vmatprep.mubr.f32.mxu0 0.0
    %3810 = vmatmul.mubr.f32.gmra.mxu0 %v3538
    %v3811 = vpop.f32.mrf.mxu0
    %v3812 = vadd.f32 0.0, %v3811
    %v3813 = vpop.f32.mrf.mxu0
    %3814 = vmatprep.mubr.f32.mxu0 0.0
    %3815 = vmatmul.mubr.f32.gmra.mxu0 %v3541
    %v3816 = vpop.f32.mrf.mxu0
    %v3817 = vadd.f32 0.0, %v3816
    %v3818 = vpop.f32.mrf.mxu0
    %3819 = vmatprep.mubr.f32.mxu0 0.0
    %3820 = vmatmul.mubr.f32.gmra.mxu0 %v3544
    %v3821 = vpop.f32.mrf.mxu0
    %v3822 = vadd.f32 0.0, %v3821
    %v3823 = vpop.f32.mrf.mxu0
    %3824 = vmatprep.mubr.f32.mxu0 0.0
    %3825 = vmatmul.mubr.f32.gmra.mxu0 %v3547
    %v3826 = vpop.f32.mrf.mxu0
    %v3827 = vadd.f32 0.0, %v3826
    %v3828 = vpop.f32.mrf.mxu0
    %3829 = vmatprep.mubr.f32.mxu0 0.0
    %3830 = vmatmul.mubr.f32.gmra.mxu0 %v3550
    %v3831 = vpop.f32.mrf.mxu0
    %v3832 = vadd.f32 0.0, %v3831
    %v3833 = vpop.f32.mrf.mxu0
    %3834 = vmatprep.mubr.f32.mxu0 0.0
    %3835 = vmatmul.mubr.f32.gmra.mxu0 %v3553
    %v3836 = vpop.f32.mrf.mxu0
    %v3837 = vadd.f32 0.0, %v3836
    %v3838 = vpop.f32.mrf.mxu0
    %3839 = vmatprep.mubr.f32.mxu0 0.0
    %3840 = vmatmul.mubr.f32.gmra.mxu0 %v3556
    %v3841 = vpop.f32.mrf.mxu0
    %v3842 = vadd.f32 0.0, %v3841
    %v3843 = vpop.f32.mrf.mxu0
    %3844 = vmatprep.mubr.f32.mxu0 0.0
    %3845 = vmatmul.mubr.f32.gmra.mxu0 %v3559
    %v3846 = vpop.f32.mrf.mxu0
    %v3847 = vadd.f32 0.0, %v3846
    %v3848 = vpop.f32.mrf.mxu0
    %3849 = vmatprep.mubr.f32.mxu0 0.0
    %3850 = vmatmul.mubr.f32.gmra.mxu0 %v3562
    %v3851 = vpop.f32.mrf.mxu0
    %v3852 = vadd.f32 0.0, %v3851
    %v3853 = vpop.f32.mrf.mxu0
    %3854 = vmatprep.mubr.f32.mxu0 0.0
    %3855 = vmatmul.mubr.f32.gmra.mxu0 %v3565
    %v3856 = vpop.f32.mrf.mxu0
    %v3857 = vadd.f32 0.0, %v3856
    %v3858 = vpop.f32.mrf.mxu0
    %3859 = vmatprep.mubr.f32.mxu0 0.0
    %3860 = vmatmul.mubr.f32.gmra.mxu0 %v3568
    %v3861 = vpop.f32.mrf.mxu0
    %v3862 = vadd.f32 0.0, %v3861
    %v3863 = vpop.f32.mrf.mxu0
    %3864 = vmatprep.mubr.f32.mxu0 0.0
    %3865 = vmatmul.mubr.f32.gmra.mxu0 %v3571
    %v3866 = vpop.f32.mrf.mxu0
    %v3867 = vadd.f32 0.0, %v3866
    %v3868 = vpop.f32.mrf.mxu0
    %3869 = vmatprep.mubr.f32.mxu0 0.0
    %3870 = vmatmul.mubr.f32.gmra.mxu0 %v3574
    %v3871 = vpop.f32.mrf.mxu0
    %v3872 = vadd.f32 0.0, %v3871
    %v3873 = vpop.f32.mrf.mxu0
    %3874 = vmatprep.mubr.f32.mxu0 0.0
    %3875 = vmatmul.mubr.f32.gmra.mxu0 %v3577
    %v3876 = vpop.f32.mrf.mxu0
    %v3877 = vadd.f32 0.0, %v3876
    %v3878 = vpop.f32.mrf.mxu0
    %3879 = vmatprep.mubr.f32.mxu0 0.0
    %3880 = vmatmul.mubr.f32.gmra.mxu0 %v3580
    %v3881 = vpop.f32.mrf.mxu0
    %v3882 = vadd.f32 0.0, %v3881
    %v3883 = vpop.f32.mrf.mxu0
    %3884 = vmatprep.mubr.f32.mxu0 0.0
    %3885 = vmatmul.mubr.f32.gmra.mxu0 %v3583
    %v3886 = vpop.f32.mrf.mxu0
    %v3887 = vadd.f32 0.0, %v3886
    %v3888 = vpop.f32.mrf.mxu0
    %3889 = vmatprep.mubr.f32.mxu0 0.0
    %3890 = vmatmul.mubr.f32.gmra.mxu0 %v3586
    %v3891 = vpop.f32.mrf.mxu0
    %v3892 = vadd.f32 0.0, %v3891
    %v3893 = vpop.f32.mrf.mxu0
    %3894 = vmatprep.mubr.f32.mxu0 0.0
    %3895 = vmatmul.mubr.f32.gmra.mxu0 %v3589
    %v3896 = vpop.f32.mrf.mxu0
    %v3897 = vadd.f32 0.0, %v3896
    %v3898 = vpop.f32.mrf.mxu0
    %3899 = vmatprep.mubr.f32.mxu0 0.0
    %3900 = vmatmul.mubr.f32.gmra.mxu0 %v3592
    %v3901 = vpop.f32.mrf.mxu0
    %v3902 = vadd.f32 0.0, %v3901
    %v3903 = vpop.f32.mrf.mxu0
    %3904 = vmatprep.mubr.f32.mxu0 0.0
    %3905 = vmatmul.mubr.f32.gmra.mxu0 %v3595
    %v3906 = vpop.f32.mrf.mxu0
    %v3907 = vadd.f32 0.0, %v3906
    %v3908 = vpop.f32.mrf.mxu0
    %3909 = vmatprep.mubr.f32.mxu0 0.0
    %3910 = vmatmul.mubr.f32.gmra.mxu0 %v3598
    %v3911 = vpop.f32.mrf.mxu0
    %v3912 = vadd.f32 0.0, %v3911
    %v3913 = vpop.f32.mrf.mxu0
    %3914 = vmatprep.mubr.f32.mxu0 0.0
    %3915 = vmatmul.mubr.f32.gmra.mxu0 %v3601
    %v3916 = vpop.f32.mrf.mxu0
    %v3917 = vadd.f32 0.0, %v3916
    %v3918 = vpop.f32.mrf.mxu0
    %3919 = vmatprep.mubr.f32.mxu0 0.0
    %3920 = vmatmul.mubr.f32.gmra.mxu0 %v3604
    %v3921 = vpop.f32.mrf.mxu0
    %v3922 = vadd.f32 0.0, %v3921
    %v3923 = vpop.f32.mrf.mxu0
    %3924 = vmatprep.mubr.f32.mxu0 0.0
    %3925 = vmatmul.mubr.f32.gmra.mxu0 %v3607
    %v3926 = vpop.f32.mrf.mxu0
    %v3927 = vadd.f32 0.0, %v3926
    %v3928 = vpop.f32.mrf.mxu0
    %3929 = vmatprep.mubr.f32.mxu0 0.0
    %3930 = vmatmul.mubr.f32.gmra.mxu0 %v3610
    %v3931 = vpop.f32.mrf.mxu0
    %v3932 = vadd.f32 0.0, %v3931
    %v3933 = vpop.f32.mrf.mxu0
    %3934 = vmatprep.mubr.f32.mxu0 0.0
    %3935 = vmatmul.mubr.f32.gmra.mxu0 %v3613
    %v3936 = vpop.f32.mrf.mxu0
    %v3937 = vadd.f32 0.0, %v3936
    %v3938 = vpop.f32.mrf.mxu0
    %3939 = vmatprep.mubr.f32.mxu0 0.0
    %3940 = vmatmul.mubr.f32.gmra.mxu0 %v3616
    %v3941 = vpop.f32.mrf.mxu0
    %v3942 = vadd.f32 0.0, %v3941
    %v3943 = vpop.f32.mrf.mxu0
    %3944 = vmatprep.mubr.f32.mxu0 0.0
    %3945 = vmatmul.mubr.f32.gmra.mxu0 %v3619
    %v3946 = vpop.f32.mrf.mxu0
    %v3947 = vadd.f32 0.0, %v3946
    %v3948 = vpop.f32.mrf.mxu0
    %3949 = vmatprep.mubr.f32.mxu0 0.0
    %3950 = vmatmul.mubr.f32.gmra.mxu0 %v3622
    %v3951 = vpop.f32.mrf.mxu0
    %v3952 = vadd.f32 0.0, %v3951
    %v3953 = vpop.f32.mrf.mxu0
    %3954 = vmatprep.mubr.f32.mxu0 0.0
    %3955 = vmatmul.mubr.f32.gmra.mxu0 %v3625
    %v3956 = vpop.f32.mrf.mxu0
    %v3957 = vadd.f32 0.0, %v3956
    %v3958 = vpop.f32.mrf.mxu0
    %3959 = vmatprep.mubr.f32.mxu0 0.0
    %3960 = vmatmul.mubr.f32.gmra.mxu0 %v3628
    %v3961 = vpop.f32.mrf.mxu0
    %v3962 = vadd.f32 0.0, %v3961
    %v3963 = vpop.f32.mrf.mxu0
    %3964 = vmatprep.mubr.f32.mxu0 0.0
    %3965 = vmatmul.mubr.f32.gmra.mxu0 %v3631
    %v3966 = vpop.f32.mrf.mxu0
    %v3967 = vadd.f32 0.0, %v3966
    %v3968 = vpop.f32.mrf.mxu0
    %3969 = vmatprep.mubr.f32.mxu0 0.0
    %3970 = vmatmul.mubr.f32.gmra.mxu0 %v3634
    %v3971 = vpop.f32.mrf.mxu0
    %v3972 = vadd.f32 0.0, %v3971
    %v3973 = vpop.f32.mrf.mxu0
    %3974 = vmatprep.mubr.f32.mxu0 0.0
    %3975 = vmatmul.mubr.f32.gmra.mxu0 %v3637
    %v3976 = vpop.f32.mrf.mxu0
    %v3977 = vadd.f32 0.0, %v3976
    %v3978 = vpop.f32.mrf.mxu0
    %3979 = vmatprep.mubr.f32.mxu0 0.0
    %3980 = vmatmul.mubr.f32.gmra.mxu0 %v3640
    %v3981 = vpop.f32.mrf.mxu0
    %v3982 = vadd.f32 0.0, %v3981
    %v3983 = vpop.f32.mrf.mxu0
    %3984 = vmatprep.mubr.f32.mxu0 0.0
    %3985 = vmatmul.mubr.f32.gmra.mxu0 %v3643
    %v3986 = vpop.f32.mrf.mxu0
    %v3987 = vadd.f32 0.0, %v3986
    %v3988 = vpop.f32.mrf.mxu0
    %3989 = vmatprep.mubr.f32.mxu0 0.0
    %3990 = vmatmul.mubr.f32.gmra.mxu0 %v3646
    %v3991 = vpop.f32.mrf.mxu0
    %v3992 = vadd.f32 0.0, %v3991
    %v3993 = vpop.f32.mrf.mxu0
    %3994 = vmatprep.mubr.f32.mxu0 0.0
    %3995 = vmatmul.mubr.f32.gmra.mxu0 %v3649
    %v3996 = vpop.f32.mrf.mxu0
    %v3997 = vadd.f32 0.0, %v3996
    %v3998 = vpop.f32.mrf.mxu0
    %3999 = vmatprep.mubr.f32.mxu0 0.0
    %4000 = vmatmul.mubr.f32.gmra.mxu0 %v3652
    %v4001 = vpop.f32.mrf.mxu0
    %v4002 = vadd.f32 0.0, %v4001
    %v4003 = vpop.f32.mrf.mxu0
    %4004 = vmatprep.mubr.f32.mxu0 0.0
    %4005 = vmatmul.mubr.f32.gmra.mxu0 %v3655
    %v4006 = vpop.f32.mrf.mxu0
    %v4007 = vadd.f32 0.0, %v4006
    %v4008 = vpop.f32.mrf.mxu0
    %4009 = vmatprep.mubr.f32.mxu0 0.0
    %4010 = vmatmul.mubr.f32.gmra.mxu0 %v3658
    %v4011 = vpop.f32.mrf.mxu0
    %v4012 = vadd.f32 0.0, %v4011
    %v4013 = vpop.f32.mrf.mxu0
    %4014 = vmatprep.mubr.f32.mxu0 0.0
    %4015 = vmatmul.mubr.f32.gmra.mxu0 %v3661
    %v4016 = vpop.f32.mrf.mxu0
    %v4017 = vadd.f32 0.0, %v4016
    %v4018 = vpop.f32.mrf.mxu0
    %4019 = vmatprep.mubr.f32.mxu0 0.0
    %4020 = vmatmul.mubr.f32.gmra.mxu0 %v3664
    %v4021 = vpop.f32.mrf.mxu0
    %v4022 = vadd.f32 0.0, %v4021
    %v4023 = vpop.f32.mrf.mxu0
    %4024 = vmatprep.mubr.f32.mxu0 0.0
    %4025 = vmatmul.mubr.f32.gmra.mxu0 %v3667
    %v4026 = vpop.f32.mrf.mxu0
    %v4027 = vadd.f32 0.0, %v4026
    %v4028 = vpop.f32.mrf.mxu0
    %4029 = vmatprep.mubr.f32.mxu0 0.0
    %4030 = vmatmul.mubr.f32.gmra.mxu0 %v3670
    %v4031 = vpop.f32.mrf.mxu0
    %v4032 = vadd.f32 0.0, %v4031
    %v4033 = vpop.f32.mrf.mxu0
    %4034 = vmatprep.mubr.f32.mxu0 0.0
    %4035 = vmatmul.mubr.f32.gmra.mxu0 %v3673
    %v4036 = vpop.f32.mrf.mxu0
    %v4037 = vadd.f32 0.0, %v4036
    %v4038 = vpop.f32.mrf.mxu0
    %4039 = vmatprep.mubr.f32.mxu0 0.0
    %4040 = vmatmul.mubr.f32.gmra.mxu0 %v3676
    %v4041 = vpop.f32.mrf.mxu0
    %v4042 = vadd.f32 0.0, %v4041
    %v4043 = vpop.f32.mrf.mxu0
    %4044 = vmatprep.mubr.f32.mxu0 0.0
    %4045 = vmatmul.mubr.f32.gmra.mxu0 %v3679
    %v4046 = vpop.f32.mrf.mxu0
    %v4047 = vadd.f32 0.0, %v4046
    %v4048 = vpop.f32.mrf.mxu0
    %4049 = vmatprep.mubr.f32.mxu0 0.0
    %4050 = vmatmul.mubr.f32.gmra.mxu0 %v3682
    %v4051 = vpop.f32.mrf.mxu0
    %v4052 = vadd.f32 0.0, %v4051
    %v4053 = vpop.f32.mrf.mxu0
    %4054 = vmatprep.mubr.f32.mxu0 0.0
    %4055 = vmatmul.mubr.f32.gmra.mxu0 %v3685
    %v4056 = vpop.f32.mrf.mxu0
    %v4057 = vadd.f32 0.0, %v4056
    %v4058 = vpop.f32.mrf.mxu0
    %4059 = vmatprep.mubr.f32.mxu0 0.0
    %4060 = vmatmul.mubr.f32.gmra.mxu0 %v3688
    %v4061 = vpop.f32.mrf.mxu0
    %v4062 = vadd.f32 0.0, %v4061
    %v4063 = vpop.f32.mrf.mxu0
    %4064 = vmatprep.mubr.f32.mxu0 0.0
    %4065 = vmatmul.mubr.f32.gmra.mxu0 %v3691
    %v4066 = vpop.f32.mrf.mxu0
    %v4067 = vadd.f32 0.0, %v4066
    %v4068 = vpop.f32.mrf.mxu0
    %4069 = vmatprep.mubr.f32.mxu0 0.0
    %4070 = vmatmul.mubr.f32.gmra.mxu0 %v3694
    %v4071 = vpop.f32.mrf.mxu0
    %v4072 = vadd.f32 0.0, %v4071
    %v4073 = vpop.f32.mrf.mxu0
    %4074 = vmatprep.mubr.f32.mxu0 0.0
    %4075 = vmatmul.mubr.f32.gmra.mxu0 %v3697
    %v4076 = vpop.f32.mrf.mxu0
    %v4077 = vadd.f32 0.0, %v4076
    %v4078 = vpop.f32.mrf.mxu0
    %4079 = vmatprep.mubr.f32.mxu0 0.0
    %4080 = vmatmul.mubr.f32.gmra.mxu0 %v3700
    %v4081 = vpop.f32.mrf.mxu0
    %v4082 = vadd.f32 0.0, %v4081
    %v4083 = vpop.f32.mrf.mxu0
    %4084 = vmatprep.mubr.f32.mxu0 0.0
    %4085 = vmatmul.mubr.f32.gmra.mxu0 %v3703
    %v4086 = vpop.f32.mrf.mxu0
    %v4087 = vadd.f32 0.0, %v4086
    %v4088 = vpop.f32.mrf.mxu0
    %4089 = vdwg.mxu0
    %v4090 = vadd.f32 %v3380, %v3772
    %v4091 = vadd.f32 %v3381, %v3777
    %v4092 = vadd.f32 %v3382, %v3782
    %v4093 = vadd.f32 %v3383, %v3787
    %v4094 = vadd.f32 %v3384, %v3792
    %v4095 = vadd.f32 %v3385, %v3797
    %v4096 = vadd.f32 %v3386, %v3802
    %v4097 = vadd.f32 %v3387, %v3807
    %v4098 = vadd.f32 %v3388, %v3812
    %v4099 = vadd.f32 %v3389, %v3817
    %v4100 = vadd.f32 %v3390, %v3822
    %v4101 = vadd.f32 %v3391, %v3827
    %v4102 = vadd.f32 %v3392, %v3832
    %v4103 = vadd.f32 %v3393, %v3837
    %v4104 = vadd.f32 %v3394, %v3842
    %v4105 = vadd.f32 %v3395, %v3847
    %v4106 = vadd.f32 %v3396, %v3852
    %v4107 = vadd.f32 %v3397, %v3857
    %v4108 = vadd.f32 %v3398, %v3862
    %v4109 = vadd.f32 %v3399, %v3867
    %v4110 = vadd.f32 %v3400, %v3872
    %v4111 = vadd.f32 %v3401, %v3877
    %v4112 = vadd.f32 %v3402, %v3882
    %v4113 = vadd.f32 %v3403, %v3887
    %v4114 = vadd.f32 %v3404, %v3892
    %v4115 = vadd.f32 %v3405, %v3897
    %v4116 = vadd.f32 %v3406, %v3902
    %v4117 = vadd.f32 %v3407, %v3907
    %v4118 = vadd.f32 %v3408, %v3912
    %v4119 = vadd.f32 %v3409, %v3917
    %v4120 = vadd.f32 %v3410, %v3922
    %v4121 = vadd.f32 %v3411, %v3927
    %v4122 = vadd.f32 %v3412, %v3932
    %v4123 = vadd.f32 %v3413, %v3937
    %v4124 = vadd.f32 %v3414, %v3942
    %v4125 = vadd.f32 %v3415, %v3947
    %v4126 = vadd.f32 %v3416, %v3952
    %v4127 = vadd.f32 %v3417, %v3957
    %v4128 = vadd.f32 %v3418, %v3962
    %v4129 = vadd.f32 %v3419, %v3967
    %v4130 = vadd.f32 %v3420, %v3972
    %v4131 = vadd.f32 %v3421, %v3977
    %v4132 = vadd.f32 %v3422, %v3982
    %v4133 = vadd.f32 %v3423, %v3987
    %v4134 = vadd.f32 %v3424, %v3992
    %v4135 = vadd.f32 %v3425, %v3997
    %v4136 = vadd.f32 %v3426, %v4002
    %v4137 = vadd.f32 %v3427, %v4007
    %v4138 = vadd.f32 %v3428, %v4012
    %v4139 = vadd.f32 %v3429, %v4017
    %v4140 = vadd.f32 %v3430, %v4022
    %v4141 = vadd.f32 %v3431, %v4027
    %v4142 = vadd.f32 %v3432, %v4032
    %v4143 = vadd.f32 %v3433, %v4037
    %v4144 = vadd.f32 %v3434, %v4042
    %v4145 = vadd.f32 %v3435, %v4047
    %v4146 = vadd.f32 %v3436, %v4052
    %v4147 = vadd.f32 %v3437, %v4057
    %v4148 = vadd.f32 %v3438, %v4062
    %v4149 = vadd.f32 %v3439, %v4067
    %v4150 = vadd.f32 %v3440, %v4072
    %v4151 = vadd.f32 %v3441, %v4077
    %v4152 = vadd.f32 %v3442, %v4082
    %v4153 = vadd.f32 %v3443, %v4087
    %s4154 = scalar_lea.vmem %s0, 48
    %v4155 = vld [vmem:[%s4154] sm:$0xff]
    %v4156 = vld [vmem:[%s4154 + $0x8] sm:$0xff]
    %v4157 = vld [vmem:[%s4154 + $0x18] sm:$0xff]
    %v4158 = vld [vmem:[%s4154 + $0x20] sm:$0xff]
    %v4159 = vld [vmem:[%s4154 + $0x30] sm:$0xff]
    %v4160 = vld [vmem:[%s4154 + $0x38] sm:$0xff]
    %v4161 = vld [vmem:[%s4154 + $0x48] sm:$0xff]
    %v4162 = vld [vmem:[%s4154 + $0x50] sm:$0xff]
    %v4163 = vld [vmem:[%s4154 + $0x60] sm:$0xff]
    %v4164 = vld [vmem:[%s4154 + $0x68] sm:$0xff]
    %v4165 = vld [vmem:[%s4154 + $0x78] sm:$0xff]
    %v4166 = vld [vmem:[%s4154 + $0x80] sm:$0xff]
    %v4167 = vld [vmem:[%s4154 + $0x90] sm:$0xff]
    %v4168 = vld [vmem:[%s4154 + $0x98] sm:$0xff]
    %v4169 = vld [vmem:[%s4154 + $0xa8] sm:$0xff]
    %v4170 = vld [vmem:[%s4154 + $0xb0] sm:$0xff]
    %v4171 = vld [vmem:[%s4154 + $0xc0] sm:$0xff]
    %v4172 = vld [vmem:[%s4154 + $0xc8] sm:$0xff]
    %v4173 = vld [vmem:[%s4154 + $0xd8] sm:$0xff]
    %v4174 = vld [vmem:[%s4154 + $0xe0] sm:$0xff]
    %v4175 = vld [vmem:[%s4154 + $0xf0] sm:$0xff]
    %v4176 = vld [vmem:[%s4154 + $0xf8] sm:$0xff]
    %v4177 = vld [vmem:[%s4154 + $0x108] sm:$0xff]
    %v4178 = vld [vmem:[%s4154 + $0x110] sm:$0xff]
    %v4179 = vld [vmem:[%s4154 + $0x120] sm:$0xff]
    %v4180 = vld [vmem:[%s4154 + $0x128] sm:$0xff]
    %v4181 = vld [vmem:[%s4154 + $0x138] sm:$0xff]
    %v4182 = vld [vmem:[%s4154 + $0x140] sm:$0xff]
    %v4183 = vld [vmem:[%s4154 + $0x150] sm:$0xff]
    %v4184 = vld [vmem:[%s4154 + $0x158] sm:$0xff]
    %v4185 = vld [vmem:[%s4154 + $0x168] sm:$0xff]
    %v4186 = vld [vmem:[%s4154 + $0x170] sm:$0xff]
    %v4187 = vld [vmem:[%s4154 + $0x1b0] sm:$0xff]
    %v4188 = vld [vmem:[%s4154 + $0x1b8] sm:$0xff]
    %v4189 = vld [vmem:[%s4154 + $0x1c8] sm:$0xff]
    %v4190 = vld [vmem:[%s4154 + $0x1d0] sm:$0xff]
    %v4191 = vld [vmem:[%s4154 + $0x1e0] sm:$0xff]
    %v4192 = vld [vmem:[%s4154 + $0x1e8] sm:$0xff]
    %v4193 = vld [vmem:[%s4154 + $0x1f8] sm:$0xff]
    %v4194 = vld [vmem:[%s4154 + $0x200] sm:$0xff]
    %v4195 = vld [vmem:[%s4154 + $0x210] sm:$0xff]
    %v4196 = vld [vmem:[%s4154 + $0x218] sm:$0xff]
    %v4197 = vld [vmem:[%s4154 + $0x228] sm:$0xff]
    %v4198 = vld [vmem:[%s4154 + $0x230] sm:$0xff]
    %v4199 = vld [vmem:[%s4154 + $0x240] sm:$0xff]
    %v4200 = vld [vmem:[%s4154 + $0x248] sm:$0xff]
    %v4201 = vld [vmem:[%s4154 + $0x258] sm:$0xff]
    %v4202 = vld [vmem:[%s4154 + $0x260] sm:$0xff]
    %v4203 = vld [vmem:[%s4154 + $0x270] sm:$0xff]
    %v4204 = vld [vmem:[%s4154 + $0x278] sm:$0xff]
    %v4205 = vld [vmem:[%s4154 + $0x288] sm:$0xff]
    %v4206 = vld [vmem:[%s4154 + $0x290] sm:$0xff]
    %v4207 = vld [vmem:[%s4154 + $0x2a0] sm:$0xff]
    %v4208 = vld [vmem:[%s4154 + $0x2a8] sm:$0xff]
    %v4209 = vld [vmem:[%s4154 + $0x2b8] sm:$0xff]
    %v4210 = vld [vmem:[%s4154 + $0x2c0] sm:$0xff]
    %v4211 = vld [vmem:[%s4154 + $0x2d0] sm:$0xff]
    %v4212 = vld [vmem:[%s4154 + $0x2d8] sm:$0xff]
    %v4213 = vld [vmem:[%s4154 + $0x2e8] sm:$0xff]
    %v4214 = vld [vmem:[%s4154 + $0x2f0] sm:$0xff]
    %v4215 = vld [vmem:[%s4154 + $0x300] sm:$0xff]
    %v4216 = vld [vmem:[%s4154 + $0x308] sm:$0xff]
    %v4217 = vld [vmem:[%s4154 + $0x318] sm:$0xff]
    %v4218 = vld [vmem:[%s4154 + $0x320] sm:$0xff]
    %s4219 = scalar_lea.vmem %s1, 192
    %v4220 = vld [vmem:[%s4219] sm:$0xff]
    %v4221 = vld [vmem:[%s4219 + $0x8] sm:$0xff]
    %v4222 = vld [vmem:[%s4219 + $0x10] sm:$0xff]
    %v4223 = vld [vmem:[%s4219 + $0x18] sm:$0xff]
    %v4225 = vsel %vm158, %v4155, 0
    %v4228 = vsel %vm158, %v4156, 0
    %v4231 = vsel %vm158, %v4157, 0
    %v4234 = vsel %vm158, %v4158, 0
    %v4237 = vsel %vm158, %v4159, 0
    %v4240 = vsel %vm158, %v4160, 0
    %v4243 = vsel %vm158, %v4161, 0
    %v4246 = vsel %vm158, %v4162, 0
    %v4249 = vsel %vm158, %v4163, 0
    %v4252 = vsel %vm158, %v4164, 0
    %v4255 = vsel %vm158, %v4165, 0
    %v4258 = vsel %vm158, %v4166, 0
    %v4261 = vsel %vm158, %v4167, 0
    %v4264 = vsel %vm158, %v4168, 0
    %v4267 = vsel %vm158, %v4169, 0
    %v4270 = vsel %vm158, %v4170, 0
    %v4273 = vsel %vm158, %v4171, 0
    %v4276 = vsel %vm158, %v4172, 0
    %v4279 = vsel %vm158, %v4173, 0
    %v4282 = vsel %vm158, %v4174, 0
    %v4285 = vsel %vm158, %v4175, 0
    %v4288 = vsel %vm158, %v4176, 0
    %v4291 = vsel %vm158, %v4177, 0
    %v4294 = vsel %vm158, %v4178, 0
    %v4297 = vsel %vm158, %v4179, 0
    %v4300 = vsel %vm158, %v4180, 0
    %v4303 = vsel %vm158, %v4181, 0
    %v4306 = vsel %vm158, %v4182, 0
    %v4309 = vsel %vm158, %v4183, 0
    %v4312 = vsel %vm158, %v4184, 0
    %v4315 = vsel %vm158, %v4185, 0
    %v4318 = vsel %vm158, %v4186, 0
    %v4321 = vsel %vm158, %v4187, 0
    %v4324 = vsel %vm158, %v4188, 0
    %v4327 = vsel %vm158, %v4189, 0
    %v4330 = vsel %vm158, %v4190, 0
    %v4333 = vsel %vm158, %v4191, 0
    %v4336 = vsel %vm158, %v4192, 0
    %v4339 = vsel %vm158, %v4193, 0
    %v4342 = vsel %vm158, %v4194, 0
    %v4345 = vsel %vm158, %v4195, 0
    %v4348 = vsel %vm158, %v4196, 0
    %v4351 = vsel %vm158, %v4197, 0
    %v4354 = vsel %vm158, %v4198, 0
    %v4357 = vsel %vm158, %v4199, 0
    %v4360 = vsel %vm158, %v4200, 0
    %v4363 = vsel %vm158, %v4201, 0
    %v4366 = vsel %vm158, %v4202, 0
    %v4369 = vsel %vm158, %v4203, 0
    %v4372 = vsel %vm158, %v4204, 0
    %v4375 = vsel %vm158, %v4205, 0
    %v4378 = vsel %vm158, %v4206, 0
    %v4381 = vsel %vm158, %v4207, 0
    %v4384 = vsel %vm158, %v4208, 0
    %v4387 = vsel %vm158, %v4209, 0
    %v4390 = vsel %vm158, %v4210, 0
    %v4393 = vsel %vm158, %v4211, 0
    %v4396 = vsel %vm158, %v4212, 0
    %v4399 = vsel %vm158, %v4213, 0
    %v4402 = vsel %vm158, %v4214, 0
    %v4405 = vsel %vm158, %v4215, 0
    %v4408 = vsel %vm158, %v4216, 0
    %v4411 = vsel %vm158, %v4217, 0
    %v4414 = vsel %vm158, %v4218, 0
    %4416 = vmatprep.subr.mxu0 0.0
    %4417 = vmatpush1.msra.mxu0 0.0
    %4418 = vmatprep.subr.mxu0 0.0
    %4419 = vmatpush1.msra.mxu0 0.0
    %4420 = vmatprep.subr.mxu0 0.0
    %4421 = vmatpush1.msra.mxu0 0.0
    %4422 = vmatprep.subr.mxu0 0.0
    %4423 = vmatpush1.msra.mxu0 0.0
    %4424 = vmatprep.subr.mxu0 0.0
    %4425 = vmatpush1.msra.mxu0 0.0
    %4426 = vmatprep.subr.mxu0 0.0
    %4427 = vmatpush1.msra.mxu0 0.0
    %4428 = vmatprep.subr.mxu0 0.0
    %4429 = vmatpush1.msra.mxu0 0.0
    %4430 = vmatprep.subr.mxu0 0.0
    %4431 = vmatpush1.msra.mxu0 0.0
    %4432 = vmatprep.subr.mxu0 0.0
    %4433 = vmatpush1.msra.mxu0 0.0
    %4434 = vmatprep.subr.mxu0 0.0
    %4435 = vmatpush1.msra.mxu0 0.0
    %4436 = vmatprep.subr.mxu0 0.0
    %4437 = vmatpush1.msra.mxu0 0.0
    %4438 = vmatprep.subr.mxu0 0.0
    %4439 = vmatpush1.msra.mxu0 0.0
    %4440 = vmatprep.subr.mxu0 0.0
    %4441 = vmatpush1.msra.mxu0 %v4223
    %4442 = vmatprep.subr.mxu0 0.0
    %4443 = vmatpush1.msra.mxu0 %v4222
    %4444 = vmatprep.subr.mxu0 0.0
    %4445 = vmatpush1.msra.mxu0 %v4221
    %4446 = vmatprep.subr.mxu0 0.0
    %4447 = vmatpush1.msra.mxu0 %v4220
    %4448 = vmatprep.subr.mxu0 0.0
    %4449 = vmatpush2.msra.mxu0 0.0
    %4450 = vmatprep.subr.mxu0 0.0
    %4451 = vmatpush2.msra.mxu0 0.0
    %4452 = vmatprep.subr.mxu0 0.0
    %4453 = vmatpush2.msra.mxu0 0.0
    %4454 = vmatprep.subr.mxu0 0.0
    %4455 = vmatpush2.msra.mxu0 0.0
    %4456 = vmatprep.subr.mxu0 0.0
    %4457 = vmatpush2.msra.mxu0 0.0
    %4458 = vmatprep.subr.mxu0 0.0
    %4459 = vmatpush2.msra.mxu0 0.0
    %4460 = vmatprep.subr.mxu0 0.0
    %4461 = vmatpush2.msra.mxu0 0.0
    %4462 = vmatprep.subr.mxu0 0.0
    %4463 = vmatpush2.msra.mxu0 0.0
    %4464 = vmatprep.subr.mxu0 0.0
    %4465 = vmatpush2.msra.mxu0 0.0
    %4466 = vmatprep.subr.mxu0 0.0
    %4467 = vmatpush2.msra.mxu0 0.0
    %4468 = vmatprep.subr.mxu0 0.0
    %4469 = vmatpush2.msra.mxu0 0.0
    %4470 = vmatprep.subr.mxu0 0.0
    %4471 = vmatpush2.msra.mxu0 0.0
    %4472 = vmatprep.subr.mxu0 0.0
    %4473 = vmatpush2.msra.mxu0 0.0
    %4474 = vmatprep.subr.mxu0 0.0
    %4475 = vmatpush2.msra.mxu0 0.0
    %4476 = vmatprep.subr.mxu0 0.0
    %4477 = vmatpush2.msra.mxu0 0.0
    %4478 = vmatprep.subr.mxu0 0.0
    %4479 = vmatpush2.msra.mxu0 0.0
    %4480 = vmatprep.mubr.f32.mxu0 0.0
    %4481 = vmatmul.mubr.f32.gmra.mxu0 %v4225
    %v4482 = vpop.f32.mrf.mxu0
    %v4483 = vadd.f32 0.0, %v4482
    %v4484 = vpop.f32.mrf.mxu0
    %4485 = vmatprep.mubr.f32.mxu0 0.0
    %4486 = vmatmul.mubr.f32.gmra.mxu0 %v4228
    %v4487 = vpop.f32.mrf.mxu0
    %v4488 = vadd.f32 0.0, %v4487
    %v4489 = vpop.f32.mrf.mxu0
    %4490 = vmatprep.mubr.f32.mxu0 0.0
    %4491 = vmatmul.mubr.f32.gmra.mxu0 %v4231
    %v4492 = vpop.f32.mrf.mxu0
    %v4493 = vadd.f32 0.0, %v4492
    %v4494 = vpop.f32.mrf.mxu0
    %4495 = vmatprep.mubr.f32.mxu0 0.0
    %4496 = vmatmul.mubr.f32.gmra.mxu0 %v4234
    %v4497 = vpop.f32.mrf.mxu0
    %v4498 = vadd.f32 0.0, %v4497
    %v4499 = vpop.f32.mrf.mxu0
    %4500 = vmatprep.mubr.f32.mxu0 0.0
    %4501 = vmatmul.mubr.f32.gmra.mxu0 %v4237
    %v4502 = vpop.f32.mrf.mxu0
    %v4503 = vadd.f32 0.0, %v4502
    %v4504 = vpop.f32.mrf.mxu0
    %4505 = vmatprep.mubr.f32.mxu0 0.0
    %4506 = vmatmul.mubr.f32.gmra.mxu0 %v4240
    %v4507 = vpop.f32.mrf.mxu0
    %v4508 = vadd.f32 0.0, %v4507
    %v4509 = vpop.f32.mrf.mxu0
    %4510 = vmatprep.mubr.f32.mxu0 0.0
    %4511 = vmatmul.mubr.f32.gmra.mxu0 %v4243
    %v4512 = vpop.f32.mrf.mxu0
    %v4513 = vadd.f32 0.0, %v4512
    %v4514 = vpop.f32.mrf.mxu0
    %4515 = vmatprep.mubr.f32.mxu0 0.0
    %4516 = vmatmul.mubr.f32.gmra.mxu0 %v4246
    %v4517 = vpop.f32.mrf.mxu0
    %v4518 = vadd.f32 0.0, %v4517
    %v4519 = vpop.f32.mrf.mxu0
    %4520 = vmatprep.mubr.f32.mxu0 0.0
    %4521 = vmatmul.mubr.f32.gmra.mxu0 %v4249
    %v4522 = vpop.f32.mrf.mxu0
    %v4523 = vadd.f32 0.0, %v4522
    %v4524 = vpop.f32.mrf.mxu0
    %4525 = vmatprep.mubr.f32.mxu0 0.0
    %4526 = vmatmul.mubr.f32.gmra.mxu0 %v4252
    %v4527 = vpop.f32.mrf.mxu0
    %v4528 = vadd.f32 0.0, %v4527
    %v4529 = vpop.f32.mrf.mxu0
    %4530 = vmatprep.mubr.f32.mxu0 0.0
    %4531 = vmatmul.mubr.f32.gmra.mxu0 %v4255
    %v4532 = vpop.f32.mrf.mxu0
    %v4533 = vadd.f32 0.0, %v4532
    %v4534 = vpop.f32.mrf.mxu0
    %4535 = vmatprep.mubr.f32.mxu0 0.0
    %4536 = vmatmul.mubr.f32.gmra.mxu0 %v4258
    %v4537 = vpop.f32.mrf.mxu0
    %v4538 = vadd.f32 0.0, %v4537
    %v4539 = vpop.f32.mrf.mxu0
    %4540 = vmatprep.mubr.f32.mxu0 0.0
    %4541 = vmatmul.mubr.f32.gmra.mxu0 %v4261
    %v4542 = vpop.f32.mrf.mxu0
    %v4543 = vadd.f32 0.0, %v4542
    %v4544 = vpop.f32.mrf.mxu0
    %4545 = vmatprep.mubr.f32.mxu0 0.0
    %4546 = vmatmul.mubr.f32.gmra.mxu0 %v4264
    %v4547 = vpop.f32.mrf.mxu0
    %v4548 = vadd.f32 0.0, %v4547
    %v4549 = vpop.f32.mrf.mxu0
    %4550 = vmatprep.mubr.f32.mxu0 0.0
    %4551 = vmatmul.mubr.f32.gmra.mxu0 %v4267
    %v4552 = vpop.f32.mrf.mxu0
    %v4553 = vadd.f32 0.0, %v4552
    %v4554 = vpop.f32.mrf.mxu0
    %4555 = vmatprep.mubr.f32.mxu0 0.0
    %4556 = vmatmul.mubr.f32.gmra.mxu0 %v4270
    %v4557 = vpop.f32.mrf.mxu0
    %v4558 = vadd.f32 0.0, %v4557
    %v4559 = vpop.f32.mrf.mxu0
    %4560 = vmatprep.mubr.f32.mxu0 0.0
    %4561 = vmatmul.mubr.f32.gmra.mxu0 %v4273
    %v4562 = vpop.f32.mrf.mxu0
    %v4563 = vadd.f32 0.0, %v4562
    %v4564 = vpop.f32.mrf.mxu0
    %4565 = vmatprep.mubr.f32.mxu0 0.0
    %4566 = vmatmul.mubr.f32.gmra.mxu0 %v4276
    %v4567 = vpop.f32.mrf.mxu0
    %v4568 = vadd.f32 0.0, %v4567
    %v4569 = vpop.f32.mrf.mxu0
    %4570 = vmatprep.mubr.f32.mxu0 0.0
    %4571 = vmatmul.mubr.f32.gmra.mxu0 %v4279
    %v4572 = vpop.f32.mrf.mxu0
    %v4573 = vadd.f32 0.0, %v4572
    %v4574 = vpop.f32.mrf.mxu0
    %4575 = vmatprep.mubr.f32.mxu0 0.0
    %4576 = vmatmul.mubr.f32.gmra.mxu0 %v4282
    %v4577 = vpop.f32.mrf.mxu0
    %v4578 = vadd.f32 0.0, %v4577
    %v4579 = vpop.f32.mrf.mxu0
    %4580 = vmatprep.mubr.f32.mxu0 0.0
    %4581 = vmatmul.mubr.f32.gmra.mxu0 %v4285
    %v4582 = vpop.f32.mrf.mxu0
    %v4583 = vadd.f32 0.0, %v4582
    %v4584 = vpop.f32.mrf.mxu0
    %4585 = vmatprep.mubr.f32.mxu0 0.0
    %4586 = vmatmul.mubr.f32.gmra.mxu0 %v4288
    %v4587 = vpop.f32.mrf.mxu0
    %v4588 = vadd.f32 0.0, %v4587
    %v4589 = vpop.f32.mrf.mxu0
    %4590 = vmatprep.mubr.f32.mxu0 0.0
    %4591 = vmatmul.mubr.f32.gmra.mxu0 %v4291
    %v4592 = vpop.f32.mrf.mxu0
    %v4593 = vadd.f32 0.0, %v4592
    %v4594 = vpop.f32.mrf.mxu0
    %4595 = vmatprep.mubr.f32.mxu0 0.0
    %4596 = vmatmul.mubr.f32.gmra.mxu0 %v4294
    %v4597 = vpop.f32.mrf.mxu0
    %v4598 = vadd.f32 0.0, %v4597
    %v4599 = vpop.f32.mrf.mxu0
    %4600 = vmatprep.mubr.f32.mxu0 0.0
    %4601 = vmatmul.mubr.f32.gmra.mxu0 %v4297
    %v4602 = vpop.f32.mrf.mxu0
    %v4603 = vadd.f32 0.0, %v4602
    %v4604 = vpop.f32.mrf.mxu0
    %4605 = vmatprep.mubr.f32.mxu0 0.0
    %4606 = vmatmul.mubr.f32.gmra.mxu0 %v4300
    %v4607 = vpop.f32.mrf.mxu0
    %v4608 = vadd.f32 0.0, %v4607
    %v4609 = vpop.f32.mrf.mxu0
    %4610 = vmatprep.mubr.f32.mxu0 0.0
    %4611 = vmatmul.mubr.f32.gmra.mxu0 %v4303
    %v4612 = vpop.f32.mrf.mxu0
    %v4613 = vadd.f32 0.0, %v4612
    %v4614 = vpop.f32.mrf.mxu0
    %4615 = vmatprep.mubr.f32.mxu0 0.0
    %4616 = vmatmul.mubr.f32.gmra.mxu0 %v4306
    %v4617 = vpop.f32.mrf.mxu0
    %v4618 = vadd.f32 0.0, %v4617
    %v4619 = vpop.f32.mrf.mxu0
    %4620 = vmatprep.mubr.f32.mxu0 0.0
    %4621 = vmatmul.mubr.f32.gmra.mxu0 %v4309
    %v4622 = vpop.f32.mrf.mxu0
    %v4623 = vadd.f32 0.0, %v4622
    %v4624 = vpop.f32.mrf.mxu0
    %4625 = vmatprep.mubr.f32.mxu0 0.0
    %4626 = vmatmul.mubr.f32.gmra.mxu0 %v4312
    %v4627 = vpop.f32.mrf.mxu0
    %v4628 = vadd.f32 0.0, %v4627
    %v4629 = vpop.f32.mrf.mxu0
    %4630 = vmatprep.mubr.f32.mxu0 0.0
    %4631 = vmatmul.mubr.f32.gmra.mxu0 %v4315
    %v4632 = vpop.f32.mrf.mxu0
    %v4633 = vadd.f32 0.0, %v4632
    %v4634 = vpop.f32.mrf.mxu0
    %4635 = vmatprep.mubr.f32.mxu0 0.0
    %4636 = vmatmul.mubr.f32.gmra.mxu0 %v4318
    %v4637 = vpop.f32.mrf.mxu0
    %v4638 = vadd.f32 0.0, %v4637
    %v4639 = vpop.f32.mrf.mxu0
    %4640 = vmatprep.mubr.f32.mxu0 0.0
    %4641 = vmatmul.mubr.f32.gmra.mxu0 %v4321
    %v4642 = vpop.f32.mrf.mxu0
    %v4643 = vadd.f32 0.0, %v4642
    %v4644 = vpop.f32.mrf.mxu0
    %4645 = vmatprep.mubr.f32.mxu0 0.0
    %4646 = vmatmul.mubr.f32.gmra.mxu0 %v4324
    %v4647 = vpop.f32.mrf.mxu0
    %v4648 = vadd.f32 0.0, %v4647
    %v4649 = vpop.f32.mrf.mxu0
    %4650 = vmatprep.mubr.f32.mxu0 0.0
    %4651 = vmatmul.mubr.f32.gmra.mxu0 %v4327
    %v4652 = vpop.f32.mrf.mxu0
    %v4653 = vadd.f32 0.0, %v4652
    %v4654 = vpop.f32.mrf.mxu0
    %4655 = vmatprep.mubr.f32.mxu0 0.0
    %4656 = vmatmul.mubr.f32.gmra.mxu0 %v4330
    %v4657 = vpop.f32.mrf.mxu0
    %v4658 = vadd.f32 0.0, %v4657
    %v4659 = vpop.f32.mrf.mxu0
    %4660 = vmatprep.mubr.f32.mxu0 0.0
    %4661 = vmatmul.mubr.f32.gmra.mxu0 %v4333
    %v4662 = vpop.f32.mrf.mxu0
    %v4663 = vadd.f32 0.0, %v4662
    %v4664 = vpop.f32.mrf.mxu0
    %4665 = vmatprep.mubr.f32.mxu0 0.0
    %4666 = vmatmul.mubr.f32.gmra.mxu0 %v4336
    %v4667 = vpop.f32.mrf.mxu0
    %v4668 = vadd.f32 0.0, %v4667
    %v4669 = vpop.f32.mrf.mxu0
    %4670 = vmatprep.mubr.f32.mxu0 0.0
    %4671 = vmatmul.mubr.f32.gmra.mxu0 %v4339
    %v4672 = vpop.f32.mrf.mxu0
    %v4673 = vadd.f32 0.0, %v4672
    %v4674 = vpop.f32.mrf.mxu0
    %4675 = vmatprep.mubr.f32.mxu0 0.0
    %4676 = vmatmul.mubr.f32.gmra.mxu0 %v4342
    %v4677 = vpop.f32.mrf.mxu0
    %v4678 = vadd.f32 0.0, %v4677
    %v4679 = vpop.f32.mrf.mxu0
    %4680 = vmatprep.mubr.f32.mxu0 0.0
    %4681 = vmatmul.mubr.f32.gmra.mxu0 %v4345
    %v4682 = vpop.f32.mrf.mxu0
    %v4683 = vadd.f32 0.0, %v4682
    %v4684 = vpop.f32.mrf.mxu0
    %4685 = vmatprep.mubr.f32.mxu0 0.0
    %4686 = vmatmul.mubr.f32.gmra.mxu0 %v4348
    %v4687 = vpop.f32.mrf.mxu0
    %v4688 = vadd.f32 0.0, %v4687
    %v4689 = vpop.f32.mrf.mxu0
    %4690 = vmatprep.mubr.f32.mxu0 0.0
    %4691 = vmatmul.mubr.f32.gmra.mxu0 %v4351
    %v4692 = vpop.f32.mrf.mxu0
    %v4693 = vadd.f32 0.0, %v4692
    %v4694 = vpop.f32.mrf.mxu0
    %4695 = vmatprep.mubr.f32.mxu0 0.0
    %4696 = vmatmul.mubr.f32.gmra.mxu0 %v4354
    %v4697 = vpop.f32.mrf.mxu0
    %v4698 = vadd.f32 0.0, %v4697
    %v4699 = vpop.f32.mrf.mxu0
    %4700 = vmatprep.mubr.f32.mxu0 0.0
    %4701 = vmatmul.mubr.f32.gmra.mxu0 %v4357
    %v4702 = vpop.f32.mrf.mxu0
    %v4703 = vadd.f32 0.0, %v4702
    %v4704 = vpop.f32.mrf.mxu0
    %4705 = vmatprep.mubr.f32.mxu0 0.0
    %4706 = vmatmul.mubr.f32.gmra.mxu0 %v4360
    %v4707 = vpop.f32.mrf.mxu0
    %v4708 = vadd.f32 0.0, %v4707
    %v4709 = vpop.f32.mrf.mxu0
    %4710 = vmatprep.mubr.f32.mxu0 0.0
    %4711 = vmatmul.mubr.f32.gmra.mxu0 %v4363
    %v4712 = vpop.f32.mrf.mxu0
    %v4713 = vadd.f32 0.0, %v4712
    %v4714 = vpop.f32.mrf.mxu0
    %4715 = vmatprep.mubr.f32.mxu0 0.0
    %4716 = vmatmul.mubr.f32.gmra.mxu0 %v4366
    %v4717 = vpop.f32.mrf.mxu0
    %v4718 = vadd.f32 0.0, %v4717
    %v4719 = vpop.f32.mrf.mxu0
    %4720 = vmatprep.mubr.f32.mxu0 0.0
    %4721 = vmatmul.mubr.f32.gmra.mxu0 %v4369
    %v4722 = vpop.f32.mrf.mxu0
    %v4723 = vadd.f32 0.0, %v4722
    %v4724 = vpop.f32.mrf.mxu0
    %4725 = vmatprep.mubr.f32.mxu0 0.0
    %4726 = vmatmul.mubr.f32.gmra.mxu0 %v4372
    %v4727 = vpop.f32.mrf.mxu0
    %v4728 = vadd.f32 0.0, %v4727
    %v4729 = vpop.f32.mrf.mxu0
    %4730 = vmatprep.mubr.f32.mxu0 0.0
    %4731 = vmatmul.mubr.f32.gmra.mxu0 %v4375
    %v4732 = vpop.f32.mrf.mxu0
    %v4733 = vadd.f32 0.0, %v4732
    %v4734 = vpop.f32.mrf.mxu0
    %4735 = vmatprep.mubr.f32.mxu0 0.0
    %4736 = vmatmul.mubr.f32.gmra.mxu0 %v4378
    %v4737 = vpop.f32.mrf.mxu0
    %v4738 = vadd.f32 0.0, %v4737
    %v4739 = vpop.f32.mrf.mxu0
    %4740 = vmatprep.mubr.f32.mxu0 0.0
    %4741 = vmatmul.mubr.f32.gmra.mxu0 %v4381
    %v4742 = vpop.f32.mrf.mxu0
    %v4743 = vadd.f32 0.0, %v4742
    %v4744 = vpop.f32.mrf.mxu0
    %4745 = vmatprep.mubr.f32.mxu0 0.0
    %4746 = vmatmul.mubr.f32.gmra.mxu0 %v4384
    %v4747 = vpop.f32.mrf.mxu0
    %v4748 = vadd.f32 0.0, %v4747
    %v4749 = vpop.f32.mrf.mxu0
    %4750 = vmatprep.mubr.f32.mxu0 0.0
    %4751 = vmatmul.mubr.f32.gmra.mxu0 %v4387
    %v4752 = vpop.f32.mrf.mxu0
    %v4753 = vadd.f32 0.0, %v4752
    %v4754 = vpop.f32.mrf.mxu0
    %4755 = vmatprep.mubr.f32.mxu0 0.0
    %4756 = vmatmul.mubr.f32.gmra.mxu0 %v4390
    %v4757 = vpop.f32.mrf.mxu0
    %v4758 = vadd.f32 0.0, %v4757
    %v4759 = vpop.f32.mrf.mxu0
    %4760 = vmatprep.mubr.f32.mxu0 0.0
    %4761 = vmatmul.mubr.f32.gmra.mxu0 %v4393
    %v4762 = vpop.f32.mrf.mxu0
    %v4763 = vadd.f32 0.0, %v4762
    %v4764 = vpop.f32.mrf.mxu0
    %4765 = vmatprep.mubr.f32.mxu0 0.0
    %4766 = vmatmul.mubr.f32.gmra.mxu0 %v4396
    %v4767 = vpop.f32.mrf.mxu0
    %v4768 = vadd.f32 0.0, %v4767
    %v4769 = vpop.f32.mrf.mxu0
    %4770 = vmatprep.mubr.f32.mxu0 0.0
    %4771 = vmatmul.mubr.f32.gmra.mxu0 %v4399
    %v4772 = vpop.f32.mrf.mxu0
    %v4773 = vadd.f32 0.0, %v4772
    %v4774 = vpop.f32.mrf.mxu0
    %4775 = vmatprep.mubr.f32.mxu0 0.0
    %4776 = vmatmul.mubr.f32.gmra.mxu0 %v4402
    %v4777 = vpop.f32.mrf.mxu0
    %v4778 = vadd.f32 0.0, %v4777
    %v4779 = vpop.f32.mrf.mxu0
    %4780 = vmatprep.mubr.f32.mxu0 0.0
    %4781 = vmatmul.mubr.f32.gmra.mxu0 %v4405
    %v4782 = vpop.f32.mrf.mxu0
    %v4783 = vadd.f32 0.0, %v4782
    %v4784 = vpop.f32.mrf.mxu0
    %4785 = vmatprep.mubr.f32.mxu0 0.0
    %4786 = vmatmul.mubr.f32.gmra.mxu0 %v4408
    %v4787 = vpop.f32.mrf.mxu0
    %v4788 = vadd.f32 0.0, %v4787
    %v4789 = vpop.f32.mrf.mxu0
    %4790 = vmatprep.mubr.f32.mxu0 0.0
    %4791 = vmatmul.mubr.f32.gmra.mxu0 %v4411
    %v4792 = vpop.f32.mrf.mxu0
    %v4793 = vadd.f32 0.0, %v4792
    %v4794 = vpop.f32.mrf.mxu0
    %4795 = vmatprep.mubr.f32.mxu0 0.0
    %4796 = vmatmul.mubr.f32.gmra.mxu0 %v4414
    %v4797 = vpop.f32.mrf.mxu0
    %v4798 = vadd.f32 0.0, %v4797
    %v4799 = vpop.f32.mrf.mxu0
    %4800 = vdwg.mxu0
    %v4801 = vadd.f32 %v4090, %v4483
    %v4802 = vadd.f32 %v4091, %v4488
    %v4803 = vadd.f32 %v4092, %v4493
    %v4804 = vadd.f32 %v4093, %v4498
    %v4805 = vadd.f32 %v4094, %v4503
    %v4806 = vadd.f32 %v4095, %v4508
    %v4807 = vadd.f32 %v4096, %v4513
    %v4808 = vadd.f32 %v4097, %v4518
    %v4809 = vadd.f32 %v4098, %v4523
    %v4810 = vadd.f32 %v4099, %v4528
    %v4811 = vadd.f32 %v4100, %v4533
    %v4812 = vadd.f32 %v4101, %v4538
    %v4813 = vadd.f32 %v4102, %v4543
    %v4814 = vadd.f32 %v4103, %v4548
    %v4815 = vadd.f32 %v4104, %v4553
    %v4816 = vadd.f32 %v4105, %v4558
    %v4817 = vadd.f32 %v4106, %v4563
    %v4818 = vadd.f32 %v4107, %v4568
    %v4819 = vadd.f32 %v4108, %v4573
    %v4820 = vadd.f32 %v4109, %v4578
    %v4821 = vadd.f32 %v4110, %v4583
    %v4822 = vadd.f32 %v4111, %v4588
    %v4823 = vadd.f32 %v4112, %v4593
    %v4824 = vadd.f32 %v4113, %v4598
    %v4825 = vadd.f32 %v4114, %v4603
    %v4826 = vadd.f32 %v4115, %v4608
    %v4827 = vadd.f32 %v4116, %v4613
    %v4828 = vadd.f32 %v4117, %v4618
    %v4829 = vadd.f32 %v4118, %v4623
    %v4830 = vadd.f32 %v4119, %v4628
    %v4831 = vadd.f32 %v4120, %v4633
    %v4832 = vadd.f32 %v4121, %v4638
    %v4833 = vadd.f32 %v4122, %v4643
    %v4834 = vadd.f32 %v4123, %v4648
    %v4835 = vadd.f32 %v4124, %v4653
    %v4836 = vadd.f32 %v4125, %v4658
    %v4837 = vadd.f32 %v4126, %v4663
    %v4838 = vadd.f32 %v4127, %v4668
    %v4839 = vadd.f32 %v4128, %v4673
    %v4840 = vadd.f32 %v4129, %v4678
    %v4841 = vadd.f32 %v4130, %v4683
    %v4842 = vadd.f32 %v4131, %v4688
    %v4843 = vadd.f32 %v4132, %v4693
    %v4844 = vadd.f32 %v4133, %v4698
    %v4845 = vadd.f32 %v4134, %v4703
    %v4846 = vadd.f32 %v4135, %v4708
    %v4847 = vadd.f32 %v4136, %v4713
    %v4848 = vadd.f32 %v4137, %v4718
    %v4849 = vadd.f32 %v4138, %v4723
    %v4850 = vadd.f32 %v4139, %v4728
    %v4851 = vadd.f32 %v4140, %v4733
    %v4852 = vadd.f32 %v4141, %v4738
    %v4853 = vadd.f32 %v4142, %v4743
    %v4854 = vadd.f32 %v4143, %v4748
    %v4855 = vadd.f32 %v4144, %v4753
    %v4856 = vadd.f32 %v4145, %v4758
    %v4857 = vadd.f32 %v4146, %v4763
    %v4858 = vadd.f32 %v4147, %v4768
    %v4859 = vadd.f32 %v4148, %v4773
    %v4860 = vadd.f32 %v4149, %v4778
    %v4861 = vadd.f32 %v4150, %v4783
    %v4862 = vadd.f32 %v4151, %v4788
    %v4863 = vadd.f32 %v4152, %v4793
    %v4864 = vadd.f32 %v4153, %v4798
    %v4865 = vld [vmem:[%s4154 + $0x1] sm:$0xff]
    %v4866 = vld [vmem:[%s4154 + $0x9] sm:$0xff]
    %v4867 = vld [vmem:[%s4154 + $0x19] sm:$0xff]
    %v4868 = vld [vmem:[%s4154 + $0x21] sm:$0xff]
    %v4869 = vld [vmem:[%s4154 + $0x31] sm:$0xff]
    %v4870 = vld [vmem:[%s4154 + $0x39] sm:$0xff]
    %v4871 = vld [vmem:[%s4154 + $0x49] sm:$0xff]
    %v4872 = vld [vmem:[%s4154 + $0x51] sm:$0xff]
    %v4873 = vld [vmem:[%s4154 + $0x61] sm:$0xff]
    %v4874 = vld [vmem:[%s4154 + $0x69] sm:$0xff]
    %v4875 = vld [vmem:[%s4154 + $0x79] sm:$0xff]
    %v4876 = vld [vmem:[%s4154 + $0x81] sm:$0xff]
    %v4877 = vld [vmem:[%s4154 + $0x91] sm:$0xff]
    %v4878 = vld [vmem:[%s4154 + $0x99] sm:$0xff]
    %v4879 = vld [vmem:[%s4154 + $0xa9] sm:$0xff]
    %v4880 = vld [vmem:[%s4154 + $0xb1] sm:$0xff]
    %v4881 = vld [vmem:[%s4154 + $0xc1] sm:$0xff]
    %v4882 = vld [vmem:[%s4154 + $0xc9] sm:$0xff]
    %v4883 = vld [vmem:[%s4154 + $0xd9] sm:$0xff]
    %v4884 = vld [vmem:[%s4154 + $0xe1] sm:$0xff]
    %v4885 = vld [vmem:[%s4154 + $0xf1] sm:$0xff]
    %v4886 = vld [vmem:[%s4154 + $0xf9] sm:$0xff]
    %v4887 = vld [vmem:[%s4154 + $0x109] sm:$0xff]
    %v4888 = vld [vmem:[%s4154 + $0x111] sm:$0xff]
    %v4889 = vld [vmem:[%s4154 + $0x121] sm:$0xff]
    %v4890 = vld [vmem:[%s4154 + $0x129] sm:$0xff]
    %v4891 = vld [vmem:[%s4154 + $0x139] sm:$0xff]
    %v4892 = vld [vmem:[%s4154 + $0x141] sm:$0xff]
    %v4893 = vld [vmem:[%s4154 + $0x151] sm:$0xff]
    %v4894 = vld [vmem:[%s4154 + $0x159] sm:$0xff]
    %v4895 = vld [vmem:[%s4154 + $0x169] sm:$0xff]
    %v4896 = vld [vmem:[%s4154 + $0x171] sm:$0xff]
    %v4897 = vld [vmem:[%s4154 + $0x1b1] sm:$0xff]
    %v4898 = vld [vmem:[%s4154 + $0x1b9] sm:$0xff]
    %v4899 = vld [vmem:[%s4154 + $0x1c9] sm:$0xff]
    %v4900 = vld [vmem:[%s4154 + $0x1d1] sm:$0xff]
    %v4901 = vld [vmem:[%s4154 + $0x1e1] sm:$0xff]
    %v4902 = vld [vmem:[%s4154 + $0x1e9] sm:$0xff]
    %v4903 = vld [vmem:[%s4154 + $0x1f9] sm:$0xff]
    %v4904 = vld [vmem:[%s4154 + $0x201] sm:$0xff]
    %v4905 = vld [vmem:[%s4154 + $0x211] sm:$0xff]
    %v4906 = vld [vmem:[%s4154 + $0x219] sm:$0xff]
    %v4907 = vld [vmem:[%s4154 + $0x229] sm:$0xff]
    %v4908 = vld [vmem:[%s4154 + $0x231] sm:$0xff]
    %v4909 = vld [vmem:[%s4154 + $0x241] sm:$0xff]
    %v4910 = vld [vmem:[%s4154 + $0x249] sm:$0xff]
    %v4911 = vld [vmem:[%s4154 + $0x259] sm:$0xff]
    %v4912 = vld [vmem:[%s4154 + $0x261] sm:$0xff]
    %v4913 = vld [vmem:[%s4154 + $0x271] sm:$0xff]
    %v4914 = vld [vmem:[%s4154 + $0x279] sm:$0xff]
    %v4915 = vld [vmem:[%s4154 + $0x289] sm:$0xff]
    %v4916 = vld [vmem:[%s4154 + $0x291] sm:$0xff]
    %v4917 = vld [vmem:[%s4154 + $0x2a1] sm:$0xff]
    %v4918 = vld [vmem:[%s4154 + $0x2a9] sm:$0xff]
    %v4919 = vld [vmem:[%s4154 + $0x2b9] sm:$0xff]
    %v4920 = vld [vmem:[%s4154 + $0x2c1] sm:$0xff]
    %v4921 = vld [vmem:[%s4154 + $0x2d1] sm:$0xff]
    %v4922 = vld [vmem:[%s4154 + $0x2d9] sm:$0xff]
    %v4923 = vld [vmem:[%s4154 + $0x2e9] sm:$0xff]
    %v4924 = vld [vmem:[%s4154 + $0x2f1] sm:$0xff]
    %v4925 = vld [vmem:[%s4154 + $0x301] sm:$0xff]
    %v4926 = vld [vmem:[%s4154 + $0x309] sm:$0xff]
    %v4927 = vld [vmem:[%s4154 + $0x319] sm:$0xff]
    %v4928 = vld [vmem:[%s4154 + $0x321] sm:$0xff]
    %s4929 = scalar_lea.vmem %s1, 224
    %v4930 = vld [vmem:[%s4929] sm:$0xff]
    %v4931 = vld [vmem:[%s4929 + $0x8] sm:$0xff]
    %v4932 = vld [vmem:[%s4929 + $0x10] sm:$0xff]
    %v4933 = vld [vmem:[%s4929 + $0x18] sm:$0xff]
    %v4935 = vsel %vm158, %v4865, 0
    %v4938 = vsel %vm158, %v4866, 0
    %v4941 = vsel %vm158, %v4867, 0
    %v4944 = vsel %vm158, %v4868, 0
    %v4947 = vsel %vm158, %v4869, 0
    %v4950 = vsel %vm158, %v4870, 0
    %v4953 = vsel %vm158, %v4871, 0
    %v4956 = vsel %vm158, %v4872, 0
    %v4959 = vsel %vm158, %v4873, 0
    %v4962 = vsel %vm158, %v4874, 0
    %v4965 = vsel %vm158, %v4875, 0
    %v4968 = vsel %vm158, %v4876, 0
    %v4971 = vsel %vm158, %v4877, 0
    %v4974 = vsel %vm158, %v4878, 0
    %v4977 = vsel %vm158, %v4879, 0
    %v4980 = vsel %vm158, %v4880, 0
    %v4983 = vsel %vm158, %v4881, 0
    %v4986 = vsel %vm158, %v4882, 0
    %v4989 = vsel %vm158, %v4883, 0
    %v4992 = vsel %vm158, %v4884, 0
    %v4995 = vsel %vm158, %v4885, 0
    %v4998 = vsel %vm158, %v4886, 0
    %v5001 = vsel %vm158, %v4887, 0
    %v5004 = vsel %vm158, %v4888, 0
    %v5007 = vsel %vm158, %v4889, 0
    %v5010 = vsel %vm158, %v4890, 0
    %v5013 = vsel %vm158, %v4891, 0
    %v5016 = vsel %vm158, %v4892, 0
    %v5019 = vsel %vm158, %v4893, 0
    %v5022 = vsel %vm158, %v4894, 0
    %v5025 = vsel %vm158, %v4895, 0
    %v5028 = vsel %vm158, %v4896, 0
    %v5031 = vsel %vm158, %v4897, 0
    %v5034 = vsel %vm158, %v4898, 0
    %v5037 = vsel %vm158, %v4899, 0
    %v5040 = vsel %vm158, %v4900, 0
    %v5043 = vsel %vm158, %v4901, 0
    %v5046 = vsel %vm158, %v4902, 0
    %v5049 = vsel %vm158, %v4903, 0
    %v5052 = vsel %vm158, %v4904, 0
    %v5055 = vsel %vm158, %v4905, 0
    %v5058 = vsel %vm158, %v4906, 0
    %v5061 = vsel %vm158, %v4907, 0
    %v5064 = vsel %vm158, %v4908, 0
    %v5067 = vsel %vm158, %v4909, 0
    %v5070 = vsel %vm158, %v4910, 0
    %v5073 = vsel %vm158, %v4911, 0
    %v5076 = vsel %vm158, %v4912, 0
    %v5079 = vsel %vm158, %v4913, 0
    %v5082 = vsel %vm158, %v4914, 0
    %v5085 = vsel %vm158, %v4915, 0
    %v5088 = vsel %vm158, %v4916, 0
    %v5091 = vsel %vm158, %v4917, 0
    %v5094 = vsel %vm158, %v4918, 0
    %v5097 = vsel %vm158, %v4919, 0
    %v5100 = vsel %vm158, %v4920, 0
    %v5103 = vsel %vm158, %v4921, 0
    %v5106 = vsel %vm158, %v4922, 0
    %v5109 = vsel %vm158, %v4923, 0
    %v5112 = vsel %vm158, %v4924, 0
    %v5115 = vsel %vm158, %v4925, 0
    %v5118 = vsel %vm158, %v4926, 0
    %v5121 = vsel %vm158, %v4927, 0
    %v5124 = vsel %vm158, %v4928, 0
    %5126 = vmatprep.subr.mxu0 0.0
    %5127 = vmatpush1.msra.mxu0 0.0
    %5128 = vmatprep.subr.mxu0 0.0
    %5129 = vmatpush1.msra.mxu0 0.0
    %5130 = vmatprep.subr.mxu0 0.0
    %5131 = vmatpush1.msra.mxu0 0.0
    %5132 = vmatprep.subr.mxu0 0.0
    %5133 = vmatpush1.msra.mxu0 0.0
    %5134 = vmatprep.subr.mxu0 0.0
    %5135 = vmatpush1.msra.mxu0 0.0
    %5136 = vmatprep.subr.mxu0 0.0
    %5137 = vmatpush1.msra.mxu0 0.0
    %5138 = vmatprep.subr.mxu0 0.0
    %5139 = vmatpush1.msra.mxu0 0.0
    %5140 = vmatprep.subr.mxu0 0.0
    %5141 = vmatpush1.msra.mxu0 0.0
    %5142 = vmatprep.subr.mxu0 0.0
    %5143 = vmatpush1.msra.mxu0 0.0
    %5144 = vmatprep.subr.mxu0 0.0
    %5145 = vmatpush1.msra.mxu0 0.0
    %5146 = vmatprep.subr.mxu0 0.0
    %5147 = vmatpush1.msra.mxu0 0.0
    %5148 = vmatprep.subr.mxu0 0.0
    %5149 = vmatpush1.msra.mxu0 0.0
    %5150 = vmatprep.subr.mxu0 0.0
    %5151 = vmatpush1.msra.mxu0 %v4933
    %5152 = vmatprep.subr.mxu0 0.0
    %5153 = vmatpush1.msra.mxu0 %v4932
    %5154 = vmatprep.subr.mxu0 0.0
    %5155 = vmatpush1.msra.mxu0 %v4931
    %5156 = vmatprep.subr.mxu0 0.0
    %5157 = vmatpush1.msra.mxu0 %v4930
    %5158 = vmatprep.subr.mxu0 0.0
    %5159 = vmatpush2.msra.mxu0 0.0
    %5160 = vmatprep.subr.mxu0 0.0
    %5161 = vmatpush2.msra.mxu0 0.0
    %5162 = vmatprep.subr.mxu0 0.0
    %5163 = vmatpush2.msra.mxu0 0.0
    %5164 = vmatprep.subr.mxu0 0.0
    %5165 = vmatpush2.msra.mxu0 0.0
    %5166 = vmatprep.subr.mxu0 0.0
    %5167 = vmatpush2.msra.mxu0 0.0
    %5168 = vmatprep.subr.mxu0 0.0
    %5169 = vmatpush2.msra.mxu0 0.0
    %5170 = vmatprep.subr.mxu0 0.0
    %5171 = vmatpush2.msra.mxu0 0.0
    %5172 = vmatprep.subr.mxu0 0.0
    %5173 = vmatpush2.msra.mxu0 0.0
    %5174 = vmatprep.subr.mxu0 0.0
    %5175 = vmatpush2.msra.mxu0 0.0
    %5176 = vmatprep.subr.mxu0 0.0
    %5177 = vmatpush2.msra.mxu0 0.0
    %5178 = vmatprep.subr.mxu0 0.0
    %5179 = vmatpush2.msra.mxu0 0.0
    %5180 = vmatprep.subr.mxu0 0.0
    %5181 = vmatpush2.msra.mxu0 0.0
    %5182 = vmatprep.subr.mxu0 0.0
    %5183 = vmatpush2.msra.mxu0 0.0
    %5184 = vmatprep.subr.mxu0 0.0
    %5185 = vmatpush2.msra.mxu0 0.0
    %5186 = vmatprep.subr.mxu0 0.0
    %5187 = vmatpush2.msra.mxu0 0.0
    %5188 = vmatprep.subr.mxu0 0.0
    %5189 = vmatpush2.msra.mxu0 0.0
    %5190 = vmatprep.mubr.f32.mxu0 0.0
    %5191 = vmatmul.mubr.f32.gmra.mxu0 %v4935
    %v5192 = vpop.f32.mrf.mxu0
    %v5193 = vadd.f32 0.0, %v5192
    %v5194 = vpop.f32.mrf.mxu0
    %5195 = vmatprep.mubr.f32.mxu0 0.0
    %5196 = vmatmul.mubr.f32.gmra.mxu0 %v4938
    %v5197 = vpop.f32.mrf.mxu0
    %v5198 = vadd.f32 0.0, %v5197
    %v5199 = vpop.f32.mrf.mxu0
    %5200 = vmatprep.mubr.f32.mxu0 0.0
    %5201 = vmatmul.mubr.f32.gmra.mxu0 %v4941
    %v5202 = vpop.f32.mrf.mxu0
    %v5203 = vadd.f32 0.0, %v5202
    %v5204 = vpop.f32.mrf.mxu0
    %5205 = vmatprep.mubr.f32.mxu0 0.0
    %5206 = vmatmul.mubr.f32.gmra.mxu0 %v4944
    %v5207 = vpop.f32.mrf.mxu0
    %v5208 = vadd.f32 0.0, %v5207
    %v5209 = vpop.f32.mrf.mxu0
    %5210 = vmatprep.mubr.f32.mxu0 0.0
    %5211 = vmatmul.mubr.f32.gmra.mxu0 %v4947
    %v5212 = vpop.f32.mrf.mxu0
    %v5213 = vadd.f32 0.0, %v5212
    %v5214 = vpop.f32.mrf.mxu0
    %5215 = vmatprep.mubr.f32.mxu0 0.0
    %5216 = vmatmul.mubr.f32.gmra.mxu0 %v4950
    %v5217 = vpop.f32.mrf.mxu0
    %v5218 = vadd.f32 0.0, %v5217
    %v5219 = vpop.f32.mrf.mxu0
    %5220 = vmatprep.mubr.f32.mxu0 0.0
    %5221 = vmatmul.mubr.f32.gmra.mxu0 %v4953
    %v5222 = vpop.f32.mrf.mxu0
    %v5223 = vadd.f32 0.0, %v5222
    %v5224 = vpop.f32.mrf.mxu0
    %5225 = vmatprep.mubr.f32.mxu0 0.0
    %5226 = vmatmul.mubr.f32.gmra.mxu0 %v4956
    %v5227 = vpop.f32.mrf.mxu0
    %v5228 = vadd.f32 0.0, %v5227
    %v5229 = vpop.f32.mrf.mxu0
    %5230 = vmatprep.mubr.f32.mxu0 0.0
    %5231 = vmatmul.mubr.f32.gmra.mxu0 %v4959
    %v5232 = vpop.f32.mrf.mxu0
    %v5233 = vadd.f32 0.0, %v5232
    %v5234 = vpop.f32.mrf.mxu0
    %5235 = vmatprep.mubr.f32.mxu0 0.0
    %5236 = vmatmul.mubr.f32.gmra.mxu0 %v4962
    %v5237 = vpop.f32.mrf.mxu0
    %v5238 = vadd.f32 0.0, %v5237
    %v5239 = vpop.f32.mrf.mxu0
    %5240 = vmatprep.mubr.f32.mxu0 0.0
    %5241 = vmatmul.mubr.f32.gmra.mxu0 %v4965
    %v5242 = vpop.f32.mrf.mxu0
    %v5243 = vadd.f32 0.0, %v5242
    %v5244 = vpop.f32.mrf.mxu0
    %5245 = vmatprep.mubr.f32.mxu0 0.0
    %5246 = vmatmul.mubr.f32.gmra.mxu0 %v4968
    %v5247 = vpop.f32.mrf.mxu0
    %v5248 = vadd.f32 0.0, %v5247
    %v5249 = vpop.f32.mrf.mxu0
    %5250 = vmatprep.mubr.f32.mxu0 0.0
    %5251 = vmatmul.mubr.f32.gmra.mxu0 %v4971
    %v5252 = vpop.f32.mrf.mxu0
    %v5253 = vadd.f32 0.0, %v5252
    %v5254 = vpop.f32.mrf.mxu0
    %5255 = vmatprep.mubr.f32.mxu0 0.0
    %5256 = vmatmul.mubr.f32.gmra.mxu0 %v4974
    %v5257 = vpop.f32.mrf.mxu0
    %v5258 = vadd.f32 0.0, %v5257
    %v5259 = vpop.f32.mrf.mxu0
    %5260 = vmatprep.mubr.f32.mxu0 0.0
    %5261 = vmatmul.mubr.f32.gmra.mxu0 %v4977
    %v5262 = vpop.f32.mrf.mxu0
    %v5263 = vadd.f32 0.0, %v5262
    %v5264 = vpop.f32.mrf.mxu0
    %5265 = vmatprep.mubr.f32.mxu0 0.0
    %5266 = vmatmul.mubr.f32.gmra.mxu0 %v4980
    %v5267 = vpop.f32.mrf.mxu0
    %v5268 = vadd.f32 0.0, %v5267
    %v5269 = vpop.f32.mrf.mxu0
    %5270 = vmatprep.mubr.f32.mxu0 0.0
    %5271 = vmatmul.mubr.f32.gmra.mxu0 %v4983
    %v5272 = vpop.f32.mrf.mxu0
    %v5273 = vadd.f32 0.0, %v5272
    %v5274 = vpop.f32.mrf.mxu0
    %5275 = vmatprep.mubr.f32.mxu0 0.0
    %5276 = vmatmul.mubr.f32.gmra.mxu0 %v4986
    %v5277 = vpop.f32.mrf.mxu0
    %v5278 = vadd.f32 0.0, %v5277
    %v5279 = vpop.f32.mrf.mxu0
    %5280 = vmatprep.mubr.f32.mxu0 0.0
    %5281 = vmatmul.mubr.f32.gmra.mxu0 %v4989
    %v5282 = vpop.f32.mrf.mxu0
    %v5283 = vadd.f32 0.0, %v5282
    %v5284 = vpop.f32.mrf.mxu0
    %5285 = vmatprep.mubr.f32.mxu0 0.0
    %5286 = vmatmul.mubr.f32.gmra.mxu0 %v4992
    %v5287 = vpop.f32.mrf.mxu0
    %v5288 = vadd.f32 0.0, %v5287
    %v5289 = vpop.f32.mrf.mxu0
    %5290 = vmatprep.mubr.f32.mxu0 0.0
    %5291 = vmatmul.mubr.f32.gmra.mxu0 %v4995
    %v5292 = vpop.f32.mrf.mxu0
    %v5293 = vadd.f32 0.0, %v5292
    %v5294 = vpop.f32.mrf.mxu0
    %5295 = vmatprep.mubr.f32.mxu0 0.0
    %5296 = vmatmul.mubr.f32.gmra.mxu0 %v4998
    %v5297 = vpop.f32.mrf.mxu0
    %v5298 = vadd.f32 0.0, %v5297
    %v5299 = vpop.f32.mrf.mxu0
    %5300 = vmatprep.mubr.f32.mxu0 0.0
    %5301 = vmatmul.mubr.f32.gmra.mxu0 %v5001
    %v5302 = vpop.f32.mrf.mxu0
    %v5303 = vadd.f32 0.0, %v5302
    %v5304 = vpop.f32.mrf.mxu0
    %5305 = vmatprep.mubr.f32.mxu0 0.0
    %5306 = vmatmul.mubr.f32.gmra.mxu0 %v5004
    %v5307 = vpop.f32.mrf.mxu0
    %v5308 = vadd.f32 0.0, %v5307
    %v5309 = vpop.f32.mrf.mxu0
    %5310 = vmatprep.mubr.f32.mxu0 0.0
    %5311 = vmatmul.mubr.f32.gmra.mxu0 %v5007
    %v5312 = vpop.f32.mrf.mxu0
    %v5313 = vadd.f32 0.0, %v5312
    %v5314 = vpop.f32.mrf.mxu0
    %5315 = vmatprep.mubr.f32.mxu0 0.0
    %5316 = vmatmul.mubr.f32.gmra.mxu0 %v5010
    %v5317 = vpop.f32.mrf.mxu0
    %v5318 = vadd.f32 0.0, %v5317
    %v5319 = vpop.f32.mrf.mxu0
    %5320 = vmatprep.mubr.f32.mxu0 0.0
    %5321 = vmatmul.mubr.f32.gmra.mxu0 %v5013
    %v5322 = vpop.f32.mrf.mxu0
    %v5323 = vadd.f32 0.0, %v5322
    %v5324 = vpop.f32.mrf.mxu0
    %5325 = vmatprep.mubr.f32.mxu0 0.0
    %5326 = vmatmul.mubr.f32.gmra.mxu0 %v5016
    %v5327 = vpop.f32.mrf.mxu0
    %v5328 = vadd.f32 0.0, %v5327
    %v5329 = vpop.f32.mrf.mxu0
    %5330 = vmatprep.mubr.f32.mxu0 0.0
    %5331 = vmatmul.mubr.f32.gmra.mxu0 %v5019
    %v5332 = vpop.f32.mrf.mxu0
    %v5333 = vadd.f32 0.0, %v5332
    %v5334 = vpop.f32.mrf.mxu0
    %5335 = vmatprep.mubr.f32.mxu0 0.0
    %5336 = vmatmul.mubr.f32.gmra.mxu0 %v5022
    %v5337 = vpop.f32.mrf.mxu0
    %v5338 = vadd.f32 0.0, %v5337
    %v5339 = vpop.f32.mrf.mxu0
    %5340 = vmatprep.mubr.f32.mxu0 0.0
    %5341 = vmatmul.mubr.f32.gmra.mxu0 %v5025
    %v5342 = vpop.f32.mrf.mxu0
    %v5343 = vadd.f32 0.0, %v5342
    %v5344 = vpop.f32.mrf.mxu0
    %5345 = vmatprep.mubr.f32.mxu0 0.0
    %5346 = vmatmul.mubr.f32.gmra.mxu0 %v5028
    %v5347 = vpop.f32.mrf.mxu0
    %v5348 = vadd.f32 0.0, %v5347
    %v5349 = vpop.f32.mrf.mxu0
    %5350 = vmatprep.mubr.f32.mxu0 0.0
    %5351 = vmatmul.mubr.f32.gmra.mxu0 %v5031
    %v5352 = vpop.f32.mrf.mxu0
    %v5353 = vadd.f32 0.0, %v5352
    %v5354 = vpop.f32.mrf.mxu0
    %5355 = vmatprep.mubr.f32.mxu0 0.0
    %5356 = vmatmul.mubr.f32.gmra.mxu0 %v5034
    %v5357 = vpop.f32.mrf.mxu0
    %v5358 = vadd.f32 0.0, %v5357
    %v5359 = vpop.f32.mrf.mxu0
    %5360 = vmatprep.mubr.f32.mxu0 0.0
    %5361 = vmatmul.mubr.f32.gmra.mxu0 %v5037
    %v5362 = vpop.f32.mrf.mxu0
    %v5363 = vadd.f32 0.0, %v5362
    %v5364 = vpop.f32.mrf.mxu0
    %5365 = vmatprep.mubr.f32.mxu0 0.0
    %5366 = vmatmul.mubr.f32.gmra.mxu0 %v5040
    %v5367 = vpop.f32.mrf.mxu0
    %v5368 = vadd.f32 0.0, %v5367
    %v5369 = vpop.f32.mrf.mxu0
    %5370 = vmatprep.mubr.f32.mxu0 0.0
    %5371 = vmatmul.mubr.f32.gmra.mxu0 %v5043
    %v5372 = vpop.f32.mrf.mxu0
    %v5373 = vadd.f32 0.0, %v5372
    %v5374 = vpop.f32.mrf.mxu0
    %5375 = vmatprep.mubr.f32.mxu0 0.0
    %5376 = vmatmul.mubr.f32.gmra.mxu0 %v5046
    %v5377 = vpop.f32.mrf.mxu0
    %v5378 = vadd.f32 0.0, %v5377
    %v5379 = vpop.f32.mrf.mxu0
    %5380 = vmatprep.mubr.f32.mxu0 0.0
    %5381 = vmatmul.mubr.f32.gmra.mxu0 %v5049
    %v5382 = vpop.f32.mrf.mxu0
    %v5383 = vadd.f32 0.0, %v5382
    %v5384 = vpop.f32.mrf.mxu0
    %5385 = vmatprep.mubr.f32.mxu0 0.0
    %5386 = vmatmul.mubr.f32.gmra.mxu0 %v5052
    %v5387 = vpop.f32.mrf.mxu0
    %v5388 = vadd.f32 0.0, %v5387
    %v5389 = vpop.f32.mrf.mxu0
    %5390 = vmatprep.mubr.f32.mxu0 0.0
    %5391 = vmatmul.mubr.f32.gmra.mxu0 %v5055
    %v5392 = vpop.f32.mrf.mxu0
    %v5393 = vadd.f32 0.0, %v5392
    %v5394 = vpop.f32.mrf.mxu0
    %5395 = vmatprep.mubr.f32.mxu0 0.0
    %5396 = vmatmul.mubr.f32.gmra.mxu0 %v5058
    %v5397 = vpop.f32.mrf.mxu0
    %v5398 = vadd.f32 0.0, %v5397
    %v5399 = vpop.f32.mrf.mxu0
    %5400 = vmatprep.mubr.f32.mxu0 0.0
    %5401 = vmatmul.mubr.f32.gmra.mxu0 %v5061
    %v5402 = vpop.f32.mrf.mxu0
    %v5403 = vadd.f32 0.0, %v5402
    %v5404 = vpop.f32.mrf.mxu0
    %5405 = vmatprep.mubr.f32.mxu0 0.0
    %5406 = vmatmul.mubr.f32.gmra.mxu0 %v5064
    %v5407 = vpop.f32.mrf.mxu0
    %v5408 = vadd.f32 0.0, %v5407
    %v5409 = vpop.f32.mrf.mxu0
    %5410 = vmatprep.mubr.f32.mxu0 0.0
    %5411 = vmatmul.mubr.f32.gmra.mxu0 %v5067
    %v5412 = vpop.f32.mrf.mxu0
    %v5413 = vadd.f32 0.0, %v5412
    %v5414 = vpop.f32.mrf.mxu0
    %5415 = vmatprep.mubr.f32.mxu0 0.0
    %5416 = vmatmul.mubr.f32.gmra.mxu0 %v5070
    %v5417 = vpop.f32.mrf.mxu0
    %v5418 = vadd.f32 0.0, %v5417
    %v5419 = vpop.f32.mrf.mxu0
    %5420 = vmatprep.mubr.f32.mxu0 0.0
    %5421 = vmatmul.mubr.f32.gmra.mxu0 %v5073
    %v5422 = vpop.f32.mrf.mxu0
    %v5423 = vadd.f32 0.0, %v5422
    %v5424 = vpop.f32.mrf.mxu0
    %5425 = vmatprep.mubr.f32.mxu0 0.0
    %5426 = vmatmul.mubr.f32.gmra.mxu0 %v5076
    %v5427 = vpop.f32.mrf.mxu0
    %v5428 = vadd.f32 0.0, %v5427
    %v5429 = vpop.f32.mrf.mxu0
    %5430 = vmatprep.mubr.f32.mxu0 0.0
    %5431 = vmatmul.mubr.f32.gmra.mxu0 %v5079
    %v5432 = vpop.f32.mrf.mxu0
    %v5433 = vadd.f32 0.0, %v5432
    %v5434 = vpop.f32.mrf.mxu0
    %5435 = vmatprep.mubr.f32.mxu0 0.0
    %5436 = vmatmul.mubr.f32.gmra.mxu0 %v5082
    %v5437 = vpop.f32.mrf.mxu0
    %v5438 = vadd.f32 0.0, %v5437
    %v5439 = vpop.f32.mrf.mxu0
    %5440 = vmatprep.mubr.f32.mxu0 0.0
    %5441 = vmatmul.mubr.f32.gmra.mxu0 %v5085
    %v5442 = vpop.f32.mrf.mxu0
    %v5443 = vadd.f32 0.0, %v5442
    %v5444 = vpop.f32.mrf.mxu0
    %5445 = vmatprep.mubr.f32.mxu0 0.0
    %5446 = vmatmul.mubr.f32.gmra.mxu0 %v5088
    %v5447 = vpop.f32.mrf.mxu0
    %v5448 = vadd.f32 0.0, %v5447
    %v5449 = vpop.f32.mrf.mxu0
    %5450 = vmatprep.mubr.f32.mxu0 0.0
    %5451 = vmatmul.mubr.f32.gmra.mxu0 %v5091
    %v5452 = vpop.f32.mrf.mxu0
    %v5453 = vadd.f32 0.0, %v5452
    %v5454 = vpop.f32.mrf.mxu0
    %5455 = vmatprep.mubr.f32.mxu0 0.0
    %5456 = vmatmul.mubr.f32.gmra.mxu0 %v5094
    %v5457 = vpop.f32.mrf.mxu0
    %v5458 = vadd.f32 0.0, %v5457
    %v5459 = vpop.f32.mrf.mxu0
    %5460 = vmatprep.mubr.f32.mxu0 0.0
    %5461 = vmatmul.mubr.f32.gmra.mxu0 %v5097
    %v5462 = vpop.f32.mrf.mxu0
    %v5463 = vadd.f32 0.0, %v5462
    %v5464 = vpop.f32.mrf.mxu0
    %5465 = vmatprep.mubr.f32.mxu0 0.0
    %5466 = vmatmul.mubr.f32.gmra.mxu0 %v5100
    %v5467 = vpop.f32.mrf.mxu0
    %v5468 = vadd.f32 0.0, %v5467
    %v5469 = vpop.f32.mrf.mxu0
    %5470 = vmatprep.mubr.f32.mxu0 0.0
    %5471 = vmatmul.mubr.f32.gmra.mxu0 %v5103
    %v5472 = vpop.f32.mrf.mxu0
    %v5473 = vadd.f32 0.0, %v5472
    %v5474 = vpop.f32.mrf.mxu0
    %5475 = vmatprep.mubr.f32.mxu0 0.0
    %5476 = vmatmul.mubr.f32.gmra.mxu0 %v5106
    %v5477 = vpop.f32.mrf.mxu0
    %v5478 = vadd.f32 0.0, %v5477
    %v5479 = vpop.f32.mrf.mxu0
    %5480 = vmatprep.mubr.f32.mxu0 0.0
    %5481 = vmatmul.mubr.f32.gmra.mxu0 %v5109
    %v5482 = vpop.f32.mrf.mxu0
    %v5483 = vadd.f32 0.0, %v5482
    %v5484 = vpop.f32.mrf.mxu0
    %5485 = vmatprep.mubr.f32.mxu0 0.0
    %5486 = vmatmul.mubr.f32.gmra.mxu0 %v5112
    %v5487 = vpop.f32.mrf.mxu0
    %v5488 = vadd.f32 0.0, %v5487
    %v5489 = vpop.f32.mrf.mxu0
    %5490 = vmatprep.mubr.f32.mxu0 0.0
    %5491 = vmatmul.mubr.f32.gmra.mxu0 %v5115
    %v5492 = vpop.f32.mrf.mxu0
    %v5493 = vadd.f32 0.0, %v5492
    %v5494 = vpop.f32.mrf.mxu0
    %5495 = vmatprep.mubr.f32.mxu0 0.0
    %5496 = vmatmul.mubr.f32.gmra.mxu0 %v5118
    %v5497 = vpop.f32.mrf.mxu0
    %v5498 = vadd.f32 0.0, %v5497
    %v5499 = vpop.f32.mrf.mxu0
    %5500 = vmatprep.mubr.f32.mxu0 0.0
    %5501 = vmatmul.mubr.f32.gmra.mxu0 %v5121
    %v5502 = vpop.f32.mrf.mxu0
    %v5503 = vadd.f32 0.0, %v5502
    %v5504 = vpop.f32.mrf.mxu0
    %5505 = vmatprep.mubr.f32.mxu0 0.0
    %5506 = vmatmul.mubr.f32.gmra.mxu0 %v5124
    %v5507 = vpop.f32.mrf.mxu0
    %v5508 = vadd.f32 0.0, %v5507
    %v5509 = vpop.f32.mrf.mxu0
    %5510 = vdwg.mxu0
    %v5511 = vadd.f32 %v4801, %v5193
    %v5512 = vadd.f32 %v4802, %v5198
    %v5513 = vadd.f32 %v4803, %v5203
    %v5514 = vadd.f32 %v4804, %v5208
    %v5515 = vadd.f32 %v4805, %v5213
    %v5516 = vadd.f32 %v4806, %v5218
    %v5517 = vadd.f32 %v4807, %v5223
    %v5518 = vadd.f32 %v4808, %v5228
    %v5519 = vadd.f32 %v4809, %v5233
    %v5520 = vadd.f32 %v4810, %v5238
    %v5521 = vadd.f32 %v4811, %v5243
    %v5522 = vadd.f32 %v4812, %v5248
    %v5523 = vadd.f32 %v4813, %v5253
    %v5524 = vadd.f32 %v4814, %v5258
    %v5525 = vadd.f32 %v4815, %v5263
    %v5526 = vadd.f32 %v4816, %v5268
    %v5527 = vadd.f32 %v4817, %v5273
    %v5528 = vadd.f32 %v4818, %v5278
    %v5529 = vadd.f32 %v4819, %v5283
    %v5530 = vadd.f32 %v4820, %v5288
    %v5531 = vadd.f32 %v4821, %v5293
    %v5532 = vadd.f32 %v4822, %v5298
    %v5533 = vadd.f32 %v4823, %v5303
    %v5534 = vadd.f32 %v4824, %v5308
    %v5535 = vadd.f32 %v4825, %v5313
    %v5536 = vadd.f32 %v4826, %v5318
    %v5537 = vadd.f32 %v4827, %v5323
    %v5538 = vadd.f32 %v4828, %v5328
    %v5539 = vadd.f32 %v4829, %v5333
    %v5540 = vadd.f32 %v4830, %v5338
    %v5541 = vadd.f32 %v4831, %v5343
    %v5542 = vadd.f32 %v4832, %v5348
    %v5543 = vadd.f32 %v4833, %v5353
    %v5544 = vadd.f32 %v4834, %v5358
    %v5545 = vadd.f32 %v4835, %v5363
    %v5546 = vadd.f32 %v4836, %v5368
    %v5547 = vadd.f32 %v4837, %v5373
    %v5548 = vadd.f32 %v4838, %v5378
    %v5549 = vadd.f32 %v4839, %v5383
    %v5550 = vadd.f32 %v4840, %v5388
    %v5551 = vadd.f32 %v4841, %v5393
    %v5552 = vadd.f32 %v4842, %v5398
    %v5553 = vadd.f32 %v4843, %v5403
    %v5554 = vadd.f32 %v4844, %v5408
    %v5555 = vadd.f32 %v4845, %v5413
    %v5556 = vadd.f32 %v4846, %v5418
    %v5557 = vadd.f32 %v4847, %v5423
    %v5558 = vadd.f32 %v4848, %v5428
    %v5559 = vadd.f32 %v4849, %v5433
    %v5560 = vadd.f32 %v4850, %v5438
    %v5561 = vadd.f32 %v4851, %v5443
    %v5562 = vadd.f32 %v4852, %v5448
    %v5563 = vadd.f32 %v4853, %v5453
    %v5564 = vadd.f32 %v4854, %v5458
    %v5565 = vadd.f32 %v4855, %v5463
    %v5566 = vadd.f32 %v4856, %v5468
    %v5567 = vadd.f32 %v4857, %v5473
    %v5568 = vadd.f32 %v4858, %v5478
    %v5569 = vadd.f32 %v4859, %v5483
    %v5570 = vadd.f32 %v4860, %v5488
    %v5571 = vadd.f32 %v4861, %v5493
    %v5572 = vadd.f32 %v4862, %v5498
    %v5573 = vadd.f32 %v4863, %v5503
    %v5574 = vadd.f32 %v4864, %v5508
    %v5575 = vld [vmem:[%s4154 + $0x2] sm:$0xff]
    %v5576 = vld [vmem:[%s4154 + $0xa] sm:$0xff]
    %v5577 = vld [vmem:[%s4154 + $0x1a] sm:$0xff]
    %v5578 = vld [vmem:[%s4154 + $0x22] sm:$0xff]
    %v5579 = vld [vmem:[%s4154 + $0x32] sm:$0xff]
    %v5580 = vld [vmem:[%s4154 + $0x3a] sm:$0xff]
    %v5581 = vld [vmem:[%s4154 + $0x4a] sm:$0xff]
    %v5582 = vld [vmem:[%s4154 + $0x52] sm:$0xff]
    %v5583 = vld [vmem:[%s4154 + $0x62] sm:$0xff]
    %v5584 = vld [vmem:[%s4154 + $0x6a] sm:$0xff]
    %v5585 = vld [vmem:[%s4154 + $0x7a] sm:$0xff]
    %v5586 = vld [vmem:[%s4154 + $0x82] sm:$0xff]
    %v5587 = vld [vmem:[%s4154 + $0x92] sm:$0xff]
    %v5588 = vld [vmem:[%s4154 + $0x9a] sm:$0xff]
    %v5589 = vld [vmem:[%s4154 + $0xaa] sm:$0xff]
    %v5590 = vld [vmem:[%s4154 + $0xb2] sm:$0xff]
    %v5591 = vld [vmem:[%s4154 + $0xc2] sm:$0xff]
    %v5592 = vld [vmem:[%s4154 + $0xca] sm:$0xff]
    %v5593 = vld [vmem:[%s4154 + $0xda] sm:$0xff]
    %v5594 = vld [vmem:[%s4154 + $0xe2] sm:$0xff]
    %v5595 = vld [vmem:[%s4154 + $0xf2] sm:$0xff]
    %v5596 = vld [vmem:[%s4154 + $0xfa] sm:$0xff]
    %v5597 = vld [vmem:[%s4154 + $0x10a] sm:$0xff]
    %v5598 = vld [vmem:[%s4154 + $0x112] sm:$0xff]
    %v5599 = vld [vmem:[%s4154 + $0x122] sm:$0xff]
    %v5600 = vld [vmem:[%s4154 + $0x12a] sm:$0xff]
    %v5601 = vld [vmem:[%s4154 + $0x13a] sm:$0xff]
    %v5602 = vld [vmem:[%s4154 + $0x142] sm:$0xff]
    %v5603 = vld [vmem:[%s4154 + $0x152] sm:$0xff]
    %v5604 = vld [vmem:[%s4154 + $0x15a] sm:$0xff]
    %v5605 = vld [vmem:[%s4154 + $0x16a] sm:$0xff]
    %v5606 = vld [vmem:[%s4154 + $0x172] sm:$0xff]
    %v5607 = vld [vmem:[%s4154 + $0x1b2] sm:$0xff]
    %v5608 = vld [vmem:[%s4154 + $0x1ba] sm:$0xff]
    %v5609 = vld [vmem:[%s4154 + $0x1ca] sm:$0xff]
    %v5610 = vld [vmem:[%s4154 + $0x1d2] sm:$0xff]
    %v5611 = vld [vmem:[%s4154 + $0x1e2] sm:$0xff]
    %v5612 = vld [vmem:[%s4154 + $0x1ea] sm:$0xff]
    %v5613 = vld [vmem:[%s4154 + $0x1fa] sm:$0xff]
    %v5614 = vld [vmem:[%s4154 + $0x202] sm:$0xff]
    %v5615 = vld [vmem:[%s4154 + $0x212] sm:$0xff]
    %v5616 = vld [vmem:[%s4154 + $0x21a] sm:$0xff]
    %v5617 = vld [vmem:[%s4154 + $0x22a] sm:$0xff]
    %v5618 = vld [vmem:[%s4154 + $0x232] sm:$0xff]
    %v5619 = vld [vmem:[%s4154 + $0x242] sm:$0xff]
    %v5620 = vld [vmem:[%s4154 + $0x24a] sm:$0xff]
    %v5621 = vld [vmem:[%s4154 + $0x25a] sm:$0xff]
    %v5622 = vld [vmem:[%s4154 + $0x262] sm:$0xff]
    %v5623 = vld [vmem:[%s4154 + $0x272] sm:$0xff]
    %v5624 = vld [vmem:[%s4154 + $0x27a] sm:$0xff]
    %v5625 = vld [vmem:[%s4154 + $0x28a] sm:$0xff]
    %v5626 = vld [vmem:[%s4154 + $0x292] sm:$0xff]
    %v5627 = vld [vmem:[%s4154 + $0x2a2] sm:$0xff]
    %v5628 = vld [vmem:[%s4154 + $0x2aa] sm:$0xff]
    %v5629 = vld [vmem:[%s4154 + $0x2ba] sm:$0xff]
    %v5630 = vld [vmem:[%s4154 + $0x2c2] sm:$0xff]
    %v5631 = vld [vmem:[%s4154 + $0x2d2] sm:$0xff]
    %v5632 = vld [vmem:[%s4154 + $0x2da] sm:$0xff]
    %v5633 = vld [vmem:[%s4154 + $0x2ea] sm:$0xff]
    %v5634 = vld [vmem:[%s4154 + $0x2f2] sm:$0xff]
    %v5635 = vld [vmem:[%s4154 + $0x302] sm:$0xff]
    %v5636 = vld [vmem:[%s4154 + $0x30a] sm:$0xff]
    %v5637 = vld [vmem:[%s4154 + $0x31a] sm:$0xff]
    %v5638 = vld [vmem:[%s4154 + $0x322] sm:$0xff]
    %s5639 = scalar_lea.vmem %s1, 256
    %v5640 = vld [vmem:[%s5639] sm:$0xff]
    %v5641 = vld [vmem:[%s5639 + $0x8] sm:$0xff]
    %v5642 = vld [vmem:[%s5639 + $0x10] sm:$0xff]
    %v5643 = vld [vmem:[%s5639 + $0x18] sm:$0xff]
    %v5645 = vsel %vm158, %v5575, 0
    %v5648 = vsel %vm158, %v5576, 0
    %v5651 = vsel %vm158, %v5577, 0
    %v5654 = vsel %vm158, %v5578, 0
    %v5657 = vsel %vm158, %v5579, 0
    %v5660 = vsel %vm158, %v5580, 0
    %v5663 = vsel %vm158, %v5581, 0
    %v5666 = vsel %vm158, %v5582, 0
    %v5669 = vsel %vm158, %v5583, 0
    %v5672 = vsel %vm158, %v5584, 0
    %v5675 = vsel %vm158, %v5585, 0
    %v5678 = vsel %vm158, %v5586, 0
    %v5681 = vsel %vm158, %v5587, 0
    %v5684 = vsel %vm158, %v5588, 0
    %v5687 = vsel %vm158, %v5589, 0
    %v5690 = vsel %vm158, %v5590, 0
    %v5693 = vsel %vm158, %v5591, 0
    %v5696 = vsel %vm158, %v5592, 0
    %v5699 = vsel %vm158, %v5593, 0
    %v5702 = vsel %vm158, %v5594, 0
    %v5705 = vsel %vm158, %v5595, 0
    %v5708 = vsel %vm158, %v5596, 0
    %v5711 = vsel %vm158, %v5597, 0
    %v5714 = vsel %vm158, %v5598, 0
    %v5717 = vsel %vm158, %v5599, 0
    %v5720 = vsel %vm158, %v5600, 0
    %v5723 = vsel %vm158, %v5601, 0
    %v5726 = vsel %vm158, %v5602, 0
    %v5729 = vsel %vm158, %v5603, 0
    %v5732 = vsel %vm158, %v5604, 0
    %v5735 = vsel %vm158, %v5605, 0
    %v5738 = vsel %vm158, %v5606, 0
    %v5741 = vsel %vm158, %v5607, 0
    %v5744 = vsel %vm158, %v5608, 0
    %v5747 = vsel %vm158, %v5609, 0
    %v5750 = vsel %vm158, %v5610, 0
    %v5753 = vsel %vm158, %v5611, 0
    %v5756 = vsel %vm158, %v5612, 0
    %v5759 = vsel %vm158, %v5613, 0
    %v5762 = vsel %vm158, %v5614, 0
    %v5765 = vsel %vm158, %v5615, 0
    %v5768 = vsel %vm158, %v5616, 0
    %v5771 = vsel %vm158, %v5617, 0
    %v5774 = vsel %vm158, %v5618, 0
    %v5777 = vsel %vm158, %v5619, 0
    %v5780 = vsel %vm158, %v5620, 0
    %v5783 = vsel %vm158, %v5621, 0
    %v5786 = vsel %vm158, %v5622, 0
    %v5789 = vsel %vm158, %v5623, 0
    %v5792 = vsel %vm158, %v5624, 0
    %v5795 = vsel %vm158, %v5625, 0
    %v5798 = vsel %vm158, %v5626, 0
    %v5801 = vsel %vm158, %v5627, 0
    %v5804 = vsel %vm158, %v5628, 0
    %v5807 = vsel %vm158, %v5629, 0
    %v5810 = vsel %vm158, %v5630, 0
    %v5813 = vsel %vm158, %v5631, 0
    %v5816 = vsel %vm158, %v5632, 0
    %v5819 = vsel %vm158, %v5633, 0
    %v5822 = vsel %vm158, %v5634, 0
    %v5825 = vsel %vm158, %v5635, 0
    %v5828 = vsel %vm158, %v5636, 0
    %v5831 = vsel %vm158, %v5637, 0
    %v5834 = vsel %vm158, %v5638, 0
    %5836 = vmatprep.subr.mxu0 0.0
    %5837 = vmatpush1.msra.mxu0 0.0
    %5838 = vmatprep.subr.mxu0 0.0
    %5839 = vmatpush1.msra.mxu0 0.0
    %5840 = vmatprep.subr.mxu0 0.0
    %5841 = vmatpush1.msra.mxu0 0.0
    %5842 = vmatprep.subr.mxu0 0.0
    %5843 = vmatpush1.msra.mxu0 0.0
    %5844 = vmatprep.subr.mxu0 0.0
    %5845 = vmatpush1.msra.mxu0 0.0
    %5846 = vmatprep.subr.mxu0 0.0
    %5847 = vmatpush1.msra.mxu0 0.0
    %5848 = vmatprep.subr.mxu0 0.0
    %5849 = vmatpush1.msra.mxu0 0.0
    %5850 = vmatprep.subr.mxu0 0.0
    %5851 = vmatpush1.msra.mxu0 0.0
    %5852 = vmatprep.subr.mxu0 0.0
    %5853 = vmatpush1.msra.mxu0 0.0
    %5854 = vmatprep.subr.mxu0 0.0
    %5855 = vmatpush1.msra.mxu0 0.0
    %5856 = vmatprep.subr.mxu0 0.0
    %5857 = vmatpush1.msra.mxu0 0.0
    %5858 = vmatprep.subr.mxu0 0.0
    %5859 = vmatpush1.msra.mxu0 0.0
    %5860 = vmatprep.subr.mxu0 0.0
    %5861 = vmatpush1.msra.mxu0 %v5643
    %5862 = vmatprep.subr.mxu0 0.0
    %5863 = vmatpush1.msra.mxu0 %v5642
    %5864 = vmatprep.subr.mxu0 0.0
    %5865 = vmatpush1.msra.mxu0 %v5641
    %5866 = vmatprep.subr.mxu0 0.0
    %5867 = vmatpush1.msra.mxu0 %v5640
    %5868 = vmatprep.subr.mxu0 0.0
    %5869 = vmatpush2.msra.mxu0 0.0
    %5870 = vmatprep.subr.mxu0 0.0
    %5871 = vmatpush2.msra.mxu0 0.0
    %5872 = vmatprep.subr.mxu0 0.0
    %5873 = vmatpush2.msra.mxu0 0.0
    %5874 = vmatprep.subr.mxu0 0.0
    %5875 = vmatpush2.msra.mxu0 0.0
    %5876 = vmatprep.subr.mxu0 0.0
    %5877 = vmatpush2.msra.mxu0 0.0
    %5878 = vmatprep.subr.mxu0 0.0
    %5879 = vmatpush2.msra.mxu0 0.0
    %5880 = vmatprep.subr.mxu0 0.0
    %5881 = vmatpush2.msra.mxu0 0.0
    %5882 = vmatprep.subr.mxu0 0.0
    %5883 = vmatpush2.msra.mxu0 0.0
    %5884 = vmatprep.subr.mxu0 0.0
    %5885 = vmatpush2.msra.mxu0 0.0
    %5886 = vmatprep.subr.mxu0 0.0
    %5887 = vmatpush2.msra.mxu0 0.0
    %5888 = vmatprep.subr.mxu0 0.0
    %5889 = vmatpush2.msra.mxu0 0.0
    %5890 = vmatprep.subr.mxu0 0.0
    %5891 = vmatpush2.msra.mxu0 0.0
    %5892 = vmatprep.subr.mxu0 0.0
    %5893 = vmatpush2.msra.mxu0 0.0
    %5894 = vmatprep.subr.mxu0 0.0
    %5895 = vmatpush2.msra.mxu0 0.0
    %5896 = vmatprep.subr.mxu0 0.0
    %5897 = vmatpush2.msra.mxu0 0.0
    %5898 = vmatprep.subr.mxu0 0.0
    %5899 = vmatpush2.msra.mxu0 0.0
    %5900 = vmatprep.mubr.f32.mxu0 0.0
    %5901 = vmatmul.mubr.f32.gmra.mxu0 %v5645
    %v5902 = vpop.f32.mrf.mxu0
    %v5903 = vadd.f32 0.0, %v5902
    %v5904 = vpop.f32.mrf.mxu0
    %5905 = vmatprep.mubr.f32.mxu0 0.0
    %5906 = vmatmul.mubr.f32.gmra.mxu0 %v5648
    %v5907 = vpop.f32.mrf.mxu0
    %v5908 = vadd.f32 0.0, %v5907
    %v5909 = vpop.f32.mrf.mxu0
    %5910 = vmatprep.mubr.f32.mxu0 0.0
    %5911 = vmatmul.mubr.f32.gmra.mxu0 %v5651
    %v5912 = vpop.f32.mrf.mxu0
    %v5913 = vadd.f32 0.0, %v5912
    %v5914 = vpop.f32.mrf.mxu0
    %5915 = vmatprep.mubr.f32.mxu0 0.0
    %5916 = vmatmul.mubr.f32.gmra.mxu0 %v5654
    %v5917 = vpop.f32.mrf.mxu0
    %v5918 = vadd.f32 0.0, %v5917
    %v5919 = vpop.f32.mrf.mxu0
    %5920 = vmatprep.mubr.f32.mxu0 0.0
    %5921 = vmatmul.mubr.f32.gmra.mxu0 %v5657
    %v5922 = vpop.f32.mrf.mxu0
    %v5923 = vadd.f32 0.0, %v5922
    %v5924 = vpop.f32.mrf.mxu0
    %5925 = vmatprep.mubr.f32.mxu0 0.0
    %5926 = vmatmul.mubr.f32.gmra.mxu0 %v5660
    %v5927 = vpop.f32.mrf.mxu0
    %v5928 = vadd.f32 0.0, %v5927
    %v5929 = vpop.f32.mrf.mxu0
    %5930 = vmatprep.mubr.f32.mxu0 0.0
    %5931 = vmatmul.mubr.f32.gmra.mxu0 %v5663
    %v5932 = vpop.f32.mrf.mxu0
    %v5933 = vadd.f32 0.0, %v5932
    %v5934 = vpop.f32.mrf.mxu0
    %5935 = vmatprep.mubr.f32.mxu0 0.0
    %5936 = vmatmul.mubr.f32.gmra.mxu0 %v5666
    %v5937 = vpop.f32.mrf.mxu0
    %v5938 = vadd.f32 0.0, %v5937
    %v5939 = vpop.f32.mrf.mxu0
    %5940 = vmatprep.mubr.f32.mxu0 0.0
    %5941 = vmatmul.mubr.f32.gmra.mxu0 %v5669
    %v5942 = vpop.f32.mrf.mxu0
    %v5943 = vadd.f32 0.0, %v5942
    %v5944 = vpop.f32.mrf.mxu0
    %5945 = vmatprep.mubr.f32.mxu0 0.0
    %5946 = vmatmul.mubr.f32.gmra.mxu0 %v5672
    %v5947 = vpop.f32.mrf.mxu0
    %v5948 = vadd.f32 0.0, %v5947
    %v5949 = vpop.f32.mrf.mxu0
    %5950 = vmatprep.mubr.f32.mxu0 0.0
    %5951 = vmatmul.mubr.f32.gmra.mxu0 %v5675
    %v5952 = vpop.f32.mrf.mxu0
    %v5953 = vadd.f32 0.0, %v5952
    %v5954 = vpop.f32.mrf.mxu0
    %5955 = vmatprep.mubr.f32.mxu0 0.0
    %5956 = vmatmul.mubr.f32.gmra.mxu0 %v5678
    %v5957 = vpop.f32.mrf.mxu0
    %v5958 = vadd.f32 0.0, %v5957
    %v5959 = vpop.f32.mrf.mxu0
    %5960 = vmatprep.mubr.f32.mxu0 0.0
    %5961 = vmatmul.mubr.f32.gmra.mxu0 %v5681
    %v5962 = vpop.f32.mrf.mxu0
    %v5963 = vadd.f32 0.0, %v5962
    %v5964 = vpop.f32.mrf.mxu0
    %5965 = vmatprep.mubr.f32.mxu0 0.0
    %5966 = vmatmul.mubr.f32.gmra.mxu0 %v5684
    %v5967 = vpop.f32.mrf.mxu0
    %v5968 = vadd.f32 0.0, %v5967
    %v5969 = vpop.f32.mrf.mxu0
    %5970 = vmatprep.mubr.f32.mxu0 0.0
    %5971 = vmatmul.mubr.f32.gmra.mxu0 %v5687
    %v5972 = vpop.f32.mrf.mxu0
    %v5973 = vadd.f32 0.0, %v5972
    %v5974 = vpop.f32.mrf.mxu0
    %5975 = vmatprep.mubr.f32.mxu0 0.0
    %5976 = vmatmul.mubr.f32.gmra.mxu0 %v5690
    %v5977 = vpop.f32.mrf.mxu0
    %v5978 = vadd.f32 0.0, %v5977
    %v5979 = vpop.f32.mrf.mxu0
    %5980 = vmatprep.mubr.f32.mxu0 0.0
    %5981 = vmatmul.mubr.f32.gmra.mxu0 %v5693
    %v5982 = vpop.f32.mrf.mxu0
    %v5983 = vadd.f32 0.0, %v5982
    %v5984 = vpop.f32.mrf.mxu0
    %5985 = vmatprep.mubr.f32.mxu0 0.0
    %5986 = vmatmul.mubr.f32.gmra.mxu0 %v5696
    %v5987 = vpop.f32.mrf.mxu0
    %v5988 = vadd.f32 0.0, %v5987
    %v5989 = vpop.f32.mrf.mxu0
    %5990 = vmatprep.mubr.f32.mxu0 0.0
    %5991 = vmatmul.mubr.f32.gmra.mxu0 %v5699
    %v5992 = vpop.f32.mrf.mxu0
    %v5993 = vadd.f32 0.0, %v5992
    %v5994 = vpop.f32.mrf.mxu0
    %5995 = vmatprep.mubr.f32.mxu0 0.0
    %5996 = vmatmul.mubr.f32.gmra.mxu0 %v5702
    %v5997 = vpop.f32.mrf.mxu0
    %v5998 = vadd.f32 0.0, %v5997
    %v5999 = vpop.f32.mrf.mxu0
    %6000 = vmatprep.mubr.f32.mxu0 0.0
    %6001 = vmatmul.mubr.f32.gmra.mxu0 %v5705
    %v6002 = vpop.f32.mrf.mxu0
    %v6003 = vadd.f32 0.0, %v6002
    %v6004 = vpop.f32.mrf.mxu0
    %6005 = vmatprep.mubr.f32.mxu0 0.0
    %6006 = vmatmul.mubr.f32.gmra.mxu0 %v5708
    %v6007 = vpop.f32.mrf.mxu0
    %v6008 = vadd.f32 0.0, %v6007
    %v6009 = vpop.f32.mrf.mxu0
    %6010 = vmatprep.mubr.f32.mxu0 0.0
    %6011 = vmatmul.mubr.f32.gmra.mxu0 %v5711
    %v6012 = vpop.f32.mrf.mxu0
    %v6013 = vadd.f32 0.0, %v6012
    %v6014 = vpop.f32.mrf.mxu0
    %6015 = vmatprep.mubr.f32.mxu0 0.0
    %6016 = vmatmul.mubr.f32.gmra.mxu0 %v5714
    %v6017 = vpop.f32.mrf.mxu0
    %v6018 = vadd.f32 0.0, %v6017
    %v6019 = vpop.f32.mrf.mxu0
    %6020 = vmatprep.mubr.f32.mxu0 0.0
    %6021 = vmatmul.mubr.f32.gmra.mxu0 %v5717
    %v6022 = vpop.f32.mrf.mxu0
    %v6023 = vadd.f32 0.0, %v6022
    %v6024 = vpop.f32.mrf.mxu0
    %6025 = vmatprep.mubr.f32.mxu0 0.0
    %6026 = vmatmul.mubr.f32.gmra.mxu0 %v5720
    %v6027 = vpop.f32.mrf.mxu0
    %v6028 = vadd.f32 0.0, %v6027
    %v6029 = vpop.f32.mrf.mxu0
    %6030 = vmatprep.mubr.f32.mxu0 0.0
    %6031 = vmatmul.mubr.f32.gmra.mxu0 %v5723
    %v6032 = vpop.f32.mrf.mxu0
    %v6033 = vadd.f32 0.0, %v6032
    %v6034 = vpop.f32.mrf.mxu0
    %6035 = vmatprep.mubr.f32.mxu0 0.0
    %6036 = vmatmul.mubr.f32.gmra.mxu0 %v5726
    %v6037 = vpop.f32.mrf.mxu0
    %v6038 = vadd.f32 0.0, %v6037
    %v6039 = vpop.f32.mrf.mxu0
    %6040 = vmatprep.mubr.f32.mxu0 0.0
    %6041 = vmatmul.mubr.f32.gmra.mxu0 %v5729
    %v6042 = vpop.f32.mrf.mxu0
    %v6043 = vadd.f32 0.0, %v6042
    %v6044 = vpop.f32.mrf.mxu0
    %6045 = vmatprep.mubr.f32.mxu0 0.0
    %6046 = vmatmul.mubr.f32.gmra.mxu0 %v5732
    %v6047 = vpop.f32.mrf.mxu0
    %v6048 = vadd.f32 0.0, %v6047
    %v6049 = vpop.f32.mrf.mxu0
    %6050 = vmatprep.mubr.f32.mxu0 0.0
    %6051 = vmatmul.mubr.f32.gmra.mxu0 %v5735
    %v6052 = vpop.f32.mrf.mxu0
    %v6053 = vadd.f32 0.0, %v6052
    %v6054 = vpop.f32.mrf.mxu0
    %6055 = vmatprep.mubr.f32.mxu0 0.0
    %6056 = vmatmul.mubr.f32.gmra.mxu0 %v5738
    %v6057 = vpop.f32.mrf.mxu0
    %v6058 = vadd.f32 0.0, %v6057
    %v6059 = vpop.f32.mrf.mxu0
    %6060 = vmatprep.mubr.f32.mxu0 0.0
    %6061 = vmatmul.mubr.f32.gmra.mxu0 %v5741
    %v6062 = vpop.f32.mrf.mxu0
    %v6063 = vadd.f32 0.0, %v6062
    %v6064 = vpop.f32.mrf.mxu0
    %6065 = vmatprep.mubr.f32.mxu0 0.0
    %6066 = vmatmul.mubr.f32.gmra.mxu0 %v5744
    %v6067 = vpop.f32.mrf.mxu0
    %v6068 = vadd.f32 0.0, %v6067
    %v6069 = vpop.f32.mrf.mxu0
    %6070 = vmatprep.mubr.f32.mxu0 0.0
    %6071 = vmatmul.mubr.f32.gmra.mxu0 %v5747
    %v6072 = vpop.f32.mrf.mxu0
    %v6073 = vadd.f32 0.0, %v6072
    %v6074 = vpop.f32.mrf.mxu0
    %6075 = vmatprep.mubr.f32.mxu0 0.0
    %6076 = vmatmul.mubr.f32.gmra.mxu0 %v5750
    %v6077 = vpop.f32.mrf.mxu0
    %v6078 = vadd.f32 0.0, %v6077
    %v6079 = vpop.f32.mrf.mxu0
    %6080 = vmatprep.mubr.f32.mxu0 0.0
    %6081 = vmatmul.mubr.f32.gmra.mxu0 %v5753
    %v6082 = vpop.f32.mrf.mxu0
    %v6083 = vadd.f32 0.0, %v6082
    %v6084 = vpop.f32.mrf.mxu0
    %6085 = vmatprep.mubr.f32.mxu0 0.0
    %6086 = vmatmul.mubr.f32.gmra.mxu0 %v5756
    %v6087 = vpop.f32.mrf.mxu0
    %v6088 = vadd.f32 0.0, %v6087
    %v6089 = vpop.f32.mrf.mxu0
    %6090 = vmatprep.mubr.f32.mxu0 0.0
    %6091 = vmatmul.mubr.f32.gmra.mxu0 %v5759
    %v6092 = vpop.f32.mrf.mxu0
    %v6093 = vadd.f32 0.0, %v6092
    %v6094 = vpop.f32.mrf.mxu0
    %6095 = vmatprep.mubr.f32.mxu0 0.0
    %6096 = vmatmul.mubr.f32.gmra.mxu0 %v5762
    %v6097 = vpop.f32.mrf.mxu0
    %v6098 = vadd.f32 0.0, %v6097
    %v6099 = vpop.f32.mrf.mxu0
    %6100 = vmatprep.mubr.f32.mxu0 0.0
    %6101 = vmatmul.mubr.f32.gmra.mxu0 %v5765
    %v6102 = vpop.f32.mrf.mxu0
    %v6103 = vadd.f32 0.0, %v6102
    %v6104 = vpop.f32.mrf.mxu0
    %6105 = vmatprep.mubr.f32.mxu0 0.0
    %6106 = vmatmul.mubr.f32.gmra.mxu0 %v5768
    %v6107 = vpop.f32.mrf.mxu0
    %v6108 = vadd.f32 0.0, %v6107
    %v6109 = vpop.f32.mrf.mxu0
    %6110 = vmatprep.mubr.f32.mxu0 0.0
    %6111 = vmatmul.mubr.f32.gmra.mxu0 %v5771
    %v6112 = vpop.f32.mrf.mxu0
    %v6113 = vadd.f32 0.0, %v6112
    %v6114 = vpop.f32.mrf.mxu0
    %6115 = vmatprep.mubr.f32.mxu0 0.0
    %6116 = vmatmul.mubr.f32.gmra.mxu0 %v5774
    %v6117 = vpop.f32.mrf.mxu0
    %v6118 = vadd.f32 0.0, %v6117
    %v6119 = vpop.f32.mrf.mxu0
    %6120 = vmatprep.mubr.f32.mxu0 0.0
    %6121 = vmatmul.mubr.f32.gmra.mxu0 %v5777
    %v6122 = vpop.f32.mrf.mxu0
    %v6123 = vadd.f32 0.0, %v6122
    %v6124 = vpop.f32.mrf.mxu0
    %6125 = vmatprep.mubr.f32.mxu0 0.0
    %6126 = vmatmul.mubr.f32.gmra.mxu0 %v5780
    %v6127 = vpop.f32.mrf.mxu0
    %v6128 = vadd.f32 0.0, %v6127
    %v6129 = vpop.f32.mrf.mxu0
    %6130 = vmatprep.mubr.f32.mxu0 0.0
    %6131 = vmatmul.mubr.f32.gmra.mxu0 %v5783
    %v6132 = vpop.f32.mrf.mxu0
    %v6133 = vadd.f32 0.0, %v6132
    %v6134 = vpop.f32.mrf.mxu0
    %6135 = vmatprep.mubr.f32.mxu0 0.0
    %6136 = vmatmul.mubr.f32.gmra.mxu0 %v5786
    %v6137 = vpop.f32.mrf.mxu0
    %v6138 = vadd.f32 0.0, %v6137
    %v6139 = vpop.f32.mrf.mxu0
    %6140 = vmatprep.mubr.f32.mxu0 0.0
    %6141 = vmatmul.mubr.f32.gmra.mxu0 %v5789
    %v6142 = vpop.f32.mrf.mxu0
    %v6143 = vadd.f32 0.0, %v6142
    %v6144 = vpop.f32.mrf.mxu0
    %6145 = vmatprep.mubr.f32.mxu0 0.0
    %6146 = vmatmul.mubr.f32.gmra.mxu0 %v5792
    %v6147 = vpop.f32.mrf.mxu0
    %v6148 = vadd.f32 0.0, %v6147
    %v6149 = vpop.f32.mrf.mxu0
    %6150 = vmatprep.mubr.f32.mxu0 0.0
    %6151 = vmatmul.mubr.f32.gmra.mxu0 %v5795
    %v6152 = vpop.f32.mrf.mxu0
    %v6153 = vadd.f32 0.0, %v6152
    %v6154 = vpop.f32.mrf.mxu0
    %6155 = vmatprep.mubr.f32.mxu0 0.0
    %6156 = vmatmul.mubr.f32.gmra.mxu0 %v5798
    %v6157 = vpop.f32.mrf.mxu0
    %v6158 = vadd.f32 0.0, %v6157
    %v6159 = vpop.f32.mrf.mxu0
    %6160 = vmatprep.mubr.f32.mxu0 0.0
    %6161 = vmatmul.mubr.f32.gmra.mxu0 %v5801
    %v6162 = vpop.f32.mrf.mxu0
    %v6163 = vadd.f32 0.0, %v6162
    %v6164 = vpop.f32.mrf.mxu0
    %6165 = vmatprep.mubr.f32.mxu0 0.0
    %6166 = vmatmul.mubr.f32.gmra.mxu0 %v5804
    %v6167 = vpop.f32.mrf.mxu0
    %v6168 = vadd.f32 0.0, %v6167
    %v6169 = vpop.f32.mrf.mxu0
    %6170 = vmatprep.mubr.f32.mxu0 0.0
    %6171 = vmatmul.mubr.f32.gmra.mxu0 %v5807
    %v6172 = vpop.f32.mrf.mxu0
    %v6173 = vadd.f32 0.0, %v6172
    %v6174 = vpop.f32.mrf.mxu0
    %6175 = vmatprep.mubr.f32.mxu0 0.0
    %6176 = vmatmul.mubr.f32.gmra.mxu0 %v5810
    %v6177 = vpop.f32.mrf.mxu0
    %v6178 = vadd.f32 0.0, %v6177
    %v6179 = vpop.f32.mrf.mxu0
    %6180 = vmatprep.mubr.f32.mxu0 0.0
    %6181 = vmatmul.mubr.f32.gmra.mxu0 %v5813
    %v6182 = vpop.f32.mrf.mxu0
    %v6183 = vadd.f32 0.0, %v6182
    %v6184 = vpop.f32.mrf.mxu0
    %6185 = vmatprep.mubr.f32.mxu0 0.0
    %6186 = vmatmul.mubr.f32.gmra.mxu0 %v5816
    %v6187 = vpop.f32.mrf.mxu0
    %v6188 = vadd.f32 0.0, %v6187
    %v6189 = vpop.f32.mrf.mxu0
    %6190 = vmatprep.mubr.f32.mxu0 0.0
    %6191 = vmatmul.mubr.f32.gmra.mxu0 %v5819
    %v6192 = vpop.f32.mrf.mxu0
    %v6193 = vadd.f32 0.0, %v6192
    %v6194 = vpop.f32.mrf.mxu0
    %6195 = vmatprep.mubr.f32.mxu0 0.0
    %6196 = vmatmul.mubr.f32.gmra.mxu0 %v5822
    %v6197 = vpop.f32.mrf.mxu0
    %v6198 = vadd.f32 0.0, %v6197
    %v6199 = vpop.f32.mrf.mxu0
    %6200 = vmatprep.mubr.f32.mxu0 0.0
    %6201 = vmatmul.mubr.f32.gmra.mxu0 %v5825
    %v6202 = vpop.f32.mrf.mxu0
    %v6203 = vadd.f32 0.0, %v6202
    %v6204 = vpop.f32.mrf.mxu0
    %6205 = vmatprep.mubr.f32.mxu0 0.0
    %6206 = vmatmul.mubr.f32.gmra.mxu0 %v5828
    %v6207 = vpop.f32.mrf.mxu0
    %v6208 = vadd.f32 0.0, %v6207
    %v6209 = vpop.f32.mrf.mxu0
    %6210 = vmatprep.mubr.f32.mxu0 0.0
    %6211 = vmatmul.mubr.f32.gmra.mxu0 %v5831
    %v6212 = vpop.f32.mrf.mxu0
    %v6213 = vadd.f32 0.0, %v6212
    %v6214 = vpop.f32.mrf.mxu0
    %6215 = vmatprep.mubr.f32.mxu0 0.0
    %6216 = vmatmul.mubr.f32.gmra.mxu0 %v5834
    %v6217 = vpop.f32.mrf.mxu0
    %v6218 = vadd.f32 0.0, %v6217
    %v6219 = vpop.f32.mrf.mxu0
    %6220 = vdwg.mxu0
    %v6221 = vadd.f32 %v5511, %v5903
    %v6222 = vadd.f32 %v5512, %v5908
    %v6223 = vadd.f32 %v5513, %v5913
    %v6224 = vadd.f32 %v5514, %v5918
    %v6225 = vadd.f32 %v5515, %v5923
    %v6226 = vadd.f32 %v5516, %v5928
    %v6227 = vadd.f32 %v5517, %v5933
    %v6228 = vadd.f32 %v5518, %v5938
    %v6229 = vadd.f32 %v5519, %v5943
    %v6230 = vadd.f32 %v5520, %v5948
    %v6231 = vadd.f32 %v5521, %v5953
    %v6232 = vadd.f32 %v5522, %v5958
    %v6233 = vadd.f32 %v5523, %v5963
    %v6234 = vadd.f32 %v5524, %v5968
    %v6235 = vadd.f32 %v5525, %v5973
    %v6236 = vadd.f32 %v5526, %v5978
    %v6237 = vadd.f32 %v5527, %v5983
    %v6238 = vadd.f32 %v5528, %v5988
    %v6239 = vadd.f32 %v5529, %v5993
    %v6240 = vadd.f32 %v5530, %v5998
    %v6241 = vadd.f32 %v5531, %v6003
    %v6242 = vadd.f32 %v5532, %v6008
    %v6243 = vadd.f32 %v5533, %v6013
    %v6244 = vadd.f32 %v5534, %v6018
    %v6245 = vadd.f32 %v5535, %v6023
    %v6246 = vadd.f32 %v5536, %v6028
    %v6247 = vadd.f32 %v5537, %v6033
    %v6248 = vadd.f32 %v5538, %v6038
    %v6249 = vadd.f32 %v5539, %v6043
    %v6250 = vadd.f32 %v5540, %v6048
    %v6251 = vadd.f32 %v5541, %v6053
    %v6252 = vadd.f32 %v5542, %v6058
    %v6253 = vadd.f32 %v5543, %v6063
    %v6254 = vadd.f32 %v5544, %v6068
    %v6255 = vadd.f32 %v5545, %v6073
    %v6256 = vadd.f32 %v5546, %v6078
    %v6257 = vadd.f32 %v5547, %v6083
    %v6258 = vadd.f32 %v5548, %v6088
    %v6259 = vadd.f32 %v5549, %v6093
    %v6260 = vadd.f32 %v5550, %v6098
    %v6261 = vadd.f32 %v5551, %v6103
    %v6262 = vadd.f32 %v5552, %v6108
    %v6263 = vadd.f32 %v5553, %v6113
    %v6264 = vadd.f32 %v5554, %v6118
    %v6265 = vadd.f32 %v5555, %v6123
    %v6266 = vadd.f32 %v5556, %v6128
    %v6267 = vadd.f32 %v5557, %v6133
    %v6268 = vadd.f32 %v5558, %v6138
    %v6269 = vadd.f32 %v5559, %v6143
    %v6270 = vadd.f32 %v5560, %v6148
    %v6271 = vadd.f32 %v5561, %v6153
    %v6272 = vadd.f32 %v5562, %v6158
    %v6273 = vadd.f32 %v5563, %v6163
    %v6274 = vadd.f32 %v5564, %v6168
    %v6275 = vadd.f32 %v5565, %v6173
    %v6276 = vadd.f32 %v5566, %v6178
    %v6277 = vadd.f32 %v5567, %v6183
    %v6278 = vadd.f32 %v5568, %v6188
    %v6279 = vadd.f32 %v5569, %v6193
    %v6280 = vadd.f32 %v5570, %v6198
    %v6281 = vadd.f32 %v5571, %v6203
    %v6282 = vadd.f32 %v5572, %v6208
    %v6283 = vadd.f32 %v5573, %v6213
    %v6284 = vadd.f32 %v5574, %v6218
    %v6285 = vld [vmem:[%s2] sm:$0x1]
    %v6287 = vlaneseq
    %v6288 = vshrl.u32 %v6287, 7
    %v6289 = vsub.s32 0, %v6288
    %v6290 = vrot.slane %v6285, %v6289
    %v6292 = vadd.f32 %v6221, %v6290
    %v6293 = vadd.f32 %v6222, %v6290
    %v6294 = vadd.f32 %v6223, %v6290
    %v6295 = vadd.f32 %v6224, %v6290
    %v6296 = vadd.f32 %v6225, %v6290
    %v6297 = vadd.f32 %v6226, %v6290
    %v6298 = vadd.f32 %v6227, %v6290
    %v6299 = vadd.f32 %v6228, %v6290
    %v6300 = vadd.f32 %v6229, %v6290
    %v6301 = vadd.f32 %v6230, %v6290
    %v6302 = vadd.f32 %v6231, %v6290
    %v6303 = vadd.f32 %v6232, %v6290
    %v6304 = vadd.f32 %v6233, %v6290
    %v6305 = vadd.f32 %v6234, %v6290
    %v6306 = vadd.f32 %v6235, %v6290
    %v6307 = vadd.f32 %v6236, %v6290
    %v6308 = vadd.f32 %v6237, %v6290
    %v6309 = vadd.f32 %v6238, %v6290
    %v6310 = vadd.f32 %v6239, %v6290
    %v6311 = vadd.f32 %v6240, %v6290
    %v6312 = vadd.f32 %v6241, %v6290
    %v6313 = vadd.f32 %v6242, %v6290
    %v6314 = vadd.f32 %v6243, %v6290
    %v6315 = vadd.f32 %v6244, %v6290
    %v6316 = vadd.f32 %v6245, %v6290
    %v6317 = vadd.f32 %v6246, %v6290
    %v6318 = vadd.f32 %v6247, %v6290
    %v6319 = vadd.f32 %v6248, %v6290
    %v6320 = vadd.f32 %v6249, %v6290
    %v6321 = vadd.f32 %v6250, %v6290
    %v6322 = vadd.f32 %v6251, %v6290
    %v6323 = vadd.f32 %v6252, %v6290
    %v6324 = vadd.f32 %v6253, %v6290
    %v6325 = vadd.f32 %v6254, %v6290
    %v6326 = vadd.f32 %v6255, %v6290
    %v6327 = vadd.f32 %v6256, %v6290
    %v6328 = vadd.f32 %v6257, %v6290
    %v6329 = vadd.f32 %v6258, %v6290
    %v6330 = vadd.f32 %v6259, %v6290
    %v6331 = vadd.f32 %v6260, %v6290
    %v6332 = vadd.f32 %v6261, %v6290
    %v6333 = vadd.f32 %v6262, %v6290
    %v6334 = vadd.f32 %v6263, %v6290
    %v6335 = vadd.f32 %v6264, %v6290
    %v6336 = vadd.f32 %v6265, %v6290
    %v6337 = vadd.f32 %v6266, %v6290
    %v6338 = vadd.f32 %v6267, %v6290
    %v6339 = vadd.f32 %v6268, %v6290
    %v6340 = vadd.f32 %v6269, %v6290
    %v6341 = vadd.f32 %v6270, %v6290
    %v6342 = vadd.f32 %v6271, %v6290
    %v6343 = vadd.f32 %v6272, %v6290
    %v6344 = vadd.f32 %v6273, %v6290
    %v6345 = vadd.f32 %v6274, %v6290
    %v6346 = vadd.f32 %v6275, %v6290
    %v6347 = vadd.f32 %v6276, %v6290
    %v6348 = vadd.f32 %v6277, %v6290
    %v6349 = vadd.f32 %v6278, %v6290
    %v6350 = vadd.f32 %v6279, %v6290
    %v6351 = vadd.f32 %v6280, %v6290
    %v6352 = vadd.f32 %v6281, %v6290
    %v6353 = vadd.f32 %v6282, %v6290
    %v6354 = vadd.f32 %v6283, %v6290
    %v6355 = vadd.f32 %v6284, %v6290
    %v6356 = vmax.f32 %v6292, 0.0
    %v6357 = vmax.f32 %v6293, 0.0
    %v6358 = vmax.f32 %v6294, 0.0
    %v6359 = vmax.f32 %v6295, 0.0
    %v6360 = vmax.f32 %v6296, 0.0
    %v6361 = vmax.f32 %v6297, 0.0
    %v6362 = vmax.f32 %v6298, 0.0
    %v6363 = vmax.f32 %v6299, 0.0
    %v6364 = vmax.f32 %v6300, 0.0
    %v6365 = vmax.f32 %v6301, 0.0
    %v6366 = vmax.f32 %v6302, 0.0
    %v6367 = vmax.f32 %v6303, 0.0
    %v6368 = vmax.f32 %v6304, 0.0
    %v6369 = vmax.f32 %v6305, 0.0
    %v6370 = vmax.f32 %v6306, 0.0
    %v6371 = vmax.f32 %v6307, 0.0
    %v6372 = vmax.f32 %v6308, 0.0
    %v6373 = vmax.f32 %v6309, 0.0
    %v6374 = vmax.f32 %v6310, 0.0
    %v6375 = vmax.f32 %v6311, 0.0
    %v6376 = vmax.f32 %v6312, 0.0
    %v6377 = vmax.f32 %v6313, 0.0
    %v6378 = vmax.f32 %v6314, 0.0
    %v6379 = vmax.f32 %v6315, 0.0
    %v6380 = vmax.f32 %v6316, 0.0
    %v6381 = vmax.f32 %v6317, 0.0
    %v6382 = vmax.f32 %v6318, 0.0
    %v6383 = vmax.f32 %v6319, 0.0
    %v6384 = vmax.f32 %v6320, 0.0
    %v6385 = vmax.f32 %v6321, 0.0
    %v6386 = vmax.f32 %v6322, 0.0
    %v6387 = vmax.f32 %v6323, 0.0
    %v6388 = vmax.f32 %v6324, 0.0
    %v6389 = vmax.f32 %v6325, 0.0
    %v6390 = vmax.f32 %v6326, 0.0
    %v6391 = vmax.f32 %v6327, 0.0
    %v6392 = vmax.f32 %v6328, 0.0
    %v6393 = vmax.f32 %v6329, 0.0
    %v6394 = vmax.f32 %v6330, 0.0
    %v6395 = vmax.f32 %v6331, 0.0
    %v6396 = vmax.f32 %v6332, 0.0
    %v6397 = vmax.f32 %v6333, 0.0
    %v6398 = vmax.f32 %v6334, 0.0
    %v6399 = vmax.f32 %v6335, 0.0
    %v6400 = vmax.f32 %v6336, 0.0
    %v6401 = vmax.f32 %v6337, 0.0
    %v6402 = vmax.f32 %v6338, 0.0
    %v6403 = vmax.f32 %v6339, 0.0
    %v6404 = vmax.f32 %v6340, 0.0
    %v6405 = vmax.f32 %v6341, 0.0
    %v6406 = vmax.f32 %v6342, 0.0
    %v6407 = vmax.f32 %v6343, 0.0
    %v6408 = vmax.f32 %v6344, 0.0
    %v6409 = vmax.f32 %v6345, 0.0
    %v6410 = vmax.f32 %v6346, 0.0
    %v6411 = vmax.f32 %v6347, 0.0
    %v6412 = vmax.f32 %v6348, 0.0
    %v6413 = vmax.f32 %v6349, 0.0
    %v6414 = vmax.f32 %v6350, 0.0
    %v6415 = vmax.f32 %v6351, 0.0
    %v6416 = vmax.f32 %v6352, 0.0
    %v6417 = vmax.f32 %v6353, 0.0
    %v6418 = vmax.f32 %v6354, 0.0
    %v6419 = vmax.f32 %v6355, 0.0
    %6420 = vst.msk [vmem:[#allocation2] sm:$0xff] %vm158, 0.0
    %6421 = vst.msk [vmem:[#allocation2 + $0x8] sm:$0xff] %vm158, 0.0
    %vm6422 = vcmask 254976
    %6423 = vst.msk [vmem:[#allocation2 + $0x10] sm:$0x3] %vm6422, 0.0
    %6424 = vst.msk [vmem:[#allocation2 + $0x18] sm:$0xff] %vm158, 0.0
    %6425 = vst.msk [vmem:[#allocation2 + $0x20] sm:$0xff] %vm158, 0.0
    %6426 = vst.msk [vmem:[#allocation2 + $0x28] sm:$0x3] %vm6422, 0.0
    %6427 = vst.msk [vmem:[#allocation2 + $0x30] sm:$0xff] %vm158, 0.0
    %6428 = vst.msk [vmem:[#allocation2 + $0x38] sm:$0xff] %vm158, 0.0
    %6429 = vst.msk [vmem:[#allocation2 + $0x40] sm:$0x3] %vm6422, 0.0
    %6430 = vst.msk [vmem:[#allocation2 + $0x48] sm:$0xff] %vm158, 0.0
    %6431 = vst.msk [vmem:[#allocation2 + $0x50] sm:$0xff] %vm158, 0.0
    %6432 = vst.msk [vmem:[#allocation2 + $0x58] sm:$0x3] %vm6422, 0.0
    %6433 = vst.msk [vmem:[#allocation2 + $0x60] sm:$0xff] %vm158, 0.0
    %6434 = vst.msk [vmem:[#allocation2 + $0x68] sm:$0xff] %vm158, 0.0
    %6435 = vst.msk [vmem:[#allocation2 + $0x70] sm:$0x3] %vm6422, 0.0
    %6436 = vst.msk [vmem:[#allocation2 + $0x78] sm:$0xff] %vm158, 0.0
    %6437 = vst.msk [vmem:[#allocation2 + $0x80] sm:$0xff] %vm158, 0.0
    %6438 = vst.msk [vmem:[#allocation2 + $0x88] sm:$0x3] %vm6422, 0.0
    %6439 = vst.msk [vmem:[#allocation2 + $0x90] sm:$0xff] %vm158, 0.0
    %6440 = vst.msk [vmem:[#allocation2 + $0x98] sm:$0xff] %vm158, 0.0
    %6441 = vst.msk [vmem:[#allocation2 + $0xa0] sm:$0x3] %vm6422, 0.0
    %6442 = vst.msk [vmem:[#allocation2 + $0xa8] sm:$0xff] %vm158, 0.0
    %6443 = vst.msk [vmem:[#allocation2 + $0xb0] sm:$0xff] %vm158, 0.0
    %6444 = vst.msk [vmem:[#allocation2 + $0xb8] sm:$0x3] %vm6422, 0.0
    %6445 = vst.msk [vmem:[#allocation2 + $0xc0] sm:$0xff] %vm158, 0.0
    %6446 = vst.msk [vmem:[#allocation2 + $0xc8] sm:$0xff] %vm158, 0.0
    %6447 = vst.msk [vmem:[#allocation2 + $0xd0] sm:$0x3] %vm6422, 0.0
    %6448 = vst.msk [vmem:[#allocation2 + $0xd8] sm:$0xff] %vm158, 0.0
    %6449 = vst.msk [vmem:[#allocation2 + $0xe0] sm:$0xff] %vm158, 0.0
    %6450 = vst.msk [vmem:[#allocation2 + $0xe8] sm:$0x3] %vm6422, 0.0
    %6451 = vst.msk [vmem:[#allocation2 + $0xf0] sm:$0xff] %vm158, 0.0
    %6452 = vst.msk [vmem:[#allocation2 + $0xf8] sm:$0xff] %vm158, 0.0
    %6453 = vst.msk [vmem:[#allocation2 + $0x100] sm:$0x3] %vm6422, 0.0
    %6454 = vst.msk [vmem:[#allocation2 + $0x108] sm:$0xff] %vm158, 0.0
    %6455 = vst.msk [vmem:[#allocation2 + $0x110] sm:$0xff] %vm158, 0.0
    %6456 = vst.msk [vmem:[#allocation2 + $0x118] sm:$0x3] %vm6422, 0.0
    %6457 = vst.msk [vmem:[#allocation2 + $0x120] sm:$0xff] %vm158, 0.0
    %6458 = vst.msk [vmem:[#allocation2 + $0x128] sm:$0xff] %vm158, 0.0
    %6459 = vst.msk [vmem:[#allocation2 + $0x130] sm:$0x3] %vm6422, 0.0
    %6460 = vst.msk [vmem:[#allocation2 + $0x138] sm:$0xff] %vm158, 0.0
    %6461 = vst.msk [vmem:[#allocation2 + $0x140] sm:$0xff] %vm158, 0.0
    %6462 = vst.msk [vmem:[#allocation2 + $0x148] sm:$0x3] %vm6422, 0.0
    %6463 = vst.msk [vmem:[#allocation2 + $0x150] sm:$0xff] %vm158, 0.0
    %6464 = vst.msk [vmem:[#allocation2 + $0x158] sm:$0xff] %vm158, 0.0
    %6465 = vst.msk [vmem:[#allocation2 + $0x160] sm:$0x3] %vm6422, 0.0
    %6466 = vst.msk [vmem:[#allocation2 + $0x168] sm:$0xff] %vm158, 0.0
    %6467 = vst.msk [vmem:[#allocation2 + $0x170] sm:$0xff] %vm158, 0.0
    %6468 = vst.msk [vmem:[#allocation2 + $0x178] sm:$0x3] %vm6422, 0.0
    %6469 = vst.msk [vmem:[#allocation2 + $0x180] sm:$0xff] %vm158, 0.0
    %6470 = vst.msk [vmem:[#allocation2 + $0x188] sm:$0xff] %vm158, 0.0
    %6471 = vst.msk [vmem:[#allocation2 + $0x190] sm:$0x3] %vm6422, 0.0
    %6472 = vst.msk [vmem:[#allocation2 + $0x198] sm:$0xff] %vm158, 0.0
    %6473 = vst.msk [vmem:[#allocation2 + $0x1a0] sm:$0xff] %vm158, 0.0
    %6474 = vst.msk [vmem:[#allocation2 + $0x1a8] sm:$0x3] %vm6422, 0.0
    %6475 = vst.msk [vmem:[#allocation2 + $0x1b0] sm:$0xff] %vm158, 0.0
    %6476 = vst.msk [vmem:[#allocation2 + $0x1b8] sm:$0xff] %vm158, 0.0
    %6477 = vst.msk [vmem:[#allocation2 + $0x1c0] sm:$0x3] %vm6422, 0.0
    %6478 = vst.msk [vmem:[#allocation2 + $0x1c8] sm:$0xff] %vm158, 0.0
    %6479 = vst.msk [vmem:[#allocation2 + $0x1d0] sm:$0xff] %vm158, 0.0
    %6480 = vst.msk [vmem:[#allocation2 + $0x1d8] sm:$0x3] %vm6422, 0.0
    %6481 = vst.msk [vmem:[#allocation2 + $0x1e0] sm:$0xff] %vm158, 0.0
    %6482 = vst.msk [vmem:[#allocation2 + $0x1e8] sm:$0xff] %vm158, 0.0
    %6483 = vst.msk [vmem:[#allocation2 + $0x1f0] sm:$0x3] %vm6422, 0.0
    %6484 = vst.msk [vmem:[#allocation2 + $0x1f8] sm:$0xff] %vm158, 0.0
    %6485 = vst.msk [vmem:[#allocation2 + $0x200] sm:$0xff] %vm158, 0.0
    %6486 = vst.msk [vmem:[#allocation2 + $0x208] sm:$0x3] %vm6422, 0.0
    %6487 = vst.msk [vmem:[#allocation2 + $0x210] sm:$0xff] %vm158, 0.0
    %6488 = vst.msk [vmem:[#allocation2 + $0x218] sm:$0xff] %vm158, 0.0
    %6489 = vst.msk [vmem:[#allocation2 + $0x220] sm:$0x3] %vm6422, 0.0
    %6490 = vst.msk [vmem:[#allocation2 + $0x228] sm:$0xff] %vm158, 0.0
    %6491 = vst.msk [vmem:[#allocation2 + $0x230] sm:$0xff] %vm158, 0.0
    %6492 = vst.msk [vmem:[#allocation2 + $0x238] sm:$0x3] %vm6422, 0.0
    %6493 = vst.msk [vmem:[#allocation2 + $0x240] sm:$0xff] %vm158, 0.0
    %6494 = vst.msk [vmem:[#allocation2 + $0x248] sm:$0xff] %vm158, 0.0
    %6495 = vst.msk [vmem:[#allocation2 + $0x250] sm:$0x3] %vm6422, 0.0
    %6496 = vst.msk [vmem:[#allocation2 + $0x258] sm:$0xff] %vm158, 0.0
    %6497 = vst.msk [vmem:[#allocation2 + $0x260] sm:$0xff] %vm158, 0.0
    %6498 = vst.msk [vmem:[#allocation2 + $0x268] sm:$0x3] %vm6422, 0.0
    %6499 = vst.msk [vmem:[#allocation2 + $0x270] sm:$0xff] %vm158, 0.0
    %6500 = vst.msk [vmem:[#allocation2 + $0x278] sm:$0xff] %vm158, 0.0
    %6501 = vst.msk [vmem:[#allocation2 + $0x280] sm:$0x3] %vm6422, 0.0
    %6502 = vst.msk [vmem:[#allocation2 + $0x288] sm:$0xff] %vm158, 0.0
    %6503 = vst.msk [vmem:[#allocation2 + $0x290] sm:$0xff] %vm158, 0.0
    %6504 = vst.msk [vmem:[#allocation2 + $0x298] sm:$0x3] %vm6422, 0.0
    %6505 = vst.msk [vmem:[#allocation2 + $0x2a0] sm:$0xff] %vm158, 0.0
    %6506 = vst.msk [vmem:[#allocation2 + $0x2a8] sm:$0xff] %vm158, 0.0
    %6507 = vst.msk [vmem:[#allocation2 + $0x2b0] sm:$0x3] %vm6422, 0.0
    %6508 = vst.msk [vmem:[#allocation2 + $0x2b8] sm:$0xff] %vm158, 0.0
    %6509 = vst.msk [vmem:[#allocation2 + $0x2c0] sm:$0xff] %vm158, 0.0
    %6510 = vst.msk [vmem:[#allocation2 + $0x2c8] sm:$0x3] %vm6422, 0.0
    %6511 = vst.msk [vmem:[#allocation2 + $0x2d0] sm:$0xff] %vm158, 0.0
    %6512 = vst.msk [vmem:[#allocation2 + $0x2d8] sm:$0xff] %vm158, 0.0
    %6513 = vst.msk [vmem:[#allocation2 + $0x2e0] sm:$0x3] %vm6422, 0.0
    %6514 = vst.msk [vmem:[#allocation2 + $0x2e8] sm:$0xff] %vm158, 0.0
    %6515 = vst.msk [vmem:[#allocation2 + $0x2f0] sm:$0xff] %vm158, 0.0
    %6516 = vst.msk [vmem:[#allocation2 + $0x2f8] sm:$0x3] %vm6422, 0.0
    %6517 = vst.msk [vmem:[#allocation2 + $0x300] sm:$0xff] %vm158, 0.0
    %6518 = vst.msk [vmem:[#allocation2 + $0x308] sm:$0xff] %vm158, 0.0
    %6519 = vst.msk [vmem:[#allocation2 + $0x310] sm:$0x3] %vm6422, 0.0
    %6520 = vst.msk [vmem:[#allocation2 + $0x318] sm:$0xff] %vm158, 0.0
    %6521 = vst.msk [vmem:[#allocation2 + $0x320] sm:$0xff] %vm158, 0.0
    %6522 = vst.msk [vmem:[#allocation2 + $0x328] sm:$0x3] %vm6422, 0.0
    %6523 = vst.msk [vmem:[#allocation2 + $0x330] sm:$0xff] %vm158, 0.0
    %6524 = vst.msk [vmem:[#allocation2 + $0x338] sm:$0xff] %vm158, 0.0
    %6525 = vst.msk [vmem:[#allocation2 + $0x340] sm:$0x3] %vm6422, 0.0
    %6526 = vst.msk [vmem:[#allocation2 + $0x348] sm:$0xff] %vm158, 0.0
    %6527 = vst.msk [vmem:[#allocation2 + $0x350] sm:$0xff] %vm158, 0.0
    %6528 = vst.msk [vmem:[#allocation2 + $0x358] sm:$0x3] %vm6422, 0.0
    %s6529 = scalar_lea.vmem [#allocation2], 24
    %6530 = vst.msk [vmem:[%s6529 + $0x1] sm:$0xff] %vm158, %v6356
    %6531 = vst.msk [vmem:[%s6529 + $0x9] sm:$0xff] %vm158, %v6357
    %6532 = vst.msk [vmem:[%s6529 + $0x19] sm:$0xff] %vm158, %v6358
    %6533 = vst.msk [vmem:[%s6529 + $0x21] sm:$0xff] %vm158, %v6359
    %6534 = vst.msk [vmem:[%s6529 + $0x31] sm:$0xff] %vm158, %v6360
    %6535 = vst.msk [vmem:[%s6529 + $0x39] sm:$0xff] %vm158, %v6361
    %6536 = vst.msk [vmem:[%s6529 + $0x49] sm:$0xff] %vm158, %v6362
    %6537 = vst.msk [vmem:[%s6529 + $0x51] sm:$0xff] %vm158, %v6363
    %6538 = vst.msk [vmem:[%s6529 + $0x61] sm:$0xff] %vm158, %v6364
    %6539 = vst.msk [vmem:[%s6529 + $0x69] sm:$0xff] %vm158, %v6365
    %6540 = vst.msk [vmem:[%s6529 + $0x79] sm:$0xff] %vm158, %v6366
    %6541 = vst.msk [vmem:[%s6529 + $0x81] sm:$0xff] %vm158, %v6367
    %6542 = vst.msk [vmem:[%s6529 + $0x91] sm:$0xff] %vm158, %v6368
    %6543 = vst.msk [vmem:[%s6529 + $0x99] sm:$0xff] %vm158, %v6369
    %6544 = vst.msk [vmem:[%s6529 + $0xa9] sm:$0xff] %vm158, %v6370
    %6545 = vst.msk [vmem:[%s6529 + $0xb1] sm:$0xff] %vm158, %v6371
    %6546 = vst.msk [vmem:[%s6529 + $0xc1] sm:$0xff] %vm158, %v6372
    %6547 = vst.msk [vmem:[%s6529 + $0xc9] sm:$0xff] %vm158, %v6373
    %6548 = vst.msk [vmem:[%s6529 + $0xd9] sm:$0xff] %vm158, %v6374
    %6549 = vst.msk [vmem:[%s6529 + $0xe1] sm:$0xff] %vm158, %v6375
    %6550 = vst.msk [vmem:[%s6529 + $0xf1] sm:$0xff] %vm158, %v6376
    %6551 = vst.msk [vmem:[%s6529 + $0xf9] sm:$0xff] %vm158, %v6377
    %6552 = vst.msk [vmem:[%s6529 + $0x109] sm:$0xff] %vm158, %v6378
    %6553 = vst.msk [vmem:[%s6529 + $0x111] sm:$0xff] %vm158, %v6379
    %6554 = vst.msk [vmem:[%s6529 + $0x121] sm:$0xff] %vm158, %v6380
    %6555 = vst.msk [vmem:[%s6529 + $0x129] sm:$0xff] %vm158, %v6381
    %6556 = vst.msk [vmem:[%s6529 + $0x139] sm:$0xff] %vm158, %v6382
    %6557 = vst.msk [vmem:[%s6529 + $0x141] sm:$0xff] %vm158, %v6383
    %6558 = vst.msk [vmem:[%s6529 + $0x151] sm:$0xff] %vm158, %v6384
    %6559 = vst.msk [vmem:[%s6529 + $0x159] sm:$0xff] %vm158, %v6385
    %6560 = vst.msk [vmem:[%s6529 + $0x169] sm:$0xff] %vm158, %v6386
    %6561 = vst.msk [vmem:[%s6529 + $0x171] sm:$0xff] %vm158, %v6387
    %6562 = vst.msk [vmem:[%s6529 + $0x1b1] sm:$0xff] %vm158, %v6388
    %6563 = vst.msk [vmem:[%s6529 + $0x1b9] sm:$0xff] %vm158, %v6389
    %6564 = vst.msk [vmem:[%s6529 + $0x1c9] sm:$0xff] %vm158, %v6390
    %6565 = vst.msk [vmem:[%s6529 + $0x1d1] sm:$0xff] %vm158, %v6391
    %6566 = vst.msk [vmem:[%s6529 + $0x1e1] sm:$0xff] %vm158, %v6392
    %6567 = vst.msk [vmem:[%s6529 + $0x1e9] sm:$0xff] %vm158, %v6393
    %6568 = vst.msk [vmem:[%s6529 + $0x1f9] sm:$0xff] %vm158, %v6394
    %6569 = vst.msk [vmem:[%s6529 + $0x201] sm:$0xff] %vm158, %v6395
    %6570 = vst.msk [vmem:[%s6529 + $0x211] sm:$0xff] %vm158, %v6396
    %6571 = vst.msk [vmem:[%s6529 + $0x219] sm:$0xff] %vm158, %v6397
    %6572 = vst.msk [vmem:[%s6529 + $0x229] sm:$0xff] %vm158, %v6398
    %6573 = vst.msk [vmem:[%s6529 + $0x231] sm:$0xff] %vm158, %v6399
    %6574 = vst.msk [vmem:[%s6529 + $0x241] sm:$0xff] %vm158, %v6400
    %6575 = vst.msk [vmem:[%s6529 + $0x249] sm:$0xff] %vm158, %v6401
    %6576 = vst.msk [vmem:[%s6529 + $0x259] sm:$0xff] %vm158, %v6402
    %6577 = vst.msk [vmem:[%s6529 + $0x261] sm:$0xff] %vm158, %v6403
    %6578 = vst.msk [vmem:[%s6529 + $0x271] sm:$0xff] %vm158, %v6404
    %6579 = vst.msk [vmem:[%s6529 + $0x279] sm:$0xff] %vm158, %v6405
    %6580 = vst.msk [vmem:[%s6529 + $0x289] sm:$0xff] %vm158, %v6406
    %6581 = vst.msk [vmem:[%s6529 + $0x291] sm:$0xff] %vm158, %v6407
    %6582 = vst.msk [vmem:[%s6529 + $0x2a1] sm:$0xff] %vm158, %v6408
    %6583 = vst.msk [vmem:[%s6529 + $0x2a9] sm:$0xff] %vm158, %v6409
    %6584 = vst.msk [vmem:[%s6529 + $0x2b9] sm:$0xff] %vm158, %v6410
    %6585 = vst.msk [vmem:[%s6529 + $0x2c1] sm:$0xff] %vm158, %v6411
    %6586 = vst.msk [vmem:[%s6529 + $0x2d1] sm:$0xff] %vm158, %v6412
    %6587 = vst.msk [vmem:[%s6529 + $0x2d9] sm:$0xff] %vm158, %v6413
    %6588 = vst.msk [vmem:[%s6529 + $0x2e9] sm:$0xff] %vm158, %v6414
    %6589 = vst.msk [vmem:[%s6529 + $0x2f1] sm:$0xff] %vm158, %v6415
    %6590 = vst.msk [vmem:[%s6529 + $0x301] sm:$0xff] %vm158, %v6416
    %6591 = vst.msk [vmem:[%s6529 + $0x309] sm:$0xff] %vm158, %v6417
    %6592 = vst.msk [vmem:[%s6529 + $0x319] sm:$0xff] %vm158, %v6418
    %6593 = vst.msk [vmem:[%s6529 + $0x321] sm:$0xff] %vm158, %v6419
    %v6594 = vld [vmem:[#allocation2] sm:$0xff]
    %v6595 = vld [vmem:[#allocation2 + $0x8] sm:$0xff]
    %v6596 = vld [vmem:[#allocation2 + $0x18] sm:$0xff]
    %v6597 = vld [vmem:[#allocation2 + $0x20] sm:$0xff]
    %v6598 = vld [vmem:[#allocation2 + $0x30] sm:$0xff]
    %v6599 = vld [vmem:[#allocation2 + $0x38] sm:$0xff]
    %v6600 = vld [vmem:[#allocation2 + $0x48] sm:$0xff]
    %v6601 = vld [vmem:[#allocation2 + $0x50] sm:$0xff]
    %v6602 = vld [vmem:[#allocation2 + $0x60] sm:$0xff]
    %v6603 = vld [vmem:[#allocation2 + $0x68] sm:$0xff]
    %v6604 = vld [vmem:[#allocation2 + $0x78] sm:$0xff]
    %v6605 = vld [vmem:[#allocation2 + $0x80] sm:$0xff]
    %v6606 = vld [vmem:[#allocation2 + $0x90] sm:$0xff]
    %v6607 = vld [vmem:[#allocation2 + $0x98] sm:$0xff]
    %v6608 = vld [vmem:[#allocation2 + $0xa8] sm:$0xff]
    %v6609 = vld [vmem:[#allocation2 + $0xb0] sm:$0xff]
    %v6610 = vld [vmem:[#allocation2 + $0xc0] sm:$0xff]
    %v6611 = vld [vmem:[#allocation2 + $0xc8] sm:$0xff]
    %v6612 = vld [vmem:[#allocation2 + $0xd8] sm:$0xff]
    %v6613 = vld [vmem:[#allocation2 + $0xe0] sm:$0xff]
    %v6614 = vld [vmem:[#allocation2 + $0xf0] sm:$0xff]
    %v6615 = vld [vmem:[#allocation2 + $0xf8] sm:$0xff]
    %v6616 = vld [vmem:[#allocation2 + $0x108] sm:$0xff]
    %v6617 = vld [vmem:[#allocation2 + $0x110] sm:$0xff]
    %v6618 = vld [vmem:[#allocation2 + $0x120] sm:$0xff]
    %v6619 = vld [vmem:[#allocation2 + $0x128] sm:$0xff]
    %v6620 = vld [vmem:[#allocation2 + $0x138] sm:$0xff]
    %v6621 = vld [vmem:[#allocation2 + $0x140] sm:$0xff]
    %v6622 = vld [vmem:[#allocation2 + $0x150] sm:$0xff]
    %v6623 = vld [vmem:[#allocation2 + $0x158] sm:$0xff]
    %v6624 = vld [vmem:[#allocation2 + $0x168] sm:$0xff]
    %v6625 = vld [vmem:[#allocation2 + $0x170] sm:$0xff]
    %v6626 = vld [vmem:[#allocation2 + $0x1b0] sm:$0xff]
    %v6627 = vld [vmem:[#allocation2 + $0x1b8] sm:$0xff]
    %v6628 = vld [vmem:[#allocation2 + $0x1c8] sm:$0xff]
    %v6629 = vld [vmem:[#allocation2 + $0x1d0] sm:$0xff]
    %v6630 = vld [vmem:[#allocation2 + $0x1e0] sm:$0xff]
    %v6631 = vld [vmem:[#allocation2 + $0x1e8] sm:$0xff]
    %v6632 = vld [vmem:[#allocation2 + $0x1f8] sm:$0xff]
    %v6633 = vld [vmem:[#allocation2 + $0x200] sm:$0xff]
    %v6634 = vld [vmem:[#allocation2 + $0x210] sm:$0xff]
    %v6635 = vld [vmem:[#allocation2 + $0x218] sm:$0xff]
    %v6636 = vld [vmem:[#allocation2 + $0x228] sm:$0xff]
    %v6637 = vld [vmem:[#allocation2 + $0x230] sm:$0xff]
    %v6638 = vld [vmem:[#allocation2 + $0x240] sm:$0xff]
    %v6639 = vld [vmem:[#allocation2 + $0x248] sm:$0xff]
    %v6640 = vld [vmem:[#allocation2 + $0x258] sm:$0xff]
    %v6641 = vld [vmem:[#allocation2 + $0x260] sm:$0xff]
    %v6642 = vld [vmem:[#allocation2 + $0x270] sm:$0xff]
    %v6643 = vld [vmem:[#allocation2 + $0x278] sm:$0xff]
    %v6644 = vld [vmem:[#allocation2 + $0x288] sm:$0xff]
    %v6645 = vld [vmem:[#allocation2 + $0x290] sm:$0xff]
    %v6646 = vld [vmem:[#allocation2 + $0x2a0] sm:$0xff]
    %v6647 = vld [vmem:[#allocation2 + $0x2a8] sm:$0xff]
    %v6648 = vld [vmem:[#allocation2 + $0x2b8] sm:$0xff]
    %v6649 = vld [vmem:[#allocation2 + $0x2c0] sm:$0xff]
    %v6650 = vld [vmem:[#allocation2 + $0x2d0] sm:$0xff]
    %v6651 = vld [vmem:[#allocation2 + $0x2d8] sm:$0xff]
    %v6652 = vld [vmem:[#allocation2 + $0x2e8] sm:$0xff]
    %v6653 = vld [vmem:[#allocation2 + $0x2f0] sm:$0xff]
    %v6654 = vld [vmem:[#allocation2 + $0x300] sm:$0xff]
    %v6655 = vld [vmem:[#allocation2 + $0x308] sm:$0xff]
    %v6656 = vld [vmem:[#allocation2 + $0x318] sm:$0xff]
    %v6657 = vld [vmem:[#allocation2 + $0x320] sm:$0xff]
    %v6658 = vld [vmem:[%s3] sm:$0xff]
    %v6659 = vld [vmem:[%s3 + $0x8] sm:$0xff]
    %v6660 = vld [vmem:[%s3 + $0x10] sm:$0xff]
    %v6661 = vld [vmem:[%s3 + $0x18] sm:$0xff]
    %v6662 = vld [vmem:[#allocation2 + $0x1] sm:$0xff]
    %v6663 = vld [vmem:[#allocation2 + $0x9] sm:$0xff]
    %v6664 = vld [vmem:[#allocation2 + $0x19] sm:$0xff]
    %v6665 = vld [vmem:[#allocation2 + $0x21] sm:$0xff]
    %v6666 = vld [vmem:[#allocation2 + $0x31] sm:$0xff]
    %v6667 = vld [vmem:[#allocation2 + $0x39] sm:$0xff]
    %v6668 = vld [vmem:[#allocation2 + $0x49] sm:$0xff]
    %v6669 = vld [vmem:[#allocation2 + $0x51] sm:$0xff]
    %v6670 = vld [vmem:[#allocation2 + $0x61] sm:$0xff]
    %v6671 = vld [vmem:[#allocation2 + $0x69] sm:$0xff]
    %v6672 = vld [vmem:[#allocation2 + $0x79] sm:$0xff]
    %v6673 = vld [vmem:[#allocation2 + $0x81] sm:$0xff]
    %v6674 = vld [vmem:[#allocation2 + $0x91] sm:$0xff]
    %v6675 = vld [vmem:[#allocation2 + $0x99] sm:$0xff]
    %v6676 = vld [vmem:[#allocation2 + $0xa9] sm:$0xff]
    %v6677 = vld [vmem:[#allocation2 + $0xb1] sm:$0xff]
    %v6678 = vld [vmem:[#allocation2 + $0xc1] sm:$0xff]
    %v6679 = vld [vmem:[#allocation2 + $0xc9] sm:$0xff]
    %v6680 = vld [vmem:[#allocation2 + $0xd9] sm:$0xff]
    %v6681 = vld [vmem:[#allocation2 + $0xe1] sm:$0xff]
    %v6682 = vld [vmem:[#allocation2 + $0xf1] sm:$0xff]
    %v6683 = vld [vmem:[#allocation2 + $0xf9] sm:$0xff]
    %v6684 = vld [vmem:[#allocation2 + $0x109] sm:$0xff]
    %v6685 = vld [vmem:[#allocation2 + $0x111] sm:$0xff]
    %v6686 = vld [vmem:[#allocation2 + $0x121] sm:$0xff]
    %v6687 = vld [vmem:[#allocation2 + $0x129] sm:$0xff]
    %v6688 = vld [vmem:[#allocation2 + $0x139] sm:$0xff]
    %v6689 = vld [vmem:[#allocation2 + $0x141] sm:$0xff]
    %v6690 = vld [vmem:[#allocation2 + $0x151] sm:$0xff]
    %v6691 = vld [vmem:[#allocation2 + $0x159] sm:$0xff]
    %v6692 = vld [vmem:[#allocation2 + $0x169] sm:$0xff]
    %v6693 = vld [vmem:[#allocation2 + $0x171] sm:$0xff]
    %v6694 = vld [vmem:[#allocation2 + $0x1b1] sm:$0xff]
    %v6695 = vld [vmem:[#allocation2 + $0x1b9] sm:$0xff]
    %v6696 = vld [vmem:[#allocation2 + $0x1c9] sm:$0xff]
    %v6697 = vld [vmem:[#allocation2 + $0x1d1] sm:$0xff]
    %v6698 = vld [vmem:[#allocation2 + $0x1e1] sm:$0xff]
    %v6699 = vld [vmem:[#allocation2 + $0x1e9] sm:$0xff]
    %v6700 = vld [vmem:[#allocation2 + $0x1f9] sm:$0xff]
    %v6701 = vld [vmem:[#allocation2 + $0x201] sm:$0xff]
    %v6702 = vld [vmem:[#allocation2 + $0x211] sm:$0xff]
    %v6703 = vld [vmem:[#allocation2 + $0x219] sm:$0xff]
    %v6704 = vld [vmem:[#allocation2 + $0x229] sm:$0xff]
    %v6705 = vld [vmem:[#allocation2 + $0x231] sm:$0xff]
    %v6706 = vld [vmem:[#allocation2 + $0x241] sm:$0xff]
    %v6707 = vld [vmem:[#allocation2 + $0x249] sm:$0xff]
    %v6708 = vld [vmem:[#allocation2 + $0x259] sm:$0xff]
    %v6709 = vld [vmem:[#allocation2 + $0x261] sm:$0xff]
    %v6710 = vld [vmem:[#allocation2 + $0x271] sm:$0xff]
    %v6711 = vld [vmem:[#allocation2 + $0x279] sm:$0xff]
    %v6712 = vld [vmem:[#allocation2 + $0x289] sm:$0xff]
    %v6713 = vld [vmem:[#allocation2 + $0x291] sm:$0xff]
    %v6714 = vld [vmem:[#allocation2 + $0x2a1] sm:$0xff]
    %v6715 = vld [vmem:[#allocation2 + $0x2a9] sm:$0xff]
    %v6716 = vld [vmem:[#allocation2 + $0x2b9] sm:$0xff]
    %v6717 = vld [vmem:[#allocation2 + $0x2c1] sm:$0xff]
    %v6718 = vld [vmem:[#allocation2 + $0x2d1] sm:$0xff]
    %v6719 = vld [vmem:[#allocation2 + $0x2d9] sm:$0xff]
    %v6720 = vld [vmem:[#allocation2 + $0x2e9] sm:$0xff]
    %v6721 = vld [vmem:[#allocation2 + $0x2f1] sm:$0xff]
    %v6722 = vld [vmem:[#allocation2 + $0x301] sm:$0xff]
    %v6723 = vld [vmem:[#allocation2 + $0x309] sm:$0xff]
    %v6724 = vld [vmem:[#allocation2 + $0x319] sm:$0xff]
    %v6725 = vld [vmem:[#allocation2 + $0x321] sm:$0xff]
    %s6726 = scalar_lea.vmem %s3, 32
    %v6727 = vld [vmem:[%s6726] sm:$0xff]
    %v6728 = vld [vmem:[%s6726 + $0x8] sm:$0xff]
    %v6729 = vld [vmem:[%s6726 + $0x10] sm:$0xff]
    %v6730 = vld [vmem:[%s6726 + $0x18] sm:$0xff]
    %v6732 = vsel %vm158, %v6662, 0
    %v6735 = vsel %vm158, %v6663, 0
    %v6738 = vsel %vm158, %v6664, 0
    %v6741 = vsel %vm158, %v6665, 0
    %v6744 = vsel %vm158, %v6666, 0
    %v6747 = vsel %vm158, %v6667, 0
    %v6750 = vsel %vm158, %v6668, 0
    %v6753 = vsel %vm158, %v6669, 0
    %v6756 = vsel %vm158, %v6670, 0
    %v6759 = vsel %vm158, %v6671, 0
    %v6762 = vsel %vm158, %v6672, 0
    %v6765 = vsel %vm158, %v6673, 0
    %v6768 = vsel %vm158, %v6674, 0
    %v6771 = vsel %vm158, %v6675, 0
    %v6774 = vsel %vm158, %v6676, 0
    %v6777 = vsel %vm158, %v6677, 0
    %v6780 = vsel %vm158, %v6678, 0
    %v6783 = vsel %vm158, %v6679, 0
    %v6786 = vsel %vm158, %v6680, 0
    %v6789 = vsel %vm158, %v6681, 0
    %v6792 = vsel %vm158, %v6682, 0
    %v6795 = vsel %vm158, %v6683, 0
    %v6798 = vsel %vm158, %v6684, 0
    %v6801 = vsel %vm158, %v6685, 0
    %v6804 = vsel %vm158, %v6686, 0
    %v6807 = vsel %vm158, %v6687, 0
    %v6810 = vsel %vm158, %v6688, 0
    %v6813 = vsel %vm158, %v6689, 0
    %v6816 = vsel %vm158, %v6690, 0
    %v6819 = vsel %vm158, %v6691, 0
    %v6822 = vsel %vm158, %v6692, 0
    %v6825 = vsel %vm158, %v6693, 0
    %v6828 = vsel %vm158, %v6694, 0
    %v6831 = vsel %vm158, %v6695, 0
    %v6834 = vsel %vm158, %v6696, 0
    %v6837 = vsel %vm158, %v6697, 0
    %v6840 = vsel %vm158, %v6698, 0
    %v6843 = vsel %vm158, %v6699, 0
    %v6846 = vsel %vm158, %v6700, 0
    %v6849 = vsel %vm158, %v6701, 0
    %v6852 = vsel %vm158, %v6702, 0
    %v6855 = vsel %vm158, %v6703, 0
    %v6858 = vsel %vm158, %v6704, 0
    %v6861 = vsel %vm158, %v6705, 0
    %v6864 = vsel %vm158, %v6706, 0
    %v6867 = vsel %vm158, %v6707, 0
    %v6870 = vsel %vm158, %v6708, 0
    %v6873 = vsel %vm158, %v6709, 0
    %v6876 = vsel %vm158, %v6710, 0
    %v6879 = vsel %vm158, %v6711, 0
    %v6882 = vsel %vm158, %v6712, 0
    %v6885 = vsel %vm158, %v6713, 0
    %v6888 = vsel %vm158, %v6714, 0
    %v6891 = vsel %vm158, %v6715, 0
    %v6894 = vsel %vm158, %v6716, 0
    %v6897 = vsel %vm158, %v6717, 0
    %v6900 = vsel %vm158, %v6718, 0
    %v6903 = vsel %vm158, %v6719, 0
    %v6906 = vsel %vm158, %v6720, 0
    %v6909 = vsel %vm158, %v6721, 0
    %v6912 = vsel %vm158, %v6722, 0
    %v6915 = vsel %vm158, %v6723, 0
    %v6918 = vsel %vm158, %v6724, 0
    %v6921 = vsel %vm158, %v6725, 0
    %6923 = vmatprep.subr.mxu0 0.0
    %6924 = vmatpush1.msra.mxu0 0.0
    %6925 = vmatprep.subr.mxu0 0.0
    %6926 = vmatpush1.msra.mxu0 0.0
    %6927 = vmatprep.subr.mxu0 0.0
    %6928 = vmatpush1.msra.mxu0 0.0
    %6929 = vmatprep.subr.mxu0 0.0
    %6930 = vmatpush1.msra.mxu0 0.0
    %6931 = vmatprep.subr.mxu0 0.0
    %6932 = vmatpush1.msra.mxu0 0.0
    %6933 = vmatprep.subr.mxu0 0.0
    %6934 = vmatpush1.msra.mxu0 0.0
    %6935 = vmatprep.subr.mxu0 0.0
    %6936 = vmatpush1.msra.mxu0 0.0
    %6937 = vmatprep.subr.mxu0 0.0
    %6938 = vmatpush1.msra.mxu0 0.0
    %6939 = vmatprep.subr.mxu0 0.0
    %6940 = vmatpush1.msra.mxu0 0.0
    %6941 = vmatprep.subr.mxu0 0.0
    %6942 = vmatpush1.msra.mxu0 0.0
    %6943 = vmatprep.subr.mxu0 0.0
    %6944 = vmatpush1.msra.mxu0 0.0
    %6945 = vmatprep.subr.mxu0 0.0
    %6946 = vmatpush1.msra.mxu0 0.0
    %6947 = vmatprep.subr.mxu0 0.0
    %6948 = vmatpush1.msra.mxu0 %v6730
    %6949 = vmatprep.subr.mxu0 0.0
    %6950 = vmatpush1.msra.mxu0 %v6729
    %6951 = vmatprep.subr.mxu0 0.0
    %6952 = vmatpush1.msra.mxu0 %v6728
    %6953 = vmatprep.subr.mxu0 0.0
    %6954 = vmatpush1.msra.mxu0 %v6727
    %6955 = vmatprep.subr.mxu0 0.0
    %6956 = vmatpush2.msra.mxu0 0.0
    %6957 = vmatprep.subr.mxu0 0.0
    %6958 = vmatpush2.msra.mxu0 0.0
    %6959 = vmatprep.subr.mxu0 0.0
    %6960 = vmatpush2.msra.mxu0 0.0
    %6961 = vmatprep.subr.mxu0 0.0
    %6962 = vmatpush2.msra.mxu0 0.0
    %6963 = vmatprep.subr.mxu0 0.0
    %6964 = vmatpush2.msra.mxu0 0.0
    %6965 = vmatprep.subr.mxu0 0.0
    %6966 = vmatpush2.msra.mxu0 0.0
    %6967 = vmatprep.subr.mxu0 0.0
    %6968 = vmatpush2.msra.mxu0 0.0
    %6969 = vmatprep.subr.mxu0 0.0
    %6970 = vmatpush2.msra.mxu0 0.0
    %6971 = vmatprep.subr.mxu0 0.0
    %6972 = vmatpush2.msra.mxu0 0.0
    %6973 = vmatprep.subr.mxu0 0.0
    %6974 = vmatpush2.msra.mxu0 0.0
    %6975 = vmatprep.subr.mxu0 0.0
    %6976 = vmatpush2.msra.mxu0 0.0
    %6977 = vmatprep.subr.mxu0 0.0
    %6978 = vmatpush2.msra.mxu0 0.0
    %6979 = vmatprep.subr.mxu0 0.0
    %6980 = vmatpush2.msra.mxu0 0.0
    %6981 = vmatprep.subr.mxu0 0.0
    %6982 = vmatpush2.msra.mxu0 0.0
    %6983 = vmatprep.subr.mxu0 0.0
    %6984 = vmatpush2.msra.mxu0 0.0
    %6985 = vmatprep.subr.mxu0 0.0
    %6986 = vmatpush2.msra.mxu0 0.0
    %6987 = vmatprep.mubr.f32.mxu0 0.0
    %6988 = vmatmul.mubr.f32.gmra.mxu0 %v6732
    %v6989 = vpop.f32.mrf.mxu0
    %v6990 = vadd.f32 0.0, %v6989
    %v6991 = vpop.f32.mrf.mxu0
    %6992 = vmatprep.mubr.f32.mxu0 0.0
    %6993 = vmatmul.mubr.f32.gmra.mxu0 %v6735
    %v6994 = vpop.f32.mrf.mxu0
    %v6995 = vadd.f32 0.0, %v6994
    %v6996 = vpop.f32.mrf.mxu0
    %6997 = vmatprep.mubr.f32.mxu0 0.0
    %6998 = vmatmul.mubr.f32.gmra.mxu0 %v6738
    %v6999 = vpop.f32.mrf.mxu0
    %v7000 = vadd.f32 0.0, %v6999
    %v7001 = vpop.f32.mrf.mxu0
    %7002 = vmatprep.mubr.f32.mxu0 0.0
    %7003 = vmatmul.mubr.f32.gmra.mxu0 %v6741
    %v7004 = vpop.f32.mrf.mxu0
    %v7005 = vadd.f32 0.0, %v7004
    %v7006 = vpop.f32.mrf.mxu0
    %7007 = vmatprep.mubr.f32.mxu0 0.0
    %7008 = vmatmul.mubr.f32.gmra.mxu0 %v6744
    %v7009 = vpop.f32.mrf.mxu0
    %v7010 = vadd.f32 0.0, %v7009
    %v7011 = vpop.f32.mrf.mxu0
    %7012 = vmatprep.mubr.f32.mxu0 0.0
    %7013 = vmatmul.mubr.f32.gmra.mxu0 %v6747
    %v7014 = vpop.f32.mrf.mxu0
    %v7015 = vadd.f32 0.0, %v7014
    %v7016 = vpop.f32.mrf.mxu0
    %7017 = vmatprep.mubr.f32.mxu0 0.0
    %7018 = vmatmul.mubr.f32.gmra.mxu0 %v6750
    %v7019 = vpop.f32.mrf.mxu0
    %v7020 = vadd.f32 0.0, %v7019
    %v7021 = vpop.f32.mrf.mxu0
    %7022 = vmatprep.mubr.f32.mxu0 0.0
    %7023 = vmatmul.mubr.f32.gmra.mxu0 %v6753
    %v7024 = vpop.f32.mrf.mxu0
    %v7025 = vadd.f32 0.0, %v7024
    %v7026 = vpop.f32.mrf.mxu0
    %7027 = vmatprep.mubr.f32.mxu0 0.0
    %7028 = vmatmul.mubr.f32.gmra.mxu0 %v6756
    %v7029 = vpop.f32.mrf.mxu0
    %v7030 = vadd.f32 0.0, %v7029
    %v7031 = vpop.f32.mrf.mxu0
    %7032 = vmatprep.mubr.f32.mxu0 0.0
    %7033 = vmatmul.mubr.f32.gmra.mxu0 %v6759
    %v7034 = vpop.f32.mrf.mxu0
    %v7035 = vadd.f32 0.0, %v7034
    %v7036 = vpop.f32.mrf.mxu0
    %7037 = vmatprep.mubr.f32.mxu0 0.0
    %7038 = vmatmul.mubr.f32.gmra.mxu0 %v6762
    %v7039 = vpop.f32.mrf.mxu0
    %v7040 = vadd.f32 0.0, %v7039
    %v7041 = vpop.f32.mrf.mxu0
    %7042 = vmatprep.mubr.f32.mxu0 0.0
    %7043 = vmatmul.mubr.f32.gmra.mxu0 %v6765
    %v7044 = vpop.f32.mrf.mxu0
    %v7045 = vadd.f32 0.0, %v7044
    %v7046 = vpop.f32.mrf.mxu0
    %7047 = vmatprep.mubr.f32.mxu0 0.0
    %7048 = vmatmul.mubr.f32.gmra.mxu0 %v6768
    %v7049 = vpop.f32.mrf.mxu0
    %v7050 = vadd.f32 0.0, %v7049
    %v7051 = vpop.f32.mrf.mxu0
    %7052 = vmatprep.mubr.f32.mxu0 0.0
    %7053 = vmatmul.mubr.f32.gmra.mxu0 %v6771
    %v7054 = vpop.f32.mrf.mxu0
    %v7055 = vadd.f32 0.0, %v7054
    %v7056 = vpop.f32.mrf.mxu0
    %7057 = vmatprep.mubr.f32.mxu0 0.0
    %7058 = vmatmul.mubr.f32.gmra.mxu0 %v6774
    %v7059 = vpop.f32.mrf.mxu0
    %v7060 = vadd.f32 0.0, %v7059
    %v7061 = vpop.f32.mrf.mxu0
    %7062 = vmatprep.mubr.f32.mxu0 0.0
    %7063 = vmatmul.mubr.f32.gmra.mxu0 %v6777
    %v7064 = vpop.f32.mrf.mxu0
    %v7065 = vadd.f32 0.0, %v7064
    %v7066 = vpop.f32.mrf.mxu0
    %7067 = vmatprep.mubr.f32.mxu0 0.0
    %7068 = vmatmul.mubr.f32.gmra.mxu0 %v6780
    %v7069 = vpop.f32.mrf.mxu0
    %v7070 = vadd.f32 0.0, %v7069
    %v7071 = vpop.f32.mrf.mxu0
    %7072 = vmatprep.mubr.f32.mxu0 0.0
    %7073 = vmatmul.mubr.f32.gmra.mxu0 %v6783
    %v7074 = vpop.f32.mrf.mxu0
    %v7075 = vadd.f32 0.0, %v7074
    %v7076 = vpop.f32.mrf.mxu0
    %7077 = vmatprep.mubr.f32.mxu0 0.0
    %7078 = vmatmul.mubr.f32.gmra.mxu0 %v6786
    %v7079 = vpop.f32.mrf.mxu0
    %v7080 = vadd.f32 0.0, %v7079
    %v7081 = vpop.f32.mrf.mxu0
    %7082 = vmatprep.mubr.f32.mxu0 0.0
    %7083 = vmatmul.mubr.f32.gmra.mxu0 %v6789
    %v7084 = vpop.f32.mrf.mxu0
    %v7085 = vadd.f32 0.0, %v7084
    %v7086 = vpop.f32.mrf.mxu0
    %7087 = vmatprep.mubr.f32.mxu0 0.0
    %7088 = vmatmul.mubr.f32.gmra.mxu0 %v6792
    %v7089 = vpop.f32.mrf.mxu0
    %v7090 = vadd.f32 0.0, %v7089
    %v7091 = vpop.f32.mrf.mxu0
    %7092 = vmatprep.mubr.f32.mxu0 0.0
    %7093 = vmatmul.mubr.f32.gmra.mxu0 %v6795
    %v7094 = vpop.f32.mrf.mxu0
    %v7095 = vadd.f32 0.0, %v7094
    %v7096 = vpop.f32.mrf.mxu0
    %7097 = vmatprep.mubr.f32.mxu0 0.0
    %7098 = vmatmul.mubr.f32.gmra.mxu0 %v6798
    %v7099 = vpop.f32.mrf.mxu0
    %v7100 = vadd.f32 0.0, %v7099
    %v7101 = vpop.f32.mrf.mxu0
    %7102 = vmatprep.mubr.f32.mxu0 0.0
    %7103 = vmatmul.mubr.f32.gmra.mxu0 %v6801
    %v7104 = vpop.f32.mrf.mxu0
    %v7105 = vadd.f32 0.0, %v7104
    %v7106 = vpop.f32.mrf.mxu0
    %7107 = vmatprep.mubr.f32.mxu0 0.0
    %7108 = vmatmul.mubr.f32.gmra.mxu0 %v6804
    %v7109 = vpop.f32.mrf.mxu0
    %v7110 = vadd.f32 0.0, %v7109
    %v7111 = vpop.f32.mrf.mxu0
    %7112 = vmatprep.mubr.f32.mxu0 0.0
    %7113 = vmatmul.mubr.f32.gmra.mxu0 %v6807
    %v7114 = vpop.f32.mrf.mxu0
    %v7115 = vadd.f32 0.0, %v7114
    %v7116 = vpop.f32.mrf.mxu0
    %7117 = vmatprep.mubr.f32.mxu0 0.0
    %7118 = vmatmul.mubr.f32.gmra.mxu0 %v6810
    %v7119 = vpop.f32.mrf.mxu0
    %v7120 = vadd.f32 0.0, %v7119
    %v7121 = vpop.f32.mrf.mxu0
    %7122 = vmatprep.mubr.f32.mxu0 0.0
    %7123 = vmatmul.mubr.f32.gmra.mxu0 %v6813
    %v7124 = vpop.f32.mrf.mxu0
    %v7125 = vadd.f32 0.0, %v7124
    %v7126 = vpop.f32.mrf.mxu0
    %7127 = vmatprep.mubr.f32.mxu0 0.0
    %7128 = vmatmul.mubr.f32.gmra.mxu0 %v6816
    %v7129 = vpop.f32.mrf.mxu0
    %v7130 = vadd.f32 0.0, %v7129
    %v7131 = vpop.f32.mrf.mxu0
    %7132 = vmatprep.mubr.f32.mxu0 0.0
    %7133 = vmatmul.mubr.f32.gmra.mxu0 %v6819
    %v7134 = vpop.f32.mrf.mxu0
    %v7135 = vadd.f32 0.0, %v7134
    %v7136 = vpop.f32.mrf.mxu0
    %7137 = vmatprep.mubr.f32.mxu0 0.0
    %7138 = vmatmul.mubr.f32.gmra.mxu0 %v6822
    %v7139 = vpop.f32.mrf.mxu0
    %v7140 = vadd.f32 0.0, %v7139
    %v7141 = vpop.f32.mrf.mxu0
    %7142 = vmatprep.mubr.f32.mxu0 0.0
    %7143 = vmatmul.mubr.f32.gmra.mxu0 %v6825
    %v7144 = vpop.f32.mrf.mxu0
    %v7145 = vadd.f32 0.0, %v7144
    %v7146 = vpop.f32.mrf.mxu0
    %7147 = vmatprep.mubr.f32.mxu0 0.0
    %7148 = vmatmul.mubr.f32.gmra.mxu0 %v6828
    %v7149 = vpop.f32.mrf.mxu0
    %v7150 = vadd.f32 0.0, %v7149
    %v7151 = vpop.f32.mrf.mxu0
    %7152 = vmatprep.mubr.f32.mxu0 0.0
    %7153 = vmatmul.mubr.f32.gmra.mxu0 %v6831
    %v7154 = vpop.f32.mrf.mxu0
    %v7155 = vadd.f32 0.0, %v7154
    %v7156 = vpop.f32.mrf.mxu0
    %7157 = vmatprep.mubr.f32.mxu0 0.0
    %7158 = vmatmul.mubr.f32.gmra.mxu0 %v6834
    %v7159 = vpop.f32.mrf.mxu0
    %v7160 = vadd.f32 0.0, %v7159
    %v7161 = vpop.f32.mrf.mxu0
    %7162 = vmatprep.mubr.f32.mxu0 0.0
    %7163 = vmatmul.mubr.f32.gmra.mxu0 %v6837
    %v7164 = vpop.f32.mrf.mxu0
    %v7165 = vadd.f32 0.0, %v7164
    %v7166 = vpop.f32.mrf.mxu0
    %7167 = vmatprep.mubr.f32.mxu0 0.0
    %7168 = vmatmul.mubr.f32.gmra.mxu0 %v6840
    %v7169 = vpop.f32.mrf.mxu0
    %v7170 = vadd.f32 0.0, %v7169
    %v7171 = vpop.f32.mrf.mxu0
    %7172 = vmatprep.mubr.f32.mxu0 0.0
    %7173 = vmatmul.mubr.f32.gmra.mxu0 %v6843
    %v7174 = vpop.f32.mrf.mxu0
    %v7175 = vadd.f32 0.0, %v7174
    %v7176 = vpop.f32.mrf.mxu0
    %7177 = vmatprep.mubr.f32.mxu0 0.0
    %7178 = vmatmul.mubr.f32.gmra.mxu0 %v6846
    %v7179 = vpop.f32.mrf.mxu0
    %v7180 = vadd.f32 0.0, %v7179
    %v7181 = vpop.f32.mrf.mxu0
    %7182 = vmatprep.mubr.f32.mxu0 0.0
    %7183 = vmatmul.mubr.f32.gmra.mxu0 %v6849
    %v7184 = vpop.f32.mrf.mxu0
    %v7185 = vadd.f32 0.0, %v7184
    %v7186 = vpop.f32.mrf.mxu0
    %7187 = vmatprep.mubr.f32.mxu0 0.0
    %7188 = vmatmul.mubr.f32.gmra.mxu0 %v6852
    %v7189 = vpop.f32.mrf.mxu0
    %v7190 = vadd.f32 0.0, %v7189
    %v7191 = vpop.f32.mrf.mxu0
    %7192 = vmatprep.mubr.f32.mxu0 0.0
    %7193 = vmatmul.mubr.f32.gmra.mxu0 %v6855
    %v7194 = vpop.f32.mrf.mxu0
    %v7195 = vadd.f32 0.0, %v7194
    %v7196 = vpop.f32.mrf.mxu0
    %7197 = vmatprep.mubr.f32.mxu0 0.0
    %7198 = vmatmul.mubr.f32.gmra.mxu0 %v6858
    %v7199 = vpop.f32.mrf.mxu0
    %v7200 = vadd.f32 0.0, %v7199
    %v7201 = vpop.f32.mrf.mxu0
    %7202 = vmatprep.mubr.f32.mxu0 0.0
    %7203 = vmatmul.mubr.f32.gmra.mxu0 %v6861
    %v7204 = vpop.f32.mrf.mxu0
    %v7205 = vadd.f32 0.0, %v7204
    %v7206 = vpop.f32.mrf.mxu0
    %7207 = vmatprep.mubr.f32.mxu0 0.0
    %7208 = vmatmul.mubr.f32.gmra.mxu0 %v6864
    %v7209 = vpop.f32.mrf.mxu0
    %v7210 = vadd.f32 0.0, %v7209
    %v7211 = vpop.f32.mrf.mxu0
    %7212 = vmatprep.mubr.f32.mxu0 0.0
    %7213 = vmatmul.mubr.f32.gmra.mxu0 %v6867
    %v7214 = vpop.f32.mrf.mxu0
    %v7215 = vadd.f32 0.0, %v7214
    %v7216 = vpop.f32.mrf.mxu0
    %7217 = vmatprep.mubr.f32.mxu0 0.0
    %7218 = vmatmul.mubr.f32.gmra.mxu0 %v6870
    %v7219 = vpop.f32.mrf.mxu0
    %v7220 = vadd.f32 0.0, %v7219
    %v7221 = vpop.f32.mrf.mxu0
    %7222 = vmatprep.mubr.f32.mxu0 0.0
    %7223 = vmatmul.mubr.f32.gmra.mxu0 %v6873
    %v7224 = vpop.f32.mrf.mxu0
    %v7225 = vadd.f32 0.0, %v7224
    %v7226 = vpop.f32.mrf.mxu0
    %7227 = vmatprep.mubr.f32.mxu0 0.0
    %7228 = vmatmul.mubr.f32.gmra.mxu0 %v6876
    %v7229 = vpop.f32.mrf.mxu0
    %v7230 = vadd.f32 0.0, %v7229
    %v7231 = vpop.f32.mrf.mxu0
    %7232 = vmatprep.mubr.f32.mxu0 0.0
    %7233 = vmatmul.mubr.f32.gmra.mxu0 %v6879
    %v7234 = vpop.f32.mrf.mxu0
    %v7235 = vadd.f32 0.0, %v7234
    %v7236 = vpop.f32.mrf.mxu0
    %7237 = vmatprep.mubr.f32.mxu0 0.0
    %7238 = vmatmul.mubr.f32.gmra.mxu0 %v6882
    %v7239 = vpop.f32.mrf.mxu0
    %v7240 = vadd.f32 0.0, %v7239
    %v7241 = vpop.f32.mrf.mxu0
    %7242 = vmatprep.mubr.f32.mxu0 0.0
    %7243 = vmatmul.mubr.f32.gmra.mxu0 %v6885
    %v7244 = vpop.f32.mrf.mxu0
    %v7245 = vadd.f32 0.0, %v7244
    %v7246 = vpop.f32.mrf.mxu0
    %7247 = vmatprep.mubr.f32.mxu0 0.0
    %7248 = vmatmul.mubr.f32.gmra.mxu0 %v6888
    %v7249 = vpop.f32.mrf.mxu0
    %v7250 = vadd.f32 0.0, %v7249
    %v7251 = vpop.f32.mrf.mxu0
    %7252 = vmatprep.mubr.f32.mxu0 0.0
    %7253 = vmatmul.mubr.f32.gmra.mxu0 %v6891
    %v7254 = vpop.f32.mrf.mxu0
    %v7255 = vadd.f32 0.0, %v7254
    %v7256 = vpop.f32.mrf.mxu0
    %7257 = vmatprep.mubr.f32.mxu0 0.0
    %7258 = vmatmul.mubr.f32.gmra.mxu0 %v6894
    %v7259 = vpop.f32.mrf.mxu0
    %v7260 = vadd.f32 0.0, %v7259
    %v7261 = vpop.f32.mrf.mxu0
    %7262 = vmatprep.mubr.f32.mxu0 0.0
    %7263 = vmatmul.mubr.f32.gmra.mxu0 %v6897
    %v7264 = vpop.f32.mrf.mxu0
    %v7265 = vadd.f32 0.0, %v7264
    %v7266 = vpop.f32.mrf.mxu0
    %7267 = vmatprep.mubr.f32.mxu0 0.0
    %7268 = vmatmul.mubr.f32.gmra.mxu0 %v6900
    %v7269 = vpop.f32.mrf.mxu0
    %v7270 = vadd.f32 0.0, %v7269
    %v7271 = vpop.f32.mrf.mxu0
    %7272 = vmatprep.mubr.f32.mxu0 0.0
    %7273 = vmatmul.mubr.f32.gmra.mxu0 %v6903
    %v7274 = vpop.f32.mrf.mxu0
    %v7275 = vadd.f32 0.0, %v7274
    %v7276 = vpop.f32.mrf.mxu0
    %7277 = vmatprep.mubr.f32.mxu0 0.0
    %7278 = vmatmul.mubr.f32.gmra.mxu0 %v6906
    %v7279 = vpop.f32.mrf.mxu0
    %v7280 = vadd.f32 0.0, %v7279
    %v7281 = vpop.f32.mrf.mxu0
    %7282 = vmatprep.mubr.f32.mxu0 0.0
    %7283 = vmatmul.mubr.f32.gmra.mxu0 %v6909
    %v7284 = vpop.f32.mrf.mxu0
    %v7285 = vadd.f32 0.0, %v7284
    %v7286 = vpop.f32.mrf.mxu0
    %7287 = vmatprep.mubr.f32.mxu0 0.0
    %7288 = vmatmul.mubr.f32.gmra.mxu0 %v6912
    %v7289 = vpop.f32.mrf.mxu0
    %v7290 = vadd.f32 0.0, %v7289
    %v7291 = vpop.f32.mrf.mxu0
    %7292 = vmatprep.mubr.f32.mxu0 0.0
    %7293 = vmatmul.mubr.f32.gmra.mxu0 %v6915
    %v7294 = vpop.f32.mrf.mxu0
    %v7295 = vadd.f32 0.0, %v7294
    %v7296 = vpop.f32.mrf.mxu0
    %7297 = vmatprep.mubr.f32.mxu0 0.0
    %7298 = vmatmul.mubr.f32.gmra.mxu0 %v6918
    %v7299 = vpop.f32.mrf.mxu0
    %v7300 = vadd.f32 0.0, %v7299
    %v7301 = vpop.f32.mrf.mxu0
    %7302 = vmatprep.mubr.f32.mxu0 0.0
    %7303 = vmatmul.mubr.f32.gmra.mxu0 %v6921
    %v7304 = vpop.f32.mrf.mxu0
    %v7305 = vadd.f32 0.0, %v7304
    %v7306 = vpop.f32.mrf.mxu0
    %7307 = vdwg.mxu0
    %v7309 = vsel %vm158, %v6594, 0
    %v7312 = vsel %vm158, %v6595, 0
    %v7315 = vsel %vm158, %v6596, 0
    %v7318 = vsel %vm158, %v6597, 0
    %v7321 = vsel %vm158, %v6598, 0
    %v7324 = vsel %vm158, %v6599, 0
    %v7327 = vsel %vm158, %v6600, 0
    %v7330 = vsel %vm158, %v6601, 0
    %v7333 = vsel %vm158, %v6602, 0
    %v7336 = vsel %vm158, %v6603, 0
    %v7339 = vsel %vm158, %v6604, 0
    %v7342 = vsel %vm158, %v6605, 0
    %v7345 = vsel %vm158, %v6606, 0
    %v7348 = vsel %vm158, %v6607, 0
    %v7351 = vsel %vm158, %v6608, 0
    %v7354 = vsel %vm158, %v6609, 0
    %v7357 = vsel %vm158, %v6610, 0
    %v7360 = vsel %vm158, %v6611, 0
    %v7363 = vsel %vm158, %v6612, 0
    %v7366 = vsel %vm158, %v6613, 0
    %v7369 = vsel %vm158, %v6614, 0
    %v7372 = vsel %vm158, %v6615, 0
    %v7375 = vsel %vm158, %v6616, 0
    %v7378 = vsel %vm158, %v6617, 0
    %v7381 = vsel %vm158, %v6618, 0
    %v7384 = vsel %vm158, %v6619, 0
    %v7387 = vsel %vm158, %v6620, 0
    %v7390 = vsel %vm158, %v6621, 0
    %v7393 = vsel %vm158, %v6622, 0
    %v7396 = vsel %vm158, %v6623, 0
    %v7399 = vsel %vm158, %v6624, 0
    %v7402 = vsel %vm158, %v6625, 0
    %v7405 = vsel %vm158, %v6626, 0
    %v7408 = vsel %vm158, %v6627, 0
    %v7411 = vsel %vm158, %v6628, 0
    %v7414 = vsel %vm158, %v6629, 0
    %v7417 = vsel %vm158, %v6630, 0
    %v7420 = vsel %vm158, %v6631, 0
    %v7423 = vsel %vm158, %v6632, 0
    %v7426 = vsel %vm158, %v6633, 0
    %v7429 = vsel %vm158, %v6634, 0
    %v7432 = vsel %vm158, %v6635, 0
    %v7435 = vsel %vm158, %v6636, 0
    %v7438 = vsel %vm158, %v6637, 0
    %v7441 = vsel %vm158, %v6638, 0
    %v7444 = vsel %vm158, %v6639, 0
    %v7447 = vsel %vm158, %v6640, 0
    %v7450 = vsel %vm158, %v6641, 0
    %v7453 = vsel %vm158, %v6642, 0
    %v7456 = vsel %vm158, %v6643, 0
    %v7459 = vsel %vm158, %v6644, 0
    %v7462 = vsel %vm158, %v6645, 0
    %v7465 = vsel %vm158, %v6646, 0
    %v7468 = vsel %vm158, %v6647, 0
    %v7471 = vsel %vm158, %v6648, 0
    %v7474 = vsel %vm158, %v6649, 0
    %v7477 = vsel %vm158, %v6650, 0
    %v7480 = vsel %vm158, %v6651, 0
    %v7483 = vsel %vm158, %v6652, 0
    %v7486 = vsel %vm158, %v6653, 0
    %v7489 = vsel %vm158, %v6654, 0
    %v7492 = vsel %vm158, %v6655, 0
    %v7495 = vsel %vm158, %v6656, 0
    %v7498 = vsel %vm158, %v6657, 0
    %7500 = vmatprep.subr.mxu0 0.0
    %7501 = vmatpush1.msra.mxu0 0.0
    %7502 = vmatprep.subr.mxu0 0.0
    %7503 = vmatpush1.msra.mxu0 0.0
    %7504 = vmatprep.subr.mxu0 0.0
    %7505 = vmatpush1.msra.mxu0 0.0
    %7506 = vmatprep.subr.mxu0 0.0
    %7507 = vmatpush1.msra.mxu0 0.0
    %7508 = vmatprep.subr.mxu0 0.0
    %7509 = vmatpush1.msra.mxu0 0.0
    %7510 = vmatprep.subr.mxu0 0.0
    %7511 = vmatpush1.msra.mxu0 0.0
    %7512 = vmatprep.subr.mxu0 0.0
    %7513 = vmatpush1.msra.mxu0 0.0
    %7514 = vmatprep.subr.mxu0 0.0
    %7515 = vmatpush1.msra.mxu0 0.0
    %7516 = vmatprep.subr.mxu0 0.0
    %7517 = vmatpush1.msra.mxu0 0.0
    %7518 = vmatprep.subr.mxu0 0.0
    %7519 = vmatpush1.msra.mxu0 0.0
    %7520 = vmatprep.subr.mxu0 0.0
    %7521 = vmatpush1.msra.mxu0 0.0
    %7522 = vmatprep.subr.mxu0 0.0
    %7523 = vmatpush1.msra.mxu0 0.0
    %7524 = vmatprep.subr.mxu0 0.0
    %7525 = vmatpush1.msra.mxu0 %v6661
    %7526 = vmatprep.subr.mxu0 0.0
    %7527 = vmatpush1.msra.mxu0 %v6660
    %7528 = vmatprep.subr.mxu0 0.0
    %7529 = vmatpush1.msra.mxu0 %v6659
    %7530 = vmatprep.subr.mxu0 0.0
    %7531 = vmatpush1.msra.mxu0 %v6658
    %7532 = vmatprep.subr.mxu0 0.0
    %7533 = vmatpush2.msra.mxu0 0.0
    %7534 = vmatprep.subr.mxu0 0.0
    %7535 = vmatpush2.msra.mxu0 0.0
    %7536 = vmatprep.subr.mxu0 0.0
    %7537 = vmatpush2.msra.mxu0 0.0
    %7538 = vmatprep.subr.mxu0 0.0
    %7539 = vmatpush2.msra.mxu0 0.0
    %7540 = vmatprep.subr.mxu0 0.0
    %7541 = vmatpush2.msra.mxu0 0.0
    %7542 = vmatprep.subr.mxu0 0.0
    %7543 = vmatpush2.msra.mxu0 0.0
    %7544 = vmatprep.subr.mxu0 0.0
    %7545 = vmatpush2.msra.mxu0 0.0
    %7546 = vmatprep.subr.mxu0 0.0
    %7547 = vmatpush2.msra.mxu0 0.0
    %7548 = vmatprep.subr.mxu0 0.0
    %7549 = vmatpush2.msra.mxu0 0.0
    %7550 = vmatprep.subr.mxu0 0.0
    %7551 = vmatpush2.msra.mxu0 0.0
    %7552 = vmatprep.subr.mxu0 0.0
    %7553 = vmatpush2.msra.mxu0 0.0
    %7554 = vmatprep.subr.mxu0 0.0
    %7555 = vmatpush2.msra.mxu0 0.0
    %7556 = vmatprep.subr.mxu0 0.0
    %7557 = vmatpush2.msra.mxu0 0.0
    %7558 = vmatprep.subr.mxu0 0.0
    %7559 = vmatpush2.msra.mxu0 0.0
    %7560 = vmatprep.subr.mxu0 0.0
    %7561 = vmatpush2.msra.mxu0 0.0
    %7562 = vmatprep.subr.mxu0 0.0
    %7563 = vmatpush2.msra.mxu0 0.0
    %7564 = vmatprep.mubr.f32.mxu0 0.0
    %7565 = vmatmul.mubr.f32.gmra.mxu0 %v7309
    %v7566 = vpop.f32.mrf.mxu0
    %v7567 = vadd.f32 %v6990, %v7566
    %v7568 = vpop.f32.mrf.mxu0
    %7569 = vmatprep.mubr.f32.mxu0 0.0
    %7570 = vmatmul.mubr.f32.gmra.mxu0 %v7312
    %v7571 = vpop.f32.mrf.mxu0
    %v7572 = vadd.f32 %v6995, %v7571
    %v7573 = vpop.f32.mrf.mxu0
    %7574 = vmatprep.mubr.f32.mxu0 0.0
    %7575 = vmatmul.mubr.f32.gmra.mxu0 %v7315
    %v7576 = vpop.f32.mrf.mxu0
    %v7577 = vadd.f32 %v7000, %v7576
    %v7578 = vpop.f32.mrf.mxu0
    %7579 = vmatprep.mubr.f32.mxu0 0.0
    %7580 = vmatmul.mubr.f32.gmra.mxu0 %v7318
    %v7581 = vpop.f32.mrf.mxu0
    %v7582 = vadd.f32 %v7005, %v7581
    %v7583 = vpop.f32.mrf.mxu0
    %7584 = vmatprep.mubr.f32.mxu0 0.0
    %7585 = vmatmul.mubr.f32.gmra.mxu0 %v7321
    %v7586 = vpop.f32.mrf.mxu0
    %v7587 = vadd.f32 %v7010, %v7586
    %v7588 = vpop.f32.mrf.mxu0
    %7589 = vmatprep.mubr.f32.mxu0 0.0
    %7590 = vmatmul.mubr.f32.gmra.mxu0 %v7324
    %v7591 = vpop.f32.mrf.mxu0
    %v7592 = vadd.f32 %v7015, %v7591
    %v7593 = vpop.f32.mrf.mxu0
    %7594 = vmatprep.mubr.f32.mxu0 0.0
    %7595 = vmatmul.mubr.f32.gmra.mxu0 %v7327
    %v7596 = vpop.f32.mrf.mxu0
    %v7597 = vadd.f32 %v7020, %v7596
    %v7598 = vpop.f32.mrf.mxu0
    %7599 = vmatprep.mubr.f32.mxu0 0.0
    %7600 = vmatmul.mubr.f32.gmra.mxu0 %v7330
    %v7601 = vpop.f32.mrf.mxu0
    %v7602 = vadd.f32 %v7025, %v7601
    %v7603 = vpop.f32.mrf.mxu0
    %7604 = vmatprep.mubr.f32.mxu0 0.0
    %7605 = vmatmul.mubr.f32.gmra.mxu0 %v7333
    %v7606 = vpop.f32.mrf.mxu0
    %v7607 = vadd.f32 %v7030, %v7606
    %v7608 = vpop.f32.mrf.mxu0
    %7609 = vmatprep.mubr.f32.mxu0 0.0
    %7610 = vmatmul.mubr.f32.gmra.mxu0 %v7336
    %v7611 = vpop.f32.mrf.mxu0
    %v7612 = vadd.f32 %v7035, %v7611
    %v7613 = vpop.f32.mrf.mxu0
    %7614 = vmatprep.mubr.f32.mxu0 0.0
    %7615 = vmatmul.mubr.f32.gmra.mxu0 %v7339
    %v7616 = vpop.f32.mrf.mxu0
    %v7617 = vadd.f32 %v7040, %v7616
    %v7618 = vpop.f32.mrf.mxu0
    %7619 = vmatprep.mubr.f32.mxu0 0.0
    %7620 = vmatmul.mubr.f32.gmra.mxu0 %v7342
    %v7621 = vpop.f32.mrf.mxu0
    %v7622 = vadd.f32 %v7045, %v7621
    %v7623 = vpop.f32.mrf.mxu0
    %7624 = vmatprep.mubr.f32.mxu0 0.0
    %7625 = vmatmul.mubr.f32.gmra.mxu0 %v7345
    %v7626 = vpop.f32.mrf.mxu0
    %v7627 = vadd.f32 %v7050, %v7626
    %v7628 = vpop.f32.mrf.mxu0
    %7629 = vmatprep.mubr.f32.mxu0 0.0
    %7630 = vmatmul.mubr.f32.gmra.mxu0 %v7348
    %v7631 = vpop.f32.mrf.mxu0
    %v7632 = vadd.f32 %v7055, %v7631
    %v7633 = vpop.f32.mrf.mxu0
    %7634 = vmatprep.mubr.f32.mxu0 0.0
    %7635 = vmatmul.mubr.f32.gmra.mxu0 %v7351
    %v7636 = vpop.f32.mrf.mxu0
    %v7637 = vadd.f32 %v7060, %v7636
    %v7638 = vpop.f32.mrf.mxu0
    %7639 = vmatprep.mubr.f32.mxu0 0.0
    %7640 = vmatmul.mubr.f32.gmra.mxu0 %v7354
    %v7641 = vpop.f32.mrf.mxu0
    %v7642 = vadd.f32 %v7065, %v7641
    %v7643 = vpop.f32.mrf.mxu0
    %7644 = vmatprep.mubr.f32.mxu0 0.0
    %7645 = vmatmul.mubr.f32.gmra.mxu0 %v7357
    %v7646 = vpop.f32.mrf.mxu0
    %v7647 = vadd.f32 %v7070, %v7646
    %v7648 = vpop.f32.mrf.mxu0
    %7649 = vmatprep.mubr.f32.mxu0 0.0
    %7650 = vmatmul.mubr.f32.gmra.mxu0 %v7360
    %v7651 = vpop.f32.mrf.mxu0
    %v7652 = vadd.f32 %v7075, %v7651
    %v7653 = vpop.f32.mrf.mxu0
    %7654 = vmatprep.mubr.f32.mxu0 0.0
    %7655 = vmatmul.mubr.f32.gmra.mxu0 %v7363
    %v7656 = vpop.f32.mrf.mxu0
    %v7657 = vadd.f32 %v7080, %v7656
    %v7658 = vpop.f32.mrf.mxu0
    %7659 = vmatprep.mubr.f32.mxu0 0.0
    %7660 = vmatmul.mubr.f32.gmra.mxu0 %v7366
    %v7661 = vpop.f32.mrf.mxu0
    %v7662 = vadd.f32 %v7085, %v7661
    %v7663 = vpop.f32.mrf.mxu0
    %7664 = vmatprep.mubr.f32.mxu0 0.0
    %7665 = vmatmul.mubr.f32.gmra.mxu0 %v7369
    %v7666 = vpop.f32.mrf.mxu0
    %v7667 = vadd.f32 %v7090, %v7666
    %v7668 = vpop.f32.mrf.mxu0
    %7669 = vmatprep.mubr.f32.mxu0 0.0
    %7670 = vmatmul.mubr.f32.gmra.mxu0 %v7372
    %v7671 = vpop.f32.mrf.mxu0
    %v7672 = vadd.f32 %v7095, %v7671
    %v7673 = vpop.f32.mrf.mxu0
    %7674 = vmatprep.mubr.f32.mxu0 0.0
    %7675 = vmatmul.mubr.f32.gmra.mxu0 %v7375
    %v7676 = vpop.f32.mrf.mxu0
    %v7677 = vadd.f32 %v7100, %v7676
    %v7678 = vpop.f32.mrf.mxu0
    %7679 = vmatprep.mubr.f32.mxu0 0.0
    %7680 = vmatmul.mubr.f32.gmra.mxu0 %v7378
    %v7681 = vpop.f32.mrf.mxu0
    %v7682 = vadd.f32 %v7105, %v7681
    %v7683 = vpop.f32.mrf.mxu0
    %7684 = vmatprep.mubr.f32.mxu0 0.0
    %7685 = vmatmul.mubr.f32.gmra.mxu0 %v7381
    %v7686 = vpop.f32.mrf.mxu0
    %v7687 = vadd.f32 %v7110, %v7686
    %v7688 = vpop.f32.mrf.mxu0
    %7689 = vmatprep.mubr.f32.mxu0 0.0
    %7690 = vmatmul.mubr.f32.gmra.mxu0 %v7384
    %v7691 = vpop.f32.mrf.mxu0
    %v7692 = vadd.f32 %v7115, %v7691
    %v7693 = vpop.f32.mrf.mxu0
    %7694 = vmatprep.mubr.f32.mxu0 0.0
    %7695 = vmatmul.mubr.f32.gmra.mxu0 %v7387
    %v7696 = vpop.f32.mrf.mxu0
    %v7697 = vadd.f32 %v7120, %v7696
    %v7698 = vpop.f32.mrf.mxu0
    %7699 = vmatprep.mubr.f32.mxu0 0.0
    %7700 = vmatmul.mubr.f32.gmra.mxu0 %v7390
    %v7701 = vpop.f32.mrf.mxu0
    %v7702 = vadd.f32 %v7125, %v7701
    %v7703 = vpop.f32.mrf.mxu0
    %7704 = vmatprep.mubr.f32.mxu0 0.0
    %7705 = vmatmul.mubr.f32.gmra.mxu0 %v7393
    %v7706 = vpop.f32.mrf.mxu0
    %v7707 = vadd.f32 %v7130, %v7706
    %v7708 = vpop.f32.mrf.mxu0
    %7709 = vmatprep.mubr.f32.mxu0 0.0
    %7710 = vmatmul.mubr.f32.gmra.mxu0 %v7396
    %v7711 = vpop.f32.mrf.mxu0
    %v7712 = vadd.f32 %v7135, %v7711
    %v7713 = vpop.f32.mrf.mxu0
    %7714 = vmatprep.mubr.f32.mxu0 0.0
    %7715 = vmatmul.mubr.f32.gmra.mxu0 %v7399
    %v7716 = vpop.f32.mrf.mxu0
    %v7717 = vadd.f32 %v7140, %v7716
    %v7718 = vpop.f32.mrf.mxu0
    %7719 = vmatprep.mubr.f32.mxu0 0.0
    %7720 = vmatmul.mubr.f32.gmra.mxu0 %v7402
    %v7721 = vpop.f32.mrf.mxu0
    %v7722 = vadd.f32 %v7145, %v7721
    %v7723 = vpop.f32.mrf.mxu0
    %7724 = vmatprep.mubr.f32.mxu0 0.0
    %7725 = vmatmul.mubr.f32.gmra.mxu0 %v7405
    %v7726 = vpop.f32.mrf.mxu0
    %v7727 = vadd.f32 %v7150, %v7726
    %v7728 = vpop.f32.mrf.mxu0
    %7729 = vmatprep.mubr.f32.mxu0 0.0
    %7730 = vmatmul.mubr.f32.gmra.mxu0 %v7408
    %v7731 = vpop.f32.mrf.mxu0
    %v7732 = vadd.f32 %v7155, %v7731
    %v7733 = vpop.f32.mrf.mxu0
    %7734 = vmatprep.mubr.f32.mxu0 0.0
    %7735 = vmatmul.mubr.f32.gmra.mxu0 %v7411
    %v7736 = vpop.f32.mrf.mxu0
    %v7737 = vadd.f32 %v7160, %v7736
    %v7738 = vpop.f32.mrf.mxu0
    %7739 = vmatprep.mubr.f32.mxu0 0.0
    %7740 = vmatmul.mubr.f32.gmra.mxu0 %v7414
    %v7741 = vpop.f32.mrf.mxu0
    %v7742 = vadd.f32 %v7165, %v7741
    %v7743 = vpop.f32.mrf.mxu0
    %7744 = vmatprep.mubr.f32.mxu0 0.0
    %7745 = vmatmul.mubr.f32.gmra.mxu0 %v7417
    %v7746 = vpop.f32.mrf.mxu0
    %v7747 = vadd.f32 %v7170, %v7746
    %v7748 = vpop.f32.mrf.mxu0
    %7749 = vmatprep.mubr.f32.mxu0 0.0
    %7750 = vmatmul.mubr.f32.gmra.mxu0 %v7420
    %v7751 = vpop.f32.mrf.mxu0
    %v7752 = vadd.f32 %v7175, %v7751
    %v7753 = vpop.f32.mrf.mxu0
    %7754 = vmatprep.mubr.f32.mxu0 0.0
    %7755 = vmatmul.mubr.f32.gmra.mxu0 %v7423
    %v7756 = vpop.f32.mrf.mxu0
    %v7757 = vadd.f32 %v7180, %v7756
    %v7758 = vpop.f32.mrf.mxu0
    %7759 = vmatprep.mubr.f32.mxu0 0.0
    %7760 = vmatmul.mubr.f32.gmra.mxu0 %v7426
    %v7761 = vpop.f32.mrf.mxu0
    %v7762 = vadd.f32 %v7185, %v7761
    %v7763 = vpop.f32.mrf.mxu0
    %7764 = vmatprep.mubr.f32.mxu0 0.0
    %7765 = vmatmul.mubr.f32.gmra.mxu0 %v7429
    %v7766 = vpop.f32.mrf.mxu0
    %v7767 = vadd.f32 %v7190, %v7766
    %v7768 = vpop.f32.mrf.mxu0
    %7769 = vmatprep.mubr.f32.mxu0 0.0
    %7770 = vmatmul.mubr.f32.gmra.mxu0 %v7432
    %v7771 = vpop.f32.mrf.mxu0
    %v7772 = vadd.f32 %v7195, %v7771
    %v7773 = vpop.f32.mrf.mxu0
    %7774 = vmatprep.mubr.f32.mxu0 0.0
    %7775 = vmatmul.mubr.f32.gmra.mxu0 %v7435
    %v7776 = vpop.f32.mrf.mxu0
    %v7777 = vadd.f32 %v7200, %v7776
    %v7778 = vpop.f32.mrf.mxu0
    %7779 = vmatprep.mubr.f32.mxu0 0.0
    %7780 = vmatmul.mubr.f32.gmra.mxu0 %v7438
    %v7781 = vpop.f32.mrf.mxu0
    %v7782 = vadd.f32 %v7205, %v7781
    %v7783 = vpop.f32.mrf.mxu0
    %7784 = vmatprep.mubr.f32.mxu0 0.0
    %7785 = vmatmul.mubr.f32.gmra.mxu0 %v7441
    %v7786 = vpop.f32.mrf.mxu0
    %v7787 = vadd.f32 %v7210, %v7786
    %v7788 = vpop.f32.mrf.mxu0
    %7789 = vmatprep.mubr.f32.mxu0 0.0
    %7790 = vmatmul.mubr.f32.gmra.mxu0 %v7444
    %v7791 = vpop.f32.mrf.mxu0
    %v7792 = vadd.f32 %v7215, %v7791
    %v7793 = vpop.f32.mrf.mxu0
    %7794 = vmatprep.mubr.f32.mxu0 0.0
    %7795 = vmatmul.mubr.f32.gmra.mxu0 %v7447
    %v7796 = vpop.f32.mrf.mxu0
    %v7797 = vadd.f32 %v7220, %v7796
    %v7798 = vpop.f32.mrf.mxu0
    %7799 = vmatprep.mubr.f32.mxu0 0.0
    %7800 = vmatmul.mubr.f32.gmra.mxu0 %v7450
    %v7801 = vpop.f32.mrf.mxu0
    %v7802 = vadd.f32 %v7225, %v7801
    %v7803 = vpop.f32.mrf.mxu0
    %7804 = vmatprep.mubr.f32.mxu0 0.0
    %7805 = vmatmul.mubr.f32.gmra.mxu0 %v7453
    %v7806 = vpop.f32.mrf.mxu0
    %v7807 = vadd.f32 %v7230, %v7806
    %v7808 = vpop.f32.mrf.mxu0
    %7809 = vmatprep.mubr.f32.mxu0 0.0
    %7810 = vmatmul.mubr.f32.gmra.mxu0 %v7456
    %v7811 = vpop.f32.mrf.mxu0
    %v7812 = vadd.f32 %v7235, %v7811
    %v7813 = vpop.f32.mrf.mxu0
    %7814 = vmatprep.mubr.f32.mxu0 0.0
    %7815 = vmatmul.mubr.f32.gmra.mxu0 %v7459
    %v7816 = vpop.f32.mrf.mxu0
    %v7817 = vadd.f32 %v7240, %v7816
    %v7818 = vpop.f32.mrf.mxu0
    %7819 = vmatprep.mubr.f32.mxu0 0.0
    %7820 = vmatmul.mubr.f32.gmra.mxu0 %v7462
    %v7821 = vpop.f32.mrf.mxu0
    %v7822 = vadd.f32 %v7245, %v7821
    %v7823 = vpop.f32.mrf.mxu0
    %7824 = vmatprep.mubr.f32.mxu0 0.0
    %7825 = vmatmul.mubr.f32.gmra.mxu0 %v7465
    %v7826 = vpop.f32.mrf.mxu0
    %v7827 = vadd.f32 %v7250, %v7826
    %v7828 = vpop.f32.mrf.mxu0
    %7829 = vmatprep.mubr.f32.mxu0 0.0
    %7830 = vmatmul.mubr.f32.gmra.mxu0 %v7468
    %v7831 = vpop.f32.mrf.mxu0
    %v7832 = vadd.f32 %v7255, %v7831
    %v7833 = vpop.f32.mrf.mxu0
    %7834 = vmatprep.mubr.f32.mxu0 0.0
    %7835 = vmatmul.mubr.f32.gmra.mxu0 %v7471
    %v7836 = vpop.f32.mrf.mxu0
    %v7837 = vadd.f32 %v7260, %v7836
    %v7838 = vpop.f32.mrf.mxu0
    %7839 = vmatprep.mubr.f32.mxu0 0.0
    %7840 = vmatmul.mubr.f32.gmra.mxu0 %v7474
    %v7841 = vpop.f32.mrf.mxu0
    %v7842 = vadd.f32 %v7265, %v7841
    %v7843 = vpop.f32.mrf.mxu0
    %7844 = vmatprep.mubr.f32.mxu0 0.0
    %7845 = vmatmul.mubr.f32.gmra.mxu0 %v7477
    %v7846 = vpop.f32.mrf.mxu0
    %v7847 = vadd.f32 %v7270, %v7846
    %v7848 = vpop.f32.mrf.mxu0
    %7849 = vmatprep.mubr.f32.mxu0 0.0
    %7850 = vmatmul.mubr.f32.gmra.mxu0 %v7480
    %v7851 = vpop.f32.mrf.mxu0
    %v7852 = vadd.f32 %v7275, %v7851
    %v7853 = vpop.f32.mrf.mxu0
    %7854 = vmatprep.mubr.f32.mxu0 0.0
    %7855 = vmatmul.mubr.f32.gmra.mxu0 %v7483
    %v7856 = vpop.f32.mrf.mxu0
    %v7857 = vadd.f32 %v7280, %v7856
    %v7858 = vpop.f32.mrf.mxu0
    %7859 = vmatprep.mubr.f32.mxu0 0.0
    %7860 = vmatmul.mubr.f32.gmra.mxu0 %v7486
    %v7861 = vpop.f32.mrf.mxu0
    %v7862 = vadd.f32 %v7285, %v7861
    %v7863 = vpop.f32.mrf.mxu0
    %7864 = vmatprep.mubr.f32.mxu0 0.0
    %7865 = vmatmul.mubr.f32.gmra.mxu0 %v7489
    %v7866 = vpop.f32.mrf.mxu0
    %v7867 = vadd.f32 %v7290, %v7866
    %v7868 = vpop.f32.mrf.mxu0
    %7869 = vmatprep.mubr.f32.mxu0 0.0
    %7870 = vmatmul.mubr.f32.gmra.mxu0 %v7492
    %v7871 = vpop.f32.mrf.mxu0
    %v7872 = vadd.f32 %v7295, %v7871
    %v7873 = vpop.f32.mrf.mxu0
    %7874 = vmatprep.mubr.f32.mxu0 0.0
    %7875 = vmatmul.mubr.f32.gmra.mxu0 %v7495
    %v7876 = vpop.f32.mrf.mxu0
    %v7877 = vadd.f32 %v7300, %v7876
    %v7878 = vpop.f32.mrf.mxu0
    %7879 = vmatprep.mubr.f32.mxu0 0.0
    %7880 = vmatmul.mubr.f32.gmra.mxu0 %v7498
    %v7881 = vpop.f32.mrf.mxu0
    %v7882 = vadd.f32 %v7305, %v7881
    %v7883 = vpop.f32.mrf.mxu0
    %7884 = vdwg.mxu0
    %v7885 = vld [vmem:[#allocation2 + $0x2] sm:$0xff]
    %v7886 = vld [vmem:[#allocation2 + $0xa] sm:$0xff]
    %v7887 = vld [vmem:[#allocation2 + $0x1a] sm:$0xff]
    %v7888 = vld [vmem:[#allocation2 + $0x22] sm:$0xff]
    %v7889 = vld [vmem:[#allocation2 + $0x32] sm:$0xff]
    %v7890 = vld [vmem:[#allocation2 + $0x3a] sm:$0xff]
    %v7891 = vld [vmem:[#allocation2 + $0x4a] sm:$0xff]
    %v7892 = vld [vmem:[#allocation2 + $0x52] sm:$0xff]
    %v7893 = vld [vmem:[#allocation2 + $0x62] sm:$0xff]
    %v7894 = vld [vmem:[#allocation2 + $0x6a] sm:$0xff]
    %v7895 = vld [vmem:[#allocation2 + $0x7a] sm:$0xff]
    %v7896 = vld [vmem:[#allocation2 + $0x82] sm:$0xff]
    %v7897 = vld [vmem:[#allocation2 + $0x92] sm:$0xff]
    %v7898 = vld [vmem:[#allocation2 + $0x9a] sm:$0xff]
    %v7899 = vld [vmem:[#allocation2 + $0xaa] sm:$0xff]
    %v7900 = vld [vmem:[#allocation2 + $0xb2] sm:$0xff]
    %v7901 = vld [vmem:[#allocation2 + $0xc2] sm:$0xff]
    %v7902 = vld [vmem:[#allocation2 + $0xca] sm:$0xff]
    %v7903 = vld [vmem:[#allocation2 + $0xda] sm:$0xff]
    %v7904 = vld [vmem:[#allocation2 + $0xe2] sm:$0xff]
    %v7905 = vld [vmem:[#allocation2 + $0xf2] sm:$0xff]
    %v7906 = vld [vmem:[#allocation2 + $0xfa] sm:$0xff]
    %v7907 = vld [vmem:[#allocation2 + $0x10a] sm:$0xff]
    %v7908 = vld [vmem:[#allocation2 + $0x112] sm:$0xff]
    %v7909 = vld [vmem:[#allocation2 + $0x122] sm:$0xff]
    %v7910 = vld [vmem:[#allocation2 + $0x12a] sm:$0xff]
    %v7911 = vld [vmem:[#allocation2 + $0x13a] sm:$0xff]
    %v7912 = vld [vmem:[#allocation2 + $0x142] sm:$0xff]
    %v7913 = vld [vmem:[#allocation2 + $0x152] sm:$0xff]
    %v7914 = vld [vmem:[#allocation2 + $0x15a] sm:$0xff]
    %v7915 = vld [vmem:[#allocation2 + $0x16a] sm:$0xff]
    %v7916 = vld [vmem:[#allocation2 + $0x172] sm:$0xff]
    %v7917 = vld [vmem:[#allocation2 + $0x1b2] sm:$0xff]
    %v7918 = vld [vmem:[#allocation2 + $0x1ba] sm:$0xff]
    %v7919 = vld [vmem:[#allocation2 + $0x1ca] sm:$0xff]
    %v7920 = vld [vmem:[#allocation2 + $0x1d2] sm:$0xff]
    %v7921 = vld [vmem:[#allocation2 + $0x1e2] sm:$0xff]
    %v7922 = vld [vmem:[#allocation2 + $0x1ea] sm:$0xff]
    %v7923 = vld [vmem:[#allocation2 + $0x1fa] sm:$0xff]
    %v7924 = vld [vmem:[#allocation2 + $0x202] sm:$0xff]
    %v7925 = vld [vmem:[#allocation2 + $0x212] sm:$0xff]
    %v7926 = vld [vmem:[#allocation2 + $0x21a] sm:$0xff]
    %v7927 = vld [vmem:[#allocation2 + $0x22a] sm:$0xff]
    %v7928 = vld [vmem:[#allocation2 + $0x232] sm:$0xff]
    %v7929 = vld [vmem:[#allocation2 + $0x242] sm:$0xff]
    %v7930 = vld [vmem:[#allocation2 + $0x24a] sm:$0xff]
    %v7931 = vld [vmem:[#allocation2 + $0x25a] sm:$0xff]
    %v7932 = vld [vmem:[#allocation2 + $0x262] sm:$0xff]
    %v7933 = vld [vmem:[#allocation2 + $0x272] sm:$0xff]
    %v7934 = vld [vmem:[#allocation2 + $0x27a] sm:$0xff]
    %v7935 = vld [vmem:[#allocation2 + $0x28a] sm:$0xff]
    %v7936 = vld [vmem:[#allocation2 + $0x292] sm:$0xff]
    %v7937 = vld [vmem:[#allocation2 + $0x2a2] sm:$0xff]
    %v7938 = vld [vmem:[#allocation2 + $0x2aa] sm:$0xff]
    %v7939 = vld [vmem:[#allocation2 + $0x2ba] sm:$0xff]
    %v7940 = vld [vmem:[#allocation2 + $0x2c2] sm:$0xff]
    %v7941 = vld [vmem:[#allocation2 + $0x2d2] sm:$0xff]
    %v7942 = vld [vmem:[#allocation2 + $0x2da] sm:$0xff]
    %v7943 = vld [vmem:[#allocation2 + $0x2ea] sm:$0xff]
    %v7944 = vld [vmem:[#allocation2 + $0x2f2] sm:$0xff]
    %v7945 = vld [vmem:[#allocation2 + $0x302] sm:$0xff]
    %v7946 = vld [vmem:[#allocation2 + $0x30a] sm:$0xff]
    %v7947 = vld [vmem:[#allocation2 + $0x31a] sm:$0xff]
    %v7948 = vld [vmem:[#allocation2 + $0x322] sm:$0xff]
    %s7949 = scalar_lea.vmem %s3, 64
    %v7950 = vld [vmem:[%s7949] sm:$0xff]
    %v7951 = vld [vmem:[%s7949 + $0x8] sm:$0xff]
    %v7952 = vld [vmem:[%s7949 + $0x10] sm:$0xff]
    %v7953 = vld [vmem:[%s7949 + $0x18] sm:$0xff]
    %v7955 = vsel %vm158, %v7885, 0
    %v7958 = vsel %vm158, %v7886, 0
    %v7961 = vsel %vm158, %v7887, 0
    %v7964 = vsel %vm158, %v7888, 0
    %v7967 = vsel %vm158, %v7889, 0
    %v7970 = vsel %vm158, %v7890, 0
    %v7973 = vsel %vm158, %v7891, 0
    %v7976 = vsel %vm158, %v7892, 0
    %v7979 = vsel %vm158, %v7893, 0
    %v7982 = vsel %vm158, %v7894, 0
    %v7985 = vsel %vm158, %v7895, 0
    %v7988 = vsel %vm158, %v7896, 0
    %v7991 = vsel %vm158, %v7897, 0
    %v7994 = vsel %vm158, %v7898, 0
    %v7997 = vsel %vm158, %v7899, 0
    %v8000 = vsel %vm158, %v7900, 0
    %v8003 = vsel %vm158, %v7901, 0
    %v8006 = vsel %vm158, %v7902, 0
    %v8009 = vsel %vm158, %v7903, 0
    %v8012 = vsel %vm158, %v7904, 0
    %v8015 = vsel %vm158, %v7905, 0
    %v8018 = vsel %vm158, %v7906, 0
    %v8021 = vsel %vm158, %v7907, 0
    %v8024 = vsel %vm158, %v7908, 0
    %v8027 = vsel %vm158, %v7909, 0
    %v8030 = vsel %vm158, %v7910, 0
    %v8033 = vsel %vm158, %v7911, 0
    %v8036 = vsel %vm158, %v7912, 0
    %v8039 = vsel %vm158, %v7913, 0
    %v8042 = vsel %vm158, %v7914, 0
    %v8045 = vsel %vm158, %v7915, 0
    %v8048 = vsel %vm158, %v7916, 0
    %v8051 = vsel %vm158, %v7917, 0
    %v8054 = vsel %vm158, %v7918, 0
    %v8057 = vsel %vm158, %v7919, 0
    %v8060 = vsel %vm158, %v7920, 0
    %v8063 = vsel %vm158, %v7921, 0
    %v8066 = vsel %vm158, %v7922, 0
    %v8069 = vsel %vm158, %v7923, 0
    %v8072 = vsel %vm158, %v7924, 0
    %v8075 = vsel %vm158, %v7925, 0
    %v8078 = vsel %vm158, %v7926, 0
    %v8081 = vsel %vm158, %v7927, 0
    %v8084 = vsel %vm158, %v7928, 0
    %v8087 = vsel %vm158, %v7929, 0
    %v8090 = vsel %vm158, %v7930, 0
    %v8093 = vsel %vm158, %v7931, 0
    %v8096 = vsel %vm158, %v7932, 0
    %v8099 = vsel %vm158, %v7933, 0
    %v8102 = vsel %vm158, %v7934, 0
    %v8105 = vsel %vm158, %v7935, 0
    %v8108 = vsel %vm158, %v7936, 0
    %v8111 = vsel %vm158, %v7937, 0
    %v8114 = vsel %vm158, %v7938, 0
    %v8117 = vsel %vm158, %v7939, 0
    %v8120 = vsel %vm158, %v7940, 0
    %v8123 = vsel %vm158, %v7941, 0
    %v8126 = vsel %vm158, %v7942, 0
    %v8129 = vsel %vm158, %v7943, 0
    %v8132 = vsel %vm158, %v7944, 0
    %v8135 = vsel %vm158, %v7945, 0
    %v8138 = vsel %vm158, %v7946, 0
    %v8141 = vsel %vm158, %v7947, 0
    %v8144 = vsel %vm158, %v7948, 0
    %8146 = vmatprep.subr.mxu0 0.0
    %8147 = vmatpush1.msra.mxu0 0.0
    %8148 = vmatprep.subr.mxu0 0.0
    %8149 = vmatpush1.msra.mxu0 0.0
    %8150 = vmatprep.subr.mxu0 0.0
    %8151 = vmatpush1.msra.mxu0 0.0
    %8152 = vmatprep.subr.mxu0 0.0
    %8153 = vmatpush1.msra.mxu0 0.0
    %8154 = vmatprep.subr.mxu0 0.0
    %8155 = vmatpush1.msra.mxu0 0.0
    %8156 = vmatprep.subr.mxu0 0.0
    %8157 = vmatpush1.msra.mxu0 0.0
    %8158 = vmatprep.subr.mxu0 0.0
    %8159 = vmatpush1.msra.mxu0 0.0
    %8160 = vmatprep.subr.mxu0 0.0
    %8161 = vmatpush1.msra.mxu0 0.0
    %8162 = vmatprep.subr.mxu0 0.0
    %8163 = vmatpush1.msra.mxu0 0.0
    %8164 = vmatprep.subr.mxu0 0.0
    %8165 = vmatpush1.msra.mxu0 0.0
    %8166 = vmatprep.subr.mxu0 0.0
    %8167 = vmatpush1.msra.mxu0 0.0
    %8168 = vmatprep.subr.mxu0 0.0
    %8169 = vmatpush1.msra.mxu0 0.0
    %8170 = vmatprep.subr.mxu0 0.0
    %8171 = vmatpush1.msra.mxu0 %v7953
    %8172 = vmatprep.subr.mxu0 0.0
    %8173 = vmatpush1.msra.mxu0 %v7952
    %8174 = vmatprep.subr.mxu0 0.0
    %8175 = vmatpush1.msra.mxu0 %v7951
    %8176 = vmatprep.subr.mxu0 0.0
    %8177 = vmatpush1.msra.mxu0 %v7950
    %8178 = vmatprep.subr.mxu0 0.0
    %8179 = vmatpush2.msra.mxu0 0.0
    %8180 = vmatprep.subr.mxu0 0.0
    %8181 = vmatpush2.msra.mxu0 0.0
    %8182 = vmatprep.subr.mxu0 0.0
    %8183 = vmatpush2.msra.mxu0 0.0
    %8184 = vmatprep.subr.mxu0 0.0
    %8185 = vmatpush2.msra.mxu0 0.0
    %8186 = vmatprep.subr.mxu0 0.0
    %8187 = vmatpush2.msra.mxu0 0.0
    %8188 = vmatprep.subr.mxu0 0.0
    %8189 = vmatpush2.msra.mxu0 0.0
    %8190 = vmatprep.subr.mxu0 0.0
    %8191 = vmatpush2.msra.mxu0 0.0
    %8192 = vmatprep.subr.mxu0 0.0
    %8193 = vmatpush2.msra.mxu0 0.0
    %8194 = vmatprep.subr.mxu0 0.0
    %8195 = vmatpush2.msra.mxu0 0.0
    %8196 = vmatprep.subr.mxu0 0.0
    %8197 = vmatpush2.msra.mxu0 0.0
    %8198 = vmatprep.subr.mxu0 0.0
    %8199 = vmatpush2.msra.mxu0 0.0
    %8200 = vmatprep.subr.mxu0 0.0
    %8201 = vmatpush2.msra.mxu0 0.0
    %8202 = vmatprep.subr.mxu0 0.0
    %8203 = vmatpush2.msra.mxu0 0.0
    %8204 = vmatprep.subr.mxu0 0.0
    %8205 = vmatpush2.msra.mxu0 0.0
    %8206 = vmatprep.subr.mxu0 0.0
    %8207 = vmatpush2.msra.mxu0 0.0
    %8208 = vmatprep.subr.mxu0 0.0
    %8209 = vmatpush2.msra.mxu0 0.0
    %8210 = vmatprep.mubr.f32.mxu0 0.0
    %8211 = vmatmul.mubr.f32.gmra.mxu0 %v7955
    %v8212 = vpop.f32.mrf.mxu0
    %v8213 = vadd.f32 0.0, %v8212
    %v8214 = vpop.f32.mrf.mxu0
    %8215 = vmatprep.mubr.f32.mxu0 0.0
    %8216 = vmatmul.mubr.f32.gmra.mxu0 %v7958
    %v8217 = vpop.f32.mrf.mxu0
    %v8218 = vadd.f32 0.0, %v8217
    %v8219 = vpop.f32.mrf.mxu0
    %8220 = vmatprep.mubr.f32.mxu0 0.0
    %8221 = vmatmul.mubr.f32.gmra.mxu0 %v7961
    %v8222 = vpop.f32.mrf.mxu0
    %v8223 = vadd.f32 0.0, %v8222
    %v8224 = vpop.f32.mrf.mxu0
    %8225 = vmatprep.mubr.f32.mxu0 0.0
    %8226 = vmatmul.mubr.f32.gmra.mxu0 %v7964
    %v8227 = vpop.f32.mrf.mxu0
    %v8228 = vadd.f32 0.0, %v8227
    %v8229 = vpop.f32.mrf.mxu0
    %8230 = vmatprep.mubr.f32.mxu0 0.0
    %8231 = vmatmul.mubr.f32.gmra.mxu0 %v7967
    %v8232 = vpop.f32.mrf.mxu0
    %v8233 = vadd.f32 0.0, %v8232
    %v8234 = vpop.f32.mrf.mxu0
    %8235 = vmatprep.mubr.f32.mxu0 0.0
    %8236 = vmatmul.mubr.f32.gmra.mxu0 %v7970
    %v8237 = vpop.f32.mrf.mxu0
    %v8238 = vadd.f32 0.0, %v8237
    %v8239 = vpop.f32.mrf.mxu0
    %8240 = vmatprep.mubr.f32.mxu0 0.0
    %8241 = vmatmul.mubr.f32.gmra.mxu0 %v7973
    %v8242 = vpop.f32.mrf.mxu0
    %v8243 = vadd.f32 0.0, %v8242
    %v8244 = vpop.f32.mrf.mxu0
    %8245 = vmatprep.mubr.f32.mxu0 0.0
    %8246 = vmatmul.mubr.f32.gmra.mxu0 %v7976
    %v8247 = vpop.f32.mrf.mxu0
    %v8248 = vadd.f32 0.0, %v8247
    %v8249 = vpop.f32.mrf.mxu0
    %8250 = vmatprep.mubr.f32.mxu0 0.0
    %8251 = vmatmul.mubr.f32.gmra.mxu0 %v7979
    %v8252 = vpop.f32.mrf.mxu0
    %v8253 = vadd.f32 0.0, %v8252
    %v8254 = vpop.f32.mrf.mxu0
    %8255 = vmatprep.mubr.f32.mxu0 0.0
    %8256 = vmatmul.mubr.f32.gmra.mxu0 %v7982
    %v8257 = vpop.f32.mrf.mxu0
    %v8258 = vadd.f32 0.0, %v8257
    %v8259 = vpop.f32.mrf.mxu0
    %8260 = vmatprep.mubr.f32.mxu0 0.0
    %8261 = vmatmul.mubr.f32.gmra.mxu0 %v7985
    %v8262 = vpop.f32.mrf.mxu0
    %v8263 = vadd.f32 0.0, %v8262
    %v8264 = vpop.f32.mrf.mxu0
    %8265 = vmatprep.mubr.f32.mxu0 0.0
    %8266 = vmatmul.mubr.f32.gmra.mxu0 %v7988
    %v8267 = vpop.f32.mrf.mxu0
    %v8268 = vadd.f32 0.0, %v8267
    %v8269 = vpop.f32.mrf.mxu0
    %8270 = vmatprep.mubr.f32.mxu0 0.0
    %8271 = vmatmul.mubr.f32.gmra.mxu0 %v7991
    %v8272 = vpop.f32.mrf.mxu0
    %v8273 = vadd.f32 0.0, %v8272
    %v8274 = vpop.f32.mrf.mxu0
    %8275 = vmatprep.mubr.f32.mxu0 0.0
    %8276 = vmatmul.mubr.f32.gmra.mxu0 %v7994
    %v8277 = vpop.f32.mrf.mxu0
    %v8278 = vadd.f32 0.0, %v8277
    %v8279 = vpop.f32.mrf.mxu0
    %8280 = vmatprep.mubr.f32.mxu0 0.0
    %8281 = vmatmul.mubr.f32.gmra.mxu0 %v7997
    %v8282 = vpop.f32.mrf.mxu0
    %v8283 = vadd.f32 0.0, %v8282
    %v8284 = vpop.f32.mrf.mxu0
    %8285 = vmatprep.mubr.f32.mxu0 0.0
    %8286 = vmatmul.mubr.f32.gmra.mxu0 %v8000
    %v8287 = vpop.f32.mrf.mxu0
    %v8288 = vadd.f32 0.0, %v8287
    %v8289 = vpop.f32.mrf.mxu0
    %8290 = vmatprep.mubr.f32.mxu0 0.0
    %8291 = vmatmul.mubr.f32.gmra.mxu0 %v8003
    %v8292 = vpop.f32.mrf.mxu0
    %v8293 = vadd.f32 0.0, %v8292
    %v8294 = vpop.f32.mrf.mxu0
    %8295 = vmatprep.mubr.f32.mxu0 0.0
    %8296 = vmatmul.mubr.f32.gmra.mxu0 %v8006
    %v8297 = vpop.f32.mrf.mxu0
    %v8298 = vadd.f32 0.0, %v8297
    %v8299 = vpop.f32.mrf.mxu0
    %8300 = vmatprep.mubr.f32.mxu0 0.0
    %8301 = vmatmul.mubr.f32.gmra.mxu0 %v8009
    %v8302 = vpop.f32.mrf.mxu0
    %v8303 = vadd.f32 0.0, %v8302
    %v8304 = vpop.f32.mrf.mxu0
    %8305 = vmatprep.mubr.f32.mxu0 0.0
    %8306 = vmatmul.mubr.f32.gmra.mxu0 %v8012
    %v8307 = vpop.f32.mrf.mxu0
    %v8308 = vadd.f32 0.0, %v8307
    %v8309 = vpop.f32.mrf.mxu0
    %8310 = vmatprep.mubr.f32.mxu0 0.0
    %8311 = vmatmul.mubr.f32.gmra.mxu0 %v8015
    %v8312 = vpop.f32.mrf.mxu0
    %v8313 = vadd.f32 0.0, %v8312
    %v8314 = vpop.f32.mrf.mxu0
    %8315 = vmatprep.mubr.f32.mxu0 0.0
    %8316 = vmatmul.mubr.f32.gmra.mxu0 %v8018
    %v8317 = vpop.f32.mrf.mxu0
    %v8318 = vadd.f32 0.0, %v8317
    %v8319 = vpop.f32.mrf.mxu0
    %8320 = vmatprep.mubr.f32.mxu0 0.0
    %8321 = vmatmul.mubr.f32.gmra.mxu0 %v8021
    %v8322 = vpop.f32.mrf.mxu0
    %v8323 = vadd.f32 0.0, %v8322
    %v8324 = vpop.f32.mrf.mxu0
    %8325 = vmatprep.mubr.f32.mxu0 0.0
    %8326 = vmatmul.mubr.f32.gmra.mxu0 %v8024
    %v8327 = vpop.f32.mrf.mxu0
    %v8328 = vadd.f32 0.0, %v8327
    %v8329 = vpop.f32.mrf.mxu0
    %8330 = vmatprep.mubr.f32.mxu0 0.0
    %8331 = vmatmul.mubr.f32.gmra.mxu0 %v8027
    %v8332 = vpop.f32.mrf.mxu0
    %v8333 = vadd.f32 0.0, %v8332
    %v8334 = vpop.f32.mrf.mxu0
    %8335 = vmatprep.mubr.f32.mxu0 0.0
    %8336 = vmatmul.mubr.f32.gmra.mxu0 %v8030
    %v8337 = vpop.f32.mrf.mxu0
    %v8338 = vadd.f32 0.0, %v8337
    %v8339 = vpop.f32.mrf.mxu0
    %8340 = vmatprep.mubr.f32.mxu0 0.0
    %8341 = vmatmul.mubr.f32.gmra.mxu0 %v8033
    %v8342 = vpop.f32.mrf.mxu0
    %v8343 = vadd.f32 0.0, %v8342
    %v8344 = vpop.f32.mrf.mxu0
    %8345 = vmatprep.mubr.f32.mxu0 0.0
    %8346 = vmatmul.mubr.f32.gmra.mxu0 %v8036
    %v8347 = vpop.f32.mrf.mxu0
    %v8348 = vadd.f32 0.0, %v8347
    %v8349 = vpop.f32.mrf.mxu0
    %8350 = vmatprep.mubr.f32.mxu0 0.0
    %8351 = vmatmul.mubr.f32.gmra.mxu0 %v8039
    %v8352 = vpop.f32.mrf.mxu0
    %v8353 = vadd.f32 0.0, %v8352
    %v8354 = vpop.f32.mrf.mxu0
    %8355 = vmatprep.mubr.f32.mxu0 0.0
    %8356 = vmatmul.mubr.f32.gmra.mxu0 %v8042
    %v8357 = vpop.f32.mrf.mxu0
    %v8358 = vadd.f32 0.0, %v8357
    %v8359 = vpop.f32.mrf.mxu0
    %8360 = vmatprep.mubr.f32.mxu0 0.0
    %8361 = vmatmul.mubr.f32.gmra.mxu0 %v8045
    %v8362 = vpop.f32.mrf.mxu0
    %v8363 = vadd.f32 0.0, %v8362
    %v8364 = vpop.f32.mrf.mxu0
    %8365 = vmatprep.mubr.f32.mxu0 0.0
    %8366 = vmatmul.mubr.f32.gmra.mxu0 %v8048
    %v8367 = vpop.f32.mrf.mxu0
    %v8368 = vadd.f32 0.0, %v8367
    %v8369 = vpop.f32.mrf.mxu0
    %8370 = vmatprep.mubr.f32.mxu0 0.0
    %8371 = vmatmul.mubr.f32.gmra.mxu0 %v8051
    %v8372 = vpop.f32.mrf.mxu0
    %v8373 = vadd.f32 0.0, %v8372
    %v8374 = vpop.f32.mrf.mxu0
    %8375 = vmatprep.mubr.f32.mxu0 0.0
    %8376 = vmatmul.mubr.f32.gmra.mxu0 %v8054
    %v8377 = vpop.f32.mrf.mxu0
    %v8378 = vadd.f32 0.0, %v8377
    %v8379 = vpop.f32.mrf.mxu0
    %8380 = vmatprep.mubr.f32.mxu0 0.0
    %8381 = vmatmul.mubr.f32.gmra.mxu0 %v8057
    %v8382 = vpop.f32.mrf.mxu0
    %v8383 = vadd.f32 0.0, %v8382
    %v8384 = vpop.f32.mrf.mxu0
    %8385 = vmatprep.mubr.f32.mxu0 0.0
    %8386 = vmatmul.mubr.f32.gmra.mxu0 %v8060
    %v8387 = vpop.f32.mrf.mxu0
    %v8388 = vadd.f32 0.0, %v8387
    %v8389 = vpop.f32.mrf.mxu0
    %8390 = vmatprep.mubr.f32.mxu0 0.0
    %8391 = vmatmul.mubr.f32.gmra.mxu0 %v8063
    %v8392 = vpop.f32.mrf.mxu0
    %v8393 = vadd.f32 0.0, %v8392
    %v8394 = vpop.f32.mrf.mxu0
    %8395 = vmatprep.mubr.f32.mxu0 0.0
    %8396 = vmatmul.mubr.f32.gmra.mxu0 %v8066
    %v8397 = vpop.f32.mrf.mxu0
    %v8398 = vadd.f32 0.0, %v8397
    %v8399 = vpop.f32.mrf.mxu0
    %8400 = vmatprep.mubr.f32.mxu0 0.0
    %8401 = vmatmul.mubr.f32.gmra.mxu0 %v8069
    %v8402 = vpop.f32.mrf.mxu0
    %v8403 = vadd.f32 0.0, %v8402
    %v8404 = vpop.f32.mrf.mxu0
    %8405 = vmatprep.mubr.f32.mxu0 0.0
    %8406 = vmatmul.mubr.f32.gmra.mxu0 %v8072
    %v8407 = vpop.f32.mrf.mxu0
    %v8408 = vadd.f32 0.0, %v8407
    %v8409 = vpop.f32.mrf.mxu0
    %8410 = vmatprep.mubr.f32.mxu0 0.0
    %8411 = vmatmul.mubr.f32.gmra.mxu0 %v8075
    %v8412 = vpop.f32.mrf.mxu0
    %v8413 = vadd.f32 0.0, %v8412
    %v8414 = vpop.f32.mrf.mxu0
    %8415 = vmatprep.mubr.f32.mxu0 0.0
    %8416 = vmatmul.mubr.f32.gmra.mxu0 %v8078
    %v8417 = vpop.f32.mrf.mxu0
    %v8418 = vadd.f32 0.0, %v8417
    %v8419 = vpop.f32.mrf.mxu0
    %8420 = vmatprep.mubr.f32.mxu0 0.0
    %8421 = vmatmul.mubr.f32.gmra.mxu0 %v8081
    %v8422 = vpop.f32.mrf.mxu0
    %v8423 = vadd.f32 0.0, %v8422
    %v8424 = vpop.f32.mrf.mxu0
    %8425 = vmatprep.mubr.f32.mxu0 0.0
    %8426 = vmatmul.mubr.f32.gmra.mxu0 %v8084
    %v8427 = vpop.f32.mrf.mxu0
    %v8428 = vadd.f32 0.0, %v8427
    %v8429 = vpop.f32.mrf.mxu0
    %8430 = vmatprep.mubr.f32.mxu0 0.0
    %8431 = vmatmul.mubr.f32.gmra.mxu0 %v8087
    %v8432 = vpop.f32.mrf.mxu0
    %v8433 = vadd.f32 0.0, %v8432
    %v8434 = vpop.f32.mrf.mxu0
    %8435 = vmatprep.mubr.f32.mxu0 0.0
    %8436 = vmatmul.mubr.f32.gmra.mxu0 %v8090
    %v8437 = vpop.f32.mrf.mxu0
    %v8438 = vadd.f32 0.0, %v8437
    %v8439 = vpop.f32.mrf.mxu0
    %8440 = vmatprep.mubr.f32.mxu0 0.0
    %8441 = vmatmul.mubr.f32.gmra.mxu0 %v8093
    %v8442 = vpop.f32.mrf.mxu0
    %v8443 = vadd.f32 0.0, %v8442
    %v8444 = vpop.f32.mrf.mxu0
    %8445 = vmatprep.mubr.f32.mxu0 0.0
    %8446 = vmatmul.mubr.f32.gmra.mxu0 %v8096
    %v8447 = vpop.f32.mrf.mxu0
    %v8448 = vadd.f32 0.0, %v8447
    %v8449 = vpop.f32.mrf.mxu0
    %8450 = vmatprep.mubr.f32.mxu0 0.0
    %8451 = vmatmul.mubr.f32.gmra.mxu0 %v8099
    %v8452 = vpop.f32.mrf.mxu0
    %v8453 = vadd.f32 0.0, %v8452
    %v8454 = vpop.f32.mrf.mxu0
    %8455 = vmatprep.mubr.f32.mxu0 0.0
    %8456 = vmatmul.mubr.f32.gmra.mxu0 %v8102
    %v8457 = vpop.f32.mrf.mxu0
    %v8458 = vadd.f32 0.0, %v8457
    %v8459 = vpop.f32.mrf.mxu0
    %8460 = vmatprep.mubr.f32.mxu0 0.0
    %8461 = vmatmul.mubr.f32.gmra.mxu0 %v8105
    %v8462 = vpop.f32.mrf.mxu0
    %v8463 = vadd.f32 0.0, %v8462
    %v8464 = vpop.f32.mrf.mxu0
    %8465 = vmatprep.mubr.f32.mxu0 0.0
    %8466 = vmatmul.mubr.f32.gmra.mxu0 %v8108
    %v8467 = vpop.f32.mrf.mxu0
    %v8468 = vadd.f32 0.0, %v8467
    %v8469 = vpop.f32.mrf.mxu0
    %8470 = vmatprep.mubr.f32.mxu0 0.0
    %8471 = vmatmul.mubr.f32.gmra.mxu0 %v8111
    %v8472 = vpop.f32.mrf.mxu0
    %v8473 = vadd.f32 0.0, %v8472
    %v8474 = vpop.f32.mrf.mxu0
    %8475 = vmatprep.mubr.f32.mxu0 0.0
    %8476 = vmatmul.mubr.f32.gmra.mxu0 %v8114
    %v8477 = vpop.f32.mrf.mxu0
    %v8478 = vadd.f32 0.0, %v8477
    %v8479 = vpop.f32.mrf.mxu0
    %8480 = vmatprep.mubr.f32.mxu0 0.0
    %8481 = vmatmul.mubr.f32.gmra.mxu0 %v8117
    %v8482 = vpop.f32.mrf.mxu0
    %v8483 = vadd.f32 0.0, %v8482
    %v8484 = vpop.f32.mrf.mxu0
    %8485 = vmatprep.mubr.f32.mxu0 0.0
    %8486 = vmatmul.mubr.f32.gmra.mxu0 %v8120
    %v8487 = vpop.f32.mrf.mxu0
    %v8488 = vadd.f32 0.0, %v8487
    %v8489 = vpop.f32.mrf.mxu0
    %8490 = vmatprep.mubr.f32.mxu0 0.0
    %8491 = vmatmul.mubr.f32.gmra.mxu0 %v8123
    %v8492 = vpop.f32.mrf.mxu0
    %v8493 = vadd.f32 0.0, %v8492
    %v8494 = vpop.f32.mrf.mxu0
    %8495 = vmatprep.mubr.f32.mxu0 0.0
    %8496 = vmatmul.mubr.f32.gmra.mxu0 %v8126
    %v8497 = vpop.f32.mrf.mxu0
    %v8498 = vadd.f32 0.0, %v8497
    %v8499 = vpop.f32.mrf.mxu0
    %8500 = vmatprep.mubr.f32.mxu0 0.0
    %8501 = vmatmul.mubr.f32.gmra.mxu0 %v8129
    %v8502 = vpop.f32.mrf.mxu0
    %v8503 = vadd.f32 0.0, %v8502
    %v8504 = vpop.f32.mrf.mxu0
    %8505 = vmatprep.mubr.f32.mxu0 0.0
    %8506 = vmatmul.mubr.f32.gmra.mxu0 %v8132
    %v8507 = vpop.f32.mrf.mxu0
    %v8508 = vadd.f32 0.0, %v8507
    %v8509 = vpop.f32.mrf.mxu0
    %8510 = vmatprep.mubr.f32.mxu0 0.0
    %8511 = vmatmul.mubr.f32.gmra.mxu0 %v8135
    %v8512 = vpop.f32.mrf.mxu0
    %v8513 = vadd.f32 0.0, %v8512
    %v8514 = vpop.f32.mrf.mxu0
    %8515 = vmatprep.mubr.f32.mxu0 0.0
    %8516 = vmatmul.mubr.f32.gmra.mxu0 %v8138
    %v8517 = vpop.f32.mrf.mxu0
    %v8518 = vadd.f32 0.0, %v8517
    %v8519 = vpop.f32.mrf.mxu0
    %8520 = vmatprep.mubr.f32.mxu0 0.0
    %8521 = vmatmul.mubr.f32.gmra.mxu0 %v8141
    %v8522 = vpop.f32.mrf.mxu0
    %v8523 = vadd.f32 0.0, %v8522
    %v8524 = vpop.f32.mrf.mxu0
    %8525 = vmatprep.mubr.f32.mxu0 0.0
    %8526 = vmatmul.mubr.f32.gmra.mxu0 %v8144
    %v8527 = vpop.f32.mrf.mxu0
    %v8528 = vadd.f32 0.0, %v8527
    %v8529 = vpop.f32.mrf.mxu0
    %8530 = vdwg.mxu0
    %v8531 = vadd.f32 %v7567, %v8213
    %v8532 = vadd.f32 %v7572, %v8218
    %v8533 = vadd.f32 %v7577, %v8223
    %v8534 = vadd.f32 %v7582, %v8228
    %v8535 = vadd.f32 %v7587, %v8233
    %v8536 = vadd.f32 %v7592, %v8238
    %v8537 = vadd.f32 %v7597, %v8243
    %v8538 = vadd.f32 %v7602, %v8248
    %v8539 = vadd.f32 %v7607, %v8253
    %v8540 = vadd.f32 %v7612, %v8258
    %v8541 = vadd.f32 %v7617, %v8263
    %v8542 = vadd.f32 %v7622, %v8268
    %v8543 = vadd.f32 %v7627, %v8273
    %v8544 = vadd.f32 %v7632, %v8278
    %v8545 = vadd.f32 %v7637, %v8283
    %v8546 = vadd.f32 %v7642, %v8288
    %v8547 = vadd.f32 %v7647, %v8293
    %v8548 = vadd.f32 %v7652, %v8298
    %v8549 = vadd.f32 %v7657, %v8303
    %v8550 = vadd.f32 %v7662, %v8308
    %v8551 = vadd.f32 %v7667, %v8313
    %v8552 = vadd.f32 %v7672, %v8318
    %v8553 = vadd.f32 %v7677, %v8323
    %v8554 = vadd.f32 %v7682, %v8328
    %v8555 = vadd.f32 %v7687, %v8333
    %v8556 = vadd.f32 %v7692, %v8338
    %v8557 = vadd.f32 %v7697, %v8343
    %v8558 = vadd.f32 %v7702, %v8348
    %v8559 = vadd.f32 %v7707, %v8353
    %v8560 = vadd.f32 %v7712, %v8358
    %v8561 = vadd.f32 %v7717, %v8363
    %v8562 = vadd.f32 %v7722, %v8368
    %v8563 = vadd.f32 %v7727, %v8373
    %v8564 = vadd.f32 %v7732, %v8378
    %v8565 = vadd.f32 %v7737, %v8383
    %v8566 = vadd.f32 %v7742, %v8388
    %v8567 = vadd.f32 %v7747, %v8393
    %v8568 = vadd.f32 %v7752, %v8398
    %v8569 = vadd.f32 %v7757, %v8403
    %v8570 = vadd.f32 %v7762, %v8408
    %v8571 = vadd.f32 %v7767, %v8413
    %v8572 = vadd.f32 %v7772, %v8418
    %v8573 = vadd.f32 %v7777, %v8423
    %v8574 = vadd.f32 %v7782, %v8428
    %v8575 = vadd.f32 %v7787, %v8433
    %v8576 = vadd.f32 %v7792, %v8438
    %v8577 = vadd.f32 %v7797, %v8443
    %v8578 = vadd.f32 %v7802, %v8448
    %v8579 = vadd.f32 %v7807, %v8453
    %v8580 = vadd.f32 %v7812, %v8458
    %v8581 = vadd.f32 %v7817, %v8463
    %v8582 = vadd.f32 %v7822, %v8468
    %v8583 = vadd.f32 %v7827, %v8473
    %v8584 = vadd.f32 %v7832, %v8478
    %v8585 = vadd.f32 %v7837, %v8483
    %v8586 = vadd.f32 %v7842, %v8488
    %v8587 = vadd.f32 %v7847, %v8493
    %v8588 = vadd.f32 %v7852, %v8498
    %v8589 = vadd.f32 %v7857, %v8503
    %v8590 = vadd.f32 %v7862, %v8508
    %v8591 = vadd.f32 %v7867, %v8513
    %v8592 = vadd.f32 %v7872, %v8518
    %v8593 = vadd.f32 %v7877, %v8523
    %v8594 = vadd.f32 %v7882, %v8528
    %v8595 = vld [vmem:[%s6529] sm:$0xff]
    %v8596 = vld [vmem:[%s6529 + $0x8] sm:$0xff]
    %v8597 = vld [vmem:[%s6529 + $0x18] sm:$0xff]
    %v8598 = vld [vmem:[%s6529 + $0x20] sm:$0xff]
    %v8599 = vld [vmem:[%s6529 + $0x30] sm:$0xff]
    %v8600 = vld [vmem:[%s6529 + $0x38] sm:$0xff]
    %v8601 = vld [vmem:[%s6529 + $0x48] sm:$0xff]
    %v8602 = vld [vmem:[%s6529 + $0x50] sm:$0xff]
    %v8603 = vld [vmem:[%s6529 + $0x60] sm:$0xff]
    %v8604 = vld [vmem:[%s6529 + $0x68] sm:$0xff]
    %v8605 = vld [vmem:[%s6529 + $0x78] sm:$0xff]
    %v8606 = vld [vmem:[%s6529 + $0x80] sm:$0xff]
    %v8607 = vld [vmem:[%s6529 + $0x90] sm:$0xff]
    %v8608 = vld [vmem:[%s6529 + $0x98] sm:$0xff]
    %v8609 = vld [vmem:[%s6529 + $0xa8] sm:$0xff]
    %v8610 = vld [vmem:[%s6529 + $0xb0] sm:$0xff]
    %v8611 = vld [vmem:[%s6529 + $0xc0] sm:$0xff]
    %v8612 = vld [vmem:[%s6529 + $0xc8] sm:$0xff]
    %v8613 = vld [vmem:[%s6529 + $0xd8] sm:$0xff]
    %v8614 = vld [vmem:[%s6529 + $0xe0] sm:$0xff]
    %v8615 = vld [vmem:[%s6529 + $0xf0] sm:$0xff]
    %v8616 = vld [vmem:[%s6529 + $0xf8] sm:$0xff]
    %v8617 = vld [vmem:[%s6529 + $0x108] sm:$0xff]
    %v8618 = vld [vmem:[%s6529 + $0x110] sm:$0xff]
    %v8619 = vld [vmem:[%s6529 + $0x120] sm:$0xff]
    %v8620 = vld [vmem:[%s6529 + $0x128] sm:$0xff]
    %v8621 = vld [vmem:[%s6529 + $0x138] sm:$0xff]
    %v8622 = vld [vmem:[%s6529 + $0x140] sm:$0xff]
    %v8623 = vld [vmem:[%s6529 + $0x150] sm:$0xff]
    %v8624 = vld [vmem:[%s6529 + $0x158] sm:$0xff]
    %v8625 = vld [vmem:[%s6529 + $0x168] sm:$0xff]
    %v8626 = vld [vmem:[%s6529 + $0x170] sm:$0xff]
    %v8627 = vld [vmem:[%s6529 + $0x1b0] sm:$0xff]
    %v8628 = vld [vmem:[%s6529 + $0x1b8] sm:$0xff]
    %v8629 = vld [vmem:[%s6529 + $0x1c8] sm:$0xff]
    %v8630 = vld [vmem:[%s6529 + $0x1d0] sm:$0xff]
    %v8631 = vld [vmem:[%s6529 + $0x1e0] sm:$0xff]
    %v8632 = vld [vmem:[%s6529 + $0x1e8] sm:$0xff]
    %v8633 = vld [vmem:[%s6529 + $0x1f8] sm:$0xff]
    %v8634 = vld [vmem:[%s6529 + $0x200] sm:$0xff]
    %v8635 = vld [vmem:[%s6529 + $0x210] sm:$0xff]
    %v8636 = vld [vmem:[%s6529 + $0x218] sm:$0xff]
    %v8637 = vld [vmem:[%s6529 + $0x228] sm:$0xff]
    %v8638 = vld [vmem:[%s6529 + $0x230] sm:$0xff]
    %v8639 = vld [vmem:[%s6529 + $0x240] sm:$0xff]
    %v8640 = vld [vmem:[%s6529 + $0x248] sm:$0xff]
    %v8641 = vld [vmem:[%s6529 + $0x258] sm:$0xff]
    %v8642 = vld [vmem:[%s6529 + $0x260] sm:$0xff]
    %v8643 = vld [vmem:[%s6529 + $0x270] sm:$0xff]
    %v8644 = vld [vmem:[%s6529 + $0x278] sm:$0xff]
    %v8645 = vld [vmem:[%s6529 + $0x288] sm:$0xff]
    %v8646 = vld [vmem:[%s6529 + $0x290] sm:$0xff]
    %v8647 = vld [vmem:[%s6529 + $0x2a0] sm:$0xff]
    %v8648 = vld [vmem:[%s6529 + $0x2a8] sm:$0xff]
    %v8649 = vld [vmem:[%s6529 + $0x2b8] sm:$0xff]
    %v8650 = vld [vmem:[%s6529 + $0x2c0] sm:$0xff]
    %v8651 = vld [vmem:[%s6529 + $0x2d0] sm:$0xff]
    %v8652 = vld [vmem:[%s6529 + $0x2d8] sm:$0xff]
    %v8653 = vld [vmem:[%s6529 + $0x2e8] sm:$0xff]
    %v8654 = vld [vmem:[%s6529 + $0x2f0] sm:$0xff]
    %v8655 = vld [vmem:[%s6529 + $0x300] sm:$0xff]
    %v8656 = vld [vmem:[%s6529 + $0x308] sm:$0xff]
    %v8657 = vld [vmem:[%s6529 + $0x318] sm:$0xff]
    %v8658 = vld [vmem:[%s6529 + $0x320] sm:$0xff]
    %s8659 = scalar_lea.vmem %s3, 96
    %v8660 = vld [vmem:[%s8659] sm:$0xff]
    %v8661 = vld [vmem:[%s8659 + $0x8] sm:$0xff]
    %v8662 = vld [vmem:[%s8659 + $0x10] sm:$0xff]
    %v8663 = vld [vmem:[%s8659 + $0x18] sm:$0xff]
    %v8665 = vsel %vm158, %v8595, 0
    %v8668 = vsel %vm158, %v8596, 0
    %v8671 = vsel %vm158, %v8597, 0
    %v8674 = vsel %vm158, %v8598, 0
    %v8677 = vsel %vm158, %v8599, 0
    %v8680 = vsel %vm158, %v8600, 0
    %v8683 = vsel %vm158, %v8601, 0
    %v8686 = vsel %vm158, %v8602, 0
    %v8689 = vsel %vm158, %v8603, 0
    %v8692 = vsel %vm158, %v8604, 0
    %v8695 = vsel %vm158, %v8605, 0
    %v8698 = vsel %vm158, %v8606, 0
    %v8701 = vsel %vm158, %v8607, 0
    %v8704 = vsel %vm158, %v8608, 0
    %v8707 = vsel %vm158, %v8609, 0
    %v8710 = vsel %vm158, %v8610, 0
    %v8713 = vsel %vm158, %v8611, 0
    %v8716 = vsel %vm158, %v8612, 0
    %v8719 = vsel %vm158, %v8613, 0
    %v8722 = vsel %vm158, %v8614, 0
    %v8725 = vsel %vm158, %v8615, 0
    %v8728 = vsel %vm158, %v8616, 0
    %v8731 = vsel %vm158, %v8617, 0
    %v8734 = vsel %vm158, %v8618, 0
    %v8737 = vsel %vm158, %v8619, 0
    %v8740 = vsel %vm158, %v8620, 0
    %v8743 = vsel %vm158, %v8621, 0
    %v8746 = vsel %vm158, %v8622, 0
    %v8749 = vsel %vm158, %v8623, 0
    %v8752 = vsel %vm158, %v8624, 0
    %v8755 = vsel %vm158, %v8625, 0
    %v8758 = vsel %vm158, %v8626, 0
    %v8761 = vsel %vm158, %v8627, 0
    %v8764 = vsel %vm158, %v8628, 0
    %v8767 = vsel %vm158, %v8629, 0
    %v8770 = vsel %vm158, %v8630, 0
    %v8773 = vsel %vm158, %v8631, 0
    %v8776 = vsel %vm158, %v8632, 0
    %v8779 = vsel %vm158, %v8633, 0
    %v8782 = vsel %vm158, %v8634, 0
    %v8785 = vsel %vm158, %v8635, 0
    %v8788 = vsel %vm158, %v8636, 0
    %v8791 = vsel %vm158, %v8637, 0
    %v8794 = vsel %vm158, %v8638, 0
    %v8797 = vsel %vm158, %v8639, 0
    %v8800 = vsel %vm158, %v8640, 0
    %v8803 = vsel %vm158, %v8641, 0
    %v8806 = vsel %vm158, %v8642, 0
    %v8809 = vsel %vm158, %v8643, 0
    %v8812 = vsel %vm158, %v8644, 0
    %v8815 = vsel %vm158, %v8645, 0
    %v8818 = vsel %vm158, %v8646, 0
    %v8821 = vsel %vm158, %v8647, 0
    %v8824 = vsel %vm158, %v8648, 0
    %v8827 = vsel %vm158, %v8649, 0
    %v8830 = vsel %vm158, %v8650, 0
    %v8833 = vsel %vm158, %v8651, 0
    %v8836 = vsel %vm158, %v8652, 0
    %v8839 = vsel %vm158, %v8653, 0
    %v8842 = vsel %vm158, %v8654, 0
    %v8845 = vsel %vm158, %v8655, 0
    %v8848 = vsel %vm158, %v8656, 0
    %v8851 = vsel %vm158, %v8657, 0
    %v8854 = vsel %vm158, %v8658, 0
    %8856 = vmatprep.subr.mxu0 0.0
    %8857 = vmatpush1.msra.mxu0 0.0
    %8858 = vmatprep.subr.mxu0 0.0
    %8859 = vmatpush1.msra.mxu0 0.0
    %8860 = vmatprep.subr.mxu0 0.0
    %8861 = vmatpush1.msra.mxu0 0.0
    %8862 = vmatprep.subr.mxu0 0.0
    %8863 = vmatpush1.msra.mxu0 0.0
    %8864 = vmatprep.subr.mxu0 0.0
    %8865 = vmatpush1.msra.mxu0 0.0
    %8866 = vmatprep.subr.mxu0 0.0
    %8867 = vmatpush1.msra.mxu0 0.0
    %8868 = vmatprep.subr.mxu0 0.0
    %8869 = vmatpush1.msra.mxu0 0.0
    %8870 = vmatprep.subr.mxu0 0.0
    %8871 = vmatpush1.msra.mxu0 0.0
    %8872 = vmatprep.subr.mxu0 0.0
    %8873 = vmatpush1.msra.mxu0 0.0
    %8874 = vmatprep.subr.mxu0 0.0
    %8875 = vmatpush1.msra.mxu0 0.0
    %8876 = vmatprep.subr.mxu0 0.0
    %8877 = vmatpush1.msra.mxu0 0.0
    %8878 = vmatprep.subr.mxu0 0.0
    %8879 = vmatpush1.msra.mxu0 0.0
    %8880 = vmatprep.subr.mxu0 0.0
    %8881 = vmatpush1.msra.mxu0 %v8663
    %8882 = vmatprep.subr.mxu0 0.0
    %8883 = vmatpush1.msra.mxu0 %v8662
    %8884 = vmatprep.subr.mxu0 0.0
    %8885 = vmatpush1.msra.mxu0 %v8661
    %8886 = vmatprep.subr.mxu0 0.0
    %8887 = vmatpush1.msra.mxu0 %v8660
    %8888 = vmatprep.subr.mxu0 0.0
    %8889 = vmatpush2.msra.mxu0 0.0
    %8890 = vmatprep.subr.mxu0 0.0
    %8891 = vmatpush2.msra.mxu0 0.0
    %8892 = vmatprep.subr.mxu0 0.0
    %8893 = vmatpush2.msra.mxu0 0.0
    %8894 = vmatprep.subr.mxu0 0.0
    %8895 = vmatpush2.msra.mxu0 0.0
    %8896 = vmatprep.subr.mxu0 0.0
    %8897 = vmatpush2.msra.mxu0 0.0
    %8898 = vmatprep.subr.mxu0 0.0
    %8899 = vmatpush2.msra.mxu0 0.0
    %8900 = vmatprep.subr.mxu0 0.0
    %8901 = vmatpush2.msra.mxu0 0.0
    %8902 = vmatprep.subr.mxu0 0.0
    %8903 = vmatpush2.msra.mxu0 0.0
    %8904 = vmatprep.subr.mxu0 0.0
    %8905 = vmatpush2.msra.mxu0 0.0
    %8906 = vmatprep.subr.mxu0 0.0
    %8907 = vmatpush2.msra.mxu0 0.0
    %8908 = vmatprep.subr.mxu0 0.0
    %8909 = vmatpush2.msra.mxu0 0.0
    %8910 = vmatprep.subr.mxu0 0.0
    %8911 = vmatpush2.msra.mxu0 0.0
    %8912 = vmatprep.subr.mxu0 0.0
    %8913 = vmatpush2.msra.mxu0 0.0
    %8914 = vmatprep.subr.mxu0 0.0
    %8915 = vmatpush2.msra.mxu0 0.0
    %8916 = vmatprep.subr.mxu0 0.0
    %8917 = vmatpush2.msra.mxu0 0.0
    %8918 = vmatprep.subr.mxu0 0.0
    %8919 = vmatpush2.msra.mxu0 0.0
    %8920 = vmatprep.mubr.f32.mxu0 0.0
    %8921 = vmatmul.mubr.f32.gmra.mxu0 %v8665
    %v8922 = vpop.f32.mrf.mxu0
    %v8923 = vadd.f32 0.0, %v8922
    %v8924 = vpop.f32.mrf.mxu0
    %8925 = vmatprep.mubr.f32.mxu0 0.0
    %8926 = vmatmul.mubr.f32.gmra.mxu0 %v8668
    %v8927 = vpop.f32.mrf.mxu0
    %v8928 = vadd.f32 0.0, %v8927
    %v8929 = vpop.f32.mrf.mxu0
    %8930 = vmatprep.mubr.f32.mxu0 0.0
    %8931 = vmatmul.mubr.f32.gmra.mxu0 %v8671
    %v8932 = vpop.f32.mrf.mxu0
    %v8933 = vadd.f32 0.0, %v8932
    %v8934 = vpop.f32.mrf.mxu0
    %8935 = vmatprep.mubr.f32.mxu0 0.0
    %8936 = vmatmul.mubr.f32.gmra.mxu0 %v8674
    %v8937 = vpop.f32.mrf.mxu0
    %v8938 = vadd.f32 0.0, %v8937
    %v8939 = vpop.f32.mrf.mxu0
    %8940 = vmatprep.mubr.f32.mxu0 0.0
    %8941 = vmatmul.mubr.f32.gmra.mxu0 %v8677
    %v8942 = vpop.f32.mrf.mxu0
    %v8943 = vadd.f32 0.0, %v8942
    %v8944 = vpop.f32.mrf.mxu0
    %8945 = vmatprep.mubr.f32.mxu0 0.0
    %8946 = vmatmul.mubr.f32.gmra.mxu0 %v8680
    %v8947 = vpop.f32.mrf.mxu0
    %v8948 = vadd.f32 0.0, %v8947
    %v8949 = vpop.f32.mrf.mxu0
    %8950 = vmatprep.mubr.f32.mxu0 0.0
    %8951 = vmatmul.mubr.f32.gmra.mxu0 %v8683
    %v8952 = vpop.f32.mrf.mxu0
    %v8953 = vadd.f32 0.0, %v8952
    %v8954 = vpop.f32.mrf.mxu0
    %8955 = vmatprep.mubr.f32.mxu0 0.0
    %8956 = vmatmul.mubr.f32.gmra.mxu0 %v8686
    %v8957 = vpop.f32.mrf.mxu0
    %v8958 = vadd.f32 0.0, %v8957
    %v8959 = vpop.f32.mrf.mxu0
    %8960 = vmatprep.mubr.f32.mxu0 0.0
    %8961 = vmatmul.mubr.f32.gmra.mxu0 %v8689
    %v8962 = vpop.f32.mrf.mxu0
    %v8963 = vadd.f32 0.0, %v8962
    %v8964 = vpop.f32.mrf.mxu0
    %8965 = vmatprep.mubr.f32.mxu0 0.0
    %8966 = vmatmul.mubr.f32.gmra.mxu0 %v8692
    %v8967 = vpop.f32.mrf.mxu0
    %v8968 = vadd.f32 0.0, %v8967
    %v8969 = vpop.f32.mrf.mxu0
    %8970 = vmatprep.mubr.f32.mxu0 0.0
    %8971 = vmatmul.mubr.f32.gmra.mxu0 %v8695
    %v8972 = vpop.f32.mrf.mxu0
    %v8973 = vadd.f32 0.0, %v8972
    %v8974 = vpop.f32.mrf.mxu0
    %8975 = vmatprep.mubr.f32.mxu0 0.0
    %8976 = vmatmul.mubr.f32.gmra.mxu0 %v8698
    %v8977 = vpop.f32.mrf.mxu0
    %v8978 = vadd.f32 0.0, %v8977
    %v8979 = vpop.f32.mrf.mxu0
    %8980 = vmatprep.mubr.f32.mxu0 0.0
    %8981 = vmatmul.mubr.f32.gmra.mxu0 %v8701
    %v8982 = vpop.f32.mrf.mxu0
    %v8983 = vadd.f32 0.0, %v8982
    %v8984 = vpop.f32.mrf.mxu0
    %8985 = vmatprep.mubr.f32.mxu0 0.0
    %8986 = vmatmul.mubr.f32.gmra.mxu0 %v8704
    %v8987 = vpop.f32.mrf.mxu0
    %v8988 = vadd.f32 0.0, %v8987
    %v8989 = vpop.f32.mrf.mxu0
    %8990 = vmatprep.mubr.f32.mxu0 0.0
    %8991 = vmatmul.mubr.f32.gmra.mxu0 %v8707
    %v8992 = vpop.f32.mrf.mxu0
    %v8993 = vadd.f32 0.0, %v8992
    %v8994 = vpop.f32.mrf.mxu0
    %8995 = vmatprep.mubr.f32.mxu0 0.0
    %8996 = vmatmul.mubr.f32.gmra.mxu0 %v8710
    %v8997 = vpop.f32.mrf.mxu0
    %v8998 = vadd.f32 0.0, %v8997
    %v8999 = vpop.f32.mrf.mxu0
    %9000 = vmatprep.mubr.f32.mxu0 0.0
    %9001 = vmatmul.mubr.f32.gmra.mxu0 %v8713
    %v9002 = vpop.f32.mrf.mxu0
    %v9003 = vadd.f32 0.0, %v9002
    %v9004 = vpop.f32.mrf.mxu0
    %9005 = vmatprep.mubr.f32.mxu0 0.0
    %9006 = vmatmul.mubr.f32.gmra.mxu0 %v8716
    %v9007 = vpop.f32.mrf.mxu0
    %v9008 = vadd.f32 0.0, %v9007
    %v9009 = vpop.f32.mrf.mxu0
    %9010 = vmatprep.mubr.f32.mxu0 0.0
    %9011 = vmatmul.mubr.f32.gmra.mxu0 %v8719
    %v9012 = vpop.f32.mrf.mxu0
    %v9013 = vadd.f32 0.0, %v9012
    %v9014 = vpop.f32.mrf.mxu0
    %9015 = vmatprep.mubr.f32.mxu0 0.0
    %9016 = vmatmul.mubr.f32.gmra.mxu0 %v8722
    %v9017 = vpop.f32.mrf.mxu0
    %v9018 = vadd.f32 0.0, %v9017
    %v9019 = vpop.f32.mrf.mxu0
    %9020 = vmatprep.mubr.f32.mxu0 0.0
    %9021 = vmatmul.mubr.f32.gmra.mxu0 %v8725
    %v9022 = vpop.f32.mrf.mxu0
    %v9023 = vadd.f32 0.0, %v9022
    %v9024 = vpop.f32.mrf.mxu0
    %9025 = vmatprep.mubr.f32.mxu0 0.0
    %9026 = vmatmul.mubr.f32.gmra.mxu0 %v8728
    %v9027 = vpop.f32.mrf.mxu0
    %v9028 = vadd.f32 0.0, %v9027
    %v9029 = vpop.f32.mrf.mxu0
    %9030 = vmatprep.mubr.f32.mxu0 0.0
    %9031 = vmatmul.mubr.f32.gmra.mxu0 %v8731
    %v9032 = vpop.f32.mrf.mxu0
    %v9033 = vadd.f32 0.0, %v9032
    %v9034 = vpop.f32.mrf.mxu0
    %9035 = vmatprep.mubr.f32.mxu0 0.0
    %9036 = vmatmul.mubr.f32.gmra.mxu0 %v8734
    %v9037 = vpop.f32.mrf.mxu0
    %v9038 = vadd.f32 0.0, %v9037
    %v9039 = vpop.f32.mrf.mxu0
    %9040 = vmatprep.mubr.f32.mxu0 0.0
    %9041 = vmatmul.mubr.f32.gmra.mxu0 %v8737
    %v9042 = vpop.f32.mrf.mxu0
    %v9043 = vadd.f32 0.0, %v9042
    %v9044 = vpop.f32.mrf.mxu0
    %9045 = vmatprep.mubr.f32.mxu0 0.0
    %9046 = vmatmul.mubr.f32.gmra.mxu0 %v8740
    %v9047 = vpop.f32.mrf.mxu0
    %v9048 = vadd.f32 0.0, %v9047
    %v9049 = vpop.f32.mrf.mxu0
    %9050 = vmatprep.mubr.f32.mxu0 0.0
    %9051 = vmatmul.mubr.f32.gmra.mxu0 %v8743
    %v9052 = vpop.f32.mrf.mxu0
    %v9053 = vadd.f32 0.0, %v9052
    %v9054 = vpop.f32.mrf.mxu0
    %9055 = vmatprep.mubr.f32.mxu0 0.0
    %9056 = vmatmul.mubr.f32.gmra.mxu0 %v8746
    %v9057 = vpop.f32.mrf.mxu0
    %v9058 = vadd.f32 0.0, %v9057
    %v9059 = vpop.f32.mrf.mxu0
    %9060 = vmatprep.mubr.f32.mxu0 0.0
    %9061 = vmatmul.mubr.f32.gmra.mxu0 %v8749
    %v9062 = vpop.f32.mrf.mxu0
    %v9063 = vadd.f32 0.0, %v9062
    %v9064 = vpop.f32.mrf.mxu0
    %9065 = vmatprep.mubr.f32.mxu0 0.0
    %9066 = vmatmul.mubr.f32.gmra.mxu0 %v8752
    %v9067 = vpop.f32.mrf.mxu0
    %v9068 = vadd.f32 0.0, %v9067
    %v9069 = vpop.f32.mrf.mxu0
    %9070 = vmatprep.mubr.f32.mxu0 0.0
    %9071 = vmatmul.mubr.f32.gmra.mxu0 %v8755
    %v9072 = vpop.f32.mrf.mxu0
    %v9073 = vadd.f32 0.0, %v9072
    %v9074 = vpop.f32.mrf.mxu0
    %9075 = vmatprep.mubr.f32.mxu0 0.0
    %9076 = vmatmul.mubr.f32.gmra.mxu0 %v8758
    %v9077 = vpop.f32.mrf.mxu0
    %v9078 = vadd.f32 0.0, %v9077
    %v9079 = vpop.f32.mrf.mxu0
    %9080 = vmatprep.mubr.f32.mxu0 0.0
    %9081 = vmatmul.mubr.f32.gmra.mxu0 %v8761
    %v9082 = vpop.f32.mrf.mxu0
    %v9083 = vadd.f32 0.0, %v9082
    %v9084 = vpop.f32.mrf.mxu0
    %9085 = vmatprep.mubr.f32.mxu0 0.0
    %9086 = vmatmul.mubr.f32.gmra.mxu0 %v8764
    %v9087 = vpop.f32.mrf.mxu0
    %v9088 = vadd.f32 0.0, %v9087
    %v9089 = vpop.f32.mrf.mxu0
    %9090 = vmatprep.mubr.f32.mxu0 0.0
    %9091 = vmatmul.mubr.f32.gmra.mxu0 %v8767
    %v9092 = vpop.f32.mrf.mxu0
    %v9093 = vadd.f32 0.0, %v9092
    %v9094 = vpop.f32.mrf.mxu0
    %9095 = vmatprep.mubr.f32.mxu0 0.0
    %9096 = vmatmul.mubr.f32.gmra.mxu0 %v8770
    %v9097 = vpop.f32.mrf.mxu0
    %v9098 = vadd.f32 0.0, %v9097
    %v9099 = vpop.f32.mrf.mxu0
    %9100 = vmatprep.mubr.f32.mxu0 0.0
    %9101 = vmatmul.mubr.f32.gmra.mxu0 %v8773
    %v9102 = vpop.f32.mrf.mxu0
    %v9103 = vadd.f32 0.0, %v9102
    %v9104 = vpop.f32.mrf.mxu0
    %9105 = vmatprep.mubr.f32.mxu0 0.0
    %9106 = vmatmul.mubr.f32.gmra.mxu0 %v8776
    %v9107 = vpop.f32.mrf.mxu0
    %v9108 = vadd.f32 0.0, %v9107
    %v9109 = vpop.f32.mrf.mxu0
    %9110 = vmatprep.mubr.f32.mxu0 0.0
    %9111 = vmatmul.mubr.f32.gmra.mxu0 %v8779
    %v9112 = vpop.f32.mrf.mxu0
    %v9113 = vadd.f32 0.0, %v9112
    %v9114 = vpop.f32.mrf.mxu0
    %9115 = vmatprep.mubr.f32.mxu0 0.0
    %9116 = vmatmul.mubr.f32.gmra.mxu0 %v8782
    %v9117 = vpop.f32.mrf.mxu0
    %v9118 = vadd.f32 0.0, %v9117
    %v9119 = vpop.f32.mrf.mxu0
    %9120 = vmatprep.mubr.f32.mxu0 0.0
    %9121 = vmatmul.mubr.f32.gmra.mxu0 %v8785
    %v9122 = vpop.f32.mrf.mxu0
    %v9123 = vadd.f32 0.0, %v9122
    %v9124 = vpop.f32.mrf.mxu0
    %9125 = vmatprep.mubr.f32.mxu0 0.0
    %9126 = vmatmul.mubr.f32.gmra.mxu0 %v8788
    %v9127 = vpop.f32.mrf.mxu0
    %v9128 = vadd.f32 0.0, %v9127
    %v9129 = vpop.f32.mrf.mxu0
    %9130 = vmatprep.mubr.f32.mxu0 0.0
    %9131 = vmatmul.mubr.f32.gmra.mxu0 %v8791
    %v9132 = vpop.f32.mrf.mxu0
    %v9133 = vadd.f32 0.0, %v9132
    %v9134 = vpop.f32.mrf.mxu0
    %9135 = vmatprep.mubr.f32.mxu0 0.0
    %9136 = vmatmul.mubr.f32.gmra.mxu0 %v8794
    %v9137 = vpop.f32.mrf.mxu0
    %v9138 = vadd.f32 0.0, %v9137
    %v9139 = vpop.f32.mrf.mxu0
    %9140 = vmatprep.mubr.f32.mxu0 0.0
    %9141 = vmatmul.mubr.f32.gmra.mxu0 %v8797
    %v9142 = vpop.f32.mrf.mxu0
    %v9143 = vadd.f32 0.0, %v9142
    %v9144 = vpop.f32.mrf.mxu0
    %9145 = vmatprep.mubr.f32.mxu0 0.0
    %9146 = vmatmul.mubr.f32.gmra.mxu0 %v8800
    %v9147 = vpop.f32.mrf.mxu0
    %v9148 = vadd.f32 0.0, %v9147
    %v9149 = vpop.f32.mrf.mxu0
    %9150 = vmatprep.mubr.f32.mxu0 0.0
    %9151 = vmatmul.mubr.f32.gmra.mxu0 %v8803
    %v9152 = vpop.f32.mrf.mxu0
    %v9153 = vadd.f32 0.0, %v9152
    %v9154 = vpop.f32.mrf.mxu0
    %9155 = vmatprep.mubr.f32.mxu0 0.0
    %9156 = vmatmul.mubr.f32.gmra.mxu0 %v8806
    %v9157 = vpop.f32.mrf.mxu0
    %v9158 = vadd.f32 0.0, %v9157
    %v9159 = vpop.f32.mrf.mxu0
    %9160 = vmatprep.mubr.f32.mxu0 0.0
    %9161 = vmatmul.mubr.f32.gmra.mxu0 %v8809
    %v9162 = vpop.f32.mrf.mxu0
    %v9163 = vadd.f32 0.0, %v9162
    %v9164 = vpop.f32.mrf.mxu0
    %9165 = vmatprep.mubr.f32.mxu0 0.0
    %9166 = vmatmul.mubr.f32.gmra.mxu0 %v8812
    %v9167 = vpop.f32.mrf.mxu0
    %v9168 = vadd.f32 0.0, %v9167
    %v9169 = vpop.f32.mrf.mxu0
    %9170 = vmatprep.mubr.f32.mxu0 0.0
    %9171 = vmatmul.mubr.f32.gmra.mxu0 %v8815
    %v9172 = vpop.f32.mrf.mxu0
    %v9173 = vadd.f32 0.0, %v9172
    %v9174 = vpop.f32.mrf.mxu0
    %9175 = vmatprep.mubr.f32.mxu0 0.0
    %9176 = vmatmul.mubr.f32.gmra.mxu0 %v8818
    %v9177 = vpop.f32.mrf.mxu0
    %v9178 = vadd.f32 0.0, %v9177
    %v9179 = vpop.f32.mrf.mxu0
    %9180 = vmatprep.mubr.f32.mxu0 0.0
    %9181 = vmatmul.mubr.f32.gmra.mxu0 %v8821
    %v9182 = vpop.f32.mrf.mxu0
    %v9183 = vadd.f32 0.0, %v9182
    %v9184 = vpop.f32.mrf.mxu0
    %9185 = vmatprep.mubr.f32.mxu0 0.0
    %9186 = vmatmul.mubr.f32.gmra.mxu0 %v8824
    %v9187 = vpop.f32.mrf.mxu0
    %v9188 = vadd.f32 0.0, %v9187
    %v9189 = vpop.f32.mrf.mxu0
    %9190 = vmatprep.mubr.f32.mxu0 0.0
    %9191 = vmatmul.mubr.f32.gmra.mxu0 %v8827
    %v9192 = vpop.f32.mrf.mxu0
    %v9193 = vadd.f32 0.0, %v9192
    %v9194 = vpop.f32.mrf.mxu0
    %9195 = vmatprep.mubr.f32.mxu0 0.0
    %9196 = vmatmul.mubr.f32.gmra.mxu0 %v8830
    %v9197 = vpop.f32.mrf.mxu0
    %v9198 = vadd.f32 0.0, %v9197
    %v9199 = vpop.f32.mrf.mxu0
    %9200 = vmatprep.mubr.f32.mxu0 0.0
    %9201 = vmatmul.mubr.f32.gmra.mxu0 %v8833
    %v9202 = vpop.f32.mrf.mxu0
    %v9203 = vadd.f32 0.0, %v9202
    %v9204 = vpop.f32.mrf.mxu0
    %9205 = vmatprep.mubr.f32.mxu0 0.0
    %9206 = vmatmul.mubr.f32.gmra.mxu0 %v8836
    %v9207 = vpop.f32.mrf.mxu0
    %v9208 = vadd.f32 0.0, %v9207
    %v9209 = vpop.f32.mrf.mxu0
    %9210 = vmatprep.mubr.f32.mxu0 0.0
    %9211 = vmatmul.mubr.f32.gmra.mxu0 %v8839
    %v9212 = vpop.f32.mrf.mxu0
    %v9213 = vadd.f32 0.0, %v9212
    %v9214 = vpop.f32.mrf.mxu0
    %9215 = vmatprep.mubr.f32.mxu0 0.0
    %9216 = vmatmul.mubr.f32.gmra.mxu0 %v8842
    %v9217 = vpop.f32.mrf.mxu0
    %v9218 = vadd.f32 0.0, %v9217
    %v9219 = vpop.f32.mrf.mxu0
    %9220 = vmatprep.mubr.f32.mxu0 0.0
    %9221 = vmatmul.mubr.f32.gmra.mxu0 %v8845
    %v9222 = vpop.f32.mrf.mxu0
    %v9223 = vadd.f32 0.0, %v9222
    %v9224 = vpop.f32.mrf.mxu0
    %9225 = vmatprep.mubr.f32.mxu0 0.0
    %9226 = vmatmul.mubr.f32.gmra.mxu0 %v8848
    %v9227 = vpop.f32.mrf.mxu0
    %v9228 = vadd.f32 0.0, %v9227
    %v9229 = vpop.f32.mrf.mxu0
    %9230 = vmatprep.mubr.f32.mxu0 0.0
    %9231 = vmatmul.mubr.f32.gmra.mxu0 %v8851
    %v9232 = vpop.f32.mrf.mxu0
    %v9233 = vadd.f32 0.0, %v9232
    %v9234 = vpop.f32.mrf.mxu0
    %9235 = vmatprep.mubr.f32.mxu0 0.0
    %9236 = vmatmul.mubr.f32.gmra.mxu0 %v8854
    %v9237 = vpop.f32.mrf.mxu0
    %v9238 = vadd.f32 0.0, %v9237
    %v9239 = vpop.f32.mrf.mxu0
    %9240 = vdwg.mxu0
    %v9241 = vadd.f32 %v8531, %v8923
    %v9242 = vadd.f32 %v8532, %v8928
    %v9243 = vadd.f32 %v8533, %v8933
    %v9244 = vadd.f32 %v8534, %v8938
    %v9245 = vadd.f32 %v8535, %v8943
    %v9246 = vadd.f32 %v8536, %v8948
    %v9247 = vadd.f32 %v8537, %v8953
    %v9248 = vadd.f32 %v8538, %v8958
    %v9249 = vadd.f32 %v8539, %v8963
    %v9250 = vadd.f32 %v8540, %v8968
    %v9251 = vadd.f32 %v8541, %v8973
    %v9252 = vadd.f32 %v8542, %v8978
    %v9253 = vadd.f32 %v8543, %v8983
    %v9254 = vadd.f32 %v8544, %v8988
    %v9255 = vadd.f32 %v8545, %v8993
    %v9256 = vadd.f32 %v8546, %v8998
    %v9257 = vadd.f32 %v8547, %v9003
    %v9258 = vadd.f32 %v8548, %v9008
    %v9259 = vadd.f32 %v8549, %v9013
    %v9260 = vadd.f32 %v8550, %v9018
    %v9261 = vadd.f32 %v8551, %v9023
    %v9262 = vadd.f32 %v8552, %v9028
    %v9263 = vadd.f32 %v8553, %v9033
    %v9264 = vadd.f32 %v8554, %v9038
    %v9265 = vadd.f32 %v8555, %v9043
    %v9266 = vadd.f32 %v8556, %v9048
    %v9267 = vadd.f32 %v8557, %v9053
    %v9268 = vadd.f32 %v8558, %v9058
    %v9269 = vadd.f32 %v8559, %v9063
    %v9270 = vadd.f32 %v8560, %v9068
    %v9271 = vadd.f32 %v8561, %v9073
    %v9272 = vadd.f32 %v8562, %v9078
    %v9273 = vadd.f32 %v8563, %v9083
    %v9274 = vadd.f32 %v8564, %v9088
    %v9275 = vadd.f32 %v8565, %v9093
    %v9276 = vadd.f32 %v8566, %v9098
    %v9277 = vadd.f32 %v8567, %v9103
    %v9278 = vadd.f32 %v8568, %v9108
    %v9279 = vadd.f32 %v8569, %v9113
    %v9280 = vadd.f32 %v8570, %v9118
    %v9281 = vadd.f32 %v8571, %v9123
    %v9282 = vadd.f32 %v8572, %v9128
    %v9283 = vadd.f32 %v8573, %v9133
    %v9284 = vadd.f32 %v8574, %v9138
    %v9285 = vadd.f32 %v8575, %v9143
    %v9286 = vadd.f32 %v8576, %v9148
    %v9287 = vadd.f32 %v8577, %v9153
    %v9288 = vadd.f32 %v8578, %v9158
    %v9289 = vadd.f32 %v8579, %v9163
    %v9290 = vadd.f32 %v8580, %v9168
    %v9291 = vadd.f32 %v8581, %v9173
    %v9292 = vadd.f32 %v8582, %v9178
    %v9293 = vadd.f32 %v8583, %v9183
    %v9294 = vadd.f32 %v8584, %v9188
    %v9295 = vadd.f32 %v8585, %v9193
    %v9296 = vadd.f32 %v8586, %v9198
    %v9297 = vadd.f32 %v8587, %v9203
    %v9298 = vadd.f32 %v8588, %v9208
    %v9299 = vadd.f32 %v8589, %v9213
    %v9300 = vadd.f32 %v8590, %v9218
    %v9301 = vadd.f32 %v8591, %v9223
    %v9302 = vadd.f32 %v8592, %v9228
    %v9303 = vadd.f32 %v8593, %v9233
    %v9304 = vadd.f32 %v8594, %v9238
    %v9305 = vld [vmem:[%s6529 + $0x1] sm:$0xff]
    %v9306 = vld [vmem:[%s6529 + $0x9] sm:$0xff]
    %v9307 = vld [vmem:[%s6529 + $0x19] sm:$0xff]
    %v9308 = vld [vmem:[%s6529 + $0x21] sm:$0xff]
    %v9309 = vld [vmem:[%s6529 + $0x31] sm:$0xff]
    %v9310 = vld [vmem:[%s6529 + $0x39] sm:$0xff]
    %v9311 = vld [vmem:[%s6529 + $0x49] sm:$0xff]
    %v9312 = vld [vmem:[%s6529 + $0x51] sm:$0xff]
    %v9313 = vld [vmem:[%s6529 + $0x61] sm:$0xff]
    %v9314 = vld [vmem:[%s6529 + $0x69] sm:$0xff]
    %v9315 = vld [vmem:[%s6529 + $0x79] sm:$0xff]
    %v9316 = vld [vmem:[%s6529 + $0x81] sm:$0xff]
    %v9317 = vld [vmem:[%s6529 + $0x91] sm:$0xff]
    %v9318 = vld [vmem:[%s6529 + $0x99] sm:$0xff]
    %v9319 = vld [vmem:[%s6529 + $0xa9] sm:$0xff]
    %v9320 = vld [vmem:[%s6529 + $0xb1] sm:$0xff]
    %v9321 = vld [vmem:[%s6529 + $0xc1] sm:$0xff]
    %v9322 = vld [vmem:[%s6529 + $0xc9] sm:$0xff]
    %v9323 = vld [vmem:[%s6529 + $0xd9] sm:$0xff]
    %v9324 = vld [vmem:[%s6529 + $0xe1] sm:$0xff]
    %v9325 = vld [vmem:[%s6529 + $0xf1] sm:$0xff]
    %v9326 = vld [vmem:[%s6529 + $0xf9] sm:$0xff]
    %v9327 = vld [vmem:[%s6529 + $0x109] sm:$0xff]
    %v9328 = vld [vmem:[%s6529 + $0x111] sm:$0xff]
    %v9329 = vld [vmem:[%s6529 + $0x121] sm:$0xff]
    %v9330 = vld [vmem:[%s6529 + $0x129] sm:$0xff]
    %v9331 = vld [vmem:[%s6529 + $0x139] sm:$0xff]
    %v9332 = vld [vmem:[%s6529 + $0x141] sm:$0xff]
    %v9333 = vld [vmem:[%s6529 + $0x151] sm:$0xff]
    %v9334 = vld [vmem:[%s6529 + $0x159] sm:$0xff]
    %v9335 = vld [vmem:[%s6529 + $0x169] sm:$0xff]
    %v9336 = vld [vmem:[%s6529 + $0x171] sm:$0xff]
    %v9337 = vld [vmem:[%s6529 + $0x1b1] sm:$0xff]
    %v9338 = vld [vmem:[%s6529 + $0x1b9] sm:$0xff]
    %v9339 = vld [vmem:[%s6529 + $0x1c9] sm:$0xff]
    %v9340 = vld [vmem:[%s6529 + $0x1d1] sm:$0xff]
    %v9341 = vld [vmem:[%s6529 + $0x1e1] sm:$0xff]
    %v9342 = vld [vmem:[%s6529 + $0x1e9] sm:$0xff]
    %v9343 = vld [vmem:[%s6529 + $0x1f9] sm:$0xff]
    %v9344 = vld [vmem:[%s6529 + $0x201] sm:$0xff]
    %v9345 = vld [vmem:[%s6529 + $0x211] sm:$0xff]
    %v9346 = vld [vmem:[%s6529 + $0x219] sm:$0xff]
    %v9347 = vld [vmem:[%s6529 + $0x229] sm:$0xff]
    %v9348 = vld [vmem:[%s6529 + $0x231] sm:$0xff]
    %v9349 = vld [vmem:[%s6529 + $0x241] sm:$0xff]
    %v9350 = vld [vmem:[%s6529 + $0x249] sm:$0xff]
    %v9351 = vld [vmem:[%s6529 + $0x259] sm:$0xff]
    %v9352 = vld [vmem:[%s6529 + $0x261] sm:$0xff]
    %v9353 = vld [vmem:[%s6529 + $0x271] sm:$0xff]
    %v9354 = vld [vmem:[%s6529 + $0x279] sm:$0xff]
    %v9355 = vld [vmem:[%s6529 + $0x289] sm:$0xff]
    %v9356 = vld [vmem:[%s6529 + $0x291] sm:$0xff]
    %v9357 = vld [vmem:[%s6529 + $0x2a1] sm:$0xff]
    %v9358 = vld [vmem:[%s6529 + $0x2a9] sm:$0xff]
    %v9359 = vld [vmem:[%s6529 + $0x2b9] sm:$0xff]
    %v9360 = vld [vmem:[%s6529 + $0x2c1] sm:$0xff]
    %v9361 = vld [vmem:[%s6529 + $0x2d1] sm:$0xff]
    %v9362 = vld [vmem:[%s6529 + $0x2d9] sm:$0xff]
    %v9363 = vld [vmem:[%s6529 + $0x2e9] sm:$0xff]
    %v9364 = vld [vmem:[%s6529 + $0x2f1] sm:$0xff]
    %v9365 = vld [vmem:[%s6529 + $0x301] sm:$0xff]
    %v9366 = vld [vmem:[%s6529 + $0x309] sm:$0xff]
    %v9367 = vld [vmem:[%s6529 + $0x319] sm:$0xff]
    %v9368 = vld [vmem:[%s6529 + $0x321] sm:$0xff]
    %s9369 = scalar_lea.vmem %s3, 128
    %v9370 = vld [vmem:[%s9369] sm:$0xff]
    %v9371 = vld [vmem:[%s9369 + $0x8] sm:$0xff]
    %v9372 = vld [vmem:[%s9369 + $0x10] sm:$0xff]
    %v9373 = vld [vmem:[%s9369 + $0x18] sm:$0xff]
    %v9375 = vsel %vm158, %v9305, 0
    %v9378 = vsel %vm158, %v9306, 0
    %v9381 = vsel %vm158, %v9307, 0
    %v9384 = vsel %vm158, %v9308, 0
    %v9387 = vsel %vm158, %v9309, 0
    %v9390 = vsel %vm158, %v9310, 0
    %v9393 = vsel %vm158, %v9311, 0
    %v9396 = vsel %vm158, %v9312, 0
    %v9399 = vsel %vm158, %v9313, 0
    %v9402 = vsel %vm158, %v9314, 0
    %v9405 = vsel %vm158, %v9315, 0
    %v9408 = vsel %vm158, %v9316, 0
    %v9411 = vsel %vm158, %v9317, 0
    %v9414 = vsel %vm158, %v9318, 0
    %v9417 = vsel %vm158, %v9319, 0
    %v9420 = vsel %vm158, %v9320, 0
    %v9423 = vsel %vm158, %v9321, 0
    %v9426 = vsel %vm158, %v9322, 0
    %v9429 = vsel %vm158, %v9323, 0
    %v9432 = vsel %vm158, %v9324, 0
    %v9435 = vsel %vm158, %v9325, 0
    %v9438 = vsel %vm158, %v9326, 0
    %v9441 = vsel %vm158, %v9327, 0
    %v9444 = vsel %vm158, %v9328, 0
    %v9447 = vsel %vm158, %v9329, 0
    %v9450 = vsel %vm158, %v9330, 0
    %v9453 = vsel %vm158, %v9331, 0
    %v9456 = vsel %vm158, %v9332, 0
    %v9459 = vsel %vm158, %v9333, 0
    %v9462 = vsel %vm158, %v9334, 0
    %v9465 = vsel %vm158, %v9335, 0
    %v9468 = vsel %vm158, %v9336, 0
    %v9471 = vsel %vm158, %v9337, 0
    %v9474 = vsel %vm158, %v9338, 0
    %v9477 = vsel %vm158, %v9339, 0
    %v9480 = vsel %vm158, %v9340, 0
    %v9483 = vsel %vm158, %v9341, 0
    %v9486 = vsel %vm158, %v9342, 0
    %v9489 = vsel %vm158, %v9343, 0
    %v9492 = vsel %vm158, %v9344, 0
    %v9495 = vsel %vm158, %v9345, 0
    %v9498 = vsel %vm158, %v9346, 0
    %v9501 = vsel %vm158, %v9347, 0
    %v9504 = vsel %vm158, %v9348, 0
    %v9507 = vsel %vm158, %v9349, 0
    %v9510 = vsel %vm158, %v9350, 0
    %v9513 = vsel %vm158, %v9351, 0
    %v9516 = vsel %vm158, %v9352, 0
    %v9519 = vsel %vm158, %v9353, 0
    %v9522 = vsel %vm158, %v9354, 0
    %v9525 = vsel %vm158, %v9355, 0
    %v9528 = vsel %vm158, %v9356, 0
    %v9531 = vsel %vm158, %v9357, 0
    %v9534 = vsel %vm158, %v9358, 0
    %v9537 = vsel %vm158, %v9359, 0
    %v9540 = vsel %vm158, %v9360, 0
    %v9543 = vsel %vm158, %v9361, 0
    %v9546 = vsel %vm158, %v9362, 0
    %v9549 = vsel %vm158, %v9363, 0
    %v9552 = vsel %vm158, %v9364, 0
    %v9555 = vsel %vm158, %v9365, 0
    %v9558 = vsel %vm158, %v9366, 0
    %v9561 = vsel %vm158, %v9367, 0
    %v9564 = vsel %vm158, %v9368, 0
    %9566 = vmatprep.subr.mxu0 0.0
    %9567 = vmatpush1.msra.mxu0 0.0
    %9568 = vmatprep.subr.mxu0 0.0
    %9569 = vmatpush1.msra.mxu0 0.0
    %9570 = vmatprep.subr.mxu0 0.0
    %9571 = vmatpush1.msra.mxu0 0.0
    %9572 = vmatprep.subr.mxu0 0.0
    %9573 = vmatpush1.msra.mxu0 0.0
    %9574 = vmatprep.subr.mxu0 0.0
    %9575 = vmatpush1.msra.mxu0 0.0
    %9576 = vmatprep.subr.mxu0 0.0
    %9577 = vmatpush1.msra.mxu0 0.0
    %9578 = vmatprep.subr.mxu0 0.0
    %9579 = vmatpush1.msra.mxu0 0.0
    %9580 = vmatprep.subr.mxu0 0.0
    %9581 = vmatpush1.msra.mxu0 0.0
    %9582 = vmatprep.subr.mxu0 0.0
    %9583 = vmatpush1.msra.mxu0 0.0
    %9584 = vmatprep.subr.mxu0 0.0
    %9585 = vmatpush1.msra.mxu0 0.0
    %9586 = vmatprep.subr.mxu0 0.0
    %9587 = vmatpush1.msra.mxu0 0.0
    %9588 = vmatprep.subr.mxu0 0.0
    %9589 = vmatpush1.msra.mxu0 0.0
    %9590 = vmatprep.subr.mxu0 0.0
    %9591 = vmatpush1.msra.mxu0 %v9373
    %9592 = vmatprep.subr.mxu0 0.0
    %9593 = vmatpush1.msra.mxu0 %v9372
    %9594 = vmatprep.subr.mxu0 0.0
    %9595 = vmatpush1.msra.mxu0 %v9371
    %9596 = vmatprep.subr.mxu0 0.0
    %9597 = vmatpush1.msra.mxu0 %v9370
    %9598 = vmatprep.subr.mxu0 0.0
    %9599 = vmatpush2.msra.mxu0 0.0
    %9600 = vmatprep.subr.mxu0 0.0
    %9601 = vmatpush2.msra.mxu0 0.0
    %9602 = vmatprep.subr.mxu0 0.0
    %9603 = vmatpush2.msra.mxu0 0.0
    %9604 = vmatprep.subr.mxu0 0.0
    %9605 = vmatpush2.msra.mxu0 0.0
    %9606 = vmatprep.subr.mxu0 0.0
    %9607 = vmatpush2.msra.mxu0 0.0
    %9608 = vmatprep.subr.mxu0 0.0
    %9609 = vmatpush2.msra.mxu0 0.0
    %9610 = vmatprep.subr.mxu0 0.0
    %9611 = vmatpush2.msra.mxu0 0.0
    %9612 = vmatprep.subr.mxu0 0.0
    %9613 = vmatpush2.msra.mxu0 0.0
    %9614 = vmatprep.subr.mxu0 0.0
    %9615 = vmatpush2.msra.mxu0 0.0
    %9616 = vmatprep.subr.mxu0 0.0
    %9617 = vmatpush2.msra.mxu0 0.0
    %9618 = vmatprep.subr.mxu0 0.0
    %9619 = vmatpush2.msra.mxu0 0.0
    %9620 = vmatprep.subr.mxu0 0.0
    %9621 = vmatpush2.msra.mxu0 0.0
    %9622 = vmatprep.subr.mxu0 0.0
    %9623 = vmatpush2.msra.mxu0 0.0
    %9624 = vmatprep.subr.mxu0 0.0
    %9625 = vmatpush2.msra.mxu0 0.0
    %9626 = vmatprep.subr.mxu0 0.0
    %9627 = vmatpush2.msra.mxu0 0.0
    %9628 = vmatprep.subr.mxu0 0.0
    %9629 = vmatpush2.msra.mxu0 0.0
    %9630 = vmatprep.mubr.f32.mxu0 0.0
    %9631 = vmatmul.mubr.f32.gmra.mxu0 %v9375
    %v9632 = vpop.f32.mrf.mxu0
    %v9633 = vadd.f32 0.0, %v9632
    %v9634 = vpop.f32.mrf.mxu0
    %9635 = vmatprep.mubr.f32.mxu0 0.0
    %9636 = vmatmul.mubr.f32.gmra.mxu0 %v9378
    %v9637 = vpop.f32.mrf.mxu0
    %v9638 = vadd.f32 0.0, %v9637
    %v9639 = vpop.f32.mrf.mxu0
    %9640 = vmatprep.mubr.f32.mxu0 0.0
    %9641 = vmatmul.mubr.f32.gmra.mxu0 %v9381
    %v9642 = vpop.f32.mrf.mxu0
    %v9643 = vadd.f32 0.0, %v9642
    %v9644 = vpop.f32.mrf.mxu0
    %9645 = vmatprep.mubr.f32.mxu0 0.0
    %9646 = vmatmul.mubr.f32.gmra.mxu0 %v9384
    %v9647 = vpop.f32.mrf.mxu0
    %v9648 = vadd.f32 0.0, %v9647
    %v9649 = vpop.f32.mrf.mxu0
    %9650 = vmatprep.mubr.f32.mxu0 0.0
    %9651 = vmatmul.mubr.f32.gmra.mxu0 %v9387
    %v9652 = vpop.f32.mrf.mxu0
    %v9653 = vadd.f32 0.0, %v9652
    %v9654 = vpop.f32.mrf.mxu0
    %9655 = vmatprep.mubr.f32.mxu0 0.0
    %9656 = vmatmul.mubr.f32.gmra.mxu0 %v9390
    %v9657 = vpop.f32.mrf.mxu0
    %v9658 = vadd.f32 0.0, %v9657
    %v9659 = vpop.f32.mrf.mxu0
    %9660 = vmatprep.mubr.f32.mxu0 0.0
    %9661 = vmatmul.mubr.f32.gmra.mxu0 %v9393
    %v9662 = vpop.f32.mrf.mxu0
    %v9663 = vadd.f32 0.0, %v9662
    %v9664 = vpop.f32.mrf.mxu0
    %9665 = vmatprep.mubr.f32.mxu0 0.0
    %9666 = vmatmul.mubr.f32.gmra.mxu0 %v9396
    %v9667 = vpop.f32.mrf.mxu0
    %v9668 = vadd.f32 0.0, %v9667
    %v9669 = vpop.f32.mrf.mxu0
    %9670 = vmatprep.mubr.f32.mxu0 0.0
    %9671 = vmatmul.mubr.f32.gmra.mxu0 %v9399
    %v9672 = vpop.f32.mrf.mxu0
    %v9673 = vadd.f32 0.0, %v9672
    %v9674 = vpop.f32.mrf.mxu0
    %9675 = vmatprep.mubr.f32.mxu0 0.0
    %9676 = vmatmul.mubr.f32.gmra.mxu0 %v9402
    %v9677 = vpop.f32.mrf.mxu0
    %v9678 = vadd.f32 0.0, %v9677
    %v9679 = vpop.f32.mrf.mxu0
    %9680 = vmatprep.mubr.f32.mxu0 0.0
    %9681 = vmatmul.mubr.f32.gmra.mxu0 %v9405
    %v9682 = vpop.f32.mrf.mxu0
    %v9683 = vadd.f32 0.0, %v9682
    %v9684 = vpop.f32.mrf.mxu0
    %9685 = vmatprep.mubr.f32.mxu0 0.0
    %9686 = vmatmul.mubr.f32.gmra.mxu0 %v9408
    %v9687 = vpop.f32.mrf.mxu0
    %v9688 = vadd.f32 0.0, %v9687
    %v9689 = vpop.f32.mrf.mxu0
    %9690 = vmatprep.mubr.f32.mxu0 0.0
    %9691 = vmatmul.mubr.f32.gmra.mxu0 %v9411
    %v9692 = vpop.f32.mrf.mxu0
    %v9693 = vadd.f32 0.0, %v9692
    %v9694 = vpop.f32.mrf.mxu0
    %9695 = vmatprep.mubr.f32.mxu0 0.0
    %9696 = vmatmul.mubr.f32.gmra.mxu0 %v9414
    %v9697 = vpop.f32.mrf.mxu0
    %v9698 = vadd.f32 0.0, %v9697
    %v9699 = vpop.f32.mrf.mxu0
    %9700 = vmatprep.mubr.f32.mxu0 0.0
    %9701 = vmatmul.mubr.f32.gmra.mxu0 %v9417
    %v9702 = vpop.f32.mrf.mxu0
    %v9703 = vadd.f32 0.0, %v9702
    %v9704 = vpop.f32.mrf.mxu0
    %9705 = vmatprep.mubr.f32.mxu0 0.0
    %9706 = vmatmul.mubr.f32.gmra.mxu0 %v9420
    %v9707 = vpop.f32.mrf.mxu0
    %v9708 = vadd.f32 0.0, %v9707
    %v9709 = vpop.f32.mrf.mxu0
    %9710 = vmatprep.mubr.f32.mxu0 0.0
    %9711 = vmatmul.mubr.f32.gmra.mxu0 %v9423
    %v9712 = vpop.f32.mrf.mxu0
    %v9713 = vadd.f32 0.0, %v9712
    %v9714 = vpop.f32.mrf.mxu0
    %9715 = vmatprep.mubr.f32.mxu0 0.0
    %9716 = vmatmul.mubr.f32.gmra.mxu0 %v9426
    %v9717 = vpop.f32.mrf.mxu0
    %v9718 = vadd.f32 0.0, %v9717
    %v9719 = vpop.f32.mrf.mxu0
    %9720 = vmatprep.mubr.f32.mxu0 0.0
    %9721 = vmatmul.mubr.f32.gmra.mxu0 %v9429
    %v9722 = vpop.f32.mrf.mxu0
    %v9723 = vadd.f32 0.0, %v9722
    %v9724 = vpop.f32.mrf.mxu0
    %9725 = vmatprep.mubr.f32.mxu0 0.0
    %9726 = vmatmul.mubr.f32.gmra.mxu0 %v9432
    %v9727 = vpop.f32.mrf.mxu0
    %v9728 = vadd.f32 0.0, %v9727
    %v9729 = vpop.f32.mrf.mxu0
    %9730 = vmatprep.mubr.f32.mxu0 0.0
    %9731 = vmatmul.mubr.f32.gmra.mxu0 %v9435
    %v9732 = vpop.f32.mrf.mxu0
    %v9733 = vadd.f32 0.0, %v9732
    %v9734 = vpop.f32.mrf.mxu0
    %9735 = vmatprep.mubr.f32.mxu0 0.0
    %9736 = vmatmul.mubr.f32.gmra.mxu0 %v9438
    %v9737 = vpop.f32.mrf.mxu0
    %v9738 = vadd.f32 0.0, %v9737
    %v9739 = vpop.f32.mrf.mxu0
    %9740 = vmatprep.mubr.f32.mxu0 0.0
    %9741 = vmatmul.mubr.f32.gmra.mxu0 %v9441
    %v9742 = vpop.f32.mrf.mxu0
    %v9743 = vadd.f32 0.0, %v9742
    %v9744 = vpop.f32.mrf.mxu0
    %9745 = vmatprep.mubr.f32.mxu0 0.0
    %9746 = vmatmul.mubr.f32.gmra.mxu0 %v9444
    %v9747 = vpop.f32.mrf.mxu0
    %v9748 = vadd.f32 0.0, %v9747
    %v9749 = vpop.f32.mrf.mxu0
    %9750 = vmatprep.mubr.f32.mxu0 0.0
    %9751 = vmatmul.mubr.f32.gmra.mxu0 %v9447
    %v9752 = vpop.f32.mrf.mxu0
    %v9753 = vadd.f32 0.0, %v9752
    %v9754 = vpop.f32.mrf.mxu0
    %9755 = vmatprep.mubr.f32.mxu0 0.0
    %9756 = vmatmul.mubr.f32.gmra.mxu0 %v9450
    %v9757 = vpop.f32.mrf.mxu0
    %v9758 = vadd.f32 0.0, %v9757
    %v9759 = vpop.f32.mrf.mxu0
    %9760 = vmatprep.mubr.f32.mxu0 0.0
    %9761 = vmatmul.mubr.f32.gmra.mxu0 %v9453
    %v9762 = vpop.f32.mrf.mxu0
    %v9763 = vadd.f32 0.0, %v9762
    %v9764 = vpop.f32.mrf.mxu0
    %9765 = vmatprep.mubr.f32.mxu0 0.0
    %9766 = vmatmul.mubr.f32.gmra.mxu0 %v9456
    %v9767 = vpop.f32.mrf.mxu0
    %v9768 = vadd.f32 0.0, %v9767
    %v9769 = vpop.f32.mrf.mxu0
    %9770 = vmatprep.mubr.f32.mxu0 0.0
    %9771 = vmatmul.mubr.f32.gmra.mxu0 %v9459
    %v9772 = vpop.f32.mrf.mxu0
    %v9773 = vadd.f32 0.0, %v9772
    %v9774 = vpop.f32.mrf.mxu0
    %9775 = vmatprep.mubr.f32.mxu0 0.0
    %9776 = vmatmul.mubr.f32.gmra.mxu0 %v9462
    %v9777 = vpop.f32.mrf.mxu0
    %v9778 = vadd.f32 0.0, %v9777
    %v9779 = vpop.f32.mrf.mxu0
    %9780 = vmatprep.mubr.f32.mxu0 0.0
    %9781 = vmatmul.mubr.f32.gmra.mxu0 %v9465
    %v9782 = vpop.f32.mrf.mxu0
    %v9783 = vadd.f32 0.0, %v9782
    %v9784 = vpop.f32.mrf.mxu0
    %9785 = vmatprep.mubr.f32.mxu0 0.0
    %9786 = vmatmul.mubr.f32.gmra.mxu0 %v9468
    %v9787 = vpop.f32.mrf.mxu0
    %v9788 = vadd.f32 0.0, %v9787
    %v9789 = vpop.f32.mrf.mxu0
    %9790 = vmatprep.mubr.f32.mxu0 0.0
    %9791 = vmatmul.mubr.f32.gmra.mxu0 %v9471
    %v9792 = vpop.f32.mrf.mxu0
    %v9793 = vadd.f32 0.0, %v9792
    %v9794 = vpop.f32.mrf.mxu0
    %9795 = vmatprep.mubr.f32.mxu0 0.0
    %9796 = vmatmul.mubr.f32.gmra.mxu0 %v9474
    %v9797 = vpop.f32.mrf.mxu0
    %v9798 = vadd.f32 0.0, %v9797
    %v9799 = vpop.f32.mrf.mxu0
    %9800 = vmatprep.mubr.f32.mxu0 0.0
    %9801 = vmatmul.mubr.f32.gmra.mxu0 %v9477
    %v9802 = vpop.f32.mrf.mxu0
    %v9803 = vadd.f32 0.0, %v9802
    %v9804 = vpop.f32.mrf.mxu0
    %9805 = vmatprep.mubr.f32.mxu0 0.0
    %9806 = vmatmul.mubr.f32.gmra.mxu0 %v9480
    %v9807 = vpop.f32.mrf.mxu0
    %v9808 = vadd.f32 0.0, %v9807
    %v9809 = vpop.f32.mrf.mxu0
    %9810 = vmatprep.mubr.f32.mxu0 0.0
    %9811 = vmatmul.mubr.f32.gmra.mxu0 %v9483
    %v9812 = vpop.f32.mrf.mxu0
    %v9813 = vadd.f32 0.0, %v9812
    %v9814 = vpop.f32.mrf.mxu0
    %9815 = vmatprep.mubr.f32.mxu0 0.0
    %9816 = vmatmul.mubr.f32.gmra.mxu0 %v9486
    %v9817 = vpop.f32.mrf.mxu0
    %v9818 = vadd.f32 0.0, %v9817
    %v9819 = vpop.f32.mrf.mxu0
    %9820 = vmatprep.mubr.f32.mxu0 0.0
    %9821 = vmatmul.mubr.f32.gmra.mxu0 %v9489
    %v9822 = vpop.f32.mrf.mxu0
    %v9823 = vadd.f32 0.0, %v9822
    %v9824 = vpop.f32.mrf.mxu0
    %9825 = vmatprep.mubr.f32.mxu0 0.0
    %9826 = vmatmul.mubr.f32.gmra.mxu0 %v9492
    %v9827 = vpop.f32.mrf.mxu0
    %v9828 = vadd.f32 0.0, %v9827
    %v9829 = vpop.f32.mrf.mxu0
    %9830 = vmatprep.mubr.f32.mxu0 0.0
    %9831 = vmatmul.mubr.f32.gmra.mxu0 %v9495
    %v9832 = vpop.f32.mrf.mxu0
    %v9833 = vadd.f32 0.0, %v9832
    %v9834 = vpop.f32.mrf.mxu0
    %9835 = vmatprep.mubr.f32.mxu0 0.0
    %9836 = vmatmul.mubr.f32.gmra.mxu0 %v9498
    %v9837 = vpop.f32.mrf.mxu0
    %v9838 = vadd.f32 0.0, %v9837
    %v9839 = vpop.f32.mrf.mxu0
    %9840 = vmatprep.mubr.f32.mxu0 0.0
    %9841 = vmatmul.mubr.f32.gmra.mxu0 %v9501
    %v9842 = vpop.f32.mrf.mxu0
    %v9843 = vadd.f32 0.0, %v9842
    %v9844 = vpop.f32.mrf.mxu0
    %9845 = vmatprep.mubr.f32.mxu0 0.0
    %9846 = vmatmul.mubr.f32.gmra.mxu0 %v9504
    %v9847 = vpop.f32.mrf.mxu0
    %v9848 = vadd.f32 0.0, %v9847
    %v9849 = vpop.f32.mrf.mxu0
    %9850 = vmatprep.mubr.f32.mxu0 0.0
    %9851 = vmatmul.mubr.f32.gmra.mxu0 %v9507
    %v9852 = vpop.f32.mrf.mxu0
    %v9853 = vadd.f32 0.0, %v9852
    %v9854 = vpop.f32.mrf.mxu0
    %9855 = vmatprep.mubr.f32.mxu0 0.0
    %9856 = vmatmul.mubr.f32.gmra.mxu0 %v9510
    %v9857 = vpop.f32.mrf.mxu0
    %v9858 = vadd.f32 0.0, %v9857
    %v9859 = vpop.f32.mrf.mxu0
    %9860 = vmatprep.mubr.f32.mxu0 0.0
    %9861 = vmatmul.mubr.f32.gmra.mxu0 %v9513
    %v9862 = vpop.f32.mrf.mxu0
    %v9863 = vadd.f32 0.0, %v9862
    %v9864 = vpop.f32.mrf.mxu0
    %9865 = vmatprep.mubr.f32.mxu0 0.0
    %9866 = vmatmul.mubr.f32.gmra.mxu0 %v9516
    %v9867 = vpop.f32.mrf.mxu0
    %v9868 = vadd.f32 0.0, %v9867
    %v9869 = vpop.f32.mrf.mxu0
    %9870 = vmatprep.mubr.f32.mxu0 0.0
    %9871 = vmatmul.mubr.f32.gmra.mxu0 %v9519
    %v9872 = vpop.f32.mrf.mxu0
    %v9873 = vadd.f32 0.0, %v9872
    %v9874 = vpop.f32.mrf.mxu0
    %9875 = vmatprep.mubr.f32.mxu0 0.0
    %9876 = vmatmul.mubr.f32.gmra.mxu0 %v9522
    %v9877 = vpop.f32.mrf.mxu0
    %v9878 = vadd.f32 0.0, %v9877
    %v9879 = vpop.f32.mrf.mxu0
    %9880 = vmatprep.mubr.f32.mxu0 0.0
    %9881 = vmatmul.mubr.f32.gmra.mxu0 %v9525
    %v9882 = vpop.f32.mrf.mxu0
    %v9883 = vadd.f32 0.0, %v9882
    %v9884 = vpop.f32.mrf.mxu0
    %9885 = vmatprep.mubr.f32.mxu0 0.0
    %9886 = vmatmul.mubr.f32.gmra.mxu0 %v9528
    %v9887 = vpop.f32.mrf.mxu0
    %v9888 = vadd.f32 0.0, %v9887
    %v9889 = vpop.f32.mrf.mxu0
    %9890 = vmatprep.mubr.f32.mxu0 0.0
    %9891 = vmatmul.mubr.f32.gmra.mxu0 %v9531
    %v9892 = vpop.f32.mrf.mxu0
    %v9893 = vadd.f32 0.0, %v9892
    %v9894 = vpop.f32.mrf.mxu0
    %9895 = vmatprep.mubr.f32.mxu0 0.0
    %9896 = vmatmul.mubr.f32.gmra.mxu0 %v9534
    %v9897 = vpop.f32.mrf.mxu0
    %v9898 = vadd.f32 0.0, %v9897
    %v9899 = vpop.f32.mrf.mxu0
    %9900 = vmatprep.mubr.f32.mxu0 0.0
    %9901 = vmatmul.mubr.f32.gmra.mxu0 %v9537
    %v9902 = vpop.f32.mrf.mxu0
    %v9903 = vadd.f32 0.0, %v9902
    %v9904 = vpop.f32.mrf.mxu0
    %9905 = vmatprep.mubr.f32.mxu0 0.0
    %9906 = vmatmul.mubr.f32.gmra.mxu0 %v9540
    %v9907 = vpop.f32.mrf.mxu0
    %v9908 = vadd.f32 0.0, %v9907
    %v9909 = vpop.f32.mrf.mxu0
    %9910 = vmatprep.mubr.f32.mxu0 0.0
    %9911 = vmatmul.mubr.f32.gmra.mxu0 %v9543
    %v9912 = vpop.f32.mrf.mxu0
    %v9913 = vadd.f32 0.0, %v9912
    %v9914 = vpop.f32.mrf.mxu0
    %9915 = vmatprep.mubr.f32.mxu0 0.0
    %9916 = vmatmul.mubr.f32.gmra.mxu0 %v9546
    %v9917 = vpop.f32.mrf.mxu0
    %v9918 = vadd.f32 0.0, %v9917
    %v9919 = vpop.f32.mrf.mxu0
    %9920 = vmatprep.mubr.f32.mxu0 0.0
    %9921 = vmatmul.mubr.f32.gmra.mxu0 %v9549
    %v9922 = vpop.f32.mrf.mxu0
    %v9923 = vadd.f32 0.0, %v9922
    %v9924 = vpop.f32.mrf.mxu0
    %9925 = vmatprep.mubr.f32.mxu0 0.0
    %9926 = vmatmul.mubr.f32.gmra.mxu0 %v9552
    %v9927 = vpop.f32.mrf.mxu0
    %v9928 = vadd.f32 0.0, %v9927
    %v9929 = vpop.f32.mrf.mxu0
    %9930 = vmatprep.mubr.f32.mxu0 0.0
    %9931 = vmatmul.mubr.f32.gmra.mxu0 %v9555
    %v9932 = vpop.f32.mrf.mxu0
    %v9933 = vadd.f32 0.0, %v9932
    %v9934 = vpop.f32.mrf.mxu0
    %9935 = vmatprep.mubr.f32.mxu0 0.0
    %9936 = vmatmul.mubr.f32.gmra.mxu0 %v9558
    %v9937 = vpop.f32.mrf.mxu0
    %v9938 = vadd.f32 0.0, %v9937
    %v9939 = vpop.f32.mrf.mxu0
    %9940 = vmatprep.mubr.f32.mxu0 0.0
    %9941 = vmatmul.mubr.f32.gmra.mxu0 %v9561
    %v9942 = vpop.f32.mrf.mxu0
    %v9943 = vadd.f32 0.0, %v9942
    %v9944 = vpop.f32.mrf.mxu0
    %9945 = vmatprep.mubr.f32.mxu0 0.0
    %9946 = vmatmul.mubr.f32.gmra.mxu0 %v9564
    %v9947 = vpop.f32.mrf.mxu0
    %v9948 = vadd.f32 0.0, %v9947
    %v9949 = vpop.f32.mrf.mxu0
    %9950 = vdwg.mxu0
    %v9951 = vadd.f32 %v9241, %v9633
    %v9952 = vadd.f32 %v9242, %v9638
    %v9953 = vadd.f32 %v9243, %v9643
    %v9954 = vadd.f32 %v9244, %v9648
    %v9955 = vadd.f32 %v9245, %v9653
    %v9956 = vadd.f32 %v9246, %v9658
    %v9957 = vadd.f32 %v9247, %v9663
    %v9958 = vadd.f32 %v9248, %v9668
    %v9959 = vadd.f32 %v9249, %v9673
    %v9960 = vadd.f32 %v9250, %v9678
    %v9961 = vadd.f32 %v9251, %v9683
    %v9962 = vadd.f32 %v9252, %v9688
    %v9963 = vadd.f32 %v9253, %v9693
    %v9964 = vadd.f32 %v9254, %v9698
    %v9965 = vadd.f32 %v9255, %v9703
    %v9966 = vadd.f32 %v9256, %v9708
    %v9967 = vadd.f32 %v9257, %v9713
    %v9968 = vadd.f32 %v9258, %v9718
    %v9969 = vadd.f32 %v9259, %v9723
    %v9970 = vadd.f32 %v9260, %v9728
    %v9971 = vadd.f32 %v9261, %v9733
    %v9972 = vadd.f32 %v9262, %v9738
    %v9973 = vadd.f32 %v9263, %v9743
    %v9974 = vadd.f32 %v9264, %v9748
    %v9975 = vadd.f32 %v9265, %v9753
    %v9976 = vadd.f32 %v9266, %v9758
    %v9977 = vadd.f32 %v9267, %v9763
    %v9978 = vadd.f32 %v9268, %v9768
    %v9979 = vadd.f32 %v9269, %v9773
    %v9980 = vadd.f32 %v9270, %v9778
    %v9981 = vadd.f32 %v9271, %v9783
    %v9982 = vadd.f32 %v9272, %v9788
    %v9983 = vadd.f32 %v9273, %v9793
    %v9984 = vadd.f32 %v9274, %v9798
    %v9985 = vadd.f32 %v9275, %v9803
    %v9986 = vadd.f32 %v9276, %v9808
    %v9987 = vadd.f32 %v9277, %v9813
    %v9988 = vadd.f32 %v9278, %v9818
    %v9989 = vadd.f32 %v9279, %v9823
    %v9990 = vadd.f32 %v9280, %v9828
    %v9991 = vadd.f32 %v9281, %v9833
    %v9992 = vadd.f32 %v9282, %v9838
    %v9993 = vadd.f32 %v9283, %v9843
    %v9994 = vadd.f32 %v9284, %v9848
    %v9995 = vadd.f32 %v9285, %v9853
    %v9996 = vadd.f32 %v9286, %v9858
    %v9997 = vadd.f32 %v9287, %v9863
    %v9998 = vadd.f32 %v9288, %v9868
    %v9999 = vadd.f32 %v9289, %v9873
    %v10000 = vadd.f32 %v9290, %v9878
    %v10001 = vadd.f32 %v9291, %v9883
    %v10002 = vadd.f32 %v9292, %v9888
    %v10003 = vadd.f32 %v9293, %v9893
    %v10004 = vadd.f32 %v9294, %v9898
    %v10005 = vadd.f32 %v9295, %v9903
    %v10006 = vadd.f32 %v9296, %v9908
    %v10007 = vadd.f32 %v9297, %v9913
    %v10008 = vadd.f32 %v9298, %v9918
    %v10009 = vadd.f32 %v9299, %v9923
    %v10010 = vadd.f32 %v9300, %v9928
    %v10011 = vadd.f32 %v9301, %v9933
    %v10012 = vadd.f32 %v9302, %v9938
    %v10013 = vadd.f32 %v9303, %v9943
    %v10014 = vadd.f32 %v9304, %v9948
    %v10015 = vld [vmem:[%s6529 + $0x2] sm:$0xff]
    %v10016 = vld [vmem:[%s6529 + $0xa] sm:$0xff]
    %v10017 = vld [vmem:[%s6529 + $0x1a] sm:$0xff]
    %v10018 = vld [vmem:[%s6529 + $0x22] sm:$0xff]
    %v10019 = vld [vmem:[%s6529 + $0x32] sm:$0xff]
    %v10020 = vld [vmem:[%s6529 + $0x3a] sm:$0xff]
    %v10021 = vld [vmem:[%s6529 + $0x4a] sm:$0xff]
    %v10022 = vld [vmem:[%s6529 + $0x52] sm:$0xff]
    %v10023 = vld [vmem:[%s6529 + $0x62] sm:$0xff]
    %v10024 = vld [vmem:[%s6529 + $0x6a] sm:$0xff]
    %v10025 = vld [vmem:[%s6529 + $0x7a] sm:$0xff]
    %v10026 = vld [vmem:[%s6529 + $0x82] sm:$0xff]
    %v10027 = vld [vmem:[%s6529 + $0x92] sm:$0xff]
    %v10028 = vld [vmem:[%s6529 + $0x9a] sm:$0xff]
    %v10029 = vld [vmem:[%s6529 + $0xaa] sm:$0xff]
    %v10030 = vld [vmem:[%s6529 + $0xb2] sm:$0xff]
    %v10031 = vld [vmem:[%s6529 + $0xc2] sm:$0xff]
    %v10032 = vld [vmem:[%s6529 + $0xca] sm:$0xff]
    %v10033 = vld [vmem:[%s6529 + $0xda] sm:$0xff]
    %v10034 = vld [vmem:[%s6529 + $0xe2] sm:$0xff]
    %v10035 = vld [vmem:[%s6529 + $0xf2] sm:$0xff]
    %v10036 = vld [vmem:[%s6529 + $0xfa] sm:$0xff]
    %v10037 = vld [vmem:[%s6529 + $0x10a] sm:$0xff]
    %v10038 = vld [vmem:[%s6529 + $0x112] sm:$0xff]
    %v10039 = vld [vmem:[%s6529 + $0x122] sm:$0xff]
    %v10040 = vld [vmem:[%s6529 + $0x12a] sm:$0xff]
    %v10041 = vld [vmem:[%s6529 + $0x13a] sm:$0xff]
    %v10042 = vld [vmem:[%s6529 + $0x142] sm:$0xff]
    %v10043 = vld [vmem:[%s6529 + $0x152] sm:$0xff]
    %v10044 = vld [vmem:[%s6529 + $0x15a] sm:$0xff]
    %v10045 = vld [vmem:[%s6529 + $0x16a] sm:$0xff]
    %v10046 = vld [vmem:[%s6529 + $0x172] sm:$0xff]
    %v10047 = vld [vmem:[%s6529 + $0x1b2] sm:$0xff]
    %v10048 = vld [vmem:[%s6529 + $0x1ba] sm:$0xff]
    %v10049 = vld [vmem:[%s6529 + $0x1ca] sm:$0xff]
    %v10050 = vld [vmem:[%s6529 + $0x1d2] sm:$0xff]
    %v10051 = vld [vmem:[%s6529 + $0x1e2] sm:$0xff]
    %v10052 = vld [vmem:[%s6529 + $0x1ea] sm:$0xff]
    %v10053 = vld [vmem:[%s6529 + $0x1fa] sm:$0xff]
    %v10054 = vld [vmem:[%s6529 + $0x202] sm:$0xff]
    %v10055 = vld [vmem:[%s6529 + $0x212] sm:$0xff]
    %v10056 = vld [vmem:[%s6529 + $0x21a] sm:$0xff]
    %v10057 = vld [vmem:[%s6529 + $0x22a] sm:$0xff]
    %v10058 = vld [vmem:[%s6529 + $0x232] sm:$0xff]
    %v10059 = vld [vmem:[%s6529 + $0x242] sm:$0xff]
    %v10060 = vld [vmem:[%s6529 + $0x24a] sm:$0xff]
    %v10061 = vld [vmem:[%s6529 + $0x25a] sm:$0xff]
    %v10062 = vld [vmem:[%s6529 + $0x262] sm:$0xff]
    %v10063 = vld [vmem:[%s6529 + $0x272] sm:$0xff]
    %v10064 = vld [vmem:[%s6529 + $0x27a] sm:$0xff]
    %v10065 = vld [vmem:[%s6529 + $0x28a] sm:$0xff]
    %v10066 = vld [vmem:[%s6529 + $0x292] sm:$0xff]
    %v10067 = vld [vmem:[%s6529 + $0x2a2] sm:$0xff]
    %v10068 = vld [vmem:[%s6529 + $0x2aa] sm:$0xff]
    %v10069 = vld [vmem:[%s6529 + $0x2ba] sm:$0xff]
    %v10070 = vld [vmem:[%s6529 + $0x2c2] sm:$0xff]
    %v10071 = vld [vmem:[%s6529 + $0x2d2] sm:$0xff]
    %v10072 = vld [vmem:[%s6529 + $0x2da] sm:$0xff]
    %v10073 = vld [vmem:[%s6529 + $0x2ea] sm:$0xff]
    %v10074 = vld [vmem:[%s6529 + $0x2f2] sm:$0xff]
    %v10075 = vld [vmem:[%s6529 + $0x302] sm:$0xff]
    %v10076 = vld [vmem:[%s6529 + $0x30a] sm:$0xff]
    %v10077 = vld [vmem:[%s6529 + $0x31a] sm:$0xff]
    %v10078 = vld [vmem:[%s6529 + $0x322] sm:$0xff]
    %s10079 = scalar_lea.vmem %s3, 160
    %v10080 = vld [vmem:[%s10079] sm:$0xff]
    %v10081 = vld [vmem:[%s10079 + $0x8] sm:$0xff]
    %v10082 = vld [vmem:[%s10079 + $0x10] sm:$0xff]
    %v10083 = vld [vmem:[%s10079 + $0x18] sm:$0xff]
    %v10085 = vsel %vm158, %v10015, 0
    %v10088 = vsel %vm158, %v10016, 0
    %v10091 = vsel %vm158, %v10017, 0
    %v10094 = vsel %vm158, %v10018, 0
    %v10097 = vsel %vm158, %v10019, 0
    %v10100 = vsel %vm158, %v10020, 0
    %v10103 = vsel %vm158, %v10021, 0
    %v10106 = vsel %vm158, %v10022, 0
    %v10109 = vsel %vm158, %v10023, 0
    %v10112 = vsel %vm158, %v10024, 0
    %v10115 = vsel %vm158, %v10025, 0
    %v10118 = vsel %vm158, %v10026, 0
    %v10121 = vsel %vm158, %v10027, 0
    %v10124 = vsel %vm158, %v10028, 0
    %v10127 = vsel %vm158, %v10029, 0
    %v10130 = vsel %vm158, %v10030, 0
    %v10133 = vsel %vm158, %v10031, 0
    %v10136 = vsel %vm158, %v10032, 0
    %v10139 = vsel %vm158, %v10033, 0
    %v10142 = vsel %vm158, %v10034, 0
    %v10145 = vsel %vm158, %v10035, 0
    %v10148 = vsel %vm158, %v10036, 0
    %v10151 = vsel %vm158, %v10037, 0
    %v10154 = vsel %vm158, %v10038, 0
    %v10157 = vsel %vm158, %v10039, 0
    %v10160 = vsel %vm158, %v10040, 0
    %v10163 = vsel %vm158, %v10041, 0
    %v10166 = vsel %vm158, %v10042, 0
    %v10169 = vsel %vm158, %v10043, 0
    %v10172 = vsel %vm158, %v10044, 0
    %v10175 = vsel %vm158, %v10045, 0
    %v10178 = vsel %vm158, %v10046, 0
    %v10181 = vsel %vm158, %v10047, 0
    %v10184 = vsel %vm158, %v10048, 0
    %v10187 = vsel %vm158, %v10049, 0
    %v10190 = vsel %vm158, %v10050, 0
    %v10193 = vsel %vm158, %v10051, 0
    %v10196 = vsel %vm158, %v10052, 0
    %v10199 = vsel %vm158, %v10053, 0
    %v10202 = vsel %vm158, %v10054, 0
    %v10205 = vsel %vm158, %v10055, 0
    %v10208 = vsel %vm158, %v10056, 0
    %v10211 = vsel %vm158, %v10057, 0
    %v10214 = vsel %vm158, %v10058, 0
    %v10217 = vsel %vm158, %v10059, 0
    %v10220 = vsel %vm158, %v10060, 0
    %v10223 = vsel %vm158, %v10061, 0
    %v10226 = vsel %vm158, %v10062, 0
    %v10229 = vsel %vm158, %v10063, 0
    %v10232 = vsel %vm158, %v10064, 0
    %v10235 = vsel %vm158, %v10065, 0
    %v10238 = vsel %vm158, %v10066, 0
    %v10241 = vsel %vm158, %v10067, 0
    %v10244 = vsel %vm158, %v10068, 0
    %v10247 = vsel %vm158, %v10069, 0
    %v10250 = vsel %vm158, %v10070, 0
    %v10253 = vsel %vm158, %v10071, 0
    %v10256 = vsel %vm158, %v10072, 0
    %v10259 = vsel %vm158, %v10073, 0
    %v10262 = vsel %vm158, %v10074, 0
    %v10265 = vsel %vm158, %v10075, 0
    %v10268 = vsel %vm158, %v10076, 0
    %v10271 = vsel %vm158, %v10077, 0
    %v10274 = vsel %vm158, %v10078, 0
    %10276 = vmatprep.subr.mxu0 0.0
    %10277 = vmatpush1.msra.mxu0 0.0
    %10278 = vmatprep.subr.mxu0 0.0
    %10279 = vmatpush1.msra.mxu0 0.0
    %10280 = vmatprep.subr.mxu0 0.0
    %10281 = vmatpush1.msra.mxu0 0.0
    %10282 = vmatprep.subr.mxu0 0.0
    %10283 = vmatpush1.msra.mxu0 0.0
    %10284 = vmatprep.subr.mxu0 0.0
    %10285 = vmatpush1.msra.mxu0 0.0
    %10286 = vmatprep.subr.mxu0 0.0
    %10287 = vmatpush1.msra.mxu0 0.0
    %10288 = vmatprep.subr.mxu0 0.0
    %10289 = vmatpush1.msra.mxu0 0.0
    %10290 = vmatprep.subr.mxu0 0.0
    %10291 = vmatpush1.msra.mxu0 0.0
    %10292 = vmatprep.subr.mxu0 0.0
    %10293 = vmatpush1.msra.mxu0 0.0
    %10294 = vmatprep.subr.mxu0 0.0
    %10295 = vmatpush1.msra.mxu0 0.0
    %10296 = vmatprep.subr.mxu0 0.0
    %10297 = vmatpush1.msra.mxu0 0.0
    %10298 = vmatprep.subr.mxu0 0.0
    %10299 = vmatpush1.msra.mxu0 0.0
    %10300 = vmatprep.subr.mxu0 0.0
    %10301 = vmatpush1.msra.mxu0 %v10083
    %10302 = vmatprep.subr.mxu0 0.0
    %10303 = vmatpush1.msra.mxu0 %v10082
    %10304 = vmatprep.subr.mxu0 0.0
    %10305 = vmatpush1.msra.mxu0 %v10081
    %10306 = vmatprep.subr.mxu0 0.0
    %10307 = vmatpush1.msra.mxu0 %v10080
    %10308 = vmatprep.subr.mxu0 0.0
    %10309 = vmatpush2.msra.mxu0 0.0
    %10310 = vmatprep.subr.mxu0 0.0
    %10311 = vmatpush2.msra.mxu0 0.0
    %10312 = vmatprep.subr.mxu0 0.0
    %10313 = vmatpush2.msra.mxu0 0.0
    %10314 = vmatprep.subr.mxu0 0.0
    %10315 = vmatpush2.msra.mxu0 0.0
    %10316 = vmatprep.subr.mxu0 0.0
    %10317 = vmatpush2.msra.mxu0 0.0
    %10318 = vmatprep.subr.mxu0 0.0
    %10319 = vmatpush2.msra.mxu0 0.0
    %10320 = vmatprep.subr.mxu0 0.0
    %10321 = vmatpush2.msra.mxu0 0.0
    %10322 = vmatprep.subr.mxu0 0.0
    %10323 = vmatpush2.msra.mxu0 0.0
    %10324 = vmatprep.subr.mxu0 0.0
    %10325 = vmatpush2.msra.mxu0 0.0
    %10326 = vmatprep.subr.mxu0 0.0
    %10327 = vmatpush2.msra.mxu0 0.0
    %10328 = vmatprep.subr.mxu0 0.0
    %10329 = vmatpush2.msra.mxu0 0.0
    %10330 = vmatprep.subr.mxu0 0.0
    %10331 = vmatpush2.msra.mxu0 0.0
    %10332 = vmatprep.subr.mxu0 0.0
    %10333 = vmatpush2.msra.mxu0 0.0
    %10334 = vmatprep.subr.mxu0 0.0
    %10335 = vmatpush2.msra.mxu0 0.0
    %10336 = vmatprep.subr.mxu0 0.0
    %10337 = vmatpush2.msra.mxu0 0.0
    %10338 = vmatprep.subr.mxu0 0.0
    %10339 = vmatpush2.msra.mxu0 0.0
    %10340 = vmatprep.mubr.f32.mxu0 0.0
    %10341 = vmatmul.mubr.f32.gmra.mxu0 %v10085
    %v10342 = vpop.f32.mrf.mxu0
    %v10343 = vadd.f32 0.0, %v10342
    %v10344 = vpop.f32.mrf.mxu0
    %10345 = vmatprep.mubr.f32.mxu0 0.0
    %10346 = vmatmul.mubr.f32.gmra.mxu0 %v10088
    %v10347 = vpop.f32.mrf.mxu0
    %v10348 = vadd.f32 0.0, %v10347
    %v10349 = vpop.f32.mrf.mxu0
    %10350 = vmatprep.mubr.f32.mxu0 0.0
    %10351 = vmatmul.mubr.f32.gmra.mxu0 %v10091
    %v10352 = vpop.f32.mrf.mxu0
    %v10353 = vadd.f32 0.0, %v10352
    %v10354 = vpop.f32.mrf.mxu0
    %10355 = vmatprep.mubr.f32.mxu0 0.0
    %10356 = vmatmul.mubr.f32.gmra.mxu0 %v10094
    %v10357 = vpop.f32.mrf.mxu0
    %v10358 = vadd.f32 0.0, %v10357
    %v10359 = vpop.f32.mrf.mxu0
    %10360 = vmatprep.mubr.f32.mxu0 0.0
    %10361 = vmatmul.mubr.f32.gmra.mxu0 %v10097
    %v10362 = vpop.f32.mrf.mxu0
    %v10363 = vadd.f32 0.0, %v10362
    %v10364 = vpop.f32.mrf.mxu0
    %10365 = vmatprep.mubr.f32.mxu0 0.0
    %10366 = vmatmul.mubr.f32.gmra.mxu0 %v10100
    %v10367 = vpop.f32.mrf.mxu0
    %v10368 = vadd.f32 0.0, %v10367
    %v10369 = vpop.f32.mrf.mxu0
    %10370 = vmatprep.mubr.f32.mxu0 0.0
    %10371 = vmatmul.mubr.f32.gmra.mxu0 %v10103
    %v10372 = vpop.f32.mrf.mxu0
    %v10373 = vadd.f32 0.0, %v10372
    %v10374 = vpop.f32.mrf.mxu0
    %10375 = vmatprep.mubr.f32.mxu0 0.0
    %10376 = vmatmul.mubr.f32.gmra.mxu0 %v10106
    %v10377 = vpop.f32.mrf.mxu0
    %v10378 = vadd.f32 0.0, %v10377
    %v10379 = vpop.f32.mrf.mxu0
    %10380 = vmatprep.mubr.f32.mxu0 0.0
    %10381 = vmatmul.mubr.f32.gmra.mxu0 %v10109
    %v10382 = vpop.f32.mrf.mxu0
    %v10383 = vadd.f32 0.0, %v10382
    %v10384 = vpop.f32.mrf.mxu0
    %10385 = vmatprep.mubr.f32.mxu0 0.0
    %10386 = vmatmul.mubr.f32.gmra.mxu0 %v10112
    %v10387 = vpop.f32.mrf.mxu0
    %v10388 = vadd.f32 0.0, %v10387
    %v10389 = vpop.f32.mrf.mxu0
    %10390 = vmatprep.mubr.f32.mxu0 0.0
    %10391 = vmatmul.mubr.f32.gmra.mxu0 %v10115
    %v10392 = vpop.f32.mrf.mxu0
    %v10393 = vadd.f32 0.0, %v10392
    %v10394 = vpop.f32.mrf.mxu0
    %10395 = vmatprep.mubr.f32.mxu0 0.0
    %10396 = vmatmul.mubr.f32.gmra.mxu0 %v10118
    %v10397 = vpop.f32.mrf.mxu0
    %v10398 = vadd.f32 0.0, %v10397
    %v10399 = vpop.f32.mrf.mxu0
    %10400 = vmatprep.mubr.f32.mxu0 0.0
    %10401 = vmatmul.mubr.f32.gmra.mxu0 %v10121
    %v10402 = vpop.f32.mrf.mxu0
    %v10403 = vadd.f32 0.0, %v10402
    %v10404 = vpop.f32.mrf.mxu0
    %10405 = vmatprep.mubr.f32.mxu0 0.0
    %10406 = vmatmul.mubr.f32.gmra.mxu0 %v10124
    %v10407 = vpop.f32.mrf.mxu0
    %v10408 = vadd.f32 0.0, %v10407
    %v10409 = vpop.f32.mrf.mxu0
    %10410 = vmatprep.mubr.f32.mxu0 0.0
    %10411 = vmatmul.mubr.f32.gmra.mxu0 %v10127
    %v10412 = vpop.f32.mrf.mxu0
    %v10413 = vadd.f32 0.0, %v10412
    %v10414 = vpop.f32.mrf.mxu0
    %10415 = vmatprep.mubr.f32.mxu0 0.0
    %10416 = vmatmul.mubr.f32.gmra.mxu0 %v10130
    %v10417 = vpop.f32.mrf.mxu0
    %v10418 = vadd.f32 0.0, %v10417
    %v10419 = vpop.f32.mrf.mxu0
    %10420 = vmatprep.mubr.f32.mxu0 0.0
    %10421 = vmatmul.mubr.f32.gmra.mxu0 %v10133
    %v10422 = vpop.f32.mrf.mxu0
    %v10423 = vadd.f32 0.0, %v10422
    %v10424 = vpop.f32.mrf.mxu0
    %10425 = vmatprep.mubr.f32.mxu0 0.0
    %10426 = vmatmul.mubr.f32.gmra.mxu0 %v10136
    %v10427 = vpop.f32.mrf.mxu0
    %v10428 = vadd.f32 0.0, %v10427
    %v10429 = vpop.f32.mrf.mxu0
    %10430 = vmatprep.mubr.f32.mxu0 0.0
    %10431 = vmatmul.mubr.f32.gmra.mxu0 %v10139
    %v10432 = vpop.f32.mrf.mxu0
    %v10433 = vadd.f32 0.0, %v10432
    %v10434 = vpop.f32.mrf.mxu0
    %10435 = vmatprep.mubr.f32.mxu0 0.0
    %10436 = vmatmul.mubr.f32.gmra.mxu0 %v10142
    %v10437 = vpop.f32.mrf.mxu0
    %v10438 = vadd.f32 0.0, %v10437
    %v10439 = vpop.f32.mrf.mxu0
    %10440 = vmatprep.mubr.f32.mxu0 0.0
    %10441 = vmatmul.mubr.f32.gmra.mxu0 %v10145
    %v10442 = vpop.f32.mrf.mxu0
    %v10443 = vadd.f32 0.0, %v10442
    %v10444 = vpop.f32.mrf.mxu0
    %10445 = vmatprep.mubr.f32.mxu0 0.0
    %10446 = vmatmul.mubr.f32.gmra.mxu0 %v10148
    %v10447 = vpop.f32.mrf.mxu0
    %v10448 = vadd.f32 0.0, %v10447
    %v10449 = vpop.f32.mrf.mxu0
    %10450 = vmatprep.mubr.f32.mxu0 0.0
    %10451 = vmatmul.mubr.f32.gmra.mxu0 %v10151
    %v10452 = vpop.f32.mrf.mxu0
    %v10453 = vadd.f32 0.0, %v10452
    %v10454 = vpop.f32.mrf.mxu0
    %10455 = vmatprep.mubr.f32.mxu0 0.0
    %10456 = vmatmul.mubr.f32.gmra.mxu0 %v10154
    %v10457 = vpop.f32.mrf.mxu0
    %v10458 = vadd.f32 0.0, %v10457
    %v10459 = vpop.f32.mrf.mxu0
    %10460 = vmatprep.mubr.f32.mxu0 0.0
    %10461 = vmatmul.mubr.f32.gmra.mxu0 %v10157
    %v10462 = vpop.f32.mrf.mxu0
    %v10463 = vadd.f32 0.0, %v10462
    %v10464 = vpop.f32.mrf.mxu0
    %10465 = vmatprep.mubr.f32.mxu0 0.0
    %10466 = vmatmul.mubr.f32.gmra.mxu0 %v10160
    %v10467 = vpop.f32.mrf.mxu0
    %v10468 = vadd.f32 0.0, %v10467
    %v10469 = vpop.f32.mrf.mxu0
    %10470 = vmatprep.mubr.f32.mxu0 0.0
    %10471 = vmatmul.mubr.f32.gmra.mxu0 %v10163
    %v10472 = vpop.f32.mrf.mxu0
    %v10473 = vadd.f32 0.0, %v10472
    %v10474 = vpop.f32.mrf.mxu0
    %10475 = vmatprep.mubr.f32.mxu0 0.0
    %10476 = vmatmul.mubr.f32.gmra.mxu0 %v10166
    %v10477 = vpop.f32.mrf.mxu0
    %v10478 = vadd.f32 0.0, %v10477
    %v10479 = vpop.f32.mrf.mxu0
    %10480 = vmatprep.mubr.f32.mxu0 0.0
    %10481 = vmatmul.mubr.f32.gmra.mxu0 %v10169
    %v10482 = vpop.f32.mrf.mxu0
    %v10483 = vadd.f32 0.0, %v10482
    %v10484 = vpop.f32.mrf.mxu0
    %10485 = vmatprep.mubr.f32.mxu0 0.0
    %10486 = vmatmul.mubr.f32.gmra.mxu0 %v10172
    %v10487 = vpop.f32.mrf.mxu0
    %v10488 = vadd.f32 0.0, %v10487
    %v10489 = vpop.f32.mrf.mxu0
    %10490 = vmatprep.mubr.f32.mxu0 0.0
    %10491 = vmatmul.mubr.f32.gmra.mxu0 %v10175
    %v10492 = vpop.f32.mrf.mxu0
    %v10493 = vadd.f32 0.0, %v10492
    %v10494 = vpop.f32.mrf.mxu0
    %10495 = vmatprep.mubr.f32.mxu0 0.0
    %10496 = vmatmul.mubr.f32.gmra.mxu0 %v10178
    %v10497 = vpop.f32.mrf.mxu0
    %v10498 = vadd.f32 0.0, %v10497
    %v10499 = vpop.f32.mrf.mxu0
    %10500 = vmatprep.mubr.f32.mxu0 0.0
    %10501 = vmatmul.mubr.f32.gmra.mxu0 %v10181
    %v10502 = vpop.f32.mrf.mxu0
    %v10503 = vadd.f32 0.0, %v10502
    %v10504 = vpop.f32.mrf.mxu0
    %10505 = vmatprep.mubr.f32.mxu0 0.0
    %10506 = vmatmul.mubr.f32.gmra.mxu0 %v10184
    %v10507 = vpop.f32.mrf.mxu0
    %v10508 = vadd.f32 0.0, %v10507
    %v10509 = vpop.f32.mrf.mxu0
    %10510 = vmatprep.mubr.f32.mxu0 0.0
    %10511 = vmatmul.mubr.f32.gmra.mxu0 %v10187
    %v10512 = vpop.f32.mrf.mxu0
    %v10513 = vadd.f32 0.0, %v10512
    %v10514 = vpop.f32.mrf.mxu0
    %10515 = vmatprep.mubr.f32.mxu0 0.0
    %10516 = vmatmul.mubr.f32.gmra.mxu0 %v10190
    %v10517 = vpop.f32.mrf.mxu0
    %v10518 = vadd.f32 0.0, %v10517
    %v10519 = vpop.f32.mrf.mxu0
    %10520 = vmatprep.mubr.f32.mxu0 0.0
    %10521 = vmatmul.mubr.f32.gmra.mxu0 %v10193
    %v10522 = vpop.f32.mrf.mxu0
    %v10523 = vadd.f32 0.0, %v10522
    %v10524 = vpop.f32.mrf.mxu0
    %10525 = vmatprep.mubr.f32.mxu0 0.0
    %10526 = vmatmul.mubr.f32.gmra.mxu0 %v10196
    %v10527 = vpop.f32.mrf.mxu0
    %v10528 = vadd.f32 0.0, %v10527
    %v10529 = vpop.f32.mrf.mxu0
    %10530 = vmatprep.mubr.f32.mxu0 0.0
    %10531 = vmatmul.mubr.f32.gmra.mxu0 %v10199
    %v10532 = vpop.f32.mrf.mxu0
    %v10533 = vadd.f32 0.0, %v10532
    %v10534 = vpop.f32.mrf.mxu0
    %10535 = vmatprep.mubr.f32.mxu0 0.0
    %10536 = vmatmul.mubr.f32.gmra.mxu0 %v10202
    %v10537 = vpop.f32.mrf.mxu0
    %v10538 = vadd.f32 0.0, %v10537
    %v10539 = vpop.f32.mrf.mxu0
    %10540 = vmatprep.mubr.f32.mxu0 0.0
    %10541 = vmatmul.mubr.f32.gmra.mxu0 %v10205
    %v10542 = vpop.f32.mrf.mxu0
    %v10543 = vadd.f32 0.0, %v10542
    %v10544 = vpop.f32.mrf.mxu0
    %10545 = vmatprep.mubr.f32.mxu0 0.0
    %10546 = vmatmul.mubr.f32.gmra.mxu0 %v10208
    %v10547 = vpop.f32.mrf.mxu0
    %v10548 = vadd.f32 0.0, %v10547
    %v10549 = vpop.f32.mrf.mxu0
    %10550 = vmatprep.mubr.f32.mxu0 0.0
    %10551 = vmatmul.mubr.f32.gmra.mxu0 %v10211
    %v10552 = vpop.f32.mrf.mxu0
    %v10553 = vadd.f32 0.0, %v10552
    %v10554 = vpop.f32.mrf.mxu0
    %10555 = vmatprep.mubr.f32.mxu0 0.0
    %10556 = vmatmul.mubr.f32.gmra.mxu0 %v10214
    %v10557 = vpop.f32.mrf.mxu0
    %v10558 = vadd.f32 0.0, %v10557
    %v10559 = vpop.f32.mrf.mxu0
    %10560 = vmatprep.mubr.f32.mxu0 0.0
    %10561 = vmatmul.mubr.f32.gmra.mxu0 %v10217
    %v10562 = vpop.f32.mrf.mxu0
    %v10563 = vadd.f32 0.0, %v10562
    %v10564 = vpop.f32.mrf.mxu0
    %10565 = vmatprep.mubr.f32.mxu0 0.0
    %10566 = vmatmul.mubr.f32.gmra.mxu0 %v10220
    %v10567 = vpop.f32.mrf.mxu0
    %v10568 = vadd.f32 0.0, %v10567
    %v10569 = vpop.f32.mrf.mxu0
    %10570 = vmatprep.mubr.f32.mxu0 0.0
    %10571 = vmatmul.mubr.f32.gmra.mxu0 %v10223
    %v10572 = vpop.f32.mrf.mxu0
    %v10573 = vadd.f32 0.0, %v10572
    %v10574 = vpop.f32.mrf.mxu0
    %10575 = vmatprep.mubr.f32.mxu0 0.0
    %10576 = vmatmul.mubr.f32.gmra.mxu0 %v10226
    %v10577 = vpop.f32.mrf.mxu0
    %v10578 = vadd.f32 0.0, %v10577
    %v10579 = vpop.f32.mrf.mxu0
    %10580 = vmatprep.mubr.f32.mxu0 0.0
    %10581 = vmatmul.mubr.f32.gmra.mxu0 %v10229
    %v10582 = vpop.f32.mrf.mxu0
    %v10583 = vadd.f32 0.0, %v10582
    %v10584 = vpop.f32.mrf.mxu0
    %10585 = vmatprep.mubr.f32.mxu0 0.0
    %10586 = vmatmul.mubr.f32.gmra.mxu0 %v10232
    %v10587 = vpop.f32.mrf.mxu0
    %v10588 = vadd.f32 0.0, %v10587
    %v10589 = vpop.f32.mrf.mxu0
    %10590 = vmatprep.mubr.f32.mxu0 0.0
    %10591 = vmatmul.mubr.f32.gmra.mxu0 %v10235
    %v10592 = vpop.f32.mrf.mxu0
    %v10593 = vadd.f32 0.0, %v10592
    %v10594 = vpop.f32.mrf.mxu0
    %10595 = vmatprep.mubr.f32.mxu0 0.0
    %10596 = vmatmul.mubr.f32.gmra.mxu0 %v10238
    %v10597 = vpop.f32.mrf.mxu0
    %v10598 = vadd.f32 0.0, %v10597
    %v10599 = vpop.f32.mrf.mxu0
    %10600 = vmatprep.mubr.f32.mxu0 0.0
    %10601 = vmatmul.mubr.f32.gmra.mxu0 %v10241
    %v10602 = vpop.f32.mrf.mxu0
    %v10603 = vadd.f32 0.0, %v10602
    %v10604 = vpop.f32.mrf.mxu0
    %10605 = vmatprep.mubr.f32.mxu0 0.0
    %10606 = vmatmul.mubr.f32.gmra.mxu0 %v10244
    %v10607 = vpop.f32.mrf.mxu0
    %v10608 = vadd.f32 0.0, %v10607
    %v10609 = vpop.f32.mrf.mxu0
    %10610 = vmatprep.mubr.f32.mxu0 0.0
    %10611 = vmatmul.mubr.f32.gmra.mxu0 %v10247
    %v10612 = vpop.f32.mrf.mxu0
    %v10613 = vadd.f32 0.0, %v10612
    %v10614 = vpop.f32.mrf.mxu0
    %10615 = vmatprep.mubr.f32.mxu0 0.0
    %10616 = vmatmul.mubr.f32.gmra.mxu0 %v10250
    %v10617 = vpop.f32.mrf.mxu0
    %v10618 = vadd.f32 0.0, %v10617
    %v10619 = vpop.f32.mrf.mxu0
    %10620 = vmatprep.mubr.f32.mxu0 0.0
    %10621 = vmatmul.mubr.f32.gmra.mxu0 %v10253
    %v10622 = vpop.f32.mrf.mxu0
    %v10623 = vadd.f32 0.0, %v10622
    %v10624 = vpop.f32.mrf.mxu0
    %10625 = vmatprep.mubr.f32.mxu0 0.0
    %10626 = vmatmul.mubr.f32.gmra.mxu0 %v10256
    %v10627 = vpop.f32.mrf.mxu0
    %v10628 = vadd.f32 0.0, %v10627
    %v10629 = vpop.f32.mrf.mxu0
    %10630 = vmatprep.mubr.f32.mxu0 0.0
    %10631 = vmatmul.mubr.f32.gmra.mxu0 %v10259
    %v10632 = vpop.f32.mrf.mxu0
    %v10633 = vadd.f32 0.0, %v10632
    %v10634 = vpop.f32.mrf.mxu0
    %10635 = vmatprep.mubr.f32.mxu0 0.0
    %10636 = vmatmul.mubr.f32.gmra.mxu0 %v10262
    %v10637 = vpop.f32.mrf.mxu0
    %v10638 = vadd.f32 0.0, %v10637
    %v10639 = vpop.f32.mrf.mxu0
    %10640 = vmatprep.mubr.f32.mxu0 0.0
    %10641 = vmatmul.mubr.f32.gmra.mxu0 %v10265
    %v10642 = vpop.f32.mrf.mxu0
    %v10643 = vadd.f32 0.0, %v10642
    %v10644 = vpop.f32.mrf.mxu0
    %10645 = vmatprep.mubr.f32.mxu0 0.0
    %10646 = vmatmul.mubr.f32.gmra.mxu0 %v10268
    %v10647 = vpop.f32.mrf.mxu0
    %v10648 = vadd.f32 0.0, %v10647
    %v10649 = vpop.f32.mrf.mxu0
    %10650 = vmatprep.mubr.f32.mxu0 0.0
    %10651 = vmatmul.mubr.f32.gmra.mxu0 %v10271
    %v10652 = vpop.f32.mrf.mxu0
    %v10653 = vadd.f32 0.0, %v10652
    %v10654 = vpop.f32.mrf.mxu0
    %10655 = vmatprep.mubr.f32.mxu0 0.0
    %10656 = vmatmul.mubr.f32.gmra.mxu0 %v10274
    %v10657 = vpop.f32.mrf.mxu0
    %v10658 = vadd.f32 0.0, %v10657
    %v10659 = vpop.f32.mrf.mxu0
    %10660 = vdwg.mxu0
    %v10661 = vadd.f32 %v9951, %v10343
    %v10662 = vadd.f32 %v9952, %v10348
    %v10663 = vadd.f32 %v9953, %v10353
    %v10664 = vadd.f32 %v9954, %v10358
    %v10665 = vadd.f32 %v9955, %v10363
    %v10666 = vadd.f32 %v9956, %v10368
    %v10667 = vadd.f32 %v9957, %v10373
    %v10668 = vadd.f32 %v9958, %v10378
    %v10669 = vadd.f32 %v9959, %v10383
    %v10670 = vadd.f32 %v9960, %v10388
    %v10671 = vadd.f32 %v9961, %v10393
    %v10672 = vadd.f32 %v9962, %v10398
    %v10673 = vadd.f32 %v9963, %v10403
    %v10674 = vadd.f32 %v9964, %v10408
    %v10675 = vadd.f32 %v9965, %v10413
    %v10676 = vadd.f32 %v9966, %v10418
    %v10677 = vadd.f32 %v9967, %v10423
    %v10678 = vadd.f32 %v9968, %v10428
    %v10679 = vadd.f32 %v9969, %v10433
    %v10680 = vadd.f32 %v9970, %v10438
    %v10681 = vadd.f32 %v9971, %v10443
    %v10682 = vadd.f32 %v9972, %v10448
    %v10683 = vadd.f32 %v9973, %v10453
    %v10684 = vadd.f32 %v9974, %v10458
    %v10685 = vadd.f32 %v9975, %v10463
    %v10686 = vadd.f32 %v9976, %v10468
    %v10687 = vadd.f32 %v9977, %v10473
    %v10688 = vadd.f32 %v9978, %v10478
    %v10689 = vadd.f32 %v9979, %v10483
    %v10690 = vadd.f32 %v9980, %v10488
    %v10691 = vadd.f32 %v9981, %v10493
    %v10692 = vadd.f32 %v9982, %v10498
    %v10693 = vadd.f32 %v9983, %v10503
    %v10694 = vadd.f32 %v9984, %v10508
    %v10695 = vadd.f32 %v9985, %v10513
    %v10696 = vadd.f32 %v9986, %v10518
    %v10697 = vadd.f32 %v9987, %v10523
    %v10698 = vadd.f32 %v9988, %v10528
    %v10699 = vadd.f32 %v9989, %v10533
    %v10700 = vadd.f32 %v9990, %v10538
    %v10701 = vadd.f32 %v9991, %v10543
    %v10702 = vadd.f32 %v9992, %v10548
    %v10703 = vadd.f32 %v9993, %v10553
    %v10704 = vadd.f32 %v9994, %v10558
    %v10705 = vadd.f32 %v9995, %v10563
    %v10706 = vadd.f32 %v9996, %v10568
    %v10707 = vadd.f32 %v9997, %v10573
    %v10708 = vadd.f32 %v9998, %v10578
    %v10709 = vadd.f32 %v9999, %v10583
    %v10710 = vadd.f32 %v10000, %v10588
    %v10711 = vadd.f32 %v10001, %v10593
    %v10712 = vadd.f32 %v10002, %v10598
    %v10713 = vadd.f32 %v10003, %v10603
    %v10714 = vadd.f32 %v10004, %v10608
    %v10715 = vadd.f32 %v10005, %v10613
    %v10716 = vadd.f32 %v10006, %v10618
    %v10717 = vadd.f32 %v10007, %v10623
    %v10718 = vadd.f32 %v10008, %v10628
    %v10719 = vadd.f32 %v10009, %v10633
    %v10720 = vadd.f32 %v10010, %v10638
    %v10721 = vadd.f32 %v10011, %v10643
    %v10722 = vadd.f32 %v10012, %v10648
    %v10723 = vadd.f32 %v10013, %v10653
    %v10724 = vadd.f32 %v10014, %v10658
    %s10725 = scalar_lea.vmem [#allocation2], 48
    %v10726 = vld [vmem:[%s10725] sm:$0xff]
    %v10727 = vld [vmem:[%s10725 + $0x8] sm:$0xff]
    %v10728 = vld [vmem:[%s10725 + $0x18] sm:$0xff]
    %v10729 = vld [vmem:[%s10725 + $0x20] sm:$0xff]
    %v10730 = vld [vmem:[%s10725 + $0x30] sm:$0xff]
    %v10731 = vld [vmem:[%s10725 + $0x38] sm:$0xff]
    %v10732 = vld [vmem:[%s10725 + $0x48] sm:$0xff]
    %v10733 = vld [vmem:[%s10725 + $0x50] sm:$0xff]
    %v10734 = vld [vmem:[%s10725 + $0x60] sm:$0xff]
    %v10735 = vld [vmem:[%s10725 + $0x68] sm:$0xff]
    %v10736 = vld [vmem:[%s10725 + $0x78] sm:$0xff]
    %v10737 = vld [vmem:[%s10725 + $0x80] sm:$0xff]
    %v10738 = vld [vmem:[%s10725 + $0x90] sm:$0xff]
    %v10739 = vld [vmem:[%s10725 + $0x98] sm:$0xff]
    %v10740 = vld [vmem:[%s10725 + $0xa8] sm:$0xff]
    %v10741 = vld [vmem:[%s10725 + $0xb0] sm:$0xff]
    %v10742 = vld [vmem:[%s10725 + $0xc0] sm:$0xff]
    %v10743 = vld [vmem:[%s10725 + $0xc8] sm:$0xff]
    %v10744 = vld [vmem:[%s10725 + $0xd8] sm:$0xff]
    %v10745 = vld [vmem:[%s10725 + $0xe0] sm:$0xff]
    %v10746 = vld [vmem:[%s10725 + $0xf0] sm:$0xff]
    %v10747 = vld [vmem:[%s10725 + $0xf8] sm:$0xff]
    %v10748 = vld [vmem:[%s10725 + $0x108] sm:$0xff]
    %v10749 = vld [vmem:[%s10725 + $0x110] sm:$0xff]
    %v10750 = vld [vmem:[%s10725 + $0x120] sm:$0xff]
    %v10751 = vld [vmem:[%s10725 + $0x128] sm:$0xff]
    %v10752 = vld [vmem:[%s10725 + $0x138] sm:$0xff]
    %v10753 = vld [vmem:[%s10725 + $0x140] sm:$0xff]
    %v10754 = vld [vmem:[%s10725 + $0x150] sm:$0xff]
    %v10755 = vld [vmem:[%s10725 + $0x158] sm:$0xff]
    %v10756 = vld [vmem:[%s10725 + $0x168] sm:$0xff]
    %v10757 = vld [vmem:[%s10725 + $0x170] sm:$0xff]
    %v10758 = vld [vmem:[%s10725 + $0x1b0] sm:$0xff]
    %v10759 = vld [vmem:[%s10725 + $0x1b8] sm:$0xff]
    %v10760 = vld [vmem:[%s10725 + $0x1c8] sm:$0xff]
    %v10761 = vld [vmem:[%s10725 + $0x1d0] sm:$0xff]
    %v10762 = vld [vmem:[%s10725 + $0x1e0] sm:$0xff]
    %v10763 = vld [vmem:[%s10725 + $0x1e8] sm:$0xff]
    %v10764 = vld [vmem:[%s10725 + $0x1f8] sm:$0xff]
    %v10765 = vld [vmem:[%s10725 + $0x200] sm:$0xff]
    %v10766 = vld [vmem:[%s10725 + $0x210] sm:$0xff]
    %v10767 = vld [vmem:[%s10725 + $0x218] sm:$0xff]
    %v10768 = vld [vmem:[%s10725 + $0x228] sm:$0xff]
    %v10769 = vld [vmem:[%s10725 + $0x230] sm:$0xff]
    %v10770 = vld [vmem:[%s10725 + $0x240] sm:$0xff]
    %v10771 = vld [vmem:[%s10725 + $0x248] sm:$0xff]
    %v10772 = vld [vmem:[%s10725 + $0x258] sm:$0xff]
    %v10773 = vld [vmem:[%s10725 + $0x260] sm:$0xff]
    %v10774 = vld [vmem:[%s10725 + $0x270] sm:$0xff]
    %v10775 = vld [vmem:[%s10725 + $0x278] sm:$0xff]
    %v10776 = vld [vmem:[%s10725 + $0x288] sm:$0xff]
    %v10777 = vld [vmem:[%s10725 + $0x290] sm:$0xff]
    %v10778 = vld [vmem:[%s10725 + $0x2a0] sm:$0xff]
    %v10779 = vld [vmem:[%s10725 + $0x2a8] sm:$0xff]
    %v10780 = vld [vmem:[%s10725 + $0x2b8] sm:$0xff]
    %v10781 = vld [vmem:[%s10725 + $0x2c0] sm:$0xff]
    %v10782 = vld [vmem:[%s10725 + $0x2d0] sm:$0xff]
    %v10783 = vld [vmem:[%s10725 + $0x2d8] sm:$0xff]
    %v10784 = vld [vmem:[%s10725 + $0x2e8] sm:$0xff]
    %v10785 = vld [vmem:[%s10725 + $0x2f0] sm:$0xff]
    %v10786 = vld [vmem:[%s10725 + $0x300] sm:$0xff]
    %v10787 = vld [vmem:[%s10725 + $0x308] sm:$0xff]
    %v10788 = vld [vmem:[%s10725 + $0x318] sm:$0xff]
    %v10789 = vld [vmem:[%s10725 + $0x320] sm:$0xff]
    %s10790 = scalar_lea.vmem %s3, 192
    %v10791 = vld [vmem:[%s10790] sm:$0xff]
    %v10792 = vld [vmem:[%s10790 + $0x8] sm:$0xff]
    %v10793 = vld [vmem:[%s10790 + $0x10] sm:$0xff]
    %v10794 = vld [vmem:[%s10790 + $0x18] sm:$0xff]
    %v10796 = vsel %vm158, %v10726, 0
    %v10799 = vsel %vm158, %v10727, 0
    %v10802 = vsel %vm158, %v10728, 0
    %v10805 = vsel %vm158, %v10729, 0
    %v10808 = vsel %vm158, %v10730, 0
    %v10811 = vsel %vm158, %v10731, 0
    %v10814 = vsel %vm158, %v10732, 0
    %v10817 = vsel %vm158, %v10733, 0
    %v10820 = vsel %vm158, %v10734, 0
    %v10823 = vsel %vm158, %v10735, 0
    %v10826 = vsel %vm158, %v10736, 0
    %v10829 = vsel %vm158, %v10737, 0
    %v10832 = vsel %vm158, %v10738, 0
    %v10835 = vsel %vm158, %v10739, 0
    %v10838 = vsel %vm158, %v10740, 0
    %v10841 = vsel %vm158, %v10741, 0
    %v10844 = vsel %vm158, %v10742, 0
    %v10847 = vsel %vm158, %v10743, 0
    %v10850 = vsel %vm158, %v10744, 0
    %v10853 = vsel %vm158, %v10745, 0
    %v10856 = vsel %vm158, %v10746, 0
    %v10859 = vsel %vm158, %v10747, 0
    %v10862 = vsel %vm158, %v10748, 0
    %v10865 = vsel %vm158, %v10749, 0
    %v10868 = vsel %vm158, %v10750, 0
    %v10871 = vsel %vm158, %v10751, 0
    %v10874 = vsel %vm158, %v10752, 0
    %v10877 = vsel %vm158, %v10753, 0
    %v10880 = vsel %vm158, %v10754, 0
    %v10883 = vsel %vm158, %v10755, 0
    %v10886 = vsel %vm158, %v10756, 0
    %v10889 = vsel %vm158, %v10757, 0
    %v10892 = vsel %vm158, %v10758, 0
    %v10895 = vsel %vm158, %v10759, 0
    %v10898 = vsel %vm158, %v10760, 0
    %v10901 = vsel %vm158, %v10761, 0
    %v10904 = vsel %vm158, %v10762, 0
    %v10907 = vsel %vm158, %v10763, 0
    %v10910 = vsel %vm158, %v10764, 0
    %v10913 = vsel %vm158, %v10765, 0
    %v10916 = vsel %vm158, %v10766, 0
    %v10919 = vsel %vm158, %v10767, 0
    %v10922 = vsel %vm158, %v10768, 0
    %v10925 = vsel %vm158, %v10769, 0
    %v10928 = vsel %vm158, %v10770, 0
    %v10931 = vsel %vm158, %v10771, 0
    %v10934 = vsel %vm158, %v10772, 0
    %v10937 = vsel %vm158, %v10773, 0
    %v10940 = vsel %vm158, %v10774, 0
    %v10943 = vsel %vm158, %v10775, 0
    %v10946 = vsel %vm158, %v10776, 0
    %v10949 = vsel %vm158, %v10777, 0
    %v10952 = vsel %vm158, %v10778, 0
    %v10955 = vsel %vm158, %v10779, 0
    %v10958 = vsel %vm158, %v10780, 0
    %v10961 = vsel %vm158, %v10781, 0
    %v10964 = vsel %vm158, %v10782, 0
    %v10967 = vsel %vm158, %v10783, 0
    %v10970 = vsel %vm158, %v10784, 0
    %v10973 = vsel %vm158, %v10785, 0
    %v10976 = vsel %vm158, %v10786, 0
    %v10979 = vsel %vm158, %v10787, 0
    %v10982 = vsel %vm158, %v10788, 0
    %v10985 = vsel %vm158, %v10789, 0
    %10987 = vmatprep.subr.mxu0 0.0
    %10988 = vmatpush1.msra.mxu0 0.0
    %10989 = vmatprep.subr.mxu0 0.0
    %10990 = vmatpush1.msra.mxu0 0.0
    %10991 = vmatprep.subr.mxu0 0.0
    %10992 = vmatpush1.msra.mxu0 0.0
    %10993 = vmatprep.subr.mxu0 0.0
    %10994 = vmatpush1.msra.mxu0 0.0
    %10995 = vmatprep.subr.mxu0 0.0
    %10996 = vmatpush1.msra.mxu0 0.0
    %10997 = vmatprep.subr.mxu0 0.0
    %10998 = vmatpush1.msra.mxu0 0.0
    %10999 = vmatprep.subr.mxu0 0.0
    %11000 = vmatpush1.msra.mxu0 0.0
    %11001 = vmatprep.subr.mxu0 0.0
    %11002 = vmatpush1.msra.mxu0 0.0
    %11003 = vmatprep.subr.mxu0 0.0
    %11004 = vmatpush1.msra.mxu0 0.0
    %11005 = vmatprep.subr.mxu0 0.0
    %11006 = vmatpush1.msra.mxu0 0.0
    %11007 = vmatprep.subr.mxu0 0.0
    %11008 = vmatpush1.msra.mxu0 0.0
    %11009 = vmatprep.subr.mxu0 0.0
    %11010 = vmatpush1.msra.mxu0 0.0
    %11011 = vmatprep.subr.mxu0 0.0
    %11012 = vmatpush1.msra.mxu0 %v10794
    %11013 = vmatprep.subr.mxu0 0.0
    %11014 = vmatpush1.msra.mxu0 %v10793
    %11015 = vmatprep.subr.mxu0 0.0
    %11016 = vmatpush1.msra.mxu0 %v10792
    %11017 = vmatprep.subr.mxu0 0.0
    %11018 = vmatpush1.msra.mxu0 %v10791
    %11019 = vmatprep.subr.mxu0 0.0
    %11020 = vmatpush2.msra.mxu0 0.0
    %11021 = vmatprep.subr.mxu0 0.0
    %11022 = vmatpush2.msra.mxu0 0.0
    %11023 = vmatprep.subr.mxu0 0.0
    %11024 = vmatpush2.msra.mxu0 0.0
    %11025 = vmatprep.subr.mxu0 0.0
    %11026 = vmatpush2.msra.mxu0 0.0
    %11027 = vmatprep.subr.mxu0 0.0
    %11028 = vmatpush2.msra.mxu0 0.0
    %11029 = vmatprep.subr.mxu0 0.0
    %11030 = vmatpush2.msra.mxu0 0.0
    %11031 = vmatprep.subr.mxu0 0.0
    %11032 = vmatpush2.msra.mxu0 0.0
    %11033 = vmatprep.subr.mxu0 0.0
    %11034 = vmatpush2.msra.mxu0 0.0
    %11035 = vmatprep.subr.mxu0 0.0
    %11036 = vmatpush2.msra.mxu0 0.0
    %11037 = vmatprep.subr.mxu0 0.0
    %11038 = vmatpush2.msra.mxu0 0.0
    %11039 = vmatprep.subr.mxu0 0.0
    %11040 = vmatpush2.msra.mxu0 0.0
    %11041 = vmatprep.subr.mxu0 0.0
    %11042 = vmatpush2.msra.mxu0 0.0
    %11043 = vmatprep.subr.mxu0 0.0
    %11044 = vmatpush2.msra.mxu0 0.0
    %11045 = vmatprep.subr.mxu0 0.0
    %11046 = vmatpush2.msra.mxu0 0.0
    %11047 = vmatprep.subr.mxu0 0.0
    %11048 = vmatpush2.msra.mxu0 0.0
    %11049 = vmatprep.subr.mxu0 0.0
    %11050 = vmatpush2.msra.mxu0 0.0
    %11051 = vmatprep.mubr.f32.mxu0 0.0
    %11052 = vmatmul.mubr.f32.gmra.mxu0 %v10796
    %v11053 = vpop.f32.mrf.mxu0
    %v11054 = vadd.f32 0.0, %v11053
    %v11055 = vpop.f32.mrf.mxu0
    %11056 = vmatprep.mubr.f32.mxu0 0.0
    %11057 = vmatmul.mubr.f32.gmra.mxu0 %v10799
    %v11058 = vpop.f32.mrf.mxu0
    %v11059 = vadd.f32 0.0, %v11058
    %v11060 = vpop.f32.mrf.mxu0
    %11061 = vmatprep.mubr.f32.mxu0 0.0
    %11062 = vmatmul.mubr.f32.gmra.mxu0 %v10802
    %v11063 = vpop.f32.mrf.mxu0
    %v11064 = vadd.f32 0.0, %v11063
    %v11065 = vpop.f32.mrf.mxu0
    %11066 = vmatprep.mubr.f32.mxu0 0.0
    %11067 = vmatmul.mubr.f32.gmra.mxu0 %v10805
    %v11068 = vpop.f32.mrf.mxu0
    %v11069 = vadd.f32 0.0, %v11068
    %v11070 = vpop.f32.mrf.mxu0
    %11071 = vmatprep.mubr.f32.mxu0 0.0
    %11072 = vmatmul.mubr.f32.gmra.mxu0 %v10808
    %v11073 = vpop.f32.mrf.mxu0
    %v11074 = vadd.f32 0.0, %v11073
    %v11075 = vpop.f32.mrf.mxu0
    %11076 = vmatprep.mubr.f32.mxu0 0.0
    %11077 = vmatmul.mubr.f32.gmra.mxu0 %v10811
    %v11078 = vpop.f32.mrf.mxu0
    %v11079 = vadd.f32 0.0, %v11078
    %v11080 = vpop.f32.mrf.mxu0
    %11081 = vmatprep.mubr.f32.mxu0 0.0
    %11082 = vmatmul.mubr.f32.gmra.mxu0 %v10814
    %v11083 = vpop.f32.mrf.mxu0
    %v11084 = vadd.f32 0.0, %v11083
    %v11085 = vpop.f32.mrf.mxu0
    %11086 = vmatprep.mubr.f32.mxu0 0.0
    %11087 = vmatmul.mubr.f32.gmra.mxu0 %v10817
    %v11088 = vpop.f32.mrf.mxu0
    %v11089 = vadd.f32 0.0, %v11088
    %v11090 = vpop.f32.mrf.mxu0
    %11091 = vmatprep.mubr.f32.mxu0 0.0
    %11092 = vmatmul.mubr.f32.gmra.mxu0 %v10820
    %v11093 = vpop.f32.mrf.mxu0
    %v11094 = vadd.f32 0.0, %v11093
    %v11095 = vpop.f32.mrf.mxu0
    %11096 = vmatprep.mubr.f32.mxu0 0.0
    %11097 = vmatmul.mubr.f32.gmra.mxu0 %v10823
    %v11098 = vpop.f32.mrf.mxu0
    %v11099 = vadd.f32 0.0, %v11098
    %v11100 = vpop.f32.mrf.mxu0
    %11101 = vmatprep.mubr.f32.mxu0 0.0
    %11102 = vmatmul.mubr.f32.gmra.mxu0 %v10826
    %v11103 = vpop.f32.mrf.mxu0
    %v11104 = vadd.f32 0.0, %v11103
    %v11105 = vpop.f32.mrf.mxu0
    %11106 = vmatprep.mubr.f32.mxu0 0.0
    %11107 = vmatmul.mubr.f32.gmra.mxu0 %v10829
    %v11108 = vpop.f32.mrf.mxu0
    %v11109 = vadd.f32 0.0, %v11108
    %v11110 = vpop.f32.mrf.mxu0
    %11111 = vmatprep.mubr.f32.mxu0 0.0
    %11112 = vmatmul.mubr.f32.gmra.mxu0 %v10832
    %v11113 = vpop.f32.mrf.mxu0
    %v11114 = vadd.f32 0.0, %v11113
    %v11115 = vpop.f32.mrf.mxu0
    %11116 = vmatprep.mubr.f32.mxu0 0.0
    %11117 = vmatmul.mubr.f32.gmra.mxu0 %v10835
    %v11118 = vpop.f32.mrf.mxu0
    %v11119 = vadd.f32 0.0, %v11118
    %v11120 = vpop.f32.mrf.mxu0
    %11121 = vmatprep.mubr.f32.mxu0 0.0
    %11122 = vmatmul.mubr.f32.gmra.mxu0 %v10838
    %v11123 = vpop.f32.mrf.mxu0
    %v11124 = vadd.f32 0.0, %v11123
    %v11125 = vpop.f32.mrf.mxu0
    %11126 = vmatprep.mubr.f32.mxu0 0.0
    %11127 = vmatmul.mubr.f32.gmra.mxu0 %v10841
    %v11128 = vpop.f32.mrf.mxu0
    %v11129 = vadd.f32 0.0, %v11128
    %v11130 = vpop.f32.mrf.mxu0
    %11131 = vmatprep.mubr.f32.mxu0 0.0
    %11132 = vmatmul.mubr.f32.gmra.mxu0 %v10844
    %v11133 = vpop.f32.mrf.mxu0
    %v11134 = vadd.f32 0.0, %v11133
    %v11135 = vpop.f32.mrf.mxu0
    %11136 = vmatprep.mubr.f32.mxu0 0.0
    %11137 = vmatmul.mubr.f32.gmra.mxu0 %v10847
    %v11138 = vpop.f32.mrf.mxu0
    %v11139 = vadd.f32 0.0, %v11138
    %v11140 = vpop.f32.mrf.mxu0
    %11141 = vmatprep.mubr.f32.mxu0 0.0
    %11142 = vmatmul.mubr.f32.gmra.mxu0 %v10850
    %v11143 = vpop.f32.mrf.mxu0
    %v11144 = vadd.f32 0.0, %v11143
    %v11145 = vpop.f32.mrf.mxu0
    %11146 = vmatprep.mubr.f32.mxu0 0.0
    %11147 = vmatmul.mubr.f32.gmra.mxu0 %v10853
    %v11148 = vpop.f32.mrf.mxu0
    %v11149 = vadd.f32 0.0, %v11148
    %v11150 = vpop.f32.mrf.mxu0
    %11151 = vmatprep.mubr.f32.mxu0 0.0
    %11152 = vmatmul.mubr.f32.gmra.mxu0 %v10856
    %v11153 = vpop.f32.mrf.mxu0
    %v11154 = vadd.f32 0.0, %v11153
    %v11155 = vpop.f32.mrf.mxu0
    %11156 = vmatprep.mubr.f32.mxu0 0.0
    %11157 = vmatmul.mubr.f32.gmra.mxu0 %v10859
    %v11158 = vpop.f32.mrf.mxu0
    %v11159 = vadd.f32 0.0, %v11158
    %v11160 = vpop.f32.mrf.mxu0
    %11161 = vmatprep.mubr.f32.mxu0 0.0
    %11162 = vmatmul.mubr.f32.gmra.mxu0 %v10862
    %v11163 = vpop.f32.mrf.mxu0
    %v11164 = vadd.f32 0.0, %v11163
    %v11165 = vpop.f32.mrf.mxu0
    %11166 = vmatprep.mubr.f32.mxu0 0.0
    %11167 = vmatmul.mubr.f32.gmra.mxu0 %v10865
    %v11168 = vpop.f32.mrf.mxu0
    %v11169 = vadd.f32 0.0, %v11168
    %v11170 = vpop.f32.mrf.mxu0
    %11171 = vmatprep.mubr.f32.mxu0 0.0
    %11172 = vmatmul.mubr.f32.gmra.mxu0 %v10868
    %v11173 = vpop.f32.mrf.mxu0
    %v11174 = vadd.f32 0.0, %v11173
    %v11175 = vpop.f32.mrf.mxu0
    %11176 = vmatprep.mubr.f32.mxu0 0.0
    %11177 = vmatmul.mubr.f32.gmra.mxu0 %v10871
    %v11178 = vpop.f32.mrf.mxu0
    %v11179 = vadd.f32 0.0, %v11178
    %v11180 = vpop.f32.mrf.mxu0
    %11181 = vmatprep.mubr.f32.mxu0 0.0
    %11182 = vmatmul.mubr.f32.gmra.mxu0 %v10874
    %v11183 = vpop.f32.mrf.mxu0
    %v11184 = vadd.f32 0.0, %v11183
    %v11185 = vpop.f32.mrf.mxu0
    %11186 = vmatprep.mubr.f32.mxu0 0.0
    %11187 = vmatmul.mubr.f32.gmra.mxu0 %v10877
    %v11188 = vpop.f32.mrf.mxu0
    %v11189 = vadd.f32 0.0, %v11188
    %v11190 = vpop.f32.mrf.mxu0
    %11191 = vmatprep.mubr.f32.mxu0 0.0
    %11192 = vmatmul.mubr.f32.gmra.mxu0 %v10880
    %v11193 = vpop.f32.mrf.mxu0
    %v11194 = vadd.f32 0.0, %v11193
    %v11195 = vpop.f32.mrf.mxu0
    %11196 = vmatprep.mubr.f32.mxu0 0.0
    %11197 = vmatmul.mubr.f32.gmra.mxu0 %v10883
    %v11198 = vpop.f32.mrf.mxu0
    %v11199 = vadd.f32 0.0, %v11198
    %v11200 = vpop.f32.mrf.mxu0
    %11201 = vmatprep.mubr.f32.mxu0 0.0
    %11202 = vmatmul.mubr.f32.gmra.mxu0 %v10886
    %v11203 = vpop.f32.mrf.mxu0
    %v11204 = vadd.f32 0.0, %v11203
    %v11205 = vpop.f32.mrf.mxu0
    %11206 = vmatprep.mubr.f32.mxu0 0.0
    %11207 = vmatmul.mubr.f32.gmra.mxu0 %v10889
    %v11208 = vpop.f32.mrf.mxu0
    %v11209 = vadd.f32 0.0, %v11208
    %v11210 = vpop.f32.mrf.mxu0
    %11211 = vmatprep.mubr.f32.mxu0 0.0
    %11212 = vmatmul.mubr.f32.gmra.mxu0 %v10892
    %v11213 = vpop.f32.mrf.mxu0
    %v11214 = vadd.f32 0.0, %v11213
    %v11215 = vpop.f32.mrf.mxu0
    %11216 = vmatprep.mubr.f32.mxu0 0.0
    %11217 = vmatmul.mubr.f32.gmra.mxu0 %v10895
    %v11218 = vpop.f32.mrf.mxu0
    %v11219 = vadd.f32 0.0, %v11218
    %v11220 = vpop.f32.mrf.mxu0
    %11221 = vmatprep.mubr.f32.mxu0 0.0
    %11222 = vmatmul.mubr.f32.gmra.mxu0 %v10898
    %v11223 = vpop.f32.mrf.mxu0
    %v11224 = vadd.f32 0.0, %v11223
    %v11225 = vpop.f32.mrf.mxu0
    %11226 = vmatprep.mubr.f32.mxu0 0.0
    %11227 = vmatmul.mubr.f32.gmra.mxu0 %v10901
    %v11228 = vpop.f32.mrf.mxu0
    %v11229 = vadd.f32 0.0, %v11228
    %v11230 = vpop.f32.mrf.mxu0
    %11231 = vmatprep.mubr.f32.mxu0 0.0
    %11232 = vmatmul.mubr.f32.gmra.mxu0 %v10904
    %v11233 = vpop.f32.mrf.mxu0
    %v11234 = vadd.f32 0.0, %v11233
    %v11235 = vpop.f32.mrf.mxu0
    %11236 = vmatprep.mubr.f32.mxu0 0.0
    %11237 = vmatmul.mubr.f32.gmra.mxu0 %v10907
    %v11238 = vpop.f32.mrf.mxu0
    %v11239 = vadd.f32 0.0, %v11238
    %v11240 = vpop.f32.mrf.mxu0
    %11241 = vmatprep.mubr.f32.mxu0 0.0
    %11242 = vmatmul.mubr.f32.gmra.mxu0 %v10910
    %v11243 = vpop.f32.mrf.mxu0
    %v11244 = vadd.f32 0.0, %v11243
    %v11245 = vpop.f32.mrf.mxu0
    %11246 = vmatprep.mubr.f32.mxu0 0.0
    %11247 = vmatmul.mubr.f32.gmra.mxu0 %v10913
    %v11248 = vpop.f32.mrf.mxu0
    %v11249 = vadd.f32 0.0, %v11248
    %v11250 = vpop.f32.mrf.mxu0
    %11251 = vmatprep.mubr.f32.mxu0 0.0
    %11252 = vmatmul.mubr.f32.gmra.mxu0 %v10916
    %v11253 = vpop.f32.mrf.mxu0
    %v11254 = vadd.f32 0.0, %v11253
    %v11255 = vpop.f32.mrf.mxu0
    %11256 = vmatprep.mubr.f32.mxu0 0.0
    %11257 = vmatmul.mubr.f32.gmra.mxu0 %v10919
    %v11258 = vpop.f32.mrf.mxu0
    %v11259 = vadd.f32 0.0, %v11258
    %v11260 = vpop.f32.mrf.mxu0
    %11261 = vmatprep.mubr.f32.mxu0 0.0
    %11262 = vmatmul.mubr.f32.gmra.mxu0 %v10922
    %v11263 = vpop.f32.mrf.mxu0
    %v11264 = vadd.f32 0.0, %v11263
    %v11265 = vpop.f32.mrf.mxu0
    %11266 = vmatprep.mubr.f32.mxu0 0.0
    %11267 = vmatmul.mubr.f32.gmra.mxu0 %v10925
    %v11268 = vpop.f32.mrf.mxu0
    %v11269 = vadd.f32 0.0, %v11268
    %v11270 = vpop.f32.mrf.mxu0
    %11271 = vmatprep.mubr.f32.mxu0 0.0
    %11272 = vmatmul.mubr.f32.gmra.mxu0 %v10928
    %v11273 = vpop.f32.mrf.mxu0
    %v11274 = vadd.f32 0.0, %v11273
    %v11275 = vpop.f32.mrf.mxu0
    %11276 = vmatprep.mubr.f32.mxu0 0.0
    %11277 = vmatmul.mubr.f32.gmra.mxu0 %v10931
    %v11278 = vpop.f32.mrf.mxu0
    %v11279 = vadd.f32 0.0, %v11278
    %v11280 = vpop.f32.mrf.mxu0
    %11281 = vmatprep.mubr.f32.mxu0 0.0
    %11282 = vmatmul.mubr.f32.gmra.mxu0 %v10934
    %v11283 = vpop.f32.mrf.mxu0
    %v11284 = vadd.f32 0.0, %v11283
    %v11285 = vpop.f32.mrf.mxu0
    %11286 = vmatprep.mubr.f32.mxu0 0.0
    %11287 = vmatmul.mubr.f32.gmra.mxu0 %v10937
    %v11288 = vpop.f32.mrf.mxu0
    %v11289 = vadd.f32 0.0, %v11288
    %v11290 = vpop.f32.mrf.mxu0
    %11291 = vmatprep.mubr.f32.mxu0 0.0
    %11292 = vmatmul.mubr.f32.gmra.mxu0 %v10940
    %v11293 = vpop.f32.mrf.mxu0
    %v11294 = vadd.f32 0.0, %v11293
    %v11295 = vpop.f32.mrf.mxu0
    %11296 = vmatprep.mubr.f32.mxu0 0.0
    %11297 = vmatmul.mubr.f32.gmra.mxu0 %v10943
    %v11298 = vpop.f32.mrf.mxu0
    %v11299 = vadd.f32 0.0, %v11298
    %v11300 = vpop.f32.mrf.mxu0
    %11301 = vmatprep.mubr.f32.mxu0 0.0
    %11302 = vmatmul.mubr.f32.gmra.mxu0 %v10946
    %v11303 = vpop.f32.mrf.mxu0
    %v11304 = vadd.f32 0.0, %v11303
    %v11305 = vpop.f32.mrf.mxu0
    %11306 = vmatprep.mubr.f32.mxu0 0.0
    %11307 = vmatmul.mubr.f32.gmra.mxu0 %v10949
    %v11308 = vpop.f32.mrf.mxu0
    %v11309 = vadd.f32 0.0, %v11308
    %v11310 = vpop.f32.mrf.mxu0
    %11311 = vmatprep.mubr.f32.mxu0 0.0
    %11312 = vmatmul.mubr.f32.gmra.mxu0 %v10952
    %v11313 = vpop.f32.mrf.mxu0
    %v11314 = vadd.f32 0.0, %v11313
    %v11315 = vpop.f32.mrf.mxu0
    %11316 = vmatprep.mubr.f32.mxu0 0.0
    %11317 = vmatmul.mubr.f32.gmra.mxu0 %v10955
    %v11318 = vpop.f32.mrf.mxu0
    %v11319 = vadd.f32 0.0, %v11318
    %v11320 = vpop.f32.mrf.mxu0
    %11321 = vmatprep.mubr.f32.mxu0 0.0
    %11322 = vmatmul.mubr.f32.gmra.mxu0 %v10958
    %v11323 = vpop.f32.mrf.mxu0
    %v11324 = vadd.f32 0.0, %v11323
    %v11325 = vpop.f32.mrf.mxu0
    %11326 = vmatprep.mubr.f32.mxu0 0.0
    %11327 = vmatmul.mubr.f32.gmra.mxu0 %v10961
    %v11328 = vpop.f32.mrf.mxu0
    %v11329 = vadd.f32 0.0, %v11328
    %v11330 = vpop.f32.mrf.mxu0
    %11331 = vmatprep.mubr.f32.mxu0 0.0
    %11332 = vmatmul.mubr.f32.gmra.mxu0 %v10964
    %v11333 = vpop.f32.mrf.mxu0
    %v11334 = vadd.f32 0.0, %v11333
    %v11335 = vpop.f32.mrf.mxu0
    %11336 = vmatprep.mubr.f32.mxu0 0.0
    %11337 = vmatmul.mubr.f32.gmra.mxu0 %v10967
    %v11338 = vpop.f32.mrf.mxu0
    %v11339 = vadd.f32 0.0, %v11338
    %v11340 = vpop.f32.mrf.mxu0
    %11341 = vmatprep.mubr.f32.mxu0 0.0
    %11342 = vmatmul.mubr.f32.gmra.mxu0 %v10970
    %v11343 = vpop.f32.mrf.mxu0
    %v11344 = vadd.f32 0.0, %v11343
    %v11345 = vpop.f32.mrf.mxu0
    %11346 = vmatprep.mubr.f32.mxu0 0.0
    %11347 = vmatmul.mubr.f32.gmra.mxu0 %v10973
    %v11348 = vpop.f32.mrf.mxu0
    %v11349 = vadd.f32 0.0, %v11348
    %v11350 = vpop.f32.mrf.mxu0
    %11351 = vmatprep.mubr.f32.mxu0 0.0
    %11352 = vmatmul.mubr.f32.gmra.mxu0 %v10976
    %v11353 = vpop.f32.mrf.mxu0
    %v11354 = vadd.f32 0.0, %v11353
    %v11355 = vpop.f32.mrf.mxu0
    %11356 = vmatprep.mubr.f32.mxu0 0.0
    %11357 = vmatmul.mubr.f32.gmra.mxu0 %v10979
    %v11358 = vpop.f32.mrf.mxu0
    %v11359 = vadd.f32 0.0, %v11358
    %v11360 = vpop.f32.mrf.mxu0
    %11361 = vmatprep.mubr.f32.mxu0 0.0
    %11362 = vmatmul.mubr.f32.gmra.mxu0 %v10982
    %v11363 = vpop.f32.mrf.mxu0
    %v11364 = vadd.f32 0.0, %v11363
    %v11365 = vpop.f32.mrf.mxu0
    %11366 = vmatprep.mubr.f32.mxu0 0.0
    %11367 = vmatmul.mubr.f32.gmra.mxu0 %v10985
    %v11368 = vpop.f32.mrf.mxu0
    %v11369 = vadd.f32 0.0, %v11368
    %v11370 = vpop.f32.mrf.mxu0
    %11371 = vdwg.mxu0
    %v11372 = vadd.f32 %v10661, %v11054
    %v11373 = vadd.f32 %v10662, %v11059
    %v11374 = vadd.f32 %v10663, %v11064
    %v11375 = vadd.f32 %v10664, %v11069
    %v11376 = vadd.f32 %v10665, %v11074
    %v11377 = vadd.f32 %v10666, %v11079
    %v11378 = vadd.f32 %v10667, %v11084
    %v11379 = vadd.f32 %v10668, %v11089
    %v11380 = vadd.f32 %v10669, %v11094
    %v11381 = vadd.f32 %v10670, %v11099
    %v11382 = vadd.f32 %v10671, %v11104
    %v11383 = vadd.f32 %v10672, %v11109
    %v11384 = vadd.f32 %v10673, %v11114
    %v11385 = vadd.f32 %v10674, %v11119
    %v11386 = vadd.f32 %v10675, %v11124
    %v11387 = vadd.f32 %v10676, %v11129
    %v11388 = vadd.f32 %v10677, %v11134
    %v11389 = vadd.f32 %v10678, %v11139
    %v11390 = vadd.f32 %v10679, %v11144
    %v11391 = vadd.f32 %v10680, %v11149
    %v11392 = vadd.f32 %v10681, %v11154
    %v11393 = vadd.f32 %v10682, %v11159
    %v11394 = vadd.f32 %v10683, %v11164
    %v11395 = vadd.f32 %v10684, %v11169
    %v11396 = vadd.f32 %v10685, %v11174
    %v11397 = vadd.f32 %v10686, %v11179
    %v11398 = vadd.f32 %v10687, %v11184
    %v11399 = vadd.f32 %v10688, %v11189
    %v11400 = vadd.f32 %v10689, %v11194
    %v11401 = vadd.f32 %v10690, %v11199
    %v11402 = vadd.f32 %v10691, %v11204
    %v11403 = vadd.f32 %v10692, %v11209
    %v11404 = vadd.f32 %v10693, %v11214
    %v11405 = vadd.f32 %v10694, %v11219
    %v11406 = vadd.f32 %v10695, %v11224
    %v11407 = vadd.f32 %v10696, %v11229
    %v11408 = vadd.f32 %v10697, %v11234
    %v11409 = vadd.f32 %v10698, %v11239
    %v11410 = vadd.f32 %v10699, %v11244
    %v11411 = vadd.f32 %v10700, %v11249
    %v11412 = vadd.f32 %v10701, %v11254
    %v11413 = vadd.f32 %v10702, %v11259
    %v11414 = vadd.f32 %v10703, %v11264
    %v11415 = vadd.f32 %v10704, %v11269
    %v11416 = vadd.f32 %v10705, %v11274
    %v11417 = vadd.f32 %v10706, %v11279
    %v11418 = vadd.f32 %v10707, %v11284
    %v11419 = vadd.f32 %v10708, %v11289
    %v11420 = vadd.f32 %v10709, %v11294
    %v11421 = vadd.f32 %v10710, %v11299
    %v11422 = vadd.f32 %v10711, %v11304
    %v11423 = vadd.f32 %v10712, %v11309
    %v11424 = vadd.f32 %v10713, %v11314
    %v11425 = vadd.f32 %v10714, %v11319
    %v11426 = vadd.f32 %v10715, %v11324
    %v11427 = vadd.f32 %v10716, %v11329
    %v11428 = vadd.f32 %v10717, %v11334
    %v11429 = vadd.f32 %v10718, %v11339
    %v11430 = vadd.f32 %v10719, %v11344
    %v11431 = vadd.f32 %v10720, %v11349
    %v11432 = vadd.f32 %v10721, %v11354
    %v11433 = vadd.f32 %v10722, %v11359
    %v11434 = vadd.f32 %v10723, %v11364
    %v11435 = vadd.f32 %v10724, %v11369
    %v11436 = vld [vmem:[%s10725 + $0x1] sm:$0xff]
    %v11437 = vld [vmem:[%s10725 + $0x9] sm:$0xff]
    %v11438 = vld [vmem:[%s10725 + $0x19] sm:$0xff]
    %v11439 = vld [vmem:[%s10725 + $0x21] sm:$0xff]
    %v11440 = vld [vmem:[%s10725 + $0x31] sm:$0xff]
    %v11441 = vld [vmem:[%s10725 + $0x39] sm:$0xff]
    %v11442 = vld [vmem:[%s10725 + $0x49] sm:$0xff]
    %v11443 = vld [vmem:[%s10725 + $0x51] sm:$0xff]
    %v11444 = vld [vmem:[%s10725 + $0x61] sm:$0xff]
    %v11445 = vld [vmem:[%s10725 + $0x69] sm:$0xff]
    %v11446 = vld [vmem:[%s10725 + $0x79] sm:$0xff]
    %v11447 = vld [vmem:[%s10725 + $0x81] sm:$0xff]
    %v11448 = vld [vmem:[%s10725 + $0x91] sm:$0xff]
    %v11449 = vld [vmem:[%s10725 + $0x99] sm:$0xff]
    %v11450 = vld [vmem:[%s10725 + $0xa9] sm:$0xff]
    %v11451 = vld [vmem:[%s10725 + $0xb1] sm:$0xff]
    %v11452 = vld [vmem:[%s10725 + $0xc1] sm:$0xff]
    %v11453 = vld [vmem:[%s10725 + $0xc9] sm:$0xff]
    %v11454 = vld [vmem:[%s10725 + $0xd9] sm:$0xff]
    %v11455 = vld [vmem:[%s10725 + $0xe1] sm:$0xff]
    %v11456 = vld [vmem:[%s10725 + $0xf1] sm:$0xff]
    %v11457 = vld [vmem:[%s10725 + $0xf9] sm:$0xff]
    %v11458 = vld [vmem:[%s10725 + $0x109] sm:$0xff]
    %v11459 = vld [vmem:[%s10725 + $0x111] sm:$0xff]
    %v11460 = vld [vmem:[%s10725 + $0x121] sm:$0xff]
    %v11461 = vld [vmem:[%s10725 + $0x129] sm:$0xff]
    %v11462 = vld [vmem:[%s10725 + $0x139] sm:$0xff]
    %v11463 = vld [vmem:[%s10725 + $0x141] sm:$0xff]
    %v11464 = vld [vmem:[%s10725 + $0x151] sm:$0xff]
    %v11465 = vld [vmem:[%s10725 + $0x159] sm:$0xff]
    %v11466 = vld [vmem:[%s10725 + $0x169] sm:$0xff]
    %v11467 = vld [vmem:[%s10725 + $0x171] sm:$0xff]
    %v11468 = vld [vmem:[%s10725 + $0x1b1] sm:$0xff]
    %v11469 = vld [vmem:[%s10725 + $0x1b9] sm:$0xff]
    %v11470 = vld [vmem:[%s10725 + $0x1c9] sm:$0xff]
    %v11471 = vld [vmem:[%s10725 + $0x1d1] sm:$0xff]
    %v11472 = vld [vmem:[%s10725 + $0x1e1] sm:$0xff]
    %v11473 = vld [vmem:[%s10725 + $0x1e9] sm:$0xff]
    %v11474 = vld [vmem:[%s10725 + $0x1f9] sm:$0xff]
    %v11475 = vld [vmem:[%s10725 + $0x201] sm:$0xff]
    %v11476 = vld [vmem:[%s10725 + $0x211] sm:$0xff]
    %v11477 = vld [vmem:[%s10725 + $0x219] sm:$0xff]
    %v11478 = vld [vmem:[%s10725 + $0x229] sm:$0xff]
    %v11479 = vld [vmem:[%s10725 + $0x231] sm:$0xff]
    %v11480 = vld [vmem:[%s10725 + $0x241] sm:$0xff]
    %v11481 = vld [vmem:[%s10725 + $0x249] sm:$0xff]
    %v11482 = vld [vmem:[%s10725 + $0x259] sm:$0xff]
    %v11483 = vld [vmem:[%s10725 + $0x261] sm:$0xff]
    %v11484 = vld [vmem:[%s10725 + $0x271] sm:$0xff]
    %v11485 = vld [vmem:[%s10725 + $0x279] sm:$0xff]
    %v11486 = vld [vmem:[%s10725 + $0x289] sm:$0xff]
    %v11487 = vld [vmem:[%s10725 + $0x291] sm:$0xff]
    %v11488 = vld [vmem:[%s10725 + $0x2a1] sm:$0xff]
    %v11489 = vld [vmem:[%s10725 + $0x2a9] sm:$0xff]
    %v11490 = vld [vmem:[%s10725 + $0x2b9] sm:$0xff]
    %v11491 = vld [vmem:[%s10725 + $0x2c1] sm:$0xff]
    %v11492 = vld [vmem:[%s10725 + $0x2d1] sm:$0xff]
    %v11493 = vld [vmem:[%s10725 + $0x2d9] sm:$0xff]
    %v11494 = vld [vmem:[%s10725 + $0x2e9] sm:$0xff]
    %v11495 = vld [vmem:[%s10725 + $0x2f1] sm:$0xff]
    %v11496 = vld [vmem:[%s10725 + $0x301] sm:$0xff]
    %v11497 = vld [vmem:[%s10725 + $0x309] sm:$0xff]
    %v11498 = vld [vmem:[%s10725 + $0x319] sm:$0xff]
    %v11499 = vld [vmem:[%s10725 + $0x321] sm:$0xff]
    %s11500 = scalar_lea.vmem %s3, 224
    %v11501 = vld [vmem:[%s11500] sm:$0xff]
    %v11502 = vld [vmem:[%s11500 + $0x8] sm:$0xff]
    %v11503 = vld [vmem:[%s11500 + $0x10] sm:$0xff]
    %v11504 = vld [vmem:[%s11500 + $0x18] sm:$0xff]
    %v11506 = vsel %vm158, %v11436, 0
    %v11509 = vsel %vm158, %v11437, 0
    %v11512 = vsel %vm158, %v11438, 0
    %v11515 = vsel %vm158, %v11439, 0
    %v11518 = vsel %vm158, %v11440, 0
    %v11521 = vsel %vm158, %v11441, 0
    %v11524 = vsel %vm158, %v11442, 0
    %v11527 = vsel %vm158, %v11443, 0
    %v11530 = vsel %vm158, %v11444, 0
    %v11533 = vsel %vm158, %v11445, 0
    %v11536 = vsel %vm158, %v11446, 0
    %v11539 = vsel %vm158, %v11447, 0
    %v11542 = vsel %vm158, %v11448, 0
    %v11545 = vsel %vm158, %v11449, 0
    %v11548 = vsel %vm158, %v11450, 0
    %v11551 = vsel %vm158, %v11451, 0
    %v11554 = vsel %vm158, %v11452, 0
    %v11557 = vsel %vm158, %v11453, 0
    %v11560 = vsel %vm158, %v11454, 0
    %v11563 = vsel %vm158, %v11455, 0
    %v11566 = vsel %vm158, %v11456, 0
    %v11569 = vsel %vm158, %v11457, 0
    %v11572 = vsel %vm158, %v11458, 0
    %v11575 = vsel %vm158, %v11459, 0
    %v11578 = vsel %vm158, %v11460, 0
    %v11581 = vsel %vm158, %v11461, 0
    %v11584 = vsel %vm158, %v11462, 0
    %v11587 = vsel %vm158, %v11463, 0
    %v11590 = vsel %vm158, %v11464, 0
    %v11593 = vsel %vm158, %v11465, 0
    %v11596 = vsel %vm158, %v11466, 0
    %v11599 = vsel %vm158, %v11467, 0
    %v11602 = vsel %vm158, %v11468, 0
    %v11605 = vsel %vm158, %v11469, 0
    %v11608 = vsel %vm158, %v11470, 0
    %v11611 = vsel %vm158, %v11471, 0
    %v11614 = vsel %vm158, %v11472, 0
    %v11617 = vsel %vm158, %v11473, 0
    %v11620 = vsel %vm158, %v11474, 0
    %v11623 = vsel %vm158, %v11475, 0
    %v11626 = vsel %vm158, %v11476, 0
    %v11629 = vsel %vm158, %v11477, 0
    %v11632 = vsel %vm158, %v11478, 0
    %v11635 = vsel %vm158, %v11479, 0
    %v11638 = vsel %vm158, %v11480, 0
    %v11641 = vsel %vm158, %v11481, 0
    %v11644 = vsel %vm158, %v11482, 0
    %v11647 = vsel %vm158, %v11483, 0
    %v11650 = vsel %vm158, %v11484, 0
    %v11653 = vsel %vm158, %v11485, 0
    %v11656 = vsel %vm158, %v11486, 0
    %v11659 = vsel %vm158, %v11487, 0
    %v11662 = vsel %vm158, %v11488, 0
    %v11665 = vsel %vm158, %v11489, 0
    %v11668 = vsel %vm158, %v11490, 0
    %v11671 = vsel %vm158, %v11491, 0
    %v11674 = vsel %vm158, %v11492, 0
    %v11677 = vsel %vm158, %v11493, 0
    %v11680 = vsel %vm158, %v11494, 0
    %v11683 = vsel %vm158, %v11495, 0
    %v11686 = vsel %vm158, %v11496, 0
    %v11689 = vsel %vm158, %v11497, 0
    %v11692 = vsel %vm158, %v11498, 0
    %v11695 = vsel %vm158, %v11499, 0
    %11697 = vmatprep.subr.mxu0 0.0
    %11698 = vmatpush1.msra.mxu0 0.0
    %11699 = vmatprep.subr.mxu0 0.0
    %11700 = vmatpush1.msra.mxu0 0.0
    %11701 = vmatprep.subr.mxu0 0.0
    %11702 = vmatpush1.msra.mxu0 0.0
    %11703 = vmatprep.subr.mxu0 0.0
    %11704 = vmatpush1.msra.mxu0 0.0
    %11705 = vmatprep.subr.mxu0 0.0
    %11706 = vmatpush1.msra.mxu0 0.0
    %11707 = vmatprep.subr.mxu0 0.0
    %11708 = vmatpush1.msra.mxu0 0.0
    %11709 = vmatprep.subr.mxu0 0.0
    %11710 = vmatpush1.msra.mxu0 0.0
    %11711 = vmatprep.subr.mxu0 0.0
    %11712 = vmatpush1.msra.mxu0 0.0
    %11713 = vmatprep.subr.mxu0 0.0
    %11714 = vmatpush1.msra.mxu0 0.0
    %11715 = vmatprep.subr.mxu0 0.0
    %11716 = vmatpush1.msra.mxu0 0.0
    %11717 = vmatprep.subr.mxu0 0.0
    %11718 = vmatpush1.msra.mxu0 0.0
    %11719 = vmatprep.subr.mxu0 0.0
    %11720 = vmatpush1.msra.mxu0 0.0
    %11721 = vmatprep.subr.mxu0 0.0
    %11722 = vmatpush1.msra.mxu0 %v11504
    %11723 = vmatprep.subr.mxu0 0.0
    %11724 = vmatpush1.msra.mxu0 %v11503
    %11725 = vmatprep.subr.mxu0 0.0
    %11726 = vmatpush1.msra.mxu0 %v11502
    %11727 = vmatprep.subr.mxu0 0.0
    %11728 = vmatpush1.msra.mxu0 %v11501
    %11729 = vmatprep.subr.mxu0 0.0
    %11730 = vmatpush2.msra.mxu0 0.0
    %11731 = vmatprep.subr.mxu0 0.0
    %11732 = vmatpush2.msra.mxu0 0.0
    %11733 = vmatprep.subr.mxu0 0.0
    %11734 = vmatpush2.msra.mxu0 0.0
    %11735 = vmatprep.subr.mxu0 0.0
    %11736 = vmatpush2.msra.mxu0 0.0
    %11737 = vmatprep.subr.mxu0 0.0
    %11738 = vmatpush2.msra.mxu0 0.0
    %11739 = vmatprep.subr.mxu0 0.0
    %11740 = vmatpush2.msra.mxu0 0.0
    %11741 = vmatprep.subr.mxu0 0.0
    %11742 = vmatpush2.msra.mxu0 0.0
    %11743 = vmatprep.subr.mxu0 0.0
    %11744 = vmatpush2.msra.mxu0 0.0
    %11745 = vmatprep.subr.mxu0 0.0
    %11746 = vmatpush2.msra.mxu0 0.0
    %11747 = vmatprep.subr.mxu0 0.0
    %11748 = vmatpush2.msra.mxu0 0.0
    %11749 = vmatprep.subr.mxu0 0.0
    %11750 = vmatpush2.msra.mxu0 0.0
    %11751 = vmatprep.subr.mxu0 0.0
    %11752 = vmatpush2.msra.mxu0 0.0
    %11753 = vmatprep.subr.mxu0 0.0
    %11754 = vmatpush2.msra.mxu0 0.0
    %11755 = vmatprep.subr.mxu0 0.0
    %11756 = vmatpush2.msra.mxu0 0.0
    %11757 = vmatprep.subr.mxu0 0.0
    %11758 = vmatpush2.msra.mxu0 0.0
    %11759 = vmatprep.subr.mxu0 0.0
    %11760 = vmatpush2.msra.mxu0 0.0
    %11761 = vmatprep.mubr.f32.mxu0 0.0
    %11762 = vmatmul.mubr.f32.gmra.mxu0 %v11506
    %v11763 = vpop.f32.mrf.mxu0
    %v11764 = vadd.f32 0.0, %v11763
    %v11765 = vpop.f32.mrf.mxu0
    %11766 = vmatprep.mubr.f32.mxu0 0.0
    %11767 = vmatmul.mubr.f32.gmra.mxu0 %v11509
    %v11768 = vpop.f32.mrf.mxu0
    %v11769 = vadd.f32 0.0, %v11768
    %v11770 = vpop.f32.mrf.mxu0
    %11771 = vmatprep.mubr.f32.mxu0 0.0
    %11772 = vmatmul.mubr.f32.gmra.mxu0 %v11512
    %v11773 = vpop.f32.mrf.mxu0
    %v11774 = vadd.f32 0.0, %v11773
    %v11775 = vpop.f32.mrf.mxu0
    %11776 = vmatprep.mubr.f32.mxu0 0.0
    %11777 = vmatmul.mubr.f32.gmra.mxu0 %v11515
    %v11778 = vpop.f32.mrf.mxu0
    %v11779 = vadd.f32 0.0, %v11778
    %v11780 = vpop.f32.mrf.mxu0
    %11781 = vmatprep.mubr.f32.mxu0 0.0
    %11782 = vmatmul.mubr.f32.gmra.mxu0 %v11518
    %v11783 = vpop.f32.mrf.mxu0
    %v11784 = vadd.f32 0.0, %v11783
    %v11785 = vpop.f32.mrf.mxu0
    %11786 = vmatprep.mubr.f32.mxu0 0.0
    %11787 = vmatmul.mubr.f32.gmra.mxu0 %v11521
    %v11788 = vpop.f32.mrf.mxu0
    %v11789 = vadd.f32 0.0, %v11788
    %v11790 = vpop.f32.mrf.mxu0
    %11791 = vmatprep.mubr.f32.mxu0 0.0
    %11792 = vmatmul.mubr.f32.gmra.mxu0 %v11524
    %v11793 = vpop.f32.mrf.mxu0
    %v11794 = vadd.f32 0.0, %v11793
    %v11795 = vpop.f32.mrf.mxu0
    %11796 = vmatprep.mubr.f32.mxu0 0.0
    %11797 = vmatmul.mubr.f32.gmra.mxu0 %v11527
    %v11798 = vpop.f32.mrf.mxu0
    %v11799 = vadd.f32 0.0, %v11798
    %v11800 = vpop.f32.mrf.mxu0
    %11801 = vmatprep.mubr.f32.mxu0 0.0
    %11802 = vmatmul.mubr.f32.gmra.mxu0 %v11530
    %v11803 = vpop.f32.mrf.mxu0
    %v11804 = vadd.f32 0.0, %v11803
    %v11805 = vpop.f32.mrf.mxu0
    %11806 = vmatprep.mubr.f32.mxu0 0.0
    %11807 = vmatmul.mubr.f32.gmra.mxu0 %v11533
    %v11808 = vpop.f32.mrf.mxu0
    %v11809 = vadd.f32 0.0, %v11808
    %v11810 = vpop.f32.mrf.mxu0
    %11811 = vmatprep.mubr.f32.mxu0 0.0
    %11812 = vmatmul.mubr.f32.gmra.mxu0 %v11536
    %v11813 = vpop.f32.mrf.mxu0
    %v11814 = vadd.f32 0.0, %v11813
    %v11815 = vpop.f32.mrf.mxu0
    %11816 = vmatprep.mubr.f32.mxu0 0.0
    %11817 = vmatmul.mubr.f32.gmra.mxu0 %v11539
    %v11818 = vpop.f32.mrf.mxu0
    %v11819 = vadd.f32 0.0, %v11818
    %v11820 = vpop.f32.mrf.mxu0
    %11821 = vmatprep.mubr.f32.mxu0 0.0
    %11822 = vmatmul.mubr.f32.gmra.mxu0 %v11542
    %v11823 = vpop.f32.mrf.mxu0
    %v11824 = vadd.f32 0.0, %v11823
    %v11825 = vpop.f32.mrf.mxu0
    %11826 = vmatprep.mubr.f32.mxu0 0.0
    %11827 = vmatmul.mubr.f32.gmra.mxu0 %v11545
    %v11828 = vpop.f32.mrf.mxu0
    %v11829 = vadd.f32 0.0, %v11828
    %v11830 = vpop.f32.mrf.mxu0
    %11831 = vmatprep.mubr.f32.mxu0 0.0
    %11832 = vmatmul.mubr.f32.gmra.mxu0 %v11548
    %v11833 = vpop.f32.mrf.mxu0
    %v11834 = vadd.f32 0.0, %v11833
    %v11835 = vpop.f32.mrf.mxu0
    %11836 = vmatprep.mubr.f32.mxu0 0.0
    %11837 = vmatmul.mubr.f32.gmra.mxu0 %v11551
    %v11838 = vpop.f32.mrf.mxu0
    %v11839 = vadd.f32 0.0, %v11838
    %v11840 = vpop.f32.mrf.mxu0
    %11841 = vmatprep.mubr.f32.mxu0 0.0
    %11842 = vmatmul.mubr.f32.gmra.mxu0 %v11554
    %v11843 = vpop.f32.mrf.mxu0
    %v11844 = vadd.f32 0.0, %v11843
    %v11845 = vpop.f32.mrf.mxu0
    %11846 = vmatprep.mubr.f32.mxu0 0.0
    %11847 = vmatmul.mubr.f32.gmra.mxu0 %v11557
    %v11848 = vpop.f32.mrf.mxu0
    %v11849 = vadd.f32 0.0, %v11848
    %v11850 = vpop.f32.mrf.mxu0
    %11851 = vmatprep.mubr.f32.mxu0 0.0
    %11852 = vmatmul.mubr.f32.gmra.mxu0 %v11560
    %v11853 = vpop.f32.mrf.mxu0
    %v11854 = vadd.f32 0.0, %v11853
    %v11855 = vpop.f32.mrf.mxu0
    %11856 = vmatprep.mubr.f32.mxu0 0.0
    %11857 = vmatmul.mubr.f32.gmra.mxu0 %v11563
    %v11858 = vpop.f32.mrf.mxu0
    %v11859 = vadd.f32 0.0, %v11858
    %v11860 = vpop.f32.mrf.mxu0
    %11861 = vmatprep.mubr.f32.mxu0 0.0
    %11862 = vmatmul.mubr.f32.gmra.mxu0 %v11566
    %v11863 = vpop.f32.mrf.mxu0
    %v11864 = vadd.f32 0.0, %v11863
    %v11865 = vpop.f32.mrf.mxu0
    %11866 = vmatprep.mubr.f32.mxu0 0.0
    %11867 = vmatmul.mubr.f32.gmra.mxu0 %v11569
    %v11868 = vpop.f32.mrf.mxu0
    %v11869 = vadd.f32 0.0, %v11868
    %v11870 = vpop.f32.mrf.mxu0
    %11871 = vmatprep.mubr.f32.mxu0 0.0
    %11872 = vmatmul.mubr.f32.gmra.mxu0 %v11572
    %v11873 = vpop.f32.mrf.mxu0
    %v11874 = vadd.f32 0.0, %v11873
    %v11875 = vpop.f32.mrf.mxu0
    %11876 = vmatprep.mubr.f32.mxu0 0.0
    %11877 = vmatmul.mubr.f32.gmra.mxu0 %v11575
    %v11878 = vpop.f32.mrf.mxu0
    %v11879 = vadd.f32 0.0, %v11878
    %v11880 = vpop.f32.mrf.mxu0
    %11881 = vmatprep.mubr.f32.mxu0 0.0
    %11882 = vmatmul.mubr.f32.gmra.mxu0 %v11578
    %v11883 = vpop.f32.mrf.mxu0
    %v11884 = vadd.f32 0.0, %v11883
    %v11885 = vpop.f32.mrf.mxu0
    %11886 = vmatprep.mubr.f32.mxu0 0.0
    %11887 = vmatmul.mubr.f32.gmra.mxu0 %v11581
    %v11888 = vpop.f32.mrf.mxu0
    %v11889 = vadd.f32 0.0, %v11888
    %v11890 = vpop.f32.mrf.mxu0
    %11891 = vmatprep.mubr.f32.mxu0 0.0
    %11892 = vmatmul.mubr.f32.gmra.mxu0 %v11584
    %v11893 = vpop.f32.mrf.mxu0
    %v11894 = vadd.f32 0.0, %v11893
    %v11895 = vpop.f32.mrf.mxu0
    %11896 = vmatprep.mubr.f32.mxu0 0.0
    %11897 = vmatmul.mubr.f32.gmra.mxu0 %v11587
    %v11898 = vpop.f32.mrf.mxu0
    %v11899 = vadd.f32 0.0, %v11898
    %v11900 = vpop.f32.mrf.mxu0
    %11901 = vmatprep.mubr.f32.mxu0 0.0
    %11902 = vmatmul.mubr.f32.gmra.mxu0 %v11590
    %v11903 = vpop.f32.mrf.mxu0
    %v11904 = vadd.f32 0.0, %v11903
    %v11905 = vpop.f32.mrf.mxu0
    %11906 = vmatprep.mubr.f32.mxu0 0.0
    %11907 = vmatmul.mubr.f32.gmra.mxu0 %v11593
    %v11908 = vpop.f32.mrf.mxu0
    %v11909 = vadd.f32 0.0, %v11908
    %v11910 = vpop.f32.mrf.mxu0
    %11911 = vmatprep.mubr.f32.mxu0 0.0
    %11912 = vmatmul.mubr.f32.gmra.mxu0 %v11596
    %v11913 = vpop.f32.mrf.mxu0
    %v11914 = vadd.f32 0.0, %v11913
    %v11915 = vpop.f32.mrf.mxu0
    %11916 = vmatprep.mubr.f32.mxu0 0.0
    %11917 = vmatmul.mubr.f32.gmra.mxu0 %v11599
    %v11918 = vpop.f32.mrf.mxu0
    %v11919 = vadd.f32 0.0, %v11918
    %v11920 = vpop.f32.mrf.mxu0
    %11921 = vmatprep.mubr.f32.mxu0 0.0
    %11922 = vmatmul.mubr.f32.gmra.mxu0 %v11602
    %v11923 = vpop.f32.mrf.mxu0
    %v11924 = vadd.f32 0.0, %v11923
    %v11925 = vpop.f32.mrf.mxu0
    %11926 = vmatprep.mubr.f32.mxu0 0.0
    %11927 = vmatmul.mubr.f32.gmra.mxu0 %v11605
    %v11928 = vpop.f32.mrf.mxu0
    %v11929 = vadd.f32 0.0, %v11928
    %v11930 = vpop.f32.mrf.mxu0
    %11931 = vmatprep.mubr.f32.mxu0 0.0
    %11932 = vmatmul.mubr.f32.gmra.mxu0 %v11608
    %v11933 = vpop.f32.mrf.mxu0
    %v11934 = vadd.f32 0.0, %v11933
    %v11935 = vpop.f32.mrf.mxu0
    %11936 = vmatprep.mubr.f32.mxu0 0.0
    %11937 = vmatmul.mubr.f32.gmra.mxu0 %v11611
    %v11938 = vpop.f32.mrf.mxu0
    %v11939 = vadd.f32 0.0, %v11938
    %v11940 = vpop.f32.mrf.mxu0
    %11941 = vmatprep.mubr.f32.mxu0 0.0
    %11942 = vmatmul.mubr.f32.gmra.mxu0 %v11614
    %v11943 = vpop.f32.mrf.mxu0
    %v11944 = vadd.f32 0.0, %v11943
    %v11945 = vpop.f32.mrf.mxu0
    %11946 = vmatprep.mubr.f32.mxu0 0.0
    %11947 = vmatmul.mubr.f32.gmra.mxu0 %v11617
    %v11948 = vpop.f32.mrf.mxu0
    %v11949 = vadd.f32 0.0, %v11948
    %v11950 = vpop.f32.mrf.mxu0
    %11951 = vmatprep.mubr.f32.mxu0 0.0
    %11952 = vmatmul.mubr.f32.gmra.mxu0 %v11620
    %v11953 = vpop.f32.mrf.mxu0
    %v11954 = vadd.f32 0.0, %v11953
    %v11955 = vpop.f32.mrf.mxu0
    %11956 = vmatprep.mubr.f32.mxu0 0.0
    %11957 = vmatmul.mubr.f32.gmra.mxu0 %v11623
    %v11958 = vpop.f32.mrf.mxu0
    %v11959 = vadd.f32 0.0, %v11958
    %v11960 = vpop.f32.mrf.mxu0
    %11961 = vmatprep.mubr.f32.mxu0 0.0
    %11962 = vmatmul.mubr.f32.gmra.mxu0 %v11626
    %v11963 = vpop.f32.mrf.mxu0
    %v11964 = vadd.f32 0.0, %v11963
    %v11965 = vpop.f32.mrf.mxu0
    %11966 = vmatprep.mubr.f32.mxu0 0.0
    %11967 = vmatmul.mubr.f32.gmra.mxu0 %v11629
    %v11968 = vpop.f32.mrf.mxu0
    %v11969 = vadd.f32 0.0, %v11968
    %v11970 = vpop.f32.mrf.mxu0
    %11971 = vmatprep.mubr.f32.mxu0 0.0
    %11972 = vmatmul.mubr.f32.gmra.mxu0 %v11632
    %v11973 = vpop.f32.mrf.mxu0
    %v11974 = vadd.f32 0.0, %v11973
    %v11975 = vpop.f32.mrf.mxu0
    %11976 = vmatprep.mubr.f32.mxu0 0.0
    %11977 = vmatmul.mubr.f32.gmra.mxu0 %v11635
    %v11978 = vpop.f32.mrf.mxu0
    %v11979 = vadd.f32 0.0, %v11978
    %v11980 = vpop.f32.mrf.mxu0
    %11981 = vmatprep.mubr.f32.mxu0 0.0
    %11982 = vmatmul.mubr.f32.gmra.mxu0 %v11638
    %v11983 = vpop.f32.mrf.mxu0
    %v11984 = vadd.f32 0.0, %v11983
    %v11985 = vpop.f32.mrf.mxu0
    %11986 = vmatprep.mubr.f32.mxu0 0.0
    %11987 = vmatmul.mubr.f32.gmra.mxu0 %v11641
    %v11988 = vpop.f32.mrf.mxu0
    %v11989 = vadd.f32 0.0, %v11988
    %v11990 = vpop.f32.mrf.mxu0
    %11991 = vmatprep.mubr.f32.mxu0 0.0
    %11992 = vmatmul.mubr.f32.gmra.mxu0 %v11644
    %v11993 = vpop.f32.mrf.mxu0
    %v11994 = vadd.f32 0.0, %v11993
    %v11995 = vpop.f32.mrf.mxu0
    %11996 = vmatprep.mubr.f32.mxu0 0.0
    %11997 = vmatmul.mubr.f32.gmra.mxu0 %v11647
    %v11998 = vpop.f32.mrf.mxu0
    %v11999 = vadd.f32 0.0, %v11998
    %v12000 = vpop.f32.mrf.mxu0
    %12001 = vmatprep.mubr.f32.mxu0 0.0
    %12002 = vmatmul.mubr.f32.gmra.mxu0 %v11650
    %v12003 = vpop.f32.mrf.mxu0
    %v12004 = vadd.f32 0.0, %v12003
    %v12005 = vpop.f32.mrf.mxu0
    %12006 = vmatprep.mubr.f32.mxu0 0.0
    %12007 = vmatmul.mubr.f32.gmra.mxu0 %v11653
    %v12008 = vpop.f32.mrf.mxu0
    %v12009 = vadd.f32 0.0, %v12008
    %v12010 = vpop.f32.mrf.mxu0
    %12011 = vmatprep.mubr.f32.mxu0 0.0
    %12012 = vmatmul.mubr.f32.gmra.mxu0 %v11656
    %v12013 = vpop.f32.mrf.mxu0
    %v12014 = vadd.f32 0.0, %v12013
    %v12015 = vpop.f32.mrf.mxu0
    %12016 = vmatprep.mubr.f32.mxu0 0.0
    %12017 = vmatmul.mubr.f32.gmra.mxu0 %v11659
    %v12018 = vpop.f32.mrf.mxu0
    %v12019 = vadd.f32 0.0, %v12018
    %v12020 = vpop.f32.mrf.mxu0
    %12021 = vmatprep.mubr.f32.mxu0 0.0
    %12022 = vmatmul.mubr.f32.gmra.mxu0 %v11662
    %v12023 = vpop.f32.mrf.mxu0
    %v12024 = vadd.f32 0.0, %v12023
    %v12025 = vpop.f32.mrf.mxu0
    %12026 = vmatprep.mubr.f32.mxu0 0.0
    %12027 = vmatmul.mubr.f32.gmra.mxu0 %v11665
    %v12028 = vpop.f32.mrf.mxu0
    %v12029 = vadd.f32 0.0, %v12028
    %v12030 = vpop.f32.mrf.mxu0
    %12031 = vmatprep.mubr.f32.mxu0 0.0
    %12032 = vmatmul.mubr.f32.gmra.mxu0 %v11668
    %v12033 = vpop.f32.mrf.mxu0
    %v12034 = vadd.f32 0.0, %v12033
    %v12035 = vpop.f32.mrf.mxu0
    %12036 = vmatprep.mubr.f32.mxu0 0.0
    %12037 = vmatmul.mubr.f32.gmra.mxu0 %v11671
    %v12038 = vpop.f32.mrf.mxu0
    %v12039 = vadd.f32 0.0, %v12038
    %v12040 = vpop.f32.mrf.mxu0
    %12041 = vmatprep.mubr.f32.mxu0 0.0
    %12042 = vmatmul.mubr.f32.gmra.mxu0 %v11674
    %v12043 = vpop.f32.mrf.mxu0
    %v12044 = vadd.f32 0.0, %v12043
    %v12045 = vpop.f32.mrf.mxu0
    %12046 = vmatprep.mubr.f32.mxu0 0.0
    %12047 = vmatmul.mubr.f32.gmra.mxu0 %v11677
    %v12048 = vpop.f32.mrf.mxu0
    %v12049 = vadd.f32 0.0, %v12048
    %v12050 = vpop.f32.mrf.mxu0
    %12051 = vmatprep.mubr.f32.mxu0 0.0
    %12052 = vmatmul.mubr.f32.gmra.mxu0 %v11680
    %v12053 = vpop.f32.mrf.mxu0
    %v12054 = vadd.f32 0.0, %v12053
    %v12055 = vpop.f32.mrf.mxu0
    %12056 = vmatprep.mubr.f32.mxu0 0.0
    %12057 = vmatmul.mubr.f32.gmra.mxu0 %v11683
    %v12058 = vpop.f32.mrf.mxu0
    %v12059 = vadd.f32 0.0, %v12058
    %v12060 = vpop.f32.mrf.mxu0
    %12061 = vmatprep.mubr.f32.mxu0 0.0
    %12062 = vmatmul.mubr.f32.gmra.mxu0 %v11686
    %v12063 = vpop.f32.mrf.mxu0
    %v12064 = vadd.f32 0.0, %v12063
    %v12065 = vpop.f32.mrf.mxu0
    %12066 = vmatprep.mubr.f32.mxu0 0.0
    %12067 = vmatmul.mubr.f32.gmra.mxu0 %v11689
    %v12068 = vpop.f32.mrf.mxu0
    %v12069 = vadd.f32 0.0, %v12068
    %v12070 = vpop.f32.mrf.mxu0
    %12071 = vmatprep.mubr.f32.mxu0 0.0
    %12072 = vmatmul.mubr.f32.gmra.mxu0 %v11692
    %v12073 = vpop.f32.mrf.mxu0
    %v12074 = vadd.f32 0.0, %v12073
    %v12075 = vpop.f32.mrf.mxu0
    %12076 = vmatprep.mubr.f32.mxu0 0.0
    %12077 = vmatmul.mubr.f32.gmra.mxu0 %v11695
    %v12078 = vpop.f32.mrf.mxu0
    %v12079 = vadd.f32 0.0, %v12078
    %v12080 = vpop.f32.mrf.mxu0
    %12081 = vdwg.mxu0
    %v12082 = vadd.f32 %v11372, %v11764
    %v12083 = vadd.f32 %v11373, %v11769
    %v12084 = vadd.f32 %v11374, %v11774
    %v12085 = vadd.f32 %v11375, %v11779
    %v12086 = vadd.f32 %v11376, %v11784
    %v12087 = vadd.f32 %v11377, %v11789
    %v12088 = vadd.f32 %v11378, %v11794
    %v12089 = vadd.f32 %v11379, %v11799
    %v12090 = vadd.f32 %v11380, %v11804
    %v12091 = vadd.f32 %v11381, %v11809
    %v12092 = vadd.f32 %v11382, %v11814
    %v12093 = vadd.f32 %v11383, %v11819
    %v12094 = vadd.f32 %v11384, %v11824
    %v12095 = vadd.f32 %v11385, %v11829
    %v12096 = vadd.f32 %v11386, %v11834
    %v12097 = vadd.f32 %v11387, %v11839
    %v12098 = vadd.f32 %v11388, %v11844
    %v12099 = vadd.f32 %v11389, %v11849
    %v12100 = vadd.f32 %v11390, %v11854
    %v12101 = vadd.f32 %v11391, %v11859
    %v12102 = vadd.f32 %v11392, %v11864
    %v12103 = vadd.f32 %v11393, %v11869
    %v12104 = vadd.f32 %v11394, %v11874
    %v12105 = vadd.f32 %v11395, %v11879
    %v12106 = vadd.f32 %v11396, %v11884
    %v12107 = vadd.f32 %v11397, %v11889
    %v12108 = vadd.f32 %v11398, %v11894
    %v12109 = vadd.f32 %v11399, %v11899
    %v12110 = vadd.f32 %v11400, %v11904
    %v12111 = vadd.f32 %v11401, %v11909
    %v12112 = vadd.f32 %v11402, %v11914
    %v12113 = vadd.f32 %v11403, %v11919
    %v12114 = vadd.f32 %v11404, %v11924
    %v12115 = vadd.f32 %v11405, %v11929
    %v12116 = vadd.f32 %v11406, %v11934
    %v12117 = vadd.f32 %v11407, %v11939
    %v12118 = vadd.f32 %v11408, %v11944
    %v12119 = vadd.f32 %v11409, %v11949
    %v12120 = vadd.f32 %v11410, %v11954
    %v12121 = vadd.f32 %v11411, %v11959
    %v12122 = vadd.f32 %v11412, %v11964
    %v12123 = vadd.f32 %v11413, %v11969
    %v12124 = vadd.f32 %v11414, %v11974
    %v12125 = vadd.f32 %v11415, %v11979
    %v12126 = vadd.f32 %v11416, %v11984
    %v12127 = vadd.f32 %v11417, %v11989
    %v12128 = vadd.f32 %v11418, %v11994
    %v12129 = vadd.f32 %v11419, %v11999
    %v12130 = vadd.f32 %v11420, %v12004
    %v12131 = vadd.f32 %v11421, %v12009
    %v12132 = vadd.f32 %v11422, %v12014
    %v12133 = vadd.f32 %v11423, %v12019
    %v12134 = vadd.f32 %v11424, %v12024
    %v12135 = vadd.f32 %v11425, %v12029
    %v12136 = vadd.f32 %v11426, %v12034
    %v12137 = vadd.f32 %v11427, %v12039
    %v12138 = vadd.f32 %v11428, %v12044
    %v12139 = vadd.f32 %v11429, %v12049
    %v12140 = vadd.f32 %v11430, %v12054
    %v12141 = vadd.f32 %v11431, %v12059
    %v12142 = vadd.f32 %v11432, %v12064
    %v12143 = vadd.f32 %v11433, %v12069
    %v12144 = vadd.f32 %v11434, %v12074
    %v12145 = vadd.f32 %v11435, %v12079
    %v12146 = vld [vmem:[%s10725 + $0x2] sm:$0xff]
    %v12147 = vld [vmem:[%s10725 + $0xa] sm:$0xff]
    %v12148 = vld [vmem:[%s10725 + $0x1a] sm:$0xff]
    %v12149 = vld [vmem:[%s10725 + $0x22] sm:$0xff]
    %v12150 = vld [vmem:[%s10725 + $0x32] sm:$0xff]
    %v12151 = vld [vmem:[%s10725 + $0x3a] sm:$0xff]
    %v12152 = vld [vmem:[%s10725 + $0x4a] sm:$0xff]
    %v12153 = vld [vmem:[%s10725 + $0x52] sm:$0xff]
    %v12154 = vld [vmem:[%s10725 + $0x62] sm:$0xff]
    %v12155 = vld [vmem:[%s10725 + $0x6a] sm:$0xff]
    %v12156 = vld [vmem:[%s10725 + $0x7a] sm:$0xff]
    %v12157 = vld [vmem:[%s10725 + $0x82] sm:$0xff]
    %v12158 = vld [vmem:[%s10725 + $0x92] sm:$0xff]
    %v12159 = vld [vmem:[%s10725 + $0x9a] sm:$0xff]
    %v12160 = vld [vmem:[%s10725 + $0xaa] sm:$0xff]
    %v12161 = vld [vmem:[%s10725 + $0xb2] sm:$0xff]
    %v12162 = vld [vmem:[%s10725 + $0xc2] sm:$0xff]
    %v12163 = vld [vmem:[%s10725 + $0xca] sm:$0xff]
    %v12164 = vld [vmem:[%s10725 + $0xda] sm:$0xff]
    %v12165 = vld [vmem:[%s10725 + $0xe2] sm:$0xff]
    %v12166 = vld [vmem:[%s10725 + $0xf2] sm:$0xff]
    %v12167 = vld [vmem:[%s10725 + $0xfa] sm:$0xff]
    %v12168 = vld [vmem:[%s10725 + $0x10a] sm:$0xff]
    %v12169 = vld [vmem:[%s10725 + $0x112] sm:$0xff]
    %v12170 = vld [vmem:[%s10725 + $0x122] sm:$0xff]
    %v12171 = vld [vmem:[%s10725 + $0x12a] sm:$0xff]
    %v12172 = vld [vmem:[%s10725 + $0x13a] sm:$0xff]
    %v12173 = vld [vmem:[%s10725 + $0x142] sm:$0xff]
    %v12174 = vld [vmem:[%s10725 + $0x152] sm:$0xff]
    %v12175 = vld [vmem:[%s10725 + $0x15a] sm:$0xff]
    %v12176 = vld [vmem:[%s10725 + $0x16a] sm:$0xff]
    %v12177 = vld [vmem:[%s10725 + $0x172] sm:$0xff]
    %v12178 = vld [vmem:[%s10725 + $0x1b2] sm:$0xff]
    %v12179 = vld [vmem:[%s10725 + $0x1ba] sm:$0xff]
    %v12180 = vld [vmem:[%s10725 + $0x1ca] sm:$0xff]
    %v12181 = vld [vmem:[%s10725 + $0x1d2] sm:$0xff]
    %v12182 = vld [vmem:[%s10725 + $0x1e2] sm:$0xff]
    %v12183 = vld [vmem:[%s10725 + $0x1ea] sm:$0xff]
    %v12184 = vld [vmem:[%s10725 + $0x1fa] sm:$0xff]
    %v12185 = vld [vmem:[%s10725 + $0x202] sm:$0xff]
    %v12186 = vld [vmem:[%s10725 + $0x212] sm:$0xff]
    %v12187 = vld [vmem:[%s10725 + $0x21a] sm:$0xff]
    %v12188 = vld [vmem:[%s10725 + $0x22a] sm:$0xff]
    %v12189 = vld [vmem:[%s10725 + $0x232] sm:$0xff]
    %v12190 = vld [vmem:[%s10725 + $0x242] sm:$0xff]
    %v12191 = vld [vmem:[%s10725 + $0x24a] sm:$0xff]
    %v12192 = vld [vmem:[%s10725 + $0x25a] sm:$0xff]
    %v12193 = vld [vmem:[%s10725 + $0x262] sm:$0xff]
    %v12194 = vld [vmem:[%s10725 + $0x272] sm:$0xff]
    %v12195 = vld [vmem:[%s10725 + $0x27a] sm:$0xff]
    %v12196 = vld [vmem:[%s10725 + $0x28a] sm:$0xff]
    %v12197 = vld [vmem:[%s10725 + $0x292] sm:$0xff]
    %v12198 = vld [vmem:[%s10725 + $0x2a2] sm:$0xff]
    %v12199 = vld [vmem:[%s10725 + $0x2aa] sm:$0xff]
    %v12200 = vld [vmem:[%s10725 + $0x2ba] sm:$0xff]
    %v12201 = vld [vmem:[%s10725 + $0x2c2] sm:$0xff]
    %v12202 = vld [vmem:[%s10725 + $0x2d2] sm:$0xff]
    %v12203 = vld [vmem:[%s10725 + $0x2da] sm:$0xff]
    %v12204 = vld [vmem:[%s10725 + $0x2ea] sm:$0xff]
    %v12205 = vld [vmem:[%s10725 + $0x2f2] sm:$0xff]
    %v12206 = vld [vmem:[%s10725 + $0x302] sm:$0xff]
    %v12207 = vld [vmem:[%s10725 + $0x30a] sm:$0xff]
    %v12208 = vld [vmem:[%s10725 + $0x31a] sm:$0xff]
    %v12209 = vld [vmem:[%s10725 + $0x322] sm:$0xff]
    %s12210 = scalar_lea.vmem %s3, 256
    %v12211 = vld [vmem:[%s12210] sm:$0xff]
    %v12212 = vld [vmem:[%s12210 + $0x8] sm:$0xff]
    %v12213 = vld [vmem:[%s12210 + $0x10] sm:$0xff]
    %v12214 = vld [vmem:[%s12210 + $0x18] sm:$0xff]
    %v12216 = vsel %vm158, %v12146, 0
    %v12219 = vsel %vm158, %v12147, 0
    %v12222 = vsel %vm158, %v12148, 0
    %v12225 = vsel %vm158, %v12149, 0
    %v12228 = vsel %vm158, %v12150, 0
    %v12231 = vsel %vm158, %v12151, 0
    %v12234 = vsel %vm158, %v12152, 0
    %v12237 = vsel %vm158, %v12153, 0
    %v12240 = vsel %vm158, %v12154, 0
    %v12243 = vsel %vm158, %v12155, 0
    %v12246 = vsel %vm158, %v12156, 0
    %v12249 = vsel %vm158, %v12157, 0
    %v12252 = vsel %vm158, %v12158, 0
    %v12255 = vsel %vm158, %v12159, 0
    %v12258 = vsel %vm158, %v12160, 0
    %v12261 = vsel %vm158, %v12161, 0
    %v12264 = vsel %vm158, %v12162, 0
    %v12267 = vsel %vm158, %v12163, 0
    %v12270 = vsel %vm158, %v12164, 0
    %v12273 = vsel %vm158, %v12165, 0
    %v12276 = vsel %vm158, %v12166, 0
    %v12279 = vsel %vm158, %v12167, 0
    %v12282 = vsel %vm158, %v12168, 0
    %v12285 = vsel %vm158, %v12169, 0
    %v12288 = vsel %vm158, %v12170, 0
    %v12291 = vsel %vm158, %v12171, 0
    %v12294 = vsel %vm158, %v12172, 0
    %v12297 = vsel %vm158, %v12173, 0
    %v12300 = vsel %vm158, %v12174, 0
    %v12303 = vsel %vm158, %v12175, 0
    %v12306 = vsel %vm158, %v12176, 0
    %v12309 = vsel %vm158, %v12177, 0
    %v12312 = vsel %vm158, %v12178, 0
    %v12315 = vsel %vm158, %v12179, 0
    %v12318 = vsel %vm158, %v12180, 0
    %v12321 = vsel %vm158, %v12181, 0
    %v12324 = vsel %vm158, %v12182, 0
    %v12327 = vsel %vm158, %v12183, 0
    %v12330 = vsel %vm158, %v12184, 0
    %v12333 = vsel %vm158, %v12185, 0
    %v12336 = vsel %vm158, %v12186, 0
    %v12339 = vsel %vm158, %v12187, 0
    %v12342 = vsel %vm158, %v12188, 0
    %v12345 = vsel %vm158, %v12189, 0
    %v12348 = vsel %vm158, %v12190, 0
    %v12351 = vsel %vm158, %v12191, 0
    %v12354 = vsel %vm158, %v12192, 0
    %v12357 = vsel %vm158, %v12193, 0
    %v12360 = vsel %vm158, %v12194, 0
    %v12363 = vsel %vm158, %v12195, 0
    %v12366 = vsel %vm158, %v12196, 0
    %v12369 = vsel %vm158, %v12197, 0
    %v12372 = vsel %vm158, %v12198, 0
    %v12375 = vsel %vm158, %v12199, 0
    %v12378 = vsel %vm158, %v12200, 0
    %v12381 = vsel %vm158, %v12201, 0
    %v12384 = vsel %vm158, %v12202, 0
    %v12387 = vsel %vm158, %v12203, 0
    %v12390 = vsel %vm158, %v12204, 0
    %v12393 = vsel %vm158, %v12205, 0
    %v12396 = vsel %vm158, %v12206, 0
    %v12399 = vsel %vm158, %v12207, 0
    %v12402 = vsel %vm158, %v12208, 0
    %v12405 = vsel %vm158, %v12209, 0
    %12407 = vmatprep.subr.mxu0 0.0
    %12408 = vmatpush1.msra.mxu0 0.0
    %12409 = vmatprep.subr.mxu0 0.0
    %12410 = vmatpush1.msra.mxu0 0.0
    %12411 = vmatprep.subr.mxu0 0.0
    %12412 = vmatpush1.msra.mxu0 0.0
    %12413 = vmatprep.subr.mxu0 0.0
    %12414 = vmatpush1.msra.mxu0 0.0
    %12415 = vmatprep.subr.mxu0 0.0
    %12416 = vmatpush1.msra.mxu0 0.0
    %12417 = vmatprep.subr.mxu0 0.0
    %12418 = vmatpush1.msra.mxu0 0.0
    %12419 = vmatprep.subr.mxu0 0.0
    %12420 = vmatpush1.msra.mxu0 0.0
    %12421 = vmatprep.subr.mxu0 0.0
    %12422 = vmatpush1.msra.mxu0 0.0
    %12423 = vmatprep.subr.mxu0 0.0
    %12424 = vmatpush1.msra.mxu0 0.0
    %12425 = vmatprep.subr.mxu0 0.0
    %12426 = vmatpush1.msra.mxu0 0.0
    %12427 = vmatprep.subr.mxu0 0.0
    %12428 = vmatpush1.msra.mxu0 0.0
    %12429 = vmatprep.subr.mxu0 0.0
    %12430 = vmatpush1.msra.mxu0 0.0
    %12431 = vmatprep.subr.mxu0 0.0
    %12432 = vmatpush1.msra.mxu0 %v12214
    %12433 = vmatprep.subr.mxu0 0.0
    %12434 = vmatpush1.msra.mxu0 %v12213
    %12435 = vmatprep.subr.mxu0 0.0
    %12436 = vmatpush1.msra.mxu0 %v12212
    %12437 = vmatprep.subr.mxu0 0.0
    %12438 = vmatpush1.msra.mxu0 %v12211
    %12439 = vmatprep.subr.mxu0 0.0
    %12440 = vmatpush2.msra.mxu0 0.0
    %12441 = vmatprep.subr.mxu0 0.0
    %12442 = vmatpush2.msra.mxu0 0.0
    %12443 = vmatprep.subr.mxu0 0.0
    %12444 = vmatpush2.msra.mxu0 0.0
    %12445 = vmatprep.subr.mxu0 0.0
    %12446 = vmatpush2.msra.mxu0 0.0
    %12447 = vmatprep.subr.mxu0 0.0
    %12448 = vmatpush2.msra.mxu0 0.0
    %12449 = vmatprep.subr.mxu0 0.0
    %12450 = vmatpush2.msra.mxu0 0.0
    %12451 = vmatprep.subr.mxu0 0.0
    %12452 = vmatpush2.msra.mxu0 0.0
    %12453 = vmatprep.subr.mxu0 0.0
    %12454 = vmatpush2.msra.mxu0 0.0
    %12455 = vmatprep.subr.mxu0 0.0
    %12456 = vmatpush2.msra.mxu0 0.0
    %12457 = vmatprep.subr.mxu0 0.0
    %12458 = vmatpush2.msra.mxu0 0.0
    %12459 = vmatprep.subr.mxu0 0.0
    %12460 = vmatpush2.msra.mxu0 0.0
    %12461 = vmatprep.subr.mxu0 0.0
    %12462 = vmatpush2.msra.mxu0 0.0
    %12463 = vmatprep.subr.mxu0 0.0
    %12464 = vmatpush2.msra.mxu0 0.0
    %12465 = vmatprep.subr.mxu0 0.0
    %12466 = vmatpush2.msra.mxu0 0.0
    %12467 = vmatprep.subr.mxu0 0.0
    %12468 = vmatpush2.msra.mxu0 0.0
    %12469 = vmatprep.subr.mxu0 0.0
    %12470 = vmatpush2.msra.mxu0 0.0
    %12471 = vmatprep.mubr.f32.mxu0 0.0
    %12472 = vmatmul.mubr.f32.gmra.mxu0 %v12216
    %v12473 = vpop.f32.mrf.mxu0
    %v12474 = vadd.f32 0.0, %v12473
    %v12475 = vpop.f32.mrf.mxu0
    %12476 = vmatprep.mubr.f32.mxu0 0.0
    %12477 = vmatmul.mubr.f32.gmra.mxu0 %v12219
    %v12478 = vpop.f32.mrf.mxu0
    %v12479 = vadd.f32 0.0, %v12478
    %v12480 = vpop.f32.mrf.mxu0
    %12481 = vmatprep.mubr.f32.mxu0 0.0
    %12482 = vmatmul.mubr.f32.gmra.mxu0 %v12222
    %v12483 = vpop.f32.mrf.mxu0
    %v12484 = vadd.f32 0.0, %v12483
    %v12485 = vpop.f32.mrf.mxu0
    %12486 = vmatprep.mubr.f32.mxu0 0.0
    %12487 = vmatmul.mubr.f32.gmra.mxu0 %v12225
    %v12488 = vpop.f32.mrf.mxu0
    %v12489 = vadd.f32 0.0, %v12488
    %v12490 = vpop.f32.mrf.mxu0
    %12491 = vmatprep.mubr.f32.mxu0 0.0
    %12492 = vmatmul.mubr.f32.gmra.mxu0 %v12228
    %v12493 = vpop.f32.mrf.mxu0
    %v12494 = vadd.f32 0.0, %v12493
    %v12495 = vpop.f32.mrf.mxu0
    %12496 = vmatprep.mubr.f32.mxu0 0.0
    %12497 = vmatmul.mubr.f32.gmra.mxu0 %v12231
    %v12498 = vpop.f32.mrf.mxu0
    %v12499 = vadd.f32 0.0, %v12498
    %v12500 = vpop.f32.mrf.mxu0
    %12501 = vmatprep.mubr.f32.mxu0 0.0
    %12502 = vmatmul.mubr.f32.gmra.mxu0 %v12234
    %v12503 = vpop.f32.mrf.mxu0
    %v12504 = vadd.f32 0.0, %v12503
    %v12505 = vpop.f32.mrf.mxu0
    %12506 = vmatprep.mubr.f32.mxu0 0.0
    %12507 = vmatmul.mubr.f32.gmra.mxu0 %v12237
    %v12508 = vpop.f32.mrf.mxu0
    %v12509 = vadd.f32 0.0, %v12508
    %v12510 = vpop.f32.mrf.mxu0
    %12511 = vmatprep.mubr.f32.mxu0 0.0
    %12512 = vmatmul.mubr.f32.gmra.mxu0 %v12240
    %v12513 = vpop.f32.mrf.mxu0
    %v12514 = vadd.f32 0.0, %v12513
    %v12515 = vpop.f32.mrf.mxu0
    %12516 = vmatprep.mubr.f32.mxu0 0.0
    %12517 = vmatmul.mubr.f32.gmra.mxu0 %v12243
    %v12518 = vpop.f32.mrf.mxu0
    %v12519 = vadd.f32 0.0, %v12518
    %v12520 = vpop.f32.mrf.mxu0
    %12521 = vmatprep.mubr.f32.mxu0 0.0
    %12522 = vmatmul.mubr.f32.gmra.mxu0 %v12246
    %v12523 = vpop.f32.mrf.mxu0
    %v12524 = vadd.f32 0.0, %v12523
    %v12525 = vpop.f32.mrf.mxu0
    %12526 = vmatprep.mubr.f32.mxu0 0.0
    %12527 = vmatmul.mubr.f32.gmra.mxu0 %v12249
    %v12528 = vpop.f32.mrf.mxu0
    %v12529 = vadd.f32 0.0, %v12528
    %v12530 = vpop.f32.mrf.mxu0
    %12531 = vmatprep.mubr.f32.mxu0 0.0
    %12532 = vmatmul.mubr.f32.gmra.mxu0 %v12252
    %v12533 = vpop.f32.mrf.mxu0
    %v12534 = vadd.f32 0.0, %v12533
    %v12535 = vpop.f32.mrf.mxu0
    %12536 = vmatprep.mubr.f32.mxu0 0.0
    %12537 = vmatmul.mubr.f32.gmra.mxu0 %v12255
    %v12538 = vpop.f32.mrf.mxu0
    %v12539 = vadd.f32 0.0, %v12538
    %v12540 = vpop.f32.mrf.mxu0
    %12541 = vmatprep.mubr.f32.mxu0 0.0
    %12542 = vmatmul.mubr.f32.gmra.mxu0 %v12258
    %v12543 = vpop.f32.mrf.mxu0
    %v12544 = vadd.f32 0.0, %v12543
    %v12545 = vpop.f32.mrf.mxu0
    %12546 = vmatprep.mubr.f32.mxu0 0.0
    %12547 = vmatmul.mubr.f32.gmra.mxu0 %v12261
    %v12548 = vpop.f32.mrf.mxu0
    %v12549 = vadd.f32 0.0, %v12548
    %v12550 = vpop.f32.mrf.mxu0
    %12551 = vmatprep.mubr.f32.mxu0 0.0
    %12552 = vmatmul.mubr.f32.gmra.mxu0 %v12264
    %v12553 = vpop.f32.mrf.mxu0
    %v12554 = vadd.f32 0.0, %v12553
    %v12555 = vpop.f32.mrf.mxu0
    %12556 = vmatprep.mubr.f32.mxu0 0.0
    %12557 = vmatmul.mubr.f32.gmra.mxu0 %v12267
    %v12558 = vpop.f32.mrf.mxu0
    %v12559 = vadd.f32 0.0, %v12558
    %v12560 = vpop.f32.mrf.mxu0
    %12561 = vmatprep.mubr.f32.mxu0 0.0
    %12562 = vmatmul.mubr.f32.gmra.mxu0 %v12270
    %v12563 = vpop.f32.mrf.mxu0
    %v12564 = vadd.f32 0.0, %v12563
    %v12565 = vpop.f32.mrf.mxu0
    %12566 = vmatprep.mubr.f32.mxu0 0.0
    %12567 = vmatmul.mubr.f32.gmra.mxu0 %v12273
    %v12568 = vpop.f32.mrf.mxu0
    %v12569 = vadd.f32 0.0, %v12568
    %v12570 = vpop.f32.mrf.mxu0
    %12571 = vmatprep.mubr.f32.mxu0 0.0
    %12572 = vmatmul.mubr.f32.gmra.mxu0 %v12276
    %v12573 = vpop.f32.mrf.mxu0
    %v12574 = vadd.f32 0.0, %v12573
    %v12575 = vpop.f32.mrf.mxu0
    %12576 = vmatprep.mubr.f32.mxu0 0.0
    %12577 = vmatmul.mubr.f32.gmra.mxu0 %v12279
    %v12578 = vpop.f32.mrf.mxu0
    %v12579 = vadd.f32 0.0, %v12578
    %v12580 = vpop.f32.mrf.mxu0
    %12581 = vmatprep.mubr.f32.mxu0 0.0
    %12582 = vmatmul.mubr.f32.gmra.mxu0 %v12282
    %v12583 = vpop.f32.mrf.mxu0
    %v12584 = vadd.f32 0.0, %v12583
    %v12585 = vpop.f32.mrf.mxu0
    %12586 = vmatprep.mubr.f32.mxu0 0.0
    %12587 = vmatmul.mubr.f32.gmra.mxu0 %v12285
    %v12588 = vpop.f32.mrf.mxu0
    %v12589 = vadd.f32 0.0, %v12588
    %v12590 = vpop.f32.mrf.mxu0
    %12591 = vmatprep.mubr.f32.mxu0 0.0
    %12592 = vmatmul.mubr.f32.gmra.mxu0 %v12288
    %v12593 = vpop.f32.mrf.mxu0
    %v12594 = vadd.f32 0.0, %v12593
    %v12595 = vpop.f32.mrf.mxu0
    %12596 = vmatprep.mubr.f32.mxu0 0.0
    %12597 = vmatmul.mubr.f32.gmra.mxu0 %v12291
    %v12598 = vpop.f32.mrf.mxu0
    %v12599 = vadd.f32 0.0, %v12598
    %v12600 = vpop.f32.mrf.mxu0
    %12601 = vmatprep.mubr.f32.mxu0 0.0
    %12602 = vmatmul.mubr.f32.gmra.mxu0 %v12294
    %v12603 = vpop.f32.mrf.mxu0
    %v12604 = vadd.f32 0.0, %v12603
    %v12605 = vpop.f32.mrf.mxu0
    %12606 = vmatprep.mubr.f32.mxu0 0.0
    %12607 = vmatmul.mubr.f32.gmra.mxu0 %v12297
    %v12608 = vpop.f32.mrf.mxu0
    %v12609 = vadd.f32 0.0, %v12608
    %v12610 = vpop.f32.mrf.mxu0
    %12611 = vmatprep.mubr.f32.mxu0 0.0
    %12612 = vmatmul.mubr.f32.gmra.mxu0 %v12300
    %v12613 = vpop.f32.mrf.mxu0
    %v12614 = vadd.f32 0.0, %v12613
    %v12615 = vpop.f32.mrf.mxu0
    %12616 = vmatprep.mubr.f32.mxu0 0.0
    %12617 = vmatmul.mubr.f32.gmra.mxu0 %v12303
    %v12618 = vpop.f32.mrf.mxu0
    %v12619 = vadd.f32 0.0, %v12618
    %v12620 = vpop.f32.mrf.mxu0
    %12621 = vmatprep.mubr.f32.mxu0 0.0
    %12622 = vmatmul.mubr.f32.gmra.mxu0 %v12306
    %v12623 = vpop.f32.mrf.mxu0
    %v12624 = vadd.f32 0.0, %v12623
    %v12625 = vpop.f32.mrf.mxu0
    %12626 = vmatprep.mubr.f32.mxu0 0.0
    %12627 = vmatmul.mubr.f32.gmra.mxu0 %v12309
    %v12628 = vpop.f32.mrf.mxu0
    %v12629 = vadd.f32 0.0, %v12628
    %v12630 = vpop.f32.mrf.mxu0
    %12631 = vmatprep.mubr.f32.mxu0 0.0
    %12632 = vmatmul.mubr.f32.gmra.mxu0 %v12312
    %v12633 = vpop.f32.mrf.mxu0
    %v12634 = vadd.f32 0.0, %v12633
    %v12635 = vpop.f32.mrf.mxu0
    %12636 = vmatprep.mubr.f32.mxu0 0.0
    %12637 = vmatmul.mubr.f32.gmra.mxu0 %v12315
    %v12638 = vpop.f32.mrf.mxu0
    %v12639 = vadd.f32 0.0, %v12638
    %v12640 = vpop.f32.mrf.mxu0
    %12641 = vmatprep.mubr.f32.mxu0 0.0
    %12642 = vmatmul.mubr.f32.gmra.mxu0 %v12318
    %v12643 = vpop.f32.mrf.mxu0
    %v12644 = vadd.f32 0.0, %v12643
    %v12645 = vpop.f32.mrf.mxu0
    %12646 = vmatprep.mubr.f32.mxu0 0.0
    %12647 = vmatmul.mubr.f32.gmra.mxu0 %v12321
    %v12648 = vpop.f32.mrf.mxu0
    %v12649 = vadd.f32 0.0, %v12648
    %v12650 = vpop.f32.mrf.mxu0
    %12651 = vmatprep.mubr.f32.mxu0 0.0
    %12652 = vmatmul.mubr.f32.gmra.mxu0 %v12324
    %v12653 = vpop.f32.mrf.mxu0
    %v12654 = vadd.f32 0.0, %v12653
    %v12655 = vpop.f32.mrf.mxu0
    %12656 = vmatprep.mubr.f32.mxu0 0.0
    %12657 = vmatmul.mubr.f32.gmra.mxu0 %v12327
    %v12658 = vpop.f32.mrf.mxu0
    %v12659 = vadd.f32 0.0, %v12658
    %v12660 = vpop.f32.mrf.mxu0
    %12661 = vmatprep.mubr.f32.mxu0 0.0
    %12662 = vmatmul.mubr.f32.gmra.mxu0 %v12330
    %v12663 = vpop.f32.mrf.mxu0
    %v12664 = vadd.f32 0.0, %v12663
    %v12665 = vpop.f32.mrf.mxu0
    %12666 = vmatprep.mubr.f32.mxu0 0.0
    %12667 = vmatmul.mubr.f32.gmra.mxu0 %v12333
    %v12668 = vpop.f32.mrf.mxu0
    %v12669 = vadd.f32 0.0, %v12668
    %v12670 = vpop.f32.mrf.mxu0
    %12671 = vmatprep.mubr.f32.mxu0 0.0
    %12672 = vmatmul.mubr.f32.gmra.mxu0 %v12336
    %v12673 = vpop.f32.mrf.mxu0
    %v12674 = vadd.f32 0.0, %v12673
    %v12675 = vpop.f32.mrf.mxu0
    %12676 = vmatprep.mubr.f32.mxu0 0.0
    %12677 = vmatmul.mubr.f32.gmra.mxu0 %v12339
    %v12678 = vpop.f32.mrf.mxu0
    %v12679 = vadd.f32 0.0, %v12678
    %v12680 = vpop.f32.mrf.mxu0
    %12681 = vmatprep.mubr.f32.mxu0 0.0
    %12682 = vmatmul.mubr.f32.gmra.mxu0 %v12342
    %v12683 = vpop.f32.mrf.mxu0
    %v12684 = vadd.f32 0.0, %v12683
    %v12685 = vpop.f32.mrf.mxu0
    %12686 = vmatprep.mubr.f32.mxu0 0.0
    %12687 = vmatmul.mubr.f32.gmra.mxu0 %v12345
    %v12688 = vpop.f32.mrf.mxu0
    %v12689 = vadd.f32 0.0, %v12688
    %v12690 = vpop.f32.mrf.mxu0
    %12691 = vmatprep.mubr.f32.mxu0 0.0
    %12692 = vmatmul.mubr.f32.gmra.mxu0 %v12348
    %v12693 = vpop.f32.mrf.mxu0
    %v12694 = vadd.f32 0.0, %v12693
    %v12695 = vpop.f32.mrf.mxu0
    %12696 = vmatprep.mubr.f32.mxu0 0.0
    %12697 = vmatmul.mubr.f32.gmra.mxu0 %v12351
    %v12698 = vpop.f32.mrf.mxu0
    %v12699 = vadd.f32 0.0, %v12698
    %v12700 = vpop.f32.mrf.mxu0
    %12701 = vmatprep.mubr.f32.mxu0 0.0
    %12702 = vmatmul.mubr.f32.gmra.mxu0 %v12354
    %v12703 = vpop.f32.mrf.mxu0
    %v12704 = vadd.f32 0.0, %v12703
    %v12705 = vpop.f32.mrf.mxu0
    %12706 = vmatprep.mubr.f32.mxu0 0.0
    %12707 = vmatmul.mubr.f32.gmra.mxu0 %v12357
    %v12708 = vpop.f32.mrf.mxu0
    %v12709 = vadd.f32 0.0, %v12708
    %v12710 = vpop.f32.mrf.mxu0
    %12711 = vmatprep.mubr.f32.mxu0 0.0
    %12712 = vmatmul.mubr.f32.gmra.mxu0 %v12360
    %v12713 = vpop.f32.mrf.mxu0
    %v12714 = vadd.f32 0.0, %v12713
    %v12715 = vpop.f32.mrf.mxu0
    %12716 = vmatprep.mubr.f32.mxu0 0.0
    %12717 = vmatmul.mubr.f32.gmra.mxu0 %v12363
    %v12718 = vpop.f32.mrf.mxu0
    %v12719 = vadd.f32 0.0, %v12718
    %v12720 = vpop.f32.mrf.mxu0
    %12721 = vmatprep.mubr.f32.mxu0 0.0
    %12722 = vmatmul.mubr.f32.gmra.mxu0 %v12366
    %v12723 = vpop.f32.mrf.mxu0
    %v12724 = vadd.f32 0.0, %v12723
    %v12725 = vpop.f32.mrf.mxu0
    %12726 = vmatprep.mubr.f32.mxu0 0.0
    %12727 = vmatmul.mubr.f32.gmra.mxu0 %v12369
    %v12728 = vpop.f32.mrf.mxu0
    %v12729 = vadd.f32 0.0, %v12728
    %v12730 = vpop.f32.mrf.mxu0
    %12731 = vmatprep.mubr.f32.mxu0 0.0
    %12732 = vmatmul.mubr.f32.gmra.mxu0 %v12372
    %v12733 = vpop.f32.mrf.mxu0
    %v12734 = vadd.f32 0.0, %v12733
    %v12735 = vpop.f32.mrf.mxu0
    %12736 = vmatprep.mubr.f32.mxu0 0.0
    %12737 = vmatmul.mubr.f32.gmra.mxu0 %v12375
    %v12738 = vpop.f32.mrf.mxu0
    %v12739 = vadd.f32 0.0, %v12738
    %v12740 = vpop.f32.mrf.mxu0
    %12741 = vmatprep.mubr.f32.mxu0 0.0
    %12742 = vmatmul.mubr.f32.gmra.mxu0 %v12378
    %v12743 = vpop.f32.mrf.mxu0
    %v12744 = vadd.f32 0.0, %v12743
    %v12745 = vpop.f32.mrf.mxu0
    %12746 = vmatprep.mubr.f32.mxu0 0.0
    %12747 = vmatmul.mubr.f32.gmra.mxu0 %v12381
    %v12748 = vpop.f32.mrf.mxu0
    %v12749 = vadd.f32 0.0, %v12748
    %v12750 = vpop.f32.mrf.mxu0
    %12751 = vmatprep.mubr.f32.mxu0 0.0
    %12752 = vmatmul.mubr.f32.gmra.mxu0 %v12384
    %v12753 = vpop.f32.mrf.mxu0
    %v12754 = vadd.f32 0.0, %v12753
    %v12755 = vpop.f32.mrf.mxu0
    %12756 = vmatprep.mubr.f32.mxu0 0.0
    %12757 = vmatmul.mubr.f32.gmra.mxu0 %v12387
    %v12758 = vpop.f32.mrf.mxu0
    %v12759 = vadd.f32 0.0, %v12758
    %v12760 = vpop.f32.mrf.mxu0
    %12761 = vmatprep.mubr.f32.mxu0 0.0
    %12762 = vmatmul.mubr.f32.gmra.mxu0 %v12390
    %v12763 = vpop.f32.mrf.mxu0
    %v12764 = vadd.f32 0.0, %v12763
    %v12765 = vpop.f32.mrf.mxu0
    %12766 = vmatprep.mubr.f32.mxu0 0.0
    %12767 = vmatmul.mubr.f32.gmra.mxu0 %v12393
    %v12768 = vpop.f32.mrf.mxu0
    %v12769 = vadd.f32 0.0, %v12768
    %v12770 = vpop.f32.mrf.mxu0
    %12771 = vmatprep.mubr.f32.mxu0 0.0
    %12772 = vmatmul.mubr.f32.gmra.mxu0 %v12396
    %v12773 = vpop.f32.mrf.mxu0
    %v12774 = vadd.f32 0.0, %v12773
    %v12775 = vpop.f32.mrf.mxu0
    %12776 = vmatprep.mubr.f32.mxu0 0.0
    %12777 = vmatmul.mubr.f32.gmra.mxu0 %v12399
    %v12778 = vpop.f32.mrf.mxu0
    %v12779 = vadd.f32 0.0, %v12778
    %v12780 = vpop.f32.mrf.mxu0
    %12781 = vmatprep.mubr.f32.mxu0 0.0
    %12782 = vmatmul.mubr.f32.gmra.mxu0 %v12402
    %v12783 = vpop.f32.mrf.mxu0
    %v12784 = vadd.f32 0.0, %v12783
    %v12785 = vpop.f32.mrf.mxu0
    %12786 = vmatprep.mubr.f32.mxu0 0.0
    %12787 = vmatmul.mubr.f32.gmra.mxu0 %v12405
    %v12788 = vpop.f32.mrf.mxu0
    %v12789 = vadd.f32 0.0, %v12788
    %v12790 = vpop.f32.mrf.mxu0
    %12791 = vdwg.mxu0
    %v12792 = vadd.f32 %v12082, %v12474
    %v12793 = vadd.f32 %v12083, %v12479
    %v12794 = vadd.f32 %v12084, %v12484
    %v12795 = vadd.f32 %v12085, %v12489
    %v12796 = vadd.f32 %v12086, %v12494
    %v12797 = vadd.f32 %v12087, %v12499
    %v12798 = vadd.f32 %v12088, %v12504
    %v12799 = vadd.f32 %v12089, %v12509
    %v12800 = vadd.f32 %v12090, %v12514
    %v12801 = vadd.f32 %v12091, %v12519
    %v12802 = vadd.f32 %v12092, %v12524
    %v12803 = vadd.f32 %v12093, %v12529
    %v12804 = vadd.f32 %v12094, %v12534
    %v12805 = vadd.f32 %v12095, %v12539
    %v12806 = vadd.f32 %v12096, %v12544
    %v12807 = vadd.f32 %v12097, %v12549
    %v12808 = vadd.f32 %v12098, %v12554
    %v12809 = vadd.f32 %v12099, %v12559
    %v12810 = vadd.f32 %v12100, %v12564
    %v12811 = vadd.f32 %v12101, %v12569
    %v12812 = vadd.f32 %v12102, %v12574
    %v12813 = vadd.f32 %v12103, %v12579
    %v12814 = vadd.f32 %v12104, %v12584
    %v12815 = vadd.f32 %v12105, %v12589
    %v12816 = vadd.f32 %v12106, %v12594
    %v12817 = vadd.f32 %v12107, %v12599
    %v12818 = vadd.f32 %v12108, %v12604
    %v12819 = vadd.f32 %v12109, %v12609
    %v12820 = vadd.f32 %v12110, %v12614
    %v12821 = vadd.f32 %v12111, %v12619
    %v12822 = vadd.f32 %v12112, %v12624
    %v12823 = vadd.f32 %v12113, %v12629
    %v12824 = vadd.f32 %v12114, %v12634
    %v12825 = vadd.f32 %v12115, %v12639
    %v12826 = vadd.f32 %v12116, %v12644
    %v12827 = vadd.f32 %v12117, %v12649
    %v12828 = vadd.f32 %v12118, %v12654
    %v12829 = vadd.f32 %v12119, %v12659
    %v12830 = vadd.f32 %v12120, %v12664
    %v12831 = vadd.f32 %v12121, %v12669
    %v12832 = vadd.f32 %v12122, %v12674
    %v12833 = vadd.f32 %v12123, %v12679
    %v12834 = vadd.f32 %v12124, %v12684
    %v12835 = vadd.f32 %v12125, %v12689
    %v12836 = vadd.f32 %v12126, %v12694
    %v12837 = vadd.f32 %v12127, %v12699
    %v12838 = vadd.f32 %v12128, %v12704
    %v12839 = vadd.f32 %v12129, %v12709
    %v12840 = vadd.f32 %v12130, %v12714
    %v12841 = vadd.f32 %v12131, %v12719
    %v12842 = vadd.f32 %v12132, %v12724
    %v12843 = vadd.f32 %v12133, %v12729
    %v12844 = vadd.f32 %v12134, %v12734
    %v12845 = vadd.f32 %v12135, %v12739
    %v12846 = vadd.f32 %v12136, %v12744
    %v12847 = vadd.f32 %v12137, %v12749
    %v12848 = vadd.f32 %v12138, %v12754
    %v12849 = vadd.f32 %v12139, %v12759
    %v12850 = vadd.f32 %v12140, %v12764
    %v12851 = vadd.f32 %v12141, %v12769
    %v12852 = vadd.f32 %v12142, %v12774
    %v12853 = vadd.f32 %v12143, %v12779
    %v12854 = vadd.f32 %v12144, %v12784
    %v12855 = vadd.f32 %v12145, %v12789
    %v12856 = vld [vmem:[%s4] sm:$0x1]
    %v12858 = vlaneseq
    %v12859 = vshrl.u32 %v12858, 7
    %v12860 = vsub.s32 0, %v12859
    %v12861 = vrot.slane %v12856, %v12860
    %v12863 = vadd.f32 %v12792, %v12861
    %v12864 = vadd.f32 %v12793, %v12861
    %v12865 = vadd.f32 %v12794, %v12861
    %v12866 = vadd.f32 %v12795, %v12861
    %v12867 = vadd.f32 %v12796, %v12861
    %v12868 = vadd.f32 %v12797, %v12861
    %v12869 = vadd.f32 %v12798, %v12861
    %v12870 = vadd.f32 %v12799, %v12861
    %v12871 = vadd.f32 %v12800, %v12861
    %v12872 = vadd.f32 %v12801, %v12861
    %v12873 = vadd.f32 %v12802, %v12861
    %v12874 = vadd.f32 %v12803, %v12861
    %v12875 = vadd.f32 %v12804, %v12861
    %v12876 = vadd.f32 %v12805, %v12861
    %v12877 = vadd.f32 %v12806, %v12861
    %v12878 = vadd.f32 %v12807, %v12861
    %v12879 = vadd.f32 %v12808, %v12861
    %v12880 = vadd.f32 %v12809, %v12861
    %v12881 = vadd.f32 %v12810, %v12861
    %v12882 = vadd.f32 %v12811, %v12861
    %v12883 = vadd.f32 %v12812, %v12861
    %v12884 = vadd.f32 %v12813, %v12861
    %v12885 = vadd.f32 %v12814, %v12861
    %v12886 = vadd.f32 %v12815, %v12861
    %v12887 = vadd.f32 %v12816, %v12861
    %v12888 = vadd.f32 %v12817, %v12861
    %v12889 = vadd.f32 %v12818, %v12861
    %v12890 = vadd.f32 %v12819, %v12861
    %v12891 = vadd.f32 %v12820, %v12861
    %v12892 = vadd.f32 %v12821, %v12861
    %v12893 = vadd.f32 %v12822, %v12861
    %v12894 = vadd.f32 %v12823, %v12861
    %v12895 = vadd.f32 %v12824, %v12861
    %v12896 = vadd.f32 %v12825, %v12861
    %v12897 = vadd.f32 %v12826, %v12861
    %v12898 = vadd.f32 %v12827, %v12861
    %v12899 = vadd.f32 %v12828, %v12861
    %v12900 = vadd.f32 %v12829, %v12861
    %v12901 = vadd.f32 %v12830, %v12861
    %v12902 = vadd.f32 %v12831, %v12861
    %v12903 = vadd.f32 %v12832, %v12861
    %v12904 = vadd.f32 %v12833, %v12861
    %v12905 = vadd.f32 %v12834, %v12861
    %v12906 = vadd.f32 %v12835, %v12861
    %v12907 = vadd.f32 %v12836, %v12861
    %v12908 = vadd.f32 %v12837, %v12861
    %v12909 = vadd.f32 %v12838, %v12861
    %v12910 = vadd.f32 %v12839, %v12861
    %v12911 = vadd.f32 %v12840, %v12861
    %v12912 = vadd.f32 %v12841, %v12861
    %v12913 = vadd.f32 %v12842, %v12861
    %v12914 = vadd.f32 %v12843, %v12861
    %v12915 = vadd.f32 %v12844, %v12861
    %v12916 = vadd.f32 %v12845, %v12861
    %v12917 = vadd.f32 %v12846, %v12861
    %v12918 = vadd.f32 %v12847, %v12861
    %v12919 = vadd.f32 %v12848, %v12861
    %v12920 = vadd.f32 %v12849, %v12861
    %v12921 = vadd.f32 %v12850, %v12861
    %v12922 = vadd.f32 %v12851, %v12861
    %v12923 = vadd.f32 %v12852, %v12861
    %v12924 = vadd.f32 %v12853, %v12861
    %v12925 = vadd.f32 %v12854, %v12861
    %v12926 = vadd.f32 %v12855, %v12861
    %v12927 = vld [vmem:[%s2023 + $0x1] sm:$0xff]
    %v12928 = vld [vmem:[%s2023 + $0x9] sm:$0xff]
    %v12929 = vld [vmem:[%s2023 + $0x19] sm:$0xff]
    %v12930 = vld [vmem:[%s2023 + $0x21] sm:$0xff]
    %v12931 = vld [vmem:[%s2023 + $0x31] sm:$0xff]
    %v12932 = vld [vmem:[%s2023 + $0x39] sm:$0xff]
    %v12933 = vld [vmem:[%s2023 + $0x49] sm:$0xff]
    %v12934 = vld [vmem:[%s2023 + $0x51] sm:$0xff]
    %v12935 = vld [vmem:[%s2023 + $0x61] sm:$0xff]
    %v12936 = vld [vmem:[%s2023 + $0x69] sm:$0xff]
    %v12937 = vld [vmem:[%s2023 + $0x79] sm:$0xff]
    %v12938 = vld [vmem:[%s2023 + $0x81] sm:$0xff]
    %v12939 = vld [vmem:[%s2023 + $0x91] sm:$0xff]
    %v12940 = vld [vmem:[%s2023 + $0x99] sm:$0xff]
    %v12941 = vld [vmem:[%s2023 + $0xa9] sm:$0xff]
    %v12942 = vld [vmem:[%s2023 + $0xb1] sm:$0xff]
    %v12943 = vld [vmem:[%s2023 + $0xc1] sm:$0xff]
    %v12944 = vld [vmem:[%s2023 + $0xc9] sm:$0xff]
    %v12945 = vld [vmem:[%s2023 + $0xd9] sm:$0xff]
    %v12946 = vld [vmem:[%s2023 + $0xe1] sm:$0xff]
    %v12947 = vld [vmem:[%s2023 + $0xf1] sm:$0xff]
    %v12948 = vld [vmem:[%s2023 + $0xf9] sm:$0xff]
    %v12949 = vld [vmem:[%s2023 + $0x109] sm:$0xff]
    %v12950 = vld [vmem:[%s2023 + $0x111] sm:$0xff]
    %v12951 = vld [vmem:[%s2023 + $0x121] sm:$0xff]
    %v12952 = vld [vmem:[%s2023 + $0x129] sm:$0xff]
    %v12953 = vld [vmem:[%s2023 + $0x139] sm:$0xff]
    %v12954 = vld [vmem:[%s2023 + $0x141] sm:$0xff]
    %v12955 = vld [vmem:[%s2023 + $0x151] sm:$0xff]
    %v12956 = vld [vmem:[%s2023 + $0x159] sm:$0xff]
    %v12957 = vld [vmem:[%s2023 + $0x169] sm:$0xff]
    %v12958 = vld [vmem:[%s2023 + $0x171] sm:$0xff]
    %v12959 = vld [vmem:[%s2023 + $0x1b1] sm:$0xff]
    %v12960 = vld [vmem:[%s2023 + $0x1b9] sm:$0xff]
    %v12961 = vld [vmem:[%s2023 + $0x1c9] sm:$0xff]
    %v12962 = vld [vmem:[%s2023 + $0x1d1] sm:$0xff]
    %v12963 = vld [vmem:[%s2023 + $0x1e1] sm:$0xff]
    %v12964 = vld [vmem:[%s2023 + $0x1e9] sm:$0xff]
    %v12965 = vld [vmem:[%s2023 + $0x1f9] sm:$0xff]
    %v12966 = vld [vmem:[%s2023 + $0x201] sm:$0xff]
    %v12967 = vld [vmem:[%s2023 + $0x211] sm:$0xff]
    %v12968 = vld [vmem:[%s2023 + $0x219] sm:$0xff]
    %v12969 = vld [vmem:[%s2023 + $0x229] sm:$0xff]
    %v12970 = vld [vmem:[%s2023 + $0x231] sm:$0xff]
    %v12971 = vld [vmem:[%s2023 + $0x241] sm:$0xff]
    %v12972 = vld [vmem:[%s2023 + $0x249] sm:$0xff]
    %v12973 = vld [vmem:[%s2023 + $0x259] sm:$0xff]
    %v12974 = vld [vmem:[%s2023 + $0x261] sm:$0xff]
    %v12975 = vld [vmem:[%s2023 + $0x271] sm:$0xff]
    %v12976 = vld [vmem:[%s2023 + $0x279] sm:$0xff]
    %v12977 = vld [vmem:[%s2023 + $0x289] sm:$0xff]
    %v12978 = vld [vmem:[%s2023 + $0x291] sm:$0xff]
    %v12979 = vld [vmem:[%s2023 + $0x2a1] sm:$0xff]
    %v12980 = vld [vmem:[%s2023 + $0x2a9] sm:$0xff]
    %v12981 = vld [vmem:[%s2023 + $0x2b9] sm:$0xff]
    %v12982 = vld [vmem:[%s2023 + $0x2c1] sm:$0xff]
    %v12983 = vld [vmem:[%s2023 + $0x2d1] sm:$0xff]
    %v12984 = vld [vmem:[%s2023 + $0x2d9] sm:$0xff]
    %v12985 = vld [vmem:[%s2023 + $0x2e9] sm:$0xff]
    %v12986 = vld [vmem:[%s2023 + $0x2f1] sm:$0xff]
    %v12987 = vld [vmem:[%s2023 + $0x301] sm:$0xff]
    %v12988 = vld [vmem:[%s2023 + $0x309] sm:$0xff]
    %v12989 = vld [vmem:[%s2023 + $0x319] sm:$0xff]
    %v12990 = vld [vmem:[%s2023 + $0x321] sm:$0xff]
    %v12991 = vadd.f32 %v12863, %v12927
    %v12992 = vadd.f32 %v12864, %v12928
    %v12993 = vadd.f32 %v12865, %v12929
    %v12994 = vadd.f32 %v12866, %v12930
    %v12995 = vadd.f32 %v12867, %v12931
    %v12996 = vadd.f32 %v12868, %v12932
    %v12997 = vadd.f32 %v12869, %v12933
    %v12998 = vadd.f32 %v12870, %v12934
    %v12999 = vadd.f32 %v12871, %v12935
    %v13000 = vadd.f32 %v12872, %v12936
    %v13001 = vadd.f32 %v12873, %v12937
    %v13002 = vadd.f32 %v12874, %v12938
    %v13003 = vadd.f32 %v12875, %v12939
    %v13004 = vadd.f32 %v12876, %v12940
    %v13005 = vadd.f32 %v12877, %v12941
    %v13006 = vadd.f32 %v12878, %v12942
    %v13007 = vadd.f32 %v12879, %v12943
    %v13008 = vadd.f32 %v12880, %v12944
    %v13009 = vadd.f32 %v12881, %v12945
    %v13010 = vadd.f32 %v12882, %v12946
    %v13011 = vadd.f32 %v12883, %v12947
    %v13012 = vadd.f32 %v12884, %v12948
    %v13013 = vadd.f32 %v12885, %v12949
    %v13014 = vadd.f32 %v12886, %v12950
    %v13015 = vadd.f32 %v12887, %v12951
    %v13016 = vadd.f32 %v12888, %v12952
    %v13017 = vadd.f32 %v12889, %v12953
    %v13018 = vadd.f32 %v12890, %v12954
    %v13019 = vadd.f32 %v12891, %v12955
    %v13020 = vadd.f32 %v12892, %v12956
    %v13021 = vadd.f32 %v12893, %v12957
    %v13022 = vadd.f32 %v12894, %v12958
    %v13023 = vadd.f32 %v12895, %v12959
    %v13024 = vadd.f32 %v12896, %v12960
    %v13025 = vadd.f32 %v12897, %v12961
    %v13026 = vadd.f32 %v12898, %v12962
    %v13027 = vadd.f32 %v12899, %v12963
    %v13028 = vadd.f32 %v12900, %v12964
    %v13029 = vadd.f32 %v12901, %v12965
    %v13030 = vadd.f32 %v12902, %v12966
    %v13031 = vadd.f32 %v12903, %v12967
    %v13032 = vadd.f32 %v12904, %v12968
    %v13033 = vadd.f32 %v12905, %v12969
    %v13034 = vadd.f32 %v12906, %v12970
    %v13035 = vadd.f32 %v12907, %v12971
    %v13036 = vadd.f32 %v12908, %v12972
    %v13037 = vadd.f32 %v12909, %v12973
    %v13038 = vadd.f32 %v12910, %v12974
    %v13039 = vadd.f32 %v12911, %v12975
    %v13040 = vadd.f32 %v12912, %v12976
    %v13041 = vadd.f32 %v12913, %v12977
    %v13042 = vadd.f32 %v12914, %v12978
    %v13043 = vadd.f32 %v12915, %v12979
    %v13044 = vadd.f32 %v12916, %v12980
    %v13045 = vadd.f32 %v12917, %v12981
    %v13046 = vadd.f32 %v12918, %v12982
    %v13047 = vadd.f32 %v12919, %v12983
    %v13048 = vadd.f32 %v12920, %v12984
    %v13049 = vadd.f32 %v12921, %v12985
    %v13050 = vadd.f32 %v12922, %v12986
    %v13051 = vadd.f32 %v12923, %v12987
    %v13052 = vadd.f32 %v12924, %v12988
    %v13053 = vadd.f32 %v12925, %v12989
    %v13054 = vadd.f32 %v12926, %v12990
    %v13055 = vmax.f32 %v12991, 0.0
    %v13056 = vmax.f32 %v12992, 0.0
    %v13057 = vmax.f32 %v12993, 0.0
    %v13058 = vmax.f32 %v12994, 0.0
    %v13059 = vmax.f32 %v12995, 0.0
    %v13060 = vmax.f32 %v12996, 0.0
    %v13061 = vmax.f32 %v12997, 0.0
    %v13062 = vmax.f32 %v12998, 0.0
    %v13063 = vmax.f32 %v12999, 0.0
    %v13064 = vmax.f32 %v13000, 0.0
    %v13065 = vmax.f32 %v13001, 0.0
    %v13066 = vmax.f32 %v13002, 0.0
    %v13067 = vmax.f32 %v13003, 0.0
    %v13068 = vmax.f32 %v13004, 0.0
    %v13069 = vmax.f32 %v13005, 0.0
    %v13070 = vmax.f32 %v13006, 0.0
    %v13071 = vmax.f32 %v13007, 0.0
    %v13072 = vmax.f32 %v13008, 0.0
    %v13073 = vmax.f32 %v13009, 0.0
    %v13074 = vmax.f32 %v13010, 0.0
    %v13075 = vmax.f32 %v13011, 0.0
    %v13076 = vmax.f32 %v13012, 0.0
    %v13077 = vmax.f32 %v13013, 0.0
    %v13078 = vmax.f32 %v13014, 0.0
    %v13079 = vmax.f32 %v13015, 0.0
    %v13080 = vmax.f32 %v13016, 0.0
    %v13081 = vmax.f32 %v13017, 0.0
    %v13082 = vmax.f32 %v13018, 0.0
    %v13083 = vmax.f32 %v13019, 0.0
    %v13084 = vmax.f32 %v13020, 0.0
    %v13085 = vmax.f32 %v13021, 0.0
    %v13086 = vmax.f32 %v13022, 0.0
    %v13087 = vmax.f32 %v13023, 0.0
    %v13088 = vmax.f32 %v13024, 0.0
    %v13089 = vmax.f32 %v13025, 0.0
    %v13090 = vmax.f32 %v13026, 0.0
    %v13091 = vmax.f32 %v13027, 0.0
    %v13092 = vmax.f32 %v13028, 0.0
    %v13093 = vmax.f32 %v13029, 0.0
    %v13094 = vmax.f32 %v13030, 0.0
    %v13095 = vmax.f32 %v13031, 0.0
    %v13096 = vmax.f32 %v13032, 0.0
    %v13097 = vmax.f32 %v13033, 0.0
    %v13098 = vmax.f32 %v13034, 0.0
    %v13099 = vmax.f32 %v13035, 0.0
    %v13100 = vmax.f32 %v13036, 0.0
    %v13101 = vmax.f32 %v13037, 0.0
    %v13102 = vmax.f32 %v13038, 0.0
    %v13103 = vmax.f32 %v13039, 0.0
    %v13104 = vmax.f32 %v13040, 0.0
    %v13105 = vmax.f32 %v13041, 0.0
    %v13106 = vmax.f32 %v13042, 0.0
    %v13107 = vmax.f32 %v13043, 0.0
    %v13108 = vmax.f32 %v13044, 0.0
    %v13109 = vmax.f32 %v13045, 0.0
    %v13110 = vmax.f32 %v13046, 0.0
    %v13111 = vmax.f32 %v13047, 0.0
    %v13112 = vmax.f32 %v13048, 0.0
    %v13113 = vmax.f32 %v13049, 0.0
    %v13114 = vmax.f32 %v13050, 0.0
    %v13115 = vmax.f32 %v13051, 0.0
    %v13116 = vmax.f32 %v13052, 0.0
    %v13117 = vmax.f32 %v13053, 0.0
    %v13118 = vmax.f32 %v13054, 0.0
    %13119 = vst.msk [vmem:[#allocation3] sm:$0xff] %vm158, %v13055
    %13120 = vst.msk [vmem:[#allocation3 + $0x8] sm:$0xff] %vm158, %v13056
    %13121 = vst.msk [vmem:[#allocation3 + $0x10] sm:$0xff] %vm158, %v13057
    %13122 = vst.msk [vmem:[#allocation3 + $0x18] sm:$0xff] %vm158, %v13058
    %13123 = vst.msk [vmem:[#allocation3 + $0x20] sm:$0xff] %vm158, %v13059
    %13124 = vst.msk [vmem:[#allocation3 + $0x28] sm:$0xff] %vm158, %v13060
    %13125 = vst.msk [vmem:[#allocation3 + $0x30] sm:$0xff] %vm158, %v13061
    %13126 = vst.msk [vmem:[#allocation3 + $0x38] sm:$0xff] %vm158, %v13062
    %13127 = vst.msk [vmem:[#allocation3 + $0x40] sm:$0xff] %vm158, %v13063
    %13128 = vst.msk [vmem:[#allocation3 + $0x48] sm:$0xff] %vm158, %v13064
    %13129 = vst.msk [vmem:[#allocation3 + $0x50] sm:$0xff] %vm158, %v13065
    %13130 = vst.msk [vmem:[#allocation3 + $0x58] sm:$0xff] %vm158, %v13066
    %13131 = vst.msk [vmem:[#allocation3 + $0x60] sm:$0xff] %vm158, %v13067
    %13132 = vst.msk [vmem:[#allocation3 + $0x68] sm:$0xff] %vm158, %v13068
    %13133 = vst.msk [vmem:[#allocation3 + $0x70] sm:$0xff] %vm158, %v13069
    %13134 = vst.msk [vmem:[#allocation3 + $0x78] sm:$0xff] %vm158, %v13070
    %13135 = vst.msk [vmem:[#allocation3 + $0x80] sm:$0xff] %vm158, %v13071
    %13136 = vst.msk [vmem:[#allocation3 + $0x88] sm:$0xff] %vm158, %v13072
    %13137 = vst.msk [vmem:[#allocation3 + $0x90] sm:$0xff] %vm158, %v13073
    %13138 = vst.msk [vmem:[#allocation3 + $0x98] sm:$0xff] %vm158, %v13074
    %13139 = vst.msk [vmem:[#allocation3 + $0xa0] sm:$0xff] %vm158, %v13075
    %13140 = vst.msk [vmem:[#allocation3 + $0xa8] sm:$0xff] %vm158, %v13076
    %13141 = vst.msk [vmem:[#allocation3 + $0xb0] sm:$0xff] %vm158, %v13077
    %13142 = vst.msk [vmem:[#allocation3 + $0xb8] sm:$0xff] %vm158, %v13078
    %13143 = vst.msk [vmem:[#allocation3 + $0xc0] sm:$0xff] %vm158, %v13079
    %13144 = vst.msk [vmem:[#allocation3 + $0xc8] sm:$0xff] %vm158, %v13080
    %13145 = vst.msk [vmem:[#allocation3 + $0xd0] sm:$0xff] %vm158, %v13081
    %13146 = vst.msk [vmem:[#allocation3 + $0xd8] sm:$0xff] %vm158, %v13082
    %13147 = vst.msk [vmem:[#allocation3 + $0xe0] sm:$0xff] %vm158, %v13083
    %13148 = vst.msk [vmem:[#allocation3 + $0xe8] sm:$0xff] %vm158, %v13084
    %13149 = vst.msk [vmem:[#allocation3 + $0xf0] sm:$0xff] %vm158, %v13085
    %13150 = vst.msk [vmem:[#allocation3 + $0xf8] sm:$0xff] %vm158, %v13086
    %13151 = vst.msk [vmem:[#allocation3 + $0x100] sm:$0xff] %vm158, %v13087
    %13152 = vst.msk [vmem:[#allocation3 + $0x108] sm:$0xff] %vm158, %v13088
    %13153 = vst.msk [vmem:[#allocation3 + $0x110] sm:$0xff] %vm158, %v13089
    %13154 = vst.msk [vmem:[#allocation3 + $0x118] sm:$0xff] %vm158, %v13090
    %13155 = vst.msk [vmem:[#allocation3 + $0x120] sm:$0xff] %vm158, %v13091
    %13156 = vst.msk [vmem:[#allocation3 + $0x128] sm:$0xff] %vm158, %v13092
    %13157 = vst.msk [vmem:[#allocation3 + $0x130] sm:$0xff] %vm158, %v13093
    %13158 = vst.msk [vmem:[#allocation3 + $0x138] sm:$0xff] %vm158, %v13094
    %13159 = vst.msk [vmem:[#allocation3 + $0x140] sm:$0xff] %vm158, %v13095
    %13160 = vst.msk [vmem:[#allocation3 + $0x148] sm:$0xff] %vm158, %v13096
    %13161 = vst.msk [vmem:[#allocation3 + $0x150] sm:$0xff] %vm158, %v13097
    %13162 = vst.msk [vmem:[#allocation3 + $0x158] sm:$0xff] %vm158, %v13098
    %13163 = vst.msk [vmem:[#allocation3 + $0x160] sm:$0xff] %vm158, %v13099
    %13164 = vst.msk [vmem:[#allocation3 + $0x168] sm:$0xff] %vm158, %v13100
    %13165 = vst.msk [vmem:[#allocation3 + $0x170] sm:$0xff] %vm158, %v13101
    %13166 = vst.msk [vmem:[#allocation3 + $0x178] sm:$0xff] %vm158, %v13102
    %13167 = vst.msk [vmem:[#allocation3 + $0x180] sm:$0xff] %vm158, %v13103
    %13168 = vst.msk [vmem:[#allocation3 + $0x188] sm:$0xff] %vm158, %v13104
    %13169 = vst.msk [vmem:[#allocation3 + $0x190] sm:$0xff] %vm158, %v13105
    %13170 = vst.msk [vmem:[#allocation3 + $0x198] sm:$0xff] %vm158, %v13106
    %13171 = vst.msk [vmem:[#allocation3 + $0x1a0] sm:$0xff] %vm158, %v13107
    %13172 = vst.msk [vmem:[#allocation3 + $0x1a8] sm:$0xff] %vm158, %v13108
    %13173 = vst.msk [vmem:[#allocation3 + $0x1b0] sm:$0xff] %vm158, %v13109
    %13174 = vst.msk [vmem:[#allocation3 + $0x1b8] sm:$0xff] %vm158, %v13110
    %13175 = vst.msk [vmem:[#allocation3 + $0x1c0] sm:$0xff] %vm158, %v13111
    %13176 = vst.msk [vmem:[#allocation3 + $0x1c8] sm:$0xff] %vm158, %v13112
    %13177 = vst.msk [vmem:[#allocation3 + $0x1d0] sm:$0xff] %vm158, %v13113
    %13178 = vst.msk [vmem:[#allocation3 + $0x1d8] sm:$0xff] %vm158, %v13114
    %13179 = vst.msk [vmem:[#allocation3 + $0x1e0] sm:$0xff] %vm158, %v13115
    %13180 = vst.msk [vmem:[#allocation3 + $0x1e8] sm:$0xff] %vm158, %v13116
    %13181 = vst.msk [vmem:[#allocation3 + $0x1f0] sm:$0xff] %vm158, %v13117
    %13182 = vst.msk [vmem:[#allocation3 + $0x1f8] sm:$0xff] %vm158, %v13118
    // Predicated region
    $region22: #{tpu_custom_call.1} parent=1 // pred_check
      _
    $region23: #{tpu_custom_call.1} parent=1 // pred_check_branch
      %13184 = sbr.rel (0) target = $region25
    $region24: #{tpu_custom_call.1} parent=1 // pred_region
      %s13186 = ssub.s32 8192, 8192
      %13187 = vsyncadd [#allocation4], %s13186
      %s13188 = sshll.u32 [#allocation3], 4
      %s13189 = int_to_ptr.vmem [resolvable:$true] %s13188
      %13194 = dma.vmem_to_hbm [thread:$0]  %s13189, 8192, %s5, [#allocation4], 128, 128, 8
    $region25: #{tpu_custom_call.1} parent=1 // pred_fallthru
      _
    // Predicated region
    $region26: #{tpu_custom_call.1} parent=1 // pred_check
      _
    $region27: #{tpu_custom_call.1} parent=1 // pred_check_branch
      %13196 = sbr.rel (0) target = $region29
    $region28: #{tpu_custom_call.1} parent=1 // pred_region
      %13197 = dma.done [#allocation4], 8192
    $region29: #{tpu_custom_call.1} parent=1 // pred_fallthru
      _
    %13198 = vsyncpa [#allocation4], 1

</llo_original>
